<compile_context>
chip_gen: v7x
topology: tpu7x:2x2x1
jax: 0.10.0
libtpu: 0.0.40
codegen_flags: <defaults>
</compile_context>

<pallas_src>
import functools
import math

import jax
import jax.numpy as jnp
from jax import lax
from jax.experimental import pallas as pl
from jax.experimental.pallas import tpu as pltpu


def _mha_kernel(x_ref, wqkv_ref, wp_ref, cos_ref, sin_ref, o_ref, acc_ref, *,
                n_head, n_kv_head, head_dim):
    group = n_head // n_kv_head
    half = head_dim // 2
    dq = n_head * head_dim
    dkv = n_kv_head * head_dim
    qr_w = n_head * half          # lane width of the fused "real" q block
    kr_w = n_kv_head * half       # lane width of the fused "real" k block

    x = x_ref[0]                  # (T, C), bf16
    t = x.shape[0]

    # --- fused QKV projection: one lane-dense MXU matmul, f32 accumulation ---
    qkv = jnp.dot(x, wqkv_ref[...],
                  preferred_element_type=jnp.float32)   # (T, dq + 2*dkv)

    q_r = qkv[:, :qr_w]                                 # (T, H*half), pre-scaled
    q_i = qkv[:, qr_w:dq]
    k_r = qkv[:, dq:dq + kr_w]                          # (T, KV*half)
    k_i = qkv[:, dq + kr_w:dq + dkv]
    v_all = qkv[:, dq + dkv:].astype(jnp.bfloat16)      # (T, KV*hd), natural order

    # --- RoPE in f32 (VPU); cos/sin are pre-tiled per head in the wrapper ---
    cos_q = cos_ref[...]                                # (T, H*half)
    sin_q = sin_ref[...]
    cos_k = cos_q[:, :kr_w]                             # prefix == tile(cos, KV)
    sin_k = sin_q[:, :kr_w]

    # 1/sqrt(head_dim) already folded into Wq on the host, so q_r/q_i arrive
    # pre-scaled; the rotation is linear so scaling commutes with it.
    q_rot_r = (q_r * cos_q - q_i * sin_q).astype(jnp.bfloat16)
    q_rot_i = (q_r * sin_q + q_i * cos_q).astype(jnp.bfloat16)
    k_rot_r = (k_r * cos_k - k_i * sin_k).astype(jnp.bfloat16)
    k_rot_i = (k_r * sin_k + k_i * cos_k).astype(jnp.bfloat16)

    # Additive causal mask, built once and reused for every head.
    row = lax.broadcasted_iota(jnp.int32, (t, t), 0)
    col = lax.broadcasted_iota(jnp.int32, (t, t), 1)
    mask_add = jnp.where(col <= row, 0.0, -1e30).astype(jnp.float32)

    dims = (((1,), (1,)), ((), ()))                     # contract last axes
    for h in range(n_head):
        g = h // group                                  # shared KV head (GQA)
        qrh = q_rot_r[:, h * half:(h + 1) * half]
        qih = q_rot_i[:, h * half:(h + 1) * half]
        krh = k_rot_r[:, g * half:(g + 1) * half]
        kih = k_rot_i[:, g * half:(g + 1) * half]

        # scores = q_h . k_h as the sum of the two half-width contractions
        # (avoids a lane-concat of the rotated halves).
        s = (lax.dot_general(qrh, krh, dims, preferred_element_type=jnp.float32)
             + lax.dot_general(qih, kih, dims, preferred_element_type=jnp.float32))
        s = s + mask_add                                # causal mask

        # Softmax with deferred normalization.
        m = jnp.max(s, axis=-1, keepdims=True)
        p = jnp.exp(s - m)
        l = jnp.sum(p, axis=-1, keepdims=True)

        v_h = v_all[:, g * head_dim:(g + 1) * head_dim]
        o_h = jnp.dot(p.astype(jnp.bfloat16), v_h,
                      preferred_element_type=jnp.float32)          # (T, hd)
        o_h = o_h * pl.reciprocal(l, approx=True)                  # normalize

        acc_ref[:, h * head_dim:(h + 1) * head_dim] = o_h

    # --- single (T, C) @ (C, C) output projection (lane-dense store) ---
    o_ref[0] = jnp.dot(acc_ref[...].astype(jnp.bfloat16), wp_ref[...],
                       preferred_element_type=jnp.float32)
    # proj_dropout has p=0.0 in eval -> identity.


def mha_pallas(x, wq_w, wk_w, wv_w, wp_w, cos, sin, n_head, n_kv_head):
    """x: (B, T, C) f32; w*_w are PyTorch-convention Linear weights (out, in)."""
    B, T, C = x.shape
    hd = C // n_head
    half = hd // 2
    dq = n_head * hd
    dkv = n_kv_head * hd
    nf = dq + 2 * dkv

    def split_ri(w_t, nh):
        # (C, nh*hd) -> columns regrouped as [all real halves | all imag halves]
        # per head, preserving pair order.  q.k is invariant under this common
        # component permutation, so scores match PyTorch exactly.
        w4 = w_t.reshape(C, nh, half, 2)
        return jnp.concatenate(
            [w4[..., 0].reshape(C, nh * half), w4[..., 1].reshape(C, nh * half)],
            axis=-1)

    scale = 1.0 / math.sqrt(hd)                # fold score scale into Wq (f32)
    wq = split_ri(wq_w.T * scale, n_head)      # (C, dq)
    wk = split_ri(wk_w.T, n_kv_head)           # (C, dkv)
    wv = wv_w.T                                # (C, dkv), natural head-major order
    wqkv = jnp.concatenate([wq, wk, wv], axis=-1).astype(jnp.bfloat16)  # (C, nf)
    wp = wp_w.T.astype(jnp.bfloat16)           # (dq, C)

    # RoPE tables tiled per head once on the host: column (h, j) -> cos[:, j].
    cos_q = jnp.tile(cos, (1, n_head)).astype(jnp.float32)   # (T, H*half)
    sin_q = jnp.tile(sin, (1, n_head)).astype(jnp.float32)

    x_bf = x.astype(jnp.bfloat16)              # halve x DMA bytes; MXU runs bf16

    kernel = functools.partial(_mha_kernel, n_head=n_head,
                               n_kv_head=n_kv_head, head_dim=hd)
    return pl.pallas_call(
        kernel,
        out_shape=jax.ShapeDtypeStruct((B, T, C), jnp.float32),
        grid_spec=pltpu.PrefetchScalarGridSpec(
            num_scalar_prefetch=0,
            grid=(B,),
            in_specs=[
                pl.BlockSpec((1, T, C), lambda b: (b, 0, 0)),          # x
                pl.BlockSpec((C, nf), lambda b: (0, 0)),               # fused Wqkv
                pl.BlockSpec((dq, C), lambda b: (0, 0)),               # Wproj
                pl.BlockSpec((T, n_head * half), lambda b: (0, 0)),    # cos (tiled)
                pl.BlockSpec((T, n_head * half), lambda b: (0, 0)),    # sin (tiled)
            ],
            out_specs=pl.BlockSpec((1, T, C), lambda b: (b, 0, 0)),
            scratch_shapes=[pltpu.VMEM((T, dq), jnp.float32)],         # attn out
        ),
        compiler_params=pltpu.CompilerParams(
            dimension_semantics=("parallel",)),
    )(x_bf, wqkv, wp, cos_q, sin_q)


def mha_ref(x, wq_w, wk_w, wv_w, wp_w, cos, sin, n_head, n_kv_head):
    """Pure-JAX f32 reference reproducing the PyTorch forward exactly."""
    B, T, C = x.shape
    hd = C // n_head
    group = n_head // n_kv_head

    q = (x @ wq_w.T).reshape(B, T, n_head, hd)
    k = (x @ wk_w.T).reshape(B, T, n_kv_head, hd)
    v = (x @ wv_w.T).reshape(B, T, n_kv_head, hd)

    def rope(t):  # interleaved-pair RoPE, like apply_rope
        tp = t.reshape(t.shape[:-1] + (hd // 2, 2))
        tr, ti = tp[..., 0], tp[..., 1]
        c = cos[None, :, None, :]
        s = sin[None, :, None, :]
        return jnp.stack([tr * c - ti * s, tr * s + ti * c], axis=-1).reshape(t.shape)

    q, k = rope(q), rope(k)
    k = jnp.repeat(k, group, axis=2)   # repeat_kv (repeat_interleave, dim=2)
    v = jnp.repeat(v, group, axis=2)

    q = q.transpose(0, 2, 1, 3)
    k = k.transpose(0, 2, 1, 3)
    v = v.transpose(0, 2, 1, 3)
    s = jnp.einsum("bhqd,bhkd->bhqk", q, k) / math.sqrt(hd)
    mask = jnp.tril(jnp.ones((T, T), dtype=bool))
    s = jnp.where(mask[None, None], s, -jnp.inf)
    p = jax.nn.softmax(s, axis=-1)
    o = jnp.einsum("bhqk,bhkd->bhqd", p, v)
    o = o.transpose(0, 2, 1, 3).reshape(B, T, C)
    return o @ wp_w.T


if __name__ == "__main__":
    # Small GQA config consistent with LlamaConfig semantics.
    B, T = 2, 128
    n_dim, n_head, n_kv_head = 256, 8, 4
    hd = n_dim // n_head

    key = jax.random.PRNGKey(0)
    kx, kq, kk, kv, kp = jax.random.split(key, 5)
    x = jax.random.normal(kx, (B, T, n_dim), jnp.float32)
    # Deterministic synthetic weights, PyTorch Linear convention (out, in).
    wq_w = jax.random.normal(kq, (n_head * hd, n_dim), jnp.float32) * 0.1
    wk_w = jax.random.normal(kk, (n_kv_head * hd, n_dim), jnp.float32) * 0.1
    wv_w = jax.random.normal(kv, (n_kv_head * hd, n_dim), jnp.float32) * 0.1
    wp_w = jax.random.normal(kp, (n_dim, n_head * hd), jnp.float32) * 0.1

    # RoPE tables: (T, head_dim // 2), matching apply_rope's broadcast shape.
    inv_freq = 1.0 / (10000.0 ** (jnp.arange(0, hd, 2, dtype=jnp.float32) / hd))
    pos = jnp.arange(T, dtype=jnp.float32)
    freqs = pos[:, None] * inv_freq[None, :]
    cos_freqs = jnp.cos(freqs)
    sin_freqs = jnp.sin(freqs)

    out = mha_pallas(x, wq_w, wk_w, wv_w, wp_w, cos_freqs, sin_freqs,
                     n_head, n_kv_head)
    jax.block_until_ready(out)

    ref = mha_ref(x, wq_w, wk_w, wv_w, wp_w, cos_freqs, sin_freqs,
                  n_head, n_kv_head)
    assert out.shape == (B, T, n_dim)
    # bf16 MXU operands -> slightly looser tolerance than a pure-f32 kernel.
    assert jnp.allclose(out, ref, rtol=5e-2, atol=5e-2), \
        f"max abs diff = {float(jnp.max(jnp.abs(out - ref)))}"
    print("KERNEL_OK")
</pallas_src>

<mosaic_0001>
module attributes {stable_mosaic.version = 11 : i64} {
  func.func @_mha_kernel(%arg0: i32, %arg1: memref<1x128x256xbf16, #tpu.memory_space<vmem>>, %arg2: memref<256x512xbf16, #tpu.memory_space<vmem>>, %arg3: memref<256x256xbf16, #tpu.memory_space<vmem>>, %arg4: memref<128x128xf32, #tpu.memory_space<vmem>>, %arg5: memref<128x128xf32, #tpu.memory_space<vmem>>, %arg6: memref<1x128x256xf32, #tpu.memory_space<vmem>>, %arg7: memref<128x256xf32, #tpu.memory_space<vmem>>) attributes {dimension_semantics = [#tpu.dimension_semantics<parallel>], iteration_bounds = array<i64: 2>, scalar_prefetch = 0 : i64, scratch_operands = 1 : i64, tpu.core_type = #tpu.core_type<tc>, window_params = [{transform_indices = @transform_0, window_bounds = array<i64: 1, 128, 256>}, {pipeline_mode = #tpu.pipeline_mode<synchronous>, transform_indices = @transform_1, window_bounds = array<i64: 256, 512>}, {pipeline_mode = #tpu.pipeline_mode<synchronous>, transform_indices = @transform_2, window_bounds = array<i64: 256, 256>}, {pipeline_mode = #tpu.pipeline_mode<synchronous>, transform_indices = @transform_3, window_bounds = array<i64: 128, 128>}, {pipeline_mode = #tpu.pipeline_mode<synchronous>, transform_indices = @transform_4, window_bounds = array<i64: 128, 128>}, {transform_indices = @transform_5, window_bounds = array<i64: 1, 128, 256>}]} {
    %c0 = arith.constant 0 : index
    %c0_0 = arith.constant 0 : index
    %c0_1 = arith.constant 0 : index
    %0 = vector.load %arg1[%c0, %c0_0, %c0_1] : memref<1x128x256xbf16, #tpu.memory_space<vmem>>, vector<1x128x256xbf16>
    %1 = vector.shape_cast %0 : vector<1x128x256xbf16> to vector<128x256xbf16>
    %c0_2 = arith.constant 0 : index
    %c0_3 = arith.constant 0 : index
    %2 = vector.load %arg2[%c0_2, %c0_3] : memref<256x512xbf16, #tpu.memory_space<vmem>>, vector<256x512xbf16>
    %cst = arith.constant dense<0.000000e+00> : vector<128x512xf32>
    %3 = tpu.matmul %1, %2, %cst {dimension_numbers = #tpu.dot_dimension_numbers<[1], [0], [0], [1], [0, 0, 1, 1], [], []>} : vector<128x256xbf16>, vector<256x512xbf16>, vector<128x512xf32> -> vector<128x512xf32>
    %4 = vector.extract_strided_slice %3 {offsets = [0, 0], sizes = [128, 128], strides = [1, 1]} : vector<128x512xf32> to vector<128x128xf32>
    %5 = vector.extract_strided_slice %3 {offsets = [0, 128], sizes = [128, 128], strides = [1, 1]} : vector<128x512xf32> to vector<128x128xf32>
    %6 = vector.extract_strided_slice %3 {offsets = [0, 256], sizes = [128, 64], strides = [1, 1]} : vector<128x512xf32> to vector<128x64xf32>
    %7 = vector.extract_strided_slice %3 {offsets = [0, 320], sizes = [128, 64], strides = [1, 1]} : vector<128x512xf32> to vector<128x64xf32>
    %8 = vector.extract_strided_slice %3 {offsets = [0, 384], sizes = [128, 128], strides = [1, 1]} : vector<128x512xf32> to vector<128x128xf32>
    %9 = arith.truncf %8 : vector<128x128xf32> to vector<128x128xbf16>
    %c0_4 = arith.constant 0 : index
    %c0_5 = arith.constant 0 : index
    %10 = vector.load %arg4[%c0_4, %c0_5] : memref<128x128xf32, #tpu.memory_space<vmem>>, vector<128x128xf32>
    %c0_6 = arith.constant 0 : index
    %c0_7 = arith.constant 0 : index
    %11 = vector.load %arg5[%c0_6, %c0_7] : memref<128x128xf32, #tpu.memory_space<vmem>>, vector<128x128xf32>
    %12 = vector.extract_strided_slice %10 {offsets = [0, 0], sizes = [128, 64], strides = [1, 1]} : vector<128x128xf32> to vector<128x64xf32>
    %13 = vector.extract_strided_slice %11 {offsets = [0, 0], sizes = [128, 64], strides = [1, 1]} : vector<128x128xf32> to vector<128x64xf32>
    %14 = arith.mulf %4, %10 : vector<128x128xf32>
    %15 = arith.mulf %5, %11 : vector<128x128xf32>
    %16 = arith.subf %14, %15 : vector<128x128xf32>
    %17 = arith.truncf %16 : vector<128x128xf32> to vector<128x128xbf16>
    %18 = arith.mulf %4, %11 : vector<128x128xf32>
    %19 = arith.mulf %5, %10 : vector<128x128xf32>
    %20 = arith.addf %18, %19 : vector<128x128xf32>
    %21 = arith.truncf %20 : vector<128x128xf32> to vector<128x128xbf16>
    %22 = arith.mulf %6, %12 : vector<128x64xf32>
    %23 = arith.mulf %7, %13 : vector<128x64xf32>
    %24 = arith.subf %22, %23 : vector<128x64xf32>
    %25 = arith.truncf %24 : vector<128x64xf32> to vector<128x64xbf16>
    %26 = arith.mulf %6, %13 : vector<128x64xf32>
    %27 = arith.mulf %7, %12 : vector<128x64xf32>
    %28 = arith.addf %26, %27 : vector<128x64xf32>
    %29 = arith.truncf %28 : vector<128x64xf32> to vector<128x64xbf16>
    %30 = tpu.iota {dimensions = array<i32: 0>} : vector<128x128xi32>
    %31 = tpu.iota {dimensions = array<i32: 1>} : vector<128x128xi32>
    %32 = arith.cmpi sle, %31, %30 : vector<128x128xi32>
    %cst_8 = arith.constant 0.000000e+00 : f32
    %cst_9 = arith.constant -1.000000e+30 : f32
    %33 = vector.broadcast %cst_8 : f32 to vector<128x128xf32>
    %34 = vector.broadcast %cst_9 : f32 to vector<128x128xf32>
    %35 = arith.select %32, %33, %34 : vector<128x128xi1>, vector<128x128xf32>
    %36 = vector.extract_strided_slice %17 {offsets = [0, 0], sizes = [128, 16], strides = [1, 1]} : vector<128x128xbf16> to vector<128x16xbf16>
    %37 = vector.extract_strided_slice %21 {offsets = [0, 0], sizes = [128, 16], strides = [1, 1]} : vector<128x128xbf16> to vector<128x16xbf16>
    %38 = vector.extract_strided_slice %25 {offsets = [0, 0], sizes = [128, 16], strides = [1, 1]} : vector<128x64xbf16> to vector<128x16xbf16>
    %39 = vector.extract_strided_slice %29 {offsets = [0, 0], sizes = [128, 16], strides = [1, 1]} : vector<128x64xbf16> to vector<128x16xbf16>
    %cst_10 = arith.constant dense<0.000000e+00> : vector<128x128xf32>
    %40 = tpu.matmul %36, %38, %cst_10 {dimension_numbers = #tpu.dot_dimension_numbers<[1], [1], [0], [0], [0, 0, 1, 0], [], []>} : vector<128x16xbf16>, vector<128x16xbf16>, vector<128x128xf32> -> vector<128x128xf32>
    %cst_11 = arith.constant dense<0.000000e+00> : vector<128x128xf32>
    %41 = tpu.matmul %37, %39, %cst_11 {dimension_numbers = #tpu.dot_dimension_numbers<[1], [1], [0], [0], [0, 0, 1, 0], [], []>} : vector<128x16xbf16>, vector<128x16xbf16>, vector<128x128xf32> -> vector<128x128xf32>
    %42 = arith.addf %40, %41 : vector<128x128xf32>
    %43 = arith.addf %42, %35 : vector<128x128xf32>
    %cst_12 = arith.constant dense<0xFF800000> : vector<128xf32>
    %44 = vector.multi_reduction <maximumf>, %43, %cst_12 [1] : vector<128x128xf32> to vector<128xf32>
    %45 = vector.shape_cast %44 : vector<128xf32> to vector<128x1xf32>
    %46 = vector.broadcast %45 : vector<128x1xf32> to vector<128x128xf32>
    %47 = arith.subf %43, %46 : vector<128x128xf32>
    %48 = math.exp %47 : vector<128x128xf32>
    %cst_13 = arith.constant dense<0.000000e+00> : vector<128xf32>
    %49 = vector.multi_reduction <add>, %48, %cst_13 [1] : vector<128x128xf32> to vector<128xf32>
    %50 = vector.shape_cast %49 : vector<128xf32> to vector<128x1xf32>
    %51 = vector.extract_strided_slice %9 {offsets = [0, 0], sizes = [128, 32], strides = [1, 1]} : vector<128x128xbf16> to vector<128x32xbf16>
    %52 = arith.truncf %48 : vector<128x128xf32> to vector<128x128xbf16>
    %cst_14 = arith.constant dense<0.000000e+00> : vector<128x32xf32>
    %53 = tpu.matmul %52, %51, %cst_14 {dimension_numbers = #tpu.dot_dimension_numbers<[1], [0], [0], [1], [0, 0, 1, 1], [], []>} : vector<128x128xbf16>, vector<128x32xbf16>, vector<128x32xf32> -> vector<128x32xf32>
    %54 = tpu.reciprocal %50 {approx = true} : vector<128x1xf32> -> vector<128x1xf32>
    %55 = vector.broadcast %54 : vector<128x1xf32> to vector<128x32xf32>
    %56 = arith.mulf %53, %55 : vector<128x32xf32>
    %c0_15 = arith.constant 0 : index
    %c0_16 = arith.constant 0 : index
    %57 = vector.load %arg7[%c0_15, %c0_16] : memref<128x256xf32, #tpu.memory_space<vmem>>, vector<128x32xf32>
    tpu.vector_store %arg7[%c0_15, %c0_16], %56 {strides = array<i32>} : memref<128x256xf32, #tpu.memory_space<vmem>>, vector<128x32xf32>,
    %58 = vector.extract_strided_slice %17 {offsets = [0, 16], sizes = [128, 16], strides = [1, 1]} : vector<128x128xbf16> to vector<128x16xbf16>
    %59 = vector.extract_strided_slice %21 {offsets = [0, 16], sizes = [128, 16], strides = [1, 1]} : vector<128x128xbf16> to vector<128x16xbf16>
    %60 = vector.extract_strided_slice %25 {offsets = [0, 0], sizes = [128, 16], strides = [1, 1]} : vector<128x64xbf16> to vector<128x16xbf16>
    %61 = vector.extract_strided_slice %29 {offsets = [0, 0], sizes = [128, 16], strides = [1, 1]} : vector<128x64xbf16> to vector<128x16xbf16>
    %cst_17 = arith.constant dense<0.000000e+00> : vector<128x128xf32>
    %62 = tpu.matmul %58, %60, %cst_17 {dimension_numbers = #tpu.dot_dimension_numbers<[1], [1], [0], [0], [0, 0, 1, 0], [], []>} : vector<128x16xbf16>, vector<128x16xbf16>, vector<128x128xf32> -> vector<128x128xf32>
    %cst_18 = arith.constant dense<0.000000e+00> : vector<128x128xf32>
    %63 = tpu.matmul %59, %61, %cst_18 {dimension_numbers = #tpu.dot_dimension_numbers<[1], [1], [0], [0], [0, 0, 1, 0], [], []>} : vector<128x16xbf16>, vector<128x16xbf16>, vector<128x128xf32> -> vector<128x128xf32>
    %64 = arith.addf %62, %63 : vector<128x128xf32>
    %65 = arith.addf %64, %35 : vector<128x128xf32>
    %cst_19 = arith.constant dense<0xFF800000> : vector<128xf32>
    %66 = vector.multi_reduction <maximumf>, %65, %cst_19 [1] : vector<128x128xf32> to vector<128xf32>
    %67 = vector.shape_cast %66 : vector<128xf32> to vector<128x1xf32>
    %68 = vector.broadcast %67 : vector<128x1xf32> to vector<128x128xf32>
    %69 = arith.subf %65, %68 : vector<128x128xf32>
    %70 = math.exp %69 : vector<128x128xf32>
    %cst_20 = arith.constant dense<0.000000e+00> : vector<128xf32>
    %71 = vector.multi_reduction <add>, %70, %cst_20 [1] : vector<128x128xf32> to vector<128xf32>
    %72 = vector.shape_cast %71 : vector<128xf32> to vector<128x1xf32>
    %73 = vector.extract_strided_slice %9 {offsets = [0, 0], sizes = [128, 32], strides = [1, 1]} : vector<128x128xbf16> to vector<128x32xbf16>
    %74 = arith.truncf %70 : vector<128x128xf32> to vector<128x128xbf16>
    %cst_21 = arith.constant dense<0.000000e+00> : vector<128x32xf32>
    %75 = tpu.matmul %74, %73, %cst_21 {dimension_numbers = #tpu.dot_dimension_numbers<[1], [0], [0], [1], [0, 0, 1, 1], [], []>} : vector<128x128xbf16>, vector<128x32xbf16>, vector<128x32xf32> -> vector<128x32xf32>
    %76 = tpu.reciprocal %72 {approx = true} : vector<128x1xf32> -> vector<128x1xf32>
    %77 = vector.broadcast %76 : vector<128x1xf32> to vector<128x32xf32>
    %78 = arith.mulf %75, %77 : vector<128x32xf32>
    %c0_22 = arith.constant 0 : index
    %c32 = arith.constant 32 : index
    %79 = vector.load %arg7[%c0_22, %c32] : memref<128x256xf32, #tpu.memory_space<vmem>>, vector<128x32xf32>
    tpu.vector_store %arg7[%c0_22, %c32], %78 {strides = array<i32>} : memref<128x256xf32, #tpu.memory_space<vmem>>, vector<128x32xf32>,
    %80 = vector.extract_strided_slice %17 {offsets = [0, 32], sizes = [128, 16], strides = [1, 1]} : vector<128x128xbf16> to vector<128x16xbf16>
    %81 = vector.extract_strided_slice %21 {offsets = [0, 32], sizes = [128, 16], strides = [1, 1]} : vector<128x128xbf16> to vector<128x16xbf16>
    %82 = vector.extract_strided_slice %25 {offsets = [0, 16], sizes = [128, 16], strides = [1, 1]} : vector<128x64xbf16> to vector<128x16xbf16>
    %83 = vector.extract_strided_slice %29 {offsets = [0, 16], sizes = [128, 16], strides = [1, 1]} : vector<128x64xbf16> to vector<128x16xbf16>
    %cst_23 = arith.constant dense<0.000000e+00> : vector<128x128xf32>
    %84 = tpu.matmul %80, %82, %cst_23 {dimension_numbers = #tpu.dot_dimension_numbers<[1], [1], [0], [0], [0, 0, 1, 0], [], []>} : vector<128x16xbf16>, vector<128x16xbf16>, vector<128x128xf32> -> vector<128x128xf32>
    %cst_24 = arith.constant dense<0.000000e+00> : vector<128x128xf32>
    %85 = tpu.matmul %81, %83, %cst_24 {dimension_numbers = #tpu.dot_dimension_numbers<[1], [1], [0], [0], [0, 0, 1, 0], [], []>} : vector<128x16xbf16>, vector<128x16xbf16>, vector<128x128xf32> -> vector<128x128xf32>
    %86 = arith.addf %84, %85 : vector<128x128xf32>
    %87 = arith.addf %86, %35 : vector<128x128xf32>
    %cst_25 = arith.constant dense<0xFF800000> : vector<128xf32>
    %88 = vector.multi_reduction <maximumf>, %87, %cst_25 [1] : vector<128x128xf32> to vector<128xf32>
    %89 = vector.shape_cast %88 : vector<128xf32> to vector<128x1xf32>
    %90 = vector.broadcast %89 : vector<128x1xf32> to vector<128x128xf32>
    %91 = arith.subf %87, %90 : vector<128x128xf32>
    %92 = math.exp %91 : vector<128x128xf32>
    %cst_26 = arith.constant dense<0.000000e+00> : vector<128xf32>
    %93 = vector.multi_reduction <add>, %92, %cst_26 [1] : vector<128x128xf32> to vector<128xf32>
    %94 = vector.shape_cast %93 : vector<128xf32> to vector<128x1xf32>
    %95 = vector.extract_strided_slice %9 {offsets = [0, 32], sizes = [128, 32], strides = [1, 1]} : vector<128x128xbf16> to vector<128x32xbf16>
    %96 = arith.truncf %92 : vector<128x128xf32> to vector<128x128xbf16>
    %cst_27 = arith.constant dense<0.000000e+00> : vector<128x32xf32>
    %97 = tpu.matmul %96, %95, %cst_27 {dimension_numbers = #tpu.dot_dimension_numbers<[1], [0], [0], [1], [0, 0, 1, 1], [], []>} : vector<128x128xbf16>, vector<128x32xbf16>, vector<128x32xf32> -> vector<128x32xf32>
    %98 = tpu.reciprocal %94 {approx = true} : vector<128x1xf32> -> vector<128x1xf32>
    %99 = vector.broadcast %98 : vector<128x1xf32> to vector<128x32xf32>
    %100 = arith.mulf %97, %99 : vector<128x32xf32>
    %c0_28 = arith.constant 0 : index
    %c64 = arith.constant 64 : index
    %101 = vector.load %arg7[%c0_28, %c64] : memref<128x256xf32, #tpu.memory_space<vmem>>, vector<128x32xf32>
    tpu.vector_store %arg7[%c0_28, %c64], %100 {strides = array<i32>} : memref<128x256xf32, #tpu.memory_space<vmem>>, vector<128x32xf32>,
    %102 = vector.extract_strided_slice %17 {offsets = [0, 48], sizes = [128, 16], strides = [1, 1]} : vector<128x128xbf16> to vector<128x16xbf16>
    %103 = vector.extract_strided_slice %21 {offsets = [0, 48], sizes = [128, 16], strides = [1, 1]} : vector<128x128xbf16> to vector<128x16xbf16>
    %104 = vector.extract_strided_slice %25 {offsets = [0, 16], sizes = [128, 16], strides = [1, 1]} : vector<128x64xbf16> to vector<128x16xbf16>
    %105 = vector.extract_strided_slice %29 {offsets = [0, 16], sizes = [128, 16], strides = [1, 1]} : vector<128x64xbf16> to vector<128x16xbf16>
    %cst_29 = arith.constant dense<0.000000e+00> : vector<128x128xf32>
    %106 = tpu.matmul %102, %104, %cst_29 {dimension_numbers = #tpu.dot_dimension_numbers<[1], [1], [0], [0], [0, 0, 1, 0], [], []>} : vector<128x16xbf16>, vector<128x16xbf16>, vector<128x128xf32> -> vector<128x128xf32>
    %cst_30 = arith.constant dense<0.000000e+00> : vector<128x128xf32>
    %107 = tpu.matmul %103, %105, %cst_30 {dimension_numbers = #tpu.dot_dimension_numbers<[1], [1], [0], [0], [0, 0, 1, 0], [], []>} : vector<128x16xbf16>, vector<128x16xbf16>, vector<128x128xf32> -> vector<128x128xf32>
    %108 = arith.addf %106, %107 : vector<128x128xf32>
    %109 = arith.addf %108, %35 : vector<128x128xf32>
    %cst_31 = arith.constant dense<0xFF800000> : vector<128xf32>
    %110 = vector.multi_reduction <maximumf>, %109, %cst_31 [1] : vector<128x128xf32> to vector<128xf32>
    %111 = vector.shape_cast %110 : vector<128xf32> to vector<128x1xf32>
    %112 = vector.broadcast %111 : vector<128x1xf32> to vector<128x128xf32>
    %113 = arith.subf %109, %112 : vector<128x128xf32>
    %114 = math.exp %113 : vector<128x128xf32>
    %cst_32 = arith.constant dense<0.000000e+00> : vector<128xf32>
    %115 = vector.multi_reduction <add>, %114, %cst_32 [1] : vector<128x128xf32> to vector<128xf32>
    %116 = vector.shape_cast %115 : vector<128xf32> to vector<128x1xf32>
    %117 = vector.extract_strided_slice %9 {offsets = [0, 32], sizes = [128, 32], strides = [1, 1]} : vector<128x128xbf16> to vector<128x32xbf16>
    %118 = arith.truncf %114 : vector<128x128xf32> to vector<128x128xbf16>
    %cst_33 = arith.constant dense<0.000000e+00> : vector<128x32xf32>
    %119 = tpu.matmul %118, %117, %cst_33 {dimension_numbers = #tpu.dot_dimension_numbers<[1], [0], [0], [1], [0, 0, 1, 1], [], []>} : vector<128x128xbf16>, vector<128x32xbf16>, vector<128x32xf32> -> vector<128x32xf32>
    %120 = tpu.reciprocal %116 {approx = true} : vector<128x1xf32> -> vector<128x1xf32>
    %121 = vector.broadcast %120 : vector<128x1xf32> to vector<128x32xf32>
    %122 = arith.mulf %119, %121 : vector<128x32xf32>
    %c0_34 = arith.constant 0 : index
    %c96 = arith.constant 96 : index
    %123 = vector.load %arg7[%c0_34, %c96] : memref<128x256xf32, #tpu.memory_space<vmem>>, vector<128x32xf32>
    tpu.vector_store %arg7[%c0_34, %c96], %122 {strides = array<i32>} : memref<128x256xf32, #tpu.memory_space<vmem>>, vector<128x32xf32>,
    %124 = vector.extract_strided_slice %17 {offsets = [0, 64], sizes = [128, 16], strides = [1, 1]} : vector<128x128xbf16> to vector<128x16xbf16>
    %125 = vector.extract_strided_slice %21 {offsets = [0, 64], sizes = [128, 16], strides = [1, 1]} : vector<128x128xbf16> to vector<128x16xbf16>
    %126 = vector.extract_strided_slice %25 {offsets = [0, 32], sizes = [128, 16], strides = [1, 1]} : vector<128x64xbf16> to vector<128x16xbf16>
    %127 = vector.extract_strided_slice %29 {offsets = [0, 32], sizes = [128, 16], strides = [1, 1]} : vector<128x64xbf16> to vector<128x16xbf16>
    %cst_35 = arith.constant dense<0.000000e+00> : vector<128x128xf32>
    %128 = tpu.matmul %124, %126, %cst_35 {dimension_numbers = #tpu.dot_dimension_numbers<[1], [1], [0], [0], [0, 0, 1, 0], [], []>} : vector<128x16xbf16>, vector<128x16xbf16>, vector<128x128xf32> -> vector<128x128xf32>
    %cst_36 = arith.constant dense<0.000000e+00> : vector<128x128xf32>
    %129 = tpu.matmul %125, %127, %cst_36 {dimension_numbers = #tpu.dot_dimension_numbers<[1], [1], [0], [0], [0, 0, 1, 0], [], []>} : vector<128x16xbf16>, vector<128x16xbf16>, vector<128x128xf32> -> vector<128x128xf32>
    %130 = arith.addf %128, %129 : vector<128x128xf32>
    %131 = arith.addf %130, %35 : vector<128x128xf32>
    %cst_37 = arith.constant dense<0xFF800000> : vector<128xf32>
    %132 = vector.multi_reduction <maximumf>, %131, %cst_37 [1] : vector<128x128xf32> to vector<128xf32>
    %133 = vector.shape_cast %132 : vector<128xf32> to vector<128x1xf32>
    %134 = vector.broadcast %133 : vector<128x1xf32> to vector<128x128xf32>
    %135 = arith.subf %131, %134 : vector<128x128xf32>
    %136 = math.exp %135 : vector<128x128xf32>
    %cst_38 = arith.constant dense<0.000000e+00> : vector<128xf32>
    %137 = vector.multi_reduction <add>, %136, %cst_38 [1] : vector<128x128xf32> to vector<128xf32>
    %138 = vector.shape_cast %137 : vector<128xf32> to vector<128x1xf32>
    %139 = vector.extract_strided_slice %9 {offsets = [0, 64], sizes = [128, 32], strides = [1, 1]} : vector<128x128xbf16> to vector<128x32xbf16>
    %140 = arith.truncf %136 : vector<128x128xf32> to vector<128x128xbf16>
    %cst_39 = arith.constant dense<0.000000e+00> : vector<128x32xf32>
    %141 = tpu.matmul %140, %139, %cst_39 {dimension_numbers = #tpu.dot_dimension_numbers<[1], [0], [0], [1], [0, 0, 1, 1], [], []>} : vector<128x128xbf16>, vector<128x32xbf16>, vector<128x32xf32> -> vector<128x32xf32>
    %142 = tpu.reciprocal %138 {approx = true} : vector<128x1xf32> -> vector<128x1xf32>
    %143 = vector.broadcast %142 : vector<128x1xf32> to vector<128x32xf32>
    %144 = arith.mulf %141, %143 : vector<128x32xf32>
    %c0_40 = arith.constant 0 : index
    %c128 = arith.constant 128 : index
    %145 = vector.load %arg7[%c0_40, %c128] : memref<128x256xf32, #tpu.memory_space<vmem>>, vector<128x32xf32>
    tpu.vector_store %arg7[%c0_40, %c128], %144 {strides = array<i32>} : memref<128x256xf32, #tpu.memory_space<vmem>>, vector<128x32xf32>,
    %146 = vector.extract_strided_slice %17 {offsets = [0, 80], sizes = [128, 16], strides = [1, 1]} : vector<128x128xbf16> to vector<128x16xbf16>
    %147 = vector.extract_strided_slice %21 {offsets = [0, 80], sizes = [128, 16], strides = [1, 1]} : vector<128x128xbf16> to vector<128x16xbf16>
    %148 = vector.extract_strided_slice %25 {offsets = [0, 32], sizes = [128, 16], strides = [1, 1]} : vector<128x64xbf16> to vector<128x16xbf16>
    %149 = vector.extract_strided_slice %29 {offsets = [0, 32], sizes = [128, 16], strides = [1, 1]} : vector<128x64xbf16> to vector<128x16xbf16>
    %cst_41 = arith.constant dense<0.000000e+00> : vector<128x128xf32>
    %150 = tpu.matmul %146, %148, %cst_41 {dimension_numbers = #tpu.dot_dimension_numbers<[1], [1], [0], [0], [0, 0, 1, 0], [], []>} : vector<128x16xbf16>, vector<128x16xbf16>, vector<128x128xf32> -> vector<128x128xf32>
    %cst_42 = arith.constant dense<0.000000e+00> : vector<128x128xf32>
    %151 = tpu.matmul %147, %149, %cst_42 {dimension_numbers = #tpu.dot_dimension_numbers<[1], [1], [0], [0], [0, 0, 1, 0], [], []>} : vector<128x16xbf16>, vector<128x16xbf16>, vector<128x128xf32> -> vector<128x128xf32>
    %152 = arith.addf %150, %151 : vector<128x128xf32>
    %153 = arith.addf %152, %35 : vector<128x128xf32>
    %cst_43 = arith.constant dense<0xFF800000> : vector<128xf32>
    %154 = vector.multi_reduction <maximumf>, %153, %cst_43 [1] : vector<128x128xf32> to vector<128xf32>
    %155 = vector.shape_cast %154 : vector<128xf32> to vector<128x1xf32>
    %156 = vector.broadcast %155 : vector<128x1xf32> to vector<128x128xf32>
    %157 = arith.subf %153, %156 : vector<128x128xf32>
    %158 = math.exp %157 : vector<128x128xf32>
    %cst_44 = arith.constant dense<0.000000e+00> : vector<128xf32>
    %159 = vector.multi_reduction <add>, %158, %cst_44 [1] : vector<128x128xf32> to vector<128xf32>
    %160 = vector.shape_cast %159 : vector<128xf32> to vector<128x1xf32>
    %161 = vector.extract_strided_slice %9 {offsets = [0, 64], sizes = [128, 32], strides = [1, 1]} : vector<128x128xbf16> to vector<128x32xbf16>
    %162 = arith.truncf %158 : vector<128x128xf32> to vector<128x128xbf16>
    %cst_45 = arith.constant dense<0.000000e+00> : vector<128x32xf32>
    %163 = tpu.matmul %162, %161, %cst_45 {dimension_numbers = #tpu.dot_dimension_numbers<[1], [0], [0], [1], [0, 0, 1, 1], [], []>} : vector<128x128xbf16>, vector<128x32xbf16>, vector<128x32xf32> -> vector<128x32xf32>
    %164 = tpu.reciprocal %160 {approx = true} : vector<128x1xf32> -> vector<128x1xf32>
    %165 = vector.broadcast %164 : vector<128x1xf32> to vector<128x32xf32>
    %166 = arith.mulf %163, %165 : vector<128x32xf32>
    %c0_46 = arith.constant 0 : index
    %c160 = arith.constant 160 : index
    %167 = vector.load %arg7[%c0_46, %c160] : memref<128x256xf32, #tpu.memory_space<vmem>>, vector<128x32xf32>
    tpu.vector_store %arg7[%c0_46, %c160], %166 {strides = array<i32>} : memref<128x256xf32, #tpu.memory_space<vmem>>, vector<128x32xf32>,
    %168 = vector.extract_strided_slice %17 {offsets = [0, 96], sizes = [128, 16], strides = [1, 1]} : vector<128x128xbf16> to vector<128x16xbf16>
    %169 = vector.extract_strided_slice %21 {offsets = [0, 96], sizes = [128, 16], strides = [1, 1]} : vector<128x128xbf16> to vector<128x16xbf16>
    %170 = vector.extract_strided_slice %25 {offsets = [0, 48], sizes = [128, 16], strides = [1, 1]} : vector<128x64xbf16> to vector<128x16xbf16>
    %171 = vector.extract_strided_slice %29 {offsets = [0, 48], sizes = [128, 16], strides = [1, 1]} : vector<128x64xbf16> to vector<128x16xbf16>
    %cst_47 = arith.constant dense<0.000000e+00> : vector<128x128xf32>
    %172 = tpu.matmul %168, %170, %cst_47 {dimension_numbers = #tpu.dot_dimension_numbers<[1], [1], [0], [0], [0, 0, 1, 0], [], []>} : vector<128x16xbf16>, vector<128x16xbf16>, vector<128x128xf32> -> vector<128x128xf32>
    %cst_48 = arith.constant dense<0.000000e+00> : vector<128x128xf32>
    %173 = tpu.matmul %169, %171, %cst_48 {dimension_numbers = #tpu.dot_dimension_numbers<[1], [1], [0], [0], [0, 0, 1, 0], [], []>} : vector<128x16xbf16>, vector<128x16xbf16>, vector<128x128xf32> -> vector<128x128xf32>
    %174 = arith.addf %172, %173 : vector<128x128xf32>
    %175 = arith.addf %174, %35 : vector<128x128xf32>
    %cst_49 = arith.constant dense<0xFF800000> : vector<128xf32>
    %176 = vector.multi_reduction <maximumf>, %175, %cst_49 [1] : vector<128x128xf32> to vector<128xf32>
    %177 = vector.shape_cast %176 : vector<128xf32> to vector<128x1xf32>
    %178 = vector.broadcast %177 : vector<128x1xf32> to vector<128x128xf32>
    %179 = arith.subf %175, %178 : vector<128x128xf32>
    %180 = math.exp %179 : vector<128x128xf32>
    %cst_50 = arith.constant dense<0.000000e+00> : vector<128xf32>
    %181 = vector.multi_reduction <add>, %180, %cst_50 [1] : vector<128x128xf32> to vector<128xf32>
    %182 = vector.shape_cast %181 : vector<128xf32> to vector<128x1xf32>
    %183 = vector.extract_strided_slice %9 {offsets = [0, 96], sizes = [128, 32], strides = [1, 1]} : vector<128x128xbf16> to vector<128x32xbf16>
    %184 = arith.truncf %180 : vector<128x128xf32> to vector<128x128xbf16>
    %cst_51 = arith.constant dense<0.000000e+00> : vector<128x32xf32>
    %185 = tpu.matmul %184, %183, %cst_51 {dimension_numbers = #tpu.dot_dimension_numbers<[1], [0], [0], [1], [0, 0, 1, 1], [], []>} : vector<128x128xbf16>, vector<128x32xbf16>, vector<128x32xf32> -> vector<128x32xf32>
    %186 = tpu.reciprocal %182 {approx = true} : vector<128x1xf32> -> vector<128x1xf32>
    %187 = vector.broadcast %186 : vector<128x1xf32> to vector<128x32xf32>
    %188 = arith.mulf %185, %187 : vector<128x32xf32>
    %c0_52 = arith.constant 0 : index
    %c192 = arith.constant 192 : index
    %189 = vector.load %arg7[%c0_52, %c192] : memref<128x256xf32, #tpu.memory_space<vmem>>, vector<128x32xf32>
    tpu.vector_store %arg7[%c0_52, %c192], %188 {strides = array<i32>} : memref<128x256xf32, #tpu.memory_space<vmem>>, vector<128x32xf32>,
    %190 = vector.extract_strided_slice %17 {offsets = [0, 112], sizes = [128, 16], strides = [1, 1]} : vector<128x128xbf16> to vector<128x16xbf16>
    %191 = vector.extract_strided_slice %21 {offsets = [0, 112], sizes = [128, 16], strides = [1, 1]} : vector<128x128xbf16> to vector<128x16xbf16>
    %192 = vector.extract_strided_slice %25 {offsets = [0, 48], sizes = [128, 16], strides = [1, 1]} : vector<128x64xbf16> to vector<128x16xbf16>
    %193 = vector.extract_strided_slice %29 {offsets = [0, 48], sizes = [128, 16], strides = [1, 1]} : vector<128x64xbf16> to vector<128x16xbf16>
    %cst_53 = arith.constant dense<0.000000e+00> : vector<128x128xf32>
    %194 = tpu.matmul %190, %192, %cst_53 {dimension_numbers = #tpu.dot_dimension_numbers<[1], [1], [0], [0], [0, 0, 1, 0], [], []>} : vector<128x16xbf16>, vector<128x16xbf16>, vector<128x128xf32> -> vector<128x128xf32>
    %cst_54 = arith.constant dense<0.000000e+00> : vector<128x128xf32>
    %195 = tpu.matmul %191, %193, %cst_54 {dimension_numbers = #tpu.dot_dimension_numbers<[1], [1], [0], [0], [0, 0, 1, 0], [], []>} : vector<128x16xbf16>, vector<128x16xbf16>, vector<128x128xf32> -> vector<128x128xf32>
    %196 = arith.addf %194, %195 : vector<128x128xf32>
    %197 = arith.addf %196, %35 : vector<128x128xf32>
    %cst_55 = arith.constant dense<0xFF800000> : vector<128xf32>
    %198 = vector.multi_reduction <maximumf>, %197, %cst_55 [1] : vector<128x128xf32> to vector<128xf32>
    %199 = vector.shape_cast %198 : vector<128xf32> to vector<128x1xf32>
    %200 = vector.broadcast %199 : vector<128x1xf32> to vector<128x128xf32>
    %201 = arith.subf %197, %200 : vector<128x128xf32>
    %202 = math.exp %201 : vector<128x128xf32>
    %cst_56 = arith.constant dense<0.000000e+00> : vector<128xf32>
    %203 = vector.multi_reduction <add>, %202, %cst_56 [1] : vector<128x128xf32> to vector<128xf32>
    %204 = vector.shape_cast %203 : vector<128xf32> to vector<128x1xf32>
    %205 = vector.extract_strided_slice %9 {offsets = [0, 96], sizes = [128, 32], strides = [1, 1]} : vector<128x128xbf16> to vector<128x32xbf16>
    %206 = arith.truncf %202 : vector<128x128xf32> to vector<128x128xbf16>
    %cst_57 = arith.constant dense<0.000000e+00> : vector<128x32xf32>
    %207 = tpu.matmul %206, %205, %cst_57 {dimension_numbers = #tpu.dot_dimension_numbers<[1], [0], [0], [1], [0, 0, 1, 1], [], []>} : vector<128x128xbf16>, vector<128x32xbf16>, vector<128x32xf32> -> vector<128x32xf32>
    %208 = tpu.reciprocal %204 {approx = true} : vector<128x1xf32> -> vector<128x1xf32>
    %209 = vector.broadcast %208 : vector<128x1xf32> to vector<128x32xf32>
    %210 = arith.mulf %207, %209 : vector<128x32xf32>
    %c0_58 = arith.constant 0 : index
    %c224 = arith.constant 224 : index
    %211 = vector.load %arg7[%c0_58, %c224] : memref<128x256xf32, #tpu.memory_space<vmem>>, vector<128x32xf32>
    tpu.vector_store %arg7[%c0_58, %c224], %210 {strides = array<i32>} : memref<128x256xf32, #tpu.memory_space<vmem>>, vector<128x32xf32>,
    %c0_59 = arith.constant 0 : index
    %c0_60 = arith.constant 0 : index
    %212 = vector.load %arg7[%c0_59, %c0_60] : memref<128x256xf32, #tpu.memory_space<vmem>>, vector<128x256xf32>
    %213 = arith.truncf %212 : vector<128x256xf32> to vector<128x256xbf16>
    %c0_61 = arith.constant 0 : index
    %c0_62 = arith.constant 0 : index
    %214 = vector.load %arg3[%c0_61, %c0_62] : memref<256x256xbf16, #tpu.memory_space<vmem>>, vector<256x256xbf16>
    %cst_63 = arith.constant dense<0.000000e+00> : vector<128x256xf32>
    %215 = tpu.matmul %213, %214, %cst_63 {dimension_numbers = #tpu.dot_dimension_numbers<[1], [0], [0], [1], [0, 0, 1, 1], [], []>} : vector<128x256xbf16>, vector<256x256xbf16>, vector<128x256xf32> -> vector<128x256xf32>
    %c0_64 = arith.constant 0 : index
    %c0_65 = arith.constant 0 : index
    %c0_66 = arith.constant 0 : index
    %216 = vector.load %arg6[%c0_64, %c0_65, %c0_66] : memref<1x128x256xf32, #tpu.memory_space<vmem>>, vector<1x128x256xf32>
    %217 = vector.shape_cast %216 : vector<1x128x256xf32> to vector<128x256xf32>
    %218 = vector.shape_cast %215 : vector<128x256xf32> to vector<1x128x256xf32>
    tpu.vector_store %arg6[%c0_64, %c0_65, %c0_66], %218 {strides = array<i32>} : memref<1x128x256xf32, #tpu.memory_space<vmem>>, vector<1x128x256xf32>,
    return
  }
  func.func @transform_0(%arg0: i32) -> (i32, i32, i32) {
    %c0_i32 = arith.constant 0 : i32
    %c0_i32_0 = arith.constant 0 : i32
    %c0_i32_1 = arith.constant 0 : i32
    return %arg0, %c0_i32, %c0_i32_0 : i32, i32, i32
  }
  func.func @transform_1(%arg0: i32) -> (i32, i32) {
    %c0_i32 = arith.constant 0 : i32
    %c0_i32_0 = arith.constant 0 : i32
    %c0_i32_1 = arith.constant 0 : i32
    return %c0_i32, %c0_i32_0 : i32, i32
  }
  func.func @transform_2(%arg0: i32) -> (i32, i32) {
    %c0_i32 = arith.constant 0 : i32
    %c0_i32_0 = arith.constant 0 : i32
    %c0_i32_1 = arith.constant 0 : i32
    return %c0_i32, %c0_i32_0 : i32, i32
  }
  func.func @transform_3(%arg0: i32) -> (i32, i32) {
    %c0_i32 = arith.constant 0 : i32
    %c0_i32_0 = arith.constant 0 : i32
    %c0_i32_1 = arith.constant 0 : i32
    return %c0_i32, %c0_i32_0 : i32, i32
  }
  func.func @transform_4(%arg0: i32) -> (i32, i32) {
    %c0_i32 = arith.constant 0 : i32
    %c0_i32_0 = arith.constant 0 : i32
    %c0_i32_1 = arith.constant 0 : i32
    return %c0_i32, %c0_i32_0 : i32, i32
  }
  func.func @transform_5(%arg0: i32) -> (i32, i32, i32) {
    %c0_i32 = arith.constant 0 : i32
    %c0_i32_0 = arith.constant 0 : i32
    %c0_i32_1 = arith.constant 0 : i32
    return %arg0, %c0_i32, %c0_i32_0 : i32, i32, i32
  }
}

</mosaic_0001>

<llo_original>
// kernel: tpu_custom_call.1
$region0: #{tpu_custom_call.1}
  #allocation0 [shape = 'u32[]', space=smem, size = 0x4, offset = 0x4, fixed_abs, tag = 'smem constant byte address 0x4 - core index']
  #allocation1 [shape = 'u32[144,128]{1,0:T(1,128)}', space=vmem, size = 0x12000, scoped, tag = 'internal scratch']
  #allocation2 [shape = 'f32[128,256]{1,0:T(8,128)}', space=vmem, size = 0x20000, scoped, tag = 'scratch operand']
  %s0 = inlined_call_operand.hbm [shape: bf16[2,128,256], index: 0, kind: input, shape index: {}]
  %s1 = inlined_call_operand.hbm [shape: bf16[256,512], index: 1, kind: input, shape index: {}]
  %s2 = inlined_call_operand.hbm [shape: bf16[256,256], index: 2, kind: input, shape index: {}]
  %s3 = inlined_call_operand.hbm [shape: f32[128,128], index: 3, kind: input, shape index: {}]
  %s4 = inlined_call_operand.hbm [shape: f32[128,128], index: 4, kind: input, shape index: {}]
  %s5 = inlined_call_operand.hbm [shape: f32[2,128,256], index: 5, kind: output, shape index: {}]
  %s6 = sld [smem:[#allocation0]]
  $region73: #{tpu_custom_call.1} parent=0
    _
  %s8 = ssub.s32 1, %s6
  %s9 = scalar_select 0, %s8, %s6
  $region1: #{tpu_custom_call.1} parent=0
    #allocation3 [shape = 'u8[131072]{0}', space=vmem, size = 0x20000, scoped, tag = 'input window, operand 0']
    #allocation4 [shape = 's32[2]{0}', space=sflag, size = 0x8, scoped, tag = 'scoped memory for tpu_custom_call.1']
    #allocation5 [shape = 's32[2]{0}', space=sflag, size = 0x8, scoped, tag = 'scoped memory for tpu_custom_call.1']
    #allocation6 [shape = 'u8[262144]{0}', space=vmem, size = 0x40000, scoped, tag = 'input window, operand 1, single buffered']
    #allocation7 [shape = 's32[1]{0}', space=sflag, size = 0x4, scoped, tag = 'scoped memory for tpu_custom_call.1']
    #allocation8 [shape = 'u8[131072]{0}', space=vmem, size = 0x20000, scoped, tag = 'input window, operand 2, single buffered']
    #allocation9 [shape = 'u8[65536]{0}', space=vmem, size = 0x10000, scoped, tag = 'input window, operand 3, single buffered']
    #allocation10 [shape = 's32[1]{0}', space=sflag, size = 0x4, scoped, tag = 'scoped memory for tpu_custom_call.1']
    #allocation11 [shape = 'u8[65536]{0}', space=vmem, size = 0x10000, scoped, tag = 'input window, operand 4, single buffered']
    #allocation12 [shape = 'u8[262144]{0}', space=vmem, size = 0x40000, scoped, tag = 'output window, operand 0']
    %10 = vsyncpa [#allocation4], 0
    %s11 = scalar_lea.sflag [#allocation4], 1
    %12 = vsyncpa %s11, 0
    %13 = vsyncpa [#allocation7], 0
    %14 = vsyncpa [#allocation10], 0
    %15 = vsyncpa [#allocation5], 0
    %s16 = scalar_lea.sflag [#allocation5], 1
    %17 = vsyncpa %s16, 0
    loop: start=0, step=1, limit=4
    $region2: #{tpu_custom_call.1} parent=1 // loop_pre_header
      _
    $region3: #{tpu_custom_call.1} parent=1 // loop_header
      %s19 = sphi 0, %s23
      %p20 = scmp.ge.s32.totalorder %s19, 4
      %s29 = sphi 0, %s31
      %s32 = sphi 0, %s29
      %s33 = sphi 0, %s32
      %s49 = sphi 0, %s33
      %s53 = sphi 0, %s53
      %s55 = sphi 0, %s53
      %s56 = sphi 0, %s55
      %s70 = sphi 0, %s56
      %s74 = sphi 0, %s74
      %s76 = sphi 0, %s74
      %s77 = sphi 0, %s76
      %s91 = sphi 0, %s77
      %s95 = sphi 0, %s95
      %s97 = sphi 0, %s95
      %s98 = sphi 0, %s97
      %s112 = sphi 0, %s98
      %s116 = sphi 0, %s116
      %s118 = sphi 0, %s116
      %s119 = sphi 0, %s118
      %s133 = sphi 0, %s119
      %s139 = sphi 0, %s141
      %s142 = sphi 0, %s139
      %s143 = sphi 0, %s142
      %s159 = sphi 0, %s143
    $region4: #{tpu_custom_call.1} parent=1 // loop_header_branch
      %22 = sbr.rel (%p20) target = $region8
    $region5: #{tpu_custom_call.1} parent=1 // loop_body
      %s24 = ssub.s32 %s19, 1
      %s25 = ssub.s32 %s19, 2
      %s26 = sadd.s32 %s19, 1
      %s27 = ssub.s32 %s19, %s26
      %p28 = scmp.eq.s32.totalorder %s27, 0
      %s30 = sadd.s32 %s29, 1
      %s31 = scalar_select %p28, %s29, %s30
      %p34 = pneg %p28
      %p35 = scmp.eq.s32.totalorder %s19, 1
      %p36 = por %p34, %p35
      %p37 = scmp.ne.s32.totalorder %s29, %s32
      %p38 = scmp.eq.s32.totalorder %s19, 0
      %p39 = por %p37, %p38
      %p40 = scmp.ne.s32.totalorder %s29, %s32
      %p41 = scmp.eq.s32.totalorder %s24, 1
      %p42 = por %p40, %p41
      %p43 = scmp.ne.s32.totalorder %s32, %s33
      %p44 = scmp.eq.s32.totalorder %s24, 0
      %p45 = por %p43, %p44
      %p46 = scmp.ne.s32.totalorder %s32, %s33
      %p47 = scmp.eq.s32.totalorder %s25, 1
      %p48 = por %p46, %p47
      %p50 = scmp.ne.s32.totalorder %s33, %s49
      %p51 = scmp.eq.s32.totalorder %s25, 0
      %p52 = por %p50, %p51
      %s54 = sadd.s32 %s53, 1
      %p57 = scmp.eq.s32.totalorder %s19, 1
      %p58 = scmp.ne.s32.totalorder %s53, %s55
      %p59 = scmp.eq.s32.totalorder %s19, 0
      %p60 = por %p58, %p59
      %p61 = scmp.ne.s32.totalorder %s53, %s55
      %p62 = scmp.eq.s32.totalorder %s24, 1
      %p63 = por %p61, %p62
      %p64 = scmp.ne.s32.totalorder %s55, %s56
      %p65 = scmp.eq.s32.totalorder %s24, 0
      %p66 = por %p64, %p65
      %p67 = scmp.ne.s32.totalorder %s55, %s56
      %p68 = scmp.eq.s32.totalorder %s25, 1
      %p69 = por %p67, %p68
      %p71 = scmp.ne.s32.totalorder %s56, %s70
      %p72 = scmp.eq.s32.totalorder %s25, 0
      %p73 = por %p71, %p72
      %s75 = sadd.s32 %s74, 1
      %p78 = scmp.eq.s32.totalorder %s19, 1
      %p79 = scmp.ne.s32.totalorder %s74, %s76
      %p80 = scmp.eq.s32.totalorder %s19, 0
      %p81 = por %p79, %p80
      %p82 = scmp.ne.s32.totalorder %s74, %s76
      %p83 = scmp.eq.s32.totalorder %s24, 1
      %p84 = por %p82, %p83
      %p85 = scmp.ne.s32.totalorder %s76, %s77
      %p86 = scmp.eq.s32.totalorder %s24, 0
      %p87 = por %p85, %p86
      %p88 = scmp.ne.s32.totalorder %s76, %s77
      %p89 = scmp.eq.s32.totalorder %s25, 1
      %p90 = por %p88, %p89
      %p92 = scmp.ne.s32.totalorder %s77, %s91
      %p93 = scmp.eq.s32.totalorder %s25, 0
      %p94 = por %p92, %p93
      %s96 = sadd.s32 %s95, 1
      %p99 = scmp.eq.s32.totalorder %s19, 1
      %p100 = scmp.ne.s32.totalorder %s95, %s97
      %p101 = scmp.eq.s32.totalorder %s19, 0
      %p102 = por %p100, %p101
      %p103 = scmp.ne.s32.totalorder %s95, %s97
      %p104 = scmp.eq.s32.totalorder %s24, 1
      %p105 = por %p103, %p104
      %p106 = scmp.ne.s32.totalorder %s97, %s98
      %p107 = scmp.eq.s32.totalorder %s24, 0
      %p108 = por %p106, %p107
      %p109 = scmp.ne.s32.totalorder %s97, %s98
      %p110 = scmp.eq.s32.totalorder %s25, 1
      %p111 = por %p109, %p110
      %p113 = scmp.ne.s32.totalorder %s98, %s112
      %p114 = scmp.eq.s32.totalorder %s25, 0
      %p115 = por %p113, %p114
      %s117 = sadd.s32 %s116, 1
      %p120 = scmp.eq.s32.totalorder %s19, 1
      %p121 = scmp.ne.s32.totalorder %s116, %s118
      %p122 = scmp.eq.s32.totalorder %s19, 0
      %p123 = por %p121, %p122
      %p124 = scmp.ne.s32.totalorder %s116, %s118
      %p125 = scmp.eq.s32.totalorder %s24, 1
      %p126 = por %p124, %p125
      %p127 = scmp.ne.s32.totalorder %s118, %s119
      %p128 = scmp.eq.s32.totalorder %s24, 0
      %p129 = por %p127, %p128
      %p130 = scmp.ne.s32.totalorder %s118, %s119
      %p131 = scmp.eq.s32.totalorder %s25, 1
      %p132 = por %p130, %p131
      %p134 = scmp.ne.s32.totalorder %s119, %s133
      %p135 = scmp.eq.s32.totalorder %s25, 0
      %p136 = por %p134, %p135
      %s137 = ssub.s32 %s19, %s26
      %p138 = scmp.eq.s32.totalorder %s137, 0
      %s140 = sadd.s32 %s139, 1
      %s141 = scalar_select %p138, %s139, %s140
      %p144 = pneg %p138
      %p145 = scmp.eq.s32.totalorder %s19, 1
      %p146 = por %p144, %p145
      %p147 = scmp.ne.s32.totalorder %s139, %s142
      %p148 = scmp.eq.s32.totalorder %s19, 0
      %p149 = por %p147, %p148
      %p150 = scmp.ne.s32.totalorder %s139, %s142
      %p151 = scmp.eq.s32.totalorder %s24, 1
      %p152 = por %p150, %p151
      %p153 = scmp.ne.s32.totalorder %s142, %s143
      %p154 = scmp.eq.s32.totalorder %s24, 0
      %p155 = por %p153, %p154
      %p156 = scmp.ne.s32.totalorder %s142, %s143
      %p157 = scmp.eq.s32.totalorder %s25, 1
      %p158 = por %p156, %p157
      %p160 = scmp.ne.s32.totalorder %s143, %s159
      %p161 = scmp.eq.s32.totalorder %s25, 0
      %p162 = por %p160, %p161
      %p163 = scmp.le.s32.totalorder 1, %s19
      %p164 = scmp.lt.s32.totalorder %s19, 3
      %p165 = pnand %p163, %p164
      %p166 = pneg %p165
      // Predicated region
      $region9: #{tpu_custom_call.1} parent=5 // pred_check
        _
      $region10: #{tpu_custom_call.1} parent=5 // pred_check_branch
        %168 = sbr.rel (%p165) target = $region12
      $region11: #{tpu_custom_call.1} parent=5 // pred_region
        %s169 = ssub.s32 %s19, 1
        // Predicated region
        $region13: #{tpu_custom_call.1} parent=11 // pred_check
          %p170 = pneg %p66
        $region14: #{tpu_custom_call.1} parent=11 // pred_check_branch
          %172 = sbr.rel (%p170) target = $region16
        $region15: #{tpu_custom_call.1} parent=11 // pred_region
          %s174 = ssub.s32 8192, 8192
          %175 = vsyncadd [#allocation7], %s174
          %s176 = sshll.u32 [#allocation6], 4
          %s177 = int_to_ptr.vmem [resolvable:$true] %s176
          %182 = dma.hbm_to_vmem [thread:$0]  %s1, 8192, %s177, [#allocation7], 256, 256, 16
        $region16: #{tpu_custom_call.1} parent=11 // pred_fallthru
          _
        // Predicated region
        $region17: #{tpu_custom_call.1} parent=11 // pred_check
          %p183 = pneg %p87
        $region18: #{tpu_custom_call.1} parent=11 // pred_check_branch
          %185 = sbr.rel (%p183) target = $region20
        $region19: #{tpu_custom_call.1} parent=11 // pred_region
          %s187 = ssub.s32 4096, 4096
          %188 = vsyncadd [#allocation7], %s187
          %s189 = sshll.u32 [#allocation8], 4
          %s190 = int_to_ptr.vmem [resolvable:$true] %s189
          %195 = dma.hbm_to_vmem [thread:$0]  %s2, 4096, %s190, [#allocation7], 128, 128, 8
        $region20: #{tpu_custom_call.1} parent=11 // pred_fallthru
          _
        // Predicated region
        $region21: #{tpu_custom_call.1} parent=11 // pred_check
          %p196 = pneg %p108
        $region22: #{tpu_custom_call.1} parent=11 // pred_check_branch
          %198 = sbr.rel (%p196) target = $region24
        $region23: #{tpu_custom_call.1} parent=11 // pred_region
          %s200 = ssub.s32 2048, 2048
          %201 = vsyncadd [#allocation10], %s200
          %s202 = sshll.u32 [#allocation9], 4
          %s203 = int_to_ptr.vmem [resolvable:$true] %s202
          %208 = dma.hbm_to_vmem [thread:$0]  %s3, 2048, %s203, [#allocation10], 128, 128, 8
        $region24: #{tpu_custom_call.1} parent=11 // pred_fallthru
          _
        // Predicated region
        $region25: #{tpu_custom_call.1} parent=11 // pred_check
          %p209 = pneg %p129
        $region26: #{tpu_custom_call.1} parent=11 // pred_check_branch
          %211 = sbr.rel (%p209) target = $region28
        $region27: #{tpu_custom_call.1} parent=11 // pred_region
          %s213 = ssub.s32 2048, 2048
          %214 = vsyncadd [#allocation10], %s213
          %s215 = sshll.u32 [#allocation11], 4
          %s216 = int_to_ptr.vmem [resolvable:$true] %s215
          %221 = dma.hbm_to_vmem [thread:$0]  %s4, 2048, %s216, [#allocation10], 128, 128, 8
        $region28: #{tpu_custom_call.1} parent=11 // pred_fallthru
          _
      $region12: #{tpu_custom_call.1} parent=5 // pred_fallthru
        _
      %p222 = scmp.lt.s32.totalorder %s19, 2
      // Predicated region
      $region29: #{tpu_custom_call.1} parent=5 // pred_check
        %p223 = pneg %p222
      $region30: #{tpu_custom_call.1} parent=5 // pred_check_branch
        %225 = sbr.rel (%p223) target = $region32
      $region31: #{tpu_custom_call.1} parent=5 // pred_region
        // Predicated region
        $region33: #{tpu_custom_call.1} parent=31 // pred_check
          %p226 = pneg %p39
        $region34: #{tpu_custom_call.1} parent=31 // pred_check_branch
          %228 = sbr.rel (%p226) target = $region36
        $region35: #{tpu_custom_call.1} parent=31 // pred_region
          %s229 = sand.u32 %s29, 1
          %s230 = scalar_lea.sflag [#allocation4], %s229
          %s231 = sand.u32 %s29, 1
          %s232 = smul.addr %s231, 128
          %s233 = scalar_lea.vmem [#allocation3], %s232
          %s235 = ssub.s32 2048, 2048
          %236 = vsyncadd %s230, %s235
          %s237 = smul.addr %s19, 32
          %s238 = smul.addr %s237, 64
          %s239 = scalar_lea.hbm %s0, %s238
          %s240 = sshll.u32 %s233, 4
          %s241 = int_to_ptr.vmem [resolvable:$true] %s240
          %246 = dma.hbm_to_vmem [thread:$0]  %s239, 2048, %s241, %s230, 128, 128, 8
        $region36: #{tpu_custom_call.1} parent=31 // pred_fallthru
          _
      $region32: #{tpu_custom_call.1} parent=5 // pred_fallthru
        _
      %p247 = scmp.le.s32.totalorder 1, %s19
      %p248 = scmp.lt.s32.totalorder %s19, 3
      %p249 = pnand %p247, %p248
      %p250 = pneg %p249
      // Predicated region
      $region37: #{tpu_custom_call.1} parent=5 // pred_check
        _
      $region38: #{tpu_custom_call.1} parent=5 // pred_check_branch
        %252 = sbr.rel (%p249) target = $region40
      $region39: #{tpu_custom_call.1} parent=5 // pred_region
        %s253 = ssub.s32 %s19, 1
        %s254 = sand.u32 %s32, 1
        %s255 = scalar_lea.sflag [#allocation4], %s254
        %s256 = sand.u32 %s32, 1
        %s257 = smul.addr %s256, 128
        %s258 = scalar_lea.vmem [#allocation3], %s257
        // Predicated region
        $region41: #{tpu_custom_call.1} parent=39 // pred_check
          %p259 = pneg %p45
        $region42: #{tpu_custom_call.1} parent=39 // pred_check_branch
          %261 = sbr.rel (%p259) target = $region44
        $region43: #{tpu_custom_call.1} parent=39 // pred_region
          %262 = dma.done %s255, 2048
        $region44: #{tpu_custom_call.1} parent=39 // pred_fallthru
          _
        // Predicated region
        $region45: #{tpu_custom_call.1} parent=39 // pred_check
          %p263 = pneg %p66
        $region46: #{tpu_custom_call.1} parent=39 // pred_check_branch
          %265 = sbr.rel (%p263) target = $region48
        $region47: #{tpu_custom_call.1} parent=39 // pred_region
          %266 = dma.done [#allocation7], 8192
        $region48: #{tpu_custom_call.1} parent=39 // pred_fallthru
          _
        // Predicated region
        $region49: #{tpu_custom_call.1} parent=39 // pred_check
          %p267 = pneg %p87
        $region50: #{tpu_custom_call.1} parent=39 // pred_check_branch
          %269 = sbr.rel (%p267) target = $region52
        $region51: #{tpu_custom_call.1} parent=39 // pred_region
          %270 = dma.done [#allocation7], 4096
        $region52: #{tpu_custom_call.1} parent=39 // pred_fallthru
          _
        // Predicated region
        $region53: #{tpu_custom_call.1} parent=39 // pred_check
          %p271 = pneg %p108
        $region54: #{tpu_custom_call.1} parent=39 // pred_check_branch
          %273 = sbr.rel (%p271) target = $region56
        $region55: #{tpu_custom_call.1} parent=39 // pred_region
          %274 = dma.done [#allocation10], 2048
        $region56: #{tpu_custom_call.1} parent=39 // pred_fallthru
          _
        // Predicated region
        $region57: #{tpu_custom_call.1} parent=39 // pred_check
          %p275 = pneg %p129
        $region58: #{tpu_custom_call.1} parent=39 // pred_check_branch
          %277 = sbr.rel (%p275) target = $region60
        $region59: #{tpu_custom_call.1} parent=39 // pred_region
          %278 = dma.done [#allocation10], 2048
        $region60: #{tpu_custom_call.1} parent=39 // pred_fallthru
          _
        %s279 = sand.u32 %s32, 1
        %s280 = scalar_lea.sflag [#allocation4], %s279
        %s281 = sand.u32 %s32, 1
        %s282 = smul.addr %s281, 128
        %s283 = scalar_lea.vmem [#allocation3], %s282
        %p284 = pneg %p45
        %p285 = pneg %p42
        %p286 = pneg %p66
        %p287 = pneg %p63
        %p288 = pneg %p87
        %p289 = pneg %p84
        %p290 = pneg %p108
        %p291 = pneg %p105
        %p292 = pneg %p129
        %p293 = pneg %p126
        %p294 = pneg %p155
        %p295 = pneg %p152
        %s296 = sand.u32 %s142, 1
        %s297 = scalar_lea.sflag [#allocation5], %s296
        %s298 = sand.u32 %s142, 1
        %s299 = smul.addr %s298, 256
        %s300 = scalar_lea.vmem [#allocation12], %s299
        %v302 = vld [vmem:[%s258] sm:$0xff]
        %v303 = vld [vmem:[%s258 + $0x8] sm:$0xff]
        %v304 = vld [vmem:[%s258 + $0x10] sm:$0xff]
        %v305 = vld [vmem:[%s258 + $0x18] sm:$0xff]
        %v306 = vld [vmem:[%s258 + $0x20] sm:$0xff]
        %v307 = vld [vmem:[%s258 + $0x28] sm:$0xff]
        %v308 = vld [vmem:[%s258 + $0x30] sm:$0xff]
        %v309 = vld [vmem:[%s258 + $0x38] sm:$0xff]
        %v310 = vld [vmem:[%s258 + $0x40] sm:$0xff]
        %v311 = vld [vmem:[%s258 + $0x48] sm:$0xff]
        %v312 = vld [vmem:[%s258 + $0x50] sm:$0xff]
        %v313 = vld [vmem:[%s258 + $0x58] sm:$0xff]
        %v314 = vld [vmem:[%s258 + $0x60] sm:$0xff]
        %v315 = vld [vmem:[%s258 + $0x68] sm:$0xff]
        %v316 = vld [vmem:[%s258 + $0x70] sm:$0xff]
        %v317 = vld [vmem:[%s258 + $0x78] sm:$0xff]
        %v318 = vld [vmem:[#allocation6] sm:$0xff]
        %v319 = vld [vmem:[#allocation6 + $0x8] sm:$0xff]
        %v320 = vld [vmem:[#allocation6 + $0x10] sm:$0xff]
        %v321 = vld [vmem:[#allocation6 + $0x18] sm:$0xff]
        %v322 = vld [vmem:[#allocation6 + $0x20] sm:$0xff]
        %v323 = vld [vmem:[#allocation6 + $0x28] sm:$0xff]
        %v324 = vld [vmem:[#allocation6 + $0x30] sm:$0xff]
        %v325 = vld [vmem:[#allocation6 + $0x38] sm:$0xff]
        %v326 = vld [vmem:[#allocation6 + $0x40] sm:$0xff]
        %v327 = vld [vmem:[#allocation6 + $0x48] sm:$0xff]
        %v328 = vld [vmem:[#allocation6 + $0x50] sm:$0xff]
        %v329 = vld [vmem:[#allocation6 + $0x58] sm:$0xff]
        %v330 = vld [vmem:[#allocation6 + $0x60] sm:$0xff]
        %v331 = vld [vmem:[#allocation6 + $0x68] sm:$0xff]
        %v332 = vld [vmem:[#allocation6 + $0x70] sm:$0xff]
        %v333 = vld [vmem:[#allocation6 + $0x78] sm:$0xff]
        %v334 = vld [vmem:[#allocation6 + $0x80] sm:$0xff]
        %v335 = vld [vmem:[#allocation6 + $0x88] sm:$0xff]
        %v336 = vld [vmem:[#allocation6 + $0x90] sm:$0xff]
        %v337 = vld [vmem:[#allocation6 + $0x98] sm:$0xff]
        %v338 = vld [vmem:[#allocation6 + $0xa0] sm:$0xff]
        %v339 = vld [vmem:[#allocation6 + $0xa8] sm:$0xff]
        %v340 = vld [vmem:[#allocation6 + $0xb0] sm:$0xff]
        %v341 = vld [vmem:[#allocation6 + $0xb8] sm:$0xff]
        %v342 = vld [vmem:[#allocation6 + $0xc0] sm:$0xff]
        %v343 = vld [vmem:[#allocation6 + $0xc8] sm:$0xff]
        %v344 = vld [vmem:[#allocation6 + $0xd0] sm:$0xff]
        %v345 = vld [vmem:[#allocation6 + $0xd8] sm:$0xff]
        %v346 = vld [vmem:[#allocation6 + $0xe0] sm:$0xff]
        %v347 = vld [vmem:[#allocation6 + $0xe8] sm:$0xff]
        %v348 = vld [vmem:[#allocation6 + $0xf0] sm:$0xff]
        %v349 = vld [vmem:[#allocation6 + $0xf8] sm:$0xff]
        %v350 = vld [vmem:[#allocation6 + $0x100] sm:$0xff]
        %v351 = vld [vmem:[#allocation6 + $0x108] sm:$0xff]
        %v352 = vld [vmem:[#allocation6 + $0x110] sm:$0xff]
        %v353 = vld [vmem:[#allocation6 + $0x118] sm:$0xff]
        %v354 = vld [vmem:[#allocation6 + $0x120] sm:$0xff]
        %v355 = vld [vmem:[#allocation6 + $0x128] sm:$0xff]
        %v356 = vld [vmem:[#allocation6 + $0x130] sm:$0xff]
        %v357 = vld [vmem:[#allocation6 + $0x138] sm:$0xff]
        %v358 = vld [vmem:[#allocation6 + $0x140] sm:$0xff]
        %v359 = vld [vmem:[#allocation6 + $0x148] sm:$0xff]
        %v360 = vld [vmem:[#allocation6 + $0x150] sm:$0xff]
        %v361 = vld [vmem:[#allocation6 + $0x158] sm:$0xff]
        %v362 = vld [vmem:[#allocation6 + $0x160] sm:$0xff]
        %v363 = vld [vmem:[#allocation6 + $0x168] sm:$0xff]
        %v364 = vld [vmem:[#allocation6 + $0x170] sm:$0xff]
        %v365 = vld [vmem:[#allocation6 + $0x178] sm:$0xff]
        %v366 = vld [vmem:[#allocation6 + $0x180] sm:$0xff]
        %v367 = vld [vmem:[#allocation6 + $0x188] sm:$0xff]
        %v368 = vld [vmem:[#allocation6 + $0x190] sm:$0xff]
        %v369 = vld [vmem:[#allocation6 + $0x198] sm:$0xff]
        %v370 = vld [vmem:[#allocation6 + $0x1a0] sm:$0xff]
        %v371 = vld [vmem:[#allocation6 + $0x1a8] sm:$0xff]
        %v372 = vld [vmem:[#allocation6 + $0x1b0] sm:$0xff]
        %v373 = vld [vmem:[#allocation6 + $0x1b8] sm:$0xff]
        %v374 = vld [vmem:[#allocation6 + $0x1c0] sm:$0xff]
        %v375 = vld [vmem:[#allocation6 + $0x1c8] sm:$0xff]
        %v376 = vld [vmem:[#allocation6 + $0x1d0] sm:$0xff]
        %v377 = vld [vmem:[#allocation6 + $0x1d8] sm:$0xff]
        %v378 = vld [vmem:[#allocation6 + $0x1e0] sm:$0xff]
        %v379 = vld [vmem:[#allocation6 + $0x1e8] sm:$0xff]
        %v380 = vld [vmem:[#allocation6 + $0x1f0] sm:$0xff]
        %v381 = vld [vmem:[#allocation6 + $0x1f8] sm:$0xff]
        %v398 = vunpack.c.l.b16 %v302
        %v399 = vunpack.c.h.b16 %v302
        %v400 = vunpack.c.l.b16 %v303
        %v401 = vunpack.c.h.b16 %v303
        %v402 = vunpack.c.l.b16 %v304
        %v403 = vunpack.c.h.b16 %v304
        %v404 = vunpack.c.l.b16 %v305
        %v405 = vunpack.c.h.b16 %v305
        %v406 = vunpack.c.l.b16 %v306
        %v407 = vunpack.c.h.b16 %v306
        %v408 = vunpack.c.l.b16 %v307
        %v409 = vunpack.c.h.b16 %v307
        %v410 = vunpack.c.l.b16 %v308
        %v411 = vunpack.c.h.b16 %v308
        %v412 = vunpack.c.l.b16 %v309
        %v413 = vunpack.c.h.b16 %v309
        %v414 = vunpack.c.l.b16 %v310
        %v415 = vunpack.c.h.b16 %v310
        %v416 = vunpack.c.l.b16 %v311
        %v417 = vunpack.c.h.b16 %v311
        %v418 = vunpack.c.l.b16 %v312
        %v419 = vunpack.c.h.b16 %v312
        %v420 = vunpack.c.l.b16 %v313
        %v421 = vunpack.c.h.b16 %v313
        %v422 = vunpack.c.l.b16 %v314
        %v423 = vunpack.c.h.b16 %v314
        %v424 = vunpack.c.l.b16 %v315
        %v425 = vunpack.c.h.b16 %v315
        %v426 = vunpack.c.l.b16 %v316
        %v427 = vunpack.c.h.b16 %v316
        %v428 = vunpack.c.l.b16 %v317
        %v429 = vunpack.c.h.b16 %v317
        %v430 = vpack.c.b16 %v400, %v398
        %v431 = vpack.c.b16 %v401, %v399
        %v432 = vpack.c.b16 %v404, %v402
        %v433 = vpack.c.b16 %v405, %v403
        %v434 = vpack.c.b16 %v408, %v406
        %v435 = vpack.c.b16 %v409, %v407
        %v436 = vpack.c.b16 %v412, %v410
        %v437 = vpack.c.b16 %v413, %v411
        %v438 = vpack.c.b16 %v416, %v414
        %v439 = vpack.c.b16 %v417, %v415
        %v440 = vpack.c.b16 %v420, %v418
        %v441 = vpack.c.b16 %v421, %v419
        %v442 = vpack.c.b16 %v424, %v422
        %v443 = vpack.c.b16 %v425, %v423
        %v444 = vpack.c.b16 %v428, %v426
        %v445 = vpack.c.b16 %v429, %v427
        %v526 = vunpack.c.l.b16 %v318
        %v527 = vunpack.c.h.b16 %v318
        %v528 = vunpack.c.l.b16 %v319
        %v529 = vunpack.c.h.b16 %v319
        %v530 = vunpack.c.l.b16 %v320
        %v531 = vunpack.c.h.b16 %v320
        %v532 = vunpack.c.l.b16 %v321
        %v533 = vunpack.c.h.b16 %v321
        %v534 = vunpack.c.l.b16 %v322
        %v535 = vunpack.c.h.b16 %v322
        %v536 = vunpack.c.l.b16 %v323
        %v537 = vunpack.c.h.b16 %v323
        %v538 = vunpack.c.l.b16 %v324
        %v539 = vunpack.c.h.b16 %v324
        %v540 = vunpack.c.l.b16 %v325
        %v541 = vunpack.c.h.b16 %v325
        %v542 = vunpack.c.l.b16 %v326
        %v543 = vunpack.c.h.b16 %v326
        %v544 = vunpack.c.l.b16 %v327
        %v545 = vunpack.c.h.b16 %v327
        %v546 = vunpack.c.l.b16 %v328
        %v547 = vunpack.c.h.b16 %v328
        %v548 = vunpack.c.l.b16 %v329
        %v549 = vunpack.c.h.b16 %v329
        %v550 = vunpack.c.l.b16 %v330
        %v551 = vunpack.c.h.b16 %v330
        %v552 = vunpack.c.l.b16 %v331
        %v553 = vunpack.c.h.b16 %v331
        %v554 = vunpack.c.l.b16 %v332
        %v555 = vunpack.c.h.b16 %v332
        %v556 = vunpack.c.l.b16 %v333
        %v557 = vunpack.c.h.b16 %v333
        %v558 = vunpack.c.l.b16 %v334
        %v559 = vunpack.c.h.b16 %v334
        %v560 = vunpack.c.l.b16 %v335
        %v561 = vunpack.c.h.b16 %v335
        %v562 = vunpack.c.l.b16 %v336
        %v563 = vunpack.c.h.b16 %v336
        %v564 = vunpack.c.l.b16 %v337
        %v565 = vunpack.c.h.b16 %v337
        %v566 = vunpack.c.l.b16 %v338
        %v567 = vunpack.c.h.b16 %v338
        %v568 = vunpack.c.l.b16 %v339
        %v569 = vunpack.c.h.b16 %v339
        %v570 = vunpack.c.l.b16 %v340
        %v571 = vunpack.c.h.b16 %v340
        %v572 = vunpack.c.l.b16 %v341
        %v573 = vunpack.c.h.b16 %v341
        %v574 = vunpack.c.l.b16 %v342
        %v575 = vunpack.c.h.b16 %v342
        %v576 = vunpack.c.l.b16 %v343
        %v577 = vunpack.c.h.b16 %v343
        %v578 = vunpack.c.l.b16 %v344
        %v579 = vunpack.c.h.b16 %v344
        %v580 = vunpack.c.l.b16 %v345
        %v581 = vunpack.c.h.b16 %v345
        %v582 = vunpack.c.l.b16 %v346
        %v583 = vunpack.c.h.b16 %v346
        %v584 = vunpack.c.l.b16 %v347
        %v585 = vunpack.c.h.b16 %v347
        %v586 = vunpack.c.l.b16 %v348
        %v587 = vunpack.c.h.b16 %v348
        %v588 = vunpack.c.l.b16 %v349
        %v589 = vunpack.c.h.b16 %v349
        %v590 = vunpack.c.l.b16 %v350
        %v591 = vunpack.c.h.b16 %v350
        %v592 = vunpack.c.l.b16 %v351
        %v593 = vunpack.c.h.b16 %v351
        %v594 = vunpack.c.l.b16 %v352
        %v595 = vunpack.c.h.b16 %v352
        %v596 = vunpack.c.l.b16 %v353
        %v597 = vunpack.c.h.b16 %v353
        %v598 = vunpack.c.l.b16 %v354
        %v599 = vunpack.c.h.b16 %v354
        %v600 = vunpack.c.l.b16 %v355
        %v601 = vunpack.c.h.b16 %v355
        %v602 = vunpack.c.l.b16 %v356
        %v603 = vunpack.c.h.b16 %v356
        %v604 = vunpack.c.l.b16 %v357
        %v605 = vunpack.c.h.b16 %v357
        %v606 = vunpack.c.l.b16 %v358
        %v607 = vunpack.c.h.b16 %v358
        %v608 = vunpack.c.l.b16 %v359
        %v609 = vunpack.c.h.b16 %v359
        %v610 = vunpack.c.l.b16 %v360
        %v611 = vunpack.c.h.b16 %v360
        %v612 = vunpack.c.l.b16 %v361
        %v613 = vunpack.c.h.b16 %v361
        %v614 = vunpack.c.l.b16 %v362
        %v615 = vunpack.c.h.b16 %v362
        %v616 = vunpack.c.l.b16 %v363
        %v617 = vunpack.c.h.b16 %v363
        %v618 = vunpack.c.l.b16 %v364
        %v619 = vunpack.c.h.b16 %v364
        %v620 = vunpack.c.l.b16 %v365
        %v621 = vunpack.c.h.b16 %v365
        %v622 = vunpack.c.l.b16 %v366
        %v623 = vunpack.c.h.b16 %v366
        %v624 = vunpack.c.l.b16 %v367
        %v625 = vunpack.c.h.b16 %v367
        %v626 = vunpack.c.l.b16 %v368
        %v627 = vunpack.c.h.b16 %v368
        %v628 = vunpack.c.l.b16 %v369
        %v629 = vunpack.c.h.b16 %v369
        %v630 = vunpack.c.l.b16 %v370
        %v631 = vunpack.c.h.b16 %v370
        %v632 = vunpack.c.l.b16 %v371
        %v633 = vunpack.c.h.b16 %v371
        %v634 = vunpack.c.l.b16 %v372
        %v635 = vunpack.c.h.b16 %v372
        %v636 = vunpack.c.l.b16 %v373
        %v637 = vunpack.c.h.b16 %v373
        %v638 = vunpack.c.l.b16 %v374
        %v639 = vunpack.c.h.b16 %v374
        %v640 = vunpack.c.l.b16 %v375
        %v641 = vunpack.c.h.b16 %v375
        %v642 = vunpack.c.l.b16 %v376
        %v643 = vunpack.c.h.b16 %v376
        %v644 = vunpack.c.l.b16 %v377
        %v645 = vunpack.c.h.b16 %v377
        %v646 = vunpack.c.l.b16 %v378
        %v647 = vunpack.c.h.b16 %v378
        %v648 = vunpack.c.l.b16 %v379
        %v649 = vunpack.c.h.b16 %v379
        %v650 = vunpack.c.l.b16 %v380
        %v651 = vunpack.c.h.b16 %v380
        %v652 = vunpack.c.l.b16 %v381
        %v653 = vunpack.c.h.b16 %v381
        %v654 = vpack.c.b16 %v530, %v526
        %v655 = vpack.c.b16 %v531, %v527
        %v656 = vpack.c.b16 %v532, %v528
        %v657 = vpack.c.b16 %v533, %v529
        %v658 = vpack.c.b16 %v538, %v534
        %v659 = vpack.c.b16 %v539, %v535
        %v660 = vpack.c.b16 %v540, %v536
        %v661 = vpack.c.b16 %v541, %v537
        %v662 = vpack.c.b16 %v546, %v542
        %v663 = vpack.c.b16 %v547, %v543
        %v664 = vpack.c.b16 %v548, %v544
        %v665 = vpack.c.b16 %v549, %v545
        %v666 = vpack.c.b16 %v554, %v550
        %v667 = vpack.c.b16 %v555, %v551
        %v668 = vpack.c.b16 %v556, %v552
        %v669 = vpack.c.b16 %v557, %v553
        %v670 = vpack.c.b16 %v562, %v558
        %v671 = vpack.c.b16 %v563, %v559
        %v672 = vpack.c.b16 %v564, %v560
        %v673 = vpack.c.b16 %v565, %v561
        %v674 = vpack.c.b16 %v570, %v566
        %v675 = vpack.c.b16 %v571, %v567
        %v676 = vpack.c.b16 %v572, %v568
        %v677 = vpack.c.b16 %v573, %v569
        %v678 = vpack.c.b16 %v578, %v574
        %v679 = vpack.c.b16 %v579, %v575
        %v680 = vpack.c.b16 %v580, %v576
        %v681 = vpack.c.b16 %v581, %v577
        %v682 = vpack.c.b16 %v586, %v582
        %v683 = vpack.c.b16 %v587, %v583
        %v684 = vpack.c.b16 %v588, %v584
        %v685 = vpack.c.b16 %v589, %v585
        %v686 = vpack.c.b16 %v594, %v590
        %v687 = vpack.c.b16 %v595, %v591
        %v688 = vpack.c.b16 %v596, %v592
        %v689 = vpack.c.b16 %v597, %v593
        %v690 = vpack.c.b16 %v602, %v598
        %v691 = vpack.c.b16 %v603, %v599
        %v692 = vpack.c.b16 %v604, %v600
        %v693 = vpack.c.b16 %v605, %v601
        %v694 = vpack.c.b16 %v610, %v606
        %v695 = vpack.c.b16 %v611, %v607
        %v696 = vpack.c.b16 %v612, %v608
        %v697 = vpack.c.b16 %v613, %v609
        %v698 = vpack.c.b16 %v618, %v614
        %v699 = vpack.c.b16 %v619, %v615
        %v700 = vpack.c.b16 %v620, %v616
        %v701 = vpack.c.b16 %v621, %v617
        %v702 = vpack.c.b16 %v626, %v622
        %v703 = vpack.c.b16 %v627, %v623
        %v704 = vpack.c.b16 %v628, %v624
        %v705 = vpack.c.b16 %v629, %v625
        %v706 = vpack.c.b16 %v634, %v630
        %v707 = vpack.c.b16 %v635, %v631
        %v708 = vpack.c.b16 %v636, %v632
        %v709 = vpack.c.b16 %v637, %v633
        %v710 = vpack.c.b16 %v642, %v638
        %v711 = vpack.c.b16 %v643, %v639
        %v712 = vpack.c.b16 %v644, %v640
        %v713 = vpack.c.b16 %v645, %v641
        %v714 = vpack.c.b16 %v650, %v646
        %v715 = vpack.c.b16 %v651, %v647
        %v716 = vpack.c.b16 %v652, %v648
        %v717 = vpack.c.b16 %v653, %v649
        %782 = vmatprep.subr.bf16.mxu0 %v655
        %783 = vmatpush1.bf16.msra.mxu0 %v654
        %784 = vmatprep.subr.bf16.mxu0 %v659
        %785 = vmatpush1.bf16.msra.mxu0 %v658
        %786 = vmatprep.subr.bf16.mxu0 %v663
        %787 = vmatpush1.bf16.msra.mxu0 %v662
        %788 = vmatprep.subr.bf16.mxu0 %v667
        %789 = vmatpush1.bf16.msra.mxu0 %v666
        %790 = vmatprep.subr.bf16.mxu0 %v671
        %791 = vmatpush1.bf16.msra.mxu0 %v670
        %792 = vmatprep.subr.bf16.mxu0 %v675
        %793 = vmatpush1.bf16.msra.mxu0 %v674
        %794 = vmatprep.subr.bf16.mxu0 %v679
        %795 = vmatpush1.bf16.msra.mxu0 %v678
        %796 = vmatprep.subr.bf16.mxu0 %v683
        %797 = vmatpush1.bf16.msra.mxu0 %v682
        %798 = vmatprep.subr.bf16.mxu0 %v687
        %799 = vmatpush1.bf16.msra.mxu0 %v686
        %800 = vmatprep.subr.bf16.mxu0 %v691
        %801 = vmatpush1.bf16.msra.mxu0 %v690
        %802 = vmatprep.subr.bf16.mxu0 %v695
        %803 = vmatpush1.bf16.msra.mxu0 %v694
        %804 = vmatprep.subr.bf16.mxu0 %v699
        %805 = vmatpush1.bf16.msra.mxu0 %v698
        %806 = vmatprep.subr.bf16.mxu0 %v703
        %807 = vmatpush1.bf16.msra.mxu0 %v702
        %808 = vmatprep.subr.bf16.mxu0 %v707
        %809 = vmatpush1.bf16.msra.mxu0 %v706
        %810 = vmatprep.subr.bf16.mxu0 %v711
        %811 = vmatpush1.bf16.msra.mxu0 %v710
        %812 = vmatprep.subr.bf16.mxu0 %v715
        %813 = vmatpush1.bf16.msra.mxu0 %v714
        %814 = vmatprep.mubr.bf16.mxu0 %v431
        %815 = vmatmul.mubr.bf16.gmra.mrb[0].mxu0 %v430
        %v816 = vpop.f32.mrb[0].mxu0
        %v817 = vadd.f32 0.0, %v816
        %v818 = vpop.f32.mrb[0].mxu0
        %v819 = vadd.f32 0.0, %v818
        %v820 = vpop.f32.mrb[0].mxu0
        %v821 = vadd.f32 0.0, %v820
        %v822 = vpop.f32.mrb[0].mxu0
        %v823 = vadd.f32 0.0, %v822
        %824 = vmatprep.mubr.bf16.mxu0 %v433
        %825 = vmatmul.mubr.bf16.gmra.mrb[0].mxu0 %v432
        %v826 = vpop.f32.mrb[0].mxu0
        %v827 = vadd.f32 0.0, %v826
        %v828 = vpop.f32.mrb[0].mxu0
        %v829 = vadd.f32 0.0, %v828
        %v830 = vpop.f32.mrb[0].mxu0
        %v831 = vadd.f32 0.0, %v830
        %v832 = vpop.f32.mrb[0].mxu0
        %v833 = vadd.f32 0.0, %v832
        %834 = vmatprep.mubr.bf16.mxu0 %v435
        %835 = vmatmul.mubr.bf16.gmra.mrb[0].mxu0 %v434
        %v836 = vpop.f32.mrb[0].mxu0
        %v837 = vadd.f32 0.0, %v836
        %v838 = vpop.f32.mrb[0].mxu0
        %v839 = vadd.f32 0.0, %v838
        %v840 = vpop.f32.mrb[0].mxu0
        %v841 = vadd.f32 0.0, %v840
        %v842 = vpop.f32.mrb[0].mxu0
        %v843 = vadd.f32 0.0, %v842
        %844 = vmatprep.mubr.bf16.mxu0 %v437
        %845 = vmatmul.mubr.bf16.gmra.mrb[0].mxu0 %v436
        %v846 = vpop.f32.mrb[0].mxu0
        %v847 = vadd.f32 0.0, %v846
        %v848 = vpop.f32.mrb[0].mxu0
        %v849 = vadd.f32 0.0, %v848
        %v850 = vpop.f32.mrb[0].mxu0
        %v851 = vadd.f32 0.0, %v850
        %v852 = vpop.f32.mrb[0].mxu0
        %v853 = vadd.f32 0.0, %v852
        %854 = vmatprep.mubr.bf16.mxu0 %v439
        %855 = vmatmul.mubr.bf16.gmra.mrb[0].mxu0 %v438
        %v856 = vpop.f32.mrb[0].mxu0
        %v857 = vadd.f32 0.0, %v856
        %v858 = vpop.f32.mrb[0].mxu0
        %v859 = vadd.f32 0.0, %v858
        %v860 = vpop.f32.mrb[0].mxu0
        %v861 = vadd.f32 0.0, %v860
        %v862 = vpop.f32.mrb[0].mxu0
        %v863 = vadd.f32 0.0, %v862
        %864 = vmatprep.mubr.bf16.mxu0 %v441
        %865 = vmatmul.mubr.bf16.gmra.mrb[0].mxu0 %v440
        %v866 = vpop.f32.mrb[0].mxu0
        %v867 = vadd.f32 0.0, %v866
        %v868 = vpop.f32.mrb[0].mxu0
        %v869 = vadd.f32 0.0, %v868
        %v870 = vpop.f32.mrb[0].mxu0
        %v871 = vadd.f32 0.0, %v870
        %v872 = vpop.f32.mrb[0].mxu0
        %v873 = vadd.f32 0.0, %v872
        %874 = vmatprep.mubr.bf16.mxu0 %v443
        %875 = vmatmul.mubr.bf16.gmra.mrb[0].mxu0 %v442
        %v876 = vpop.f32.mrb[0].mxu0
        %v877 = vadd.f32 0.0, %v876
        %v878 = vpop.f32.mrb[0].mxu0
        %v879 = vadd.f32 0.0, %v878
        %v880 = vpop.f32.mrb[0].mxu0
        %v881 = vadd.f32 0.0, %v880
        %v882 = vpop.f32.mrb[0].mxu0
        %v883 = vadd.f32 0.0, %v882
        %884 = vmatprep.mubr.bf16.mxu0 %v445
        %885 = vmatmul.mubr.bf16.gmra.mrb[0].mxu0 %v444
        %v886 = vpop.f32.mrb[0].mxu0
        %v887 = vadd.f32 0.0, %v886
        %v888 = vpop.f32.mrb[0].mxu0
        %v889 = vadd.f32 0.0, %v888
        %v890 = vpop.f32.mrb[0].mxu0
        %v891 = vadd.f32 0.0, %v890
        %v892 = vpop.f32.mrb[0].mxu0
        %v893 = vadd.f32 0.0, %v892
        %894 = vdwg.mxu0
        %895 = vmatprep.subr.bf16.mxu0 %v657
        %896 = vmatpush1.bf16.msra.mxu0 %v656
        %897 = vmatprep.subr.bf16.mxu0 %v661
        %898 = vmatpush1.bf16.msra.mxu0 %v660
        %899 = vmatprep.subr.bf16.mxu0 %v665
        %900 = vmatpush1.bf16.msra.mxu0 %v664
        %901 = vmatprep.subr.bf16.mxu0 %v669
        %902 = vmatpush1.bf16.msra.mxu0 %v668
        %903 = vmatprep.subr.bf16.mxu0 %v673
        %904 = vmatpush1.bf16.msra.mxu0 %v672
        %905 = vmatprep.subr.bf16.mxu0 %v677
        %906 = vmatpush1.bf16.msra.mxu0 %v676
        %907 = vmatprep.subr.bf16.mxu0 %v681
        %908 = vmatpush1.bf16.msra.mxu0 %v680
        %909 = vmatprep.subr.bf16.mxu0 %v685
        %910 = vmatpush1.bf16.msra.mxu0 %v684
        %911 = vmatprep.subr.bf16.mxu0 %v689
        %912 = vmatpush1.bf16.msra.mxu0 %v688
        %913 = vmatprep.subr.bf16.mxu0 %v693
        %914 = vmatpush1.bf16.msra.mxu0 %v692
        %915 = vmatprep.subr.bf16.mxu0 %v697
        %916 = vmatpush1.bf16.msra.mxu0 %v696
        %917 = vmatprep.subr.bf16.mxu0 %v701
        %918 = vmatpush1.bf16.msra.mxu0 %v700
        %919 = vmatprep.subr.bf16.mxu0 %v705
        %920 = vmatpush1.bf16.msra.mxu0 %v704
        %921 = vmatprep.subr.bf16.mxu0 %v709
        %922 = vmatpush1.bf16.msra.mxu0 %v708
        %923 = vmatprep.subr.bf16.mxu0 %v713
        %924 = vmatpush1.bf16.msra.mxu0 %v712
        %925 = vmatprep.subr.bf16.mxu0 %v717
        %926 = vmatpush1.bf16.msra.mxu0 %v716
        %927 = vmatprep.mubr.bf16.mxu0 %v431
        %928 = vmatmul.mubr.bf16.gmra.mrb[0].mxu0 %v430
        %v929 = vpop.f32.mrb[0].mxu0
        %v930 = vadd.f32 0.0, %v929
        %v931 = vpop.f32.mrb[0].mxu0
        %v932 = vadd.f32 0.0, %v931
        %v933 = vpop.f32.mrb[0].mxu0
        %v934 = vadd.f32 0.0, %v933
        %v935 = vpop.f32.mrb[0].mxu0
        %v936 = vadd.f32 0.0, %v935
        %937 = vmatprep.mubr.bf16.mxu0 %v433
        %938 = vmatmul.mubr.bf16.gmra.mrb[0].mxu0 %v432
        %v939 = vpop.f32.mrb[0].mxu0
        %v940 = vadd.f32 0.0, %v939
        %v941 = vpop.f32.mrb[0].mxu0
        %v942 = vadd.f32 0.0, %v941
        %v943 = vpop.f32.mrb[0].mxu0
        %v944 = vadd.f32 0.0, %v943
        %v945 = vpop.f32.mrb[0].mxu0
        %v946 = vadd.f32 0.0, %v945
        %947 = vmatprep.mubr.bf16.mxu0 %v435
        %948 = vmatmul.mubr.bf16.gmra.mrb[0].mxu0 %v434
        %v949 = vpop.f32.mrb[0].mxu0
        %v950 = vadd.f32 0.0, %v949
        %v951 = vpop.f32.mrb[0].mxu0
        %v952 = vadd.f32 0.0, %v951
        %v953 = vpop.f32.mrb[0].mxu0
        %v954 = vadd.f32 0.0, %v953
        %v955 = vpop.f32.mrb[0].mxu0
        %v956 = vadd.f32 0.0, %v955
        %957 = vmatprep.mubr.bf16.mxu0 %v437
        %958 = vmatmul.mubr.bf16.gmra.mrb[0].mxu0 %v436
        %v959 = vpop.f32.mrb[0].mxu0
        %v960 = vadd.f32 0.0, %v959
        %v961 = vpop.f32.mrb[0].mxu0
        %v962 = vadd.f32 0.0, %v961
        %v963 = vpop.f32.mrb[0].mxu0
        %v964 = vadd.f32 0.0, %v963
        %v965 = vpop.f32.mrb[0].mxu0
        %v966 = vadd.f32 0.0, %v965
        %967 = vmatprep.mubr.bf16.mxu0 %v439
        %968 = vmatmul.mubr.bf16.gmra.mrb[0].mxu0 %v438
        %v969 = vpop.f32.mrb[0].mxu0
        %v970 = vadd.f32 0.0, %v969
        %v971 = vpop.f32.mrb[0].mxu0
        %v972 = vadd.f32 0.0, %v971
        %v973 = vpop.f32.mrb[0].mxu0
        %v974 = vadd.f32 0.0, %v973
        %v975 = vpop.f32.mrb[0].mxu0
        %v976 = vadd.f32 0.0, %v975
        %977 = vmatprep.mubr.bf16.mxu0 %v441
        %978 = vmatmul.mubr.bf16.gmra.mrb[0].mxu0 %v440
        %v979 = vpop.f32.mrb[0].mxu0
        %v980 = vadd.f32 0.0, %v979
        %v981 = vpop.f32.mrb[0].mxu0
        %v982 = vadd.f32 0.0, %v981
        %v983 = vpop.f32.mrb[0].mxu0
        %v984 = vadd.f32 0.0, %v983
        %v985 = vpop.f32.mrb[0].mxu0
        %v986 = vadd.f32 0.0, %v985
        %987 = vmatprep.mubr.bf16.mxu0 %v443
        %988 = vmatmul.mubr.bf16.gmra.mrb[0].mxu0 %v442
        %v989 = vpop.f32.mrb[0].mxu0
        %v990 = vadd.f32 0.0, %v989
        %v991 = vpop.f32.mrb[0].mxu0
        %v992 = vadd.f32 0.0, %v991
        %v993 = vpop.f32.mrb[0].mxu0
        %v994 = vadd.f32 0.0, %v993
        %v995 = vpop.f32.mrb[0].mxu0
        %v996 = vadd.f32 0.0, %v995
        %997 = vmatprep.mubr.bf16.mxu0 %v445
        %998 = vmatmul.mubr.bf16.gmra.mrb[0].mxu0 %v444
        %v999 = vpop.f32.mrb[0].mxu0
        %v1000 = vadd.f32 0.0, %v999
        %v1001 = vpop.f32.mrb[0].mxu0
        %v1002 = vadd.f32 0.0, %v1001
        %v1003 = vpop.f32.mrb[0].mxu0
        %v1004 = vadd.f32 0.0, %v1003
        %v1005 = vpop.f32.mrb[0].mxu0
        %v1006 = vadd.f32 0.0, %v1005
        %1007 = vdwg.mxu0
        %v1008 = vpack.c.bf16 %v936, %v932
        %v1009 = vpack.c.bf16 %v946, %v942
        %v1010 = vpack.c.bf16 %v956, %v952
        %v1011 = vpack.c.bf16 %v966, %v962
        %v1012 = vpack.c.bf16 %v976, %v972
        %v1013 = vpack.c.bf16 %v986, %v982
        %v1014 = vpack.c.bf16 %v996, %v992
        %v1015 = vpack.c.bf16 %v1006, %v1002
        %v1016 = vld [vmem:[#allocation9] sm:$0xff]
        %v1017 = vld [vmem:[#allocation9 + $0x8] sm:$0xff]
        %v1018 = vld [vmem:[#allocation9 + $0x10] sm:$0xff]
        %v1019 = vld [vmem:[#allocation9 + $0x18] sm:$0xff]
        %v1020 = vld [vmem:[#allocation9 + $0x20] sm:$0xff]
        %v1021 = vld [vmem:[#allocation9 + $0x28] sm:$0xff]
        %v1022 = vld [vmem:[#allocation9 + $0x30] sm:$0xff]
        %v1023 = vld [vmem:[#allocation9 + $0x38] sm:$0xff]
        %v1024 = vld [vmem:[#allocation9 + $0x40] sm:$0xff]
        %v1025 = vld [vmem:[#allocation9 + $0x48] sm:$0xff]
        %v1026 = vld [vmem:[#allocation9 + $0x50] sm:$0xff]
        %v1027 = vld [vmem:[#allocation9 + $0x58] sm:$0xff]
        %v1028 = vld [vmem:[#allocation9 + $0x60] sm:$0xff]
        %v1029 = vld [vmem:[#allocation9 + $0x68] sm:$0xff]
        %v1030 = vld [vmem:[#allocation9 + $0x70] sm:$0xff]
        %v1031 = vld [vmem:[#allocation9 + $0x78] sm:$0xff]
        %v1032 = vld [vmem:[#allocation11] sm:$0xff]
        %v1033 = vld [vmem:[#allocation11 + $0x8] sm:$0xff]
        %v1034 = vld [vmem:[#allocation11 + $0x10] sm:$0xff]
        %v1035 = vld [vmem:[#allocation11 + $0x18] sm:$0xff]
        %v1036 = vld [vmem:[#allocation11 + $0x20] sm:$0xff]
        %v1037 = vld [vmem:[#allocation11 + $0x28] sm:$0xff]
        %v1038 = vld [vmem:[#allocation11 + $0x30] sm:$0xff]
        %v1039 = vld [vmem:[#allocation11 + $0x38] sm:$0xff]
        %v1040 = vld [vmem:[#allocation11 + $0x40] sm:$0xff]
        %v1041 = vld [vmem:[#allocation11 + $0x48] sm:$0xff]
        %v1042 = vld [vmem:[#allocation11 + $0x50] sm:$0xff]
        %v1043 = vld [vmem:[#allocation11 + $0x58] sm:$0xff]
        %v1044 = vld [vmem:[#allocation11 + $0x60] sm:$0xff]
        %v1045 = vld [vmem:[#allocation11 + $0x68] sm:$0xff]
        %v1046 = vld [vmem:[#allocation11 + $0x70] sm:$0xff]
        %v1047 = vld [vmem:[#allocation11 + $0x78] sm:$0xff]
        %v1048 = vmul.f32 %v817, %v1016
        %v1049 = vmul.f32 %v821, %v1017
        %v1050 = vmul.f32 %v827, %v1018
        %v1051 = vmul.f32 %v831, %v1019
        %v1052 = vmul.f32 %v837, %v1020
        %v1053 = vmul.f32 %v841, %v1021
        %v1054 = vmul.f32 %v847, %v1022
        %v1055 = vmul.f32 %v851, %v1023
        %v1056 = vmul.f32 %v857, %v1024
        %v1057 = vmul.f32 %v861, %v1025
        %v1058 = vmul.f32 %v867, %v1026
        %v1059 = vmul.f32 %v871, %v1027
        %v1060 = vmul.f32 %v877, %v1028
        %v1061 = vmul.f32 %v881, %v1029
        %v1062 = vmul.f32 %v887, %v1030
        %v1063 = vmul.f32 %v891, %v1031
        %v1064 = vmul.f32 %v819, %v1032
        %v1065 = vmul.f32 %v823, %v1033
        %v1066 = vmul.f32 %v829, %v1034
        %v1067 = vmul.f32 %v833, %v1035
        %v1068 = vmul.f32 %v839, %v1036
        %v1069 = vmul.f32 %v843, %v1037
        %v1070 = vmul.f32 %v849, %v1038
        %v1071 = vmul.f32 %v853, %v1039
        %v1072 = vmul.f32 %v859, %v1040
        %v1073 = vmul.f32 %v863, %v1041
        %v1074 = vmul.f32 %v869, %v1042
        %v1075 = vmul.f32 %v873, %v1043
        %v1076 = vmul.f32 %v879, %v1044
        %v1077 = vmul.f32 %v883, %v1045
        %v1078 = vmul.f32 %v889, %v1046
        %v1079 = vmul.f32 %v893, %v1047
        %v1080 = vsub.f32 %v1048, %v1064
        %v1081 = vsub.f32 %v1049, %v1065
        %v1082 = vsub.f32 %v1050, %v1066
        %v1083 = vsub.f32 %v1051, %v1067
        %v1084 = vsub.f32 %v1052, %v1068
        %v1085 = vsub.f32 %v1053, %v1069
        %v1086 = vsub.f32 %v1054, %v1070
        %v1087 = vsub.f32 %v1055, %v1071
        %v1088 = vsub.f32 %v1056, %v1072
        %v1089 = vsub.f32 %v1057, %v1073
        %v1090 = vsub.f32 %v1058, %v1074
        %v1091 = vsub.f32 %v1059, %v1075
        %v1092 = vsub.f32 %v1060, %v1076
        %v1093 = vsub.f32 %v1061, %v1077
        %v1094 = vsub.f32 %v1062, %v1078
        %v1095 = vsub.f32 %v1063, %v1079
        %v1096 = vpack.c.bf16 %v1081, %v1080
        %v1097 = vpack.c.bf16 %v1083, %v1082
        %v1098 = vpack.c.bf16 %v1085, %v1084
        %v1099 = vpack.c.bf16 %v1087, %v1086
        %v1100 = vpack.c.bf16 %v1089, %v1088
        %v1101 = vpack.c.bf16 %v1091, %v1090
        %v1102 = vpack.c.bf16 %v1093, %v1092
        %v1103 = vpack.c.bf16 %v1095, %v1094
        %v1104 = vmul.f32 %v817, %v1032
        %v1105 = vmul.f32 %v821, %v1033
        %v1106 = vmul.f32 %v827, %v1034
        %v1107 = vmul.f32 %v831, %v1035
        %v1108 = vmul.f32 %v837, %v1036
        %v1109 = vmul.f32 %v841, %v1037
        %v1110 = vmul.f32 %v847, %v1038
        %v1111 = vmul.f32 %v851, %v1039
        %v1112 = vmul.f32 %v857, %v1040
        %v1113 = vmul.f32 %v861, %v1041
        %v1114 = vmul.f32 %v867, %v1042
        %v1115 = vmul.f32 %v871, %v1043
        %v1116 = vmul.f32 %v877, %v1044
        %v1117 = vmul.f32 %v881, %v1045
        %v1118 = vmul.f32 %v887, %v1046
        %v1119 = vmul.f32 %v891, %v1047
        %v1120 = vmul.f32 %v819, %v1016
        %v1121 = vmul.f32 %v823, %v1017
        %v1122 = vmul.f32 %v829, %v1018
        %v1123 = vmul.f32 %v833, %v1019
        %v1124 = vmul.f32 %v839, %v1020
        %v1125 = vmul.f32 %v843, %v1021
        %v1126 = vmul.f32 %v849, %v1022
        %v1127 = vmul.f32 %v853, %v1023
        %v1128 = vmul.f32 %v859, %v1024
        %v1129 = vmul.f32 %v863, %v1025
        %v1130 = vmul.f32 %v869, %v1026
        %v1131 = vmul.f32 %v873, %v1027
        %v1132 = vmul.f32 %v879, %v1028
        %v1133 = vmul.f32 %v883, %v1029
        %v1134 = vmul.f32 %v889, %v1030
        %v1135 = vmul.f32 %v893, %v1031
        %v1136 = vadd.f32 %v1104, %v1120
        %v1137 = vadd.f32 %v1105, %v1121
        %v1138 = vadd.f32 %v1106, %v1122
        %v1139 = vadd.f32 %v1107, %v1123
        %v1140 = vadd.f32 %v1108, %v1124
        %v1141 = vadd.f32 %v1109, %v1125
        %v1142 = vadd.f32 %v1110, %v1126
        %v1143 = vadd.f32 %v1111, %v1127
        %v1144 = vadd.f32 %v1112, %v1128
        %v1145 = vadd.f32 %v1113, %v1129
        %v1146 = vadd.f32 %v1114, %v1130
        %v1147 = vadd.f32 %v1115, %v1131
        %v1148 = vadd.f32 %v1116, %v1132
        %v1149 = vadd.f32 %v1117, %v1133
        %v1150 = vadd.f32 %v1118, %v1134
        %v1151 = vadd.f32 %v1119, %v1135
        %v1152 = vpack.c.bf16 %v1137, %v1136
        %v1153 = vpack.c.bf16 %v1139, %v1138
        %v1154 = vpack.c.bf16 %v1141, %v1140
        %v1155 = vpack.c.bf16 %v1143, %v1142
        %v1156 = vpack.c.bf16 %v1145, %v1144
        %v1157 = vpack.c.bf16 %v1147, %v1146
        %v1158 = vpack.c.bf16 %v1149, %v1148
        %v1159 = vpack.c.bf16 %v1151, %v1150
        %v1160 = vmul.f32 %v930, %v1016
        %v1161 = vmul.f32 %v934, %v1017
        %v1162 = vmul.f32 %v940, %v1018
        %v1163 = vmul.f32 %v944, %v1019
        %v1164 = vmul.f32 %v950, %v1020
        %v1165 = vmul.f32 %v954, %v1021
        %v1166 = vmul.f32 %v960, %v1022
        %v1167 = vmul.f32 %v964, %v1023
        %v1168 = vmul.f32 %v970, %v1024
        %v1169 = vmul.f32 %v974, %v1025
        %v1170 = vmul.f32 %v980, %v1026
        %v1171 = vmul.f32 %v984, %v1027
        %v1172 = vmul.f32 %v990, %v1028
        %v1173 = vmul.f32 %v994, %v1029
        %v1174 = vmul.f32 %v1000, %v1030
        %v1175 = vmul.f32 %v1004, %v1031
        %1192 = vrot.lane.b32.xlu0 %v1032, 64
        %v1193 = vpop.permute.xlu0 %1192
        %1194 = vrot.lane.b32.xlu0 %v1033, 64
        %v1195 = vpop.permute.xlu0 %1194
        %1196 = vrot.lane.b32.xlu0 %v1034, 64
        %v1197 = vpop.permute.xlu0 %1196
        %1198 = vrot.lane.b32.xlu0 %v1035, 64
        %v1199 = vpop.permute.xlu0 %1198
        %1200 = vrot.lane.b32.xlu0 %v1036, 64
        %v1201 = vpop.permute.xlu0 %1200
        %1202 = vrot.lane.b32.xlu0 %v1037, 64
        %v1203 = vpop.permute.xlu0 %1202
        %1204 = vrot.lane.b32.xlu0 %v1038, 64
        %v1205 = vpop.permute.xlu0 %1204
        %1206 = vrot.lane.b32.xlu0 %v1039, 64
        %v1207 = vpop.permute.xlu0 %1206
        %1208 = vrot.lane.b32.xlu0 %v1040, 64
        %v1209 = vpop.permute.xlu0 %1208
        %1210 = vrot.lane.b32.xlu0 %v1041, 64
        %v1211 = vpop.permute.xlu0 %1210
        %1212 = vrot.lane.b32.xlu0 %v1042, 64
        %v1213 = vpop.permute.xlu0 %1212
        %1214 = vrot.lane.b32.xlu0 %v1043, 64
        %v1215 = vpop.permute.xlu0 %1214
        %1216 = vrot.lane.b32.xlu0 %v1044, 64
        %v1217 = vpop.permute.xlu0 %1216
        %1218 = vrot.lane.b32.xlu0 %v1045, 64
        %v1219 = vpop.permute.xlu0 %1218
        %1220 = vrot.lane.b32.xlu0 %v1046, 64
        %v1221 = vpop.permute.xlu0 %1220
        %1222 = vrot.lane.b32.xlu0 %v1047, 64
        %v1223 = vpop.permute.xlu0 %1222
        %v1240 = vmul.f32 %v930, %v1193
        %v1241 = vmul.f32 %v934, %v1195
        %v1242 = vmul.f32 %v940, %v1197
        %v1243 = vmul.f32 %v944, %v1199
        %v1244 = vmul.f32 %v950, %v1201
        %v1245 = vmul.f32 %v954, %v1203
        %v1246 = vmul.f32 %v960, %v1205
        %v1247 = vmul.f32 %v964, %v1207
        %v1248 = vmul.f32 %v970, %v1209
        %v1249 = vmul.f32 %v974, %v1211
        %v1250 = vmul.f32 %v980, %v1213
        %v1251 = vmul.f32 %v984, %v1215
        %v1252 = vmul.f32 %v990, %v1217
        %v1253 = vmul.f32 %v994, %v1219
        %v1254 = vmul.f32 %v1000, %v1221
        %v1255 = vmul.f32 %v1004, %v1223
        %1272 = vrot.lane.b32.xlu0 %v1240, 64
        %v1273 = vpop.permute.xlu0 %1272
        %1274 = vrot.lane.b32.xlu0 %v1241, 64
        %v1275 = vpop.permute.xlu0 %1274
        %1276 = vrot.lane.b32.xlu0 %v1242, 64
        %v1277 = vpop.permute.xlu0 %1276
        %1278 = vrot.lane.b32.xlu0 %v1243, 64
        %v1279 = vpop.permute.xlu0 %1278
        %1280 = vrot.lane.b32.xlu0 %v1244, 64
        %v1281 = vpop.permute.xlu0 %1280
        %1282 = vrot.lane.b32.xlu0 %v1245, 64
        %v1283 = vpop.permute.xlu0 %1282
        %1284 = vrot.lane.b32.xlu0 %v1246, 64
        %v1285 = vpop.permute.xlu0 %1284
        %1286 = vrot.lane.b32.xlu0 %v1247, 64
        %v1287 = vpop.permute.xlu0 %1286
        %1288 = vrot.lane.b32.xlu0 %v1248, 64
        %v1289 = vpop.permute.xlu0 %1288
        %1290 = vrot.lane.b32.xlu0 %v1249, 64
        %v1291 = vpop.permute.xlu0 %1290
        %1292 = vrot.lane.b32.xlu0 %v1250, 64
        %v1293 = vpop.permute.xlu0 %1292
        %1294 = vrot.lane.b32.xlu0 %v1251, 64
        %v1295 = vpop.permute.xlu0 %1294
        %1296 = vrot.lane.b32.xlu0 %v1252, 64
        %v1297 = vpop.permute.xlu0 %1296
        %1298 = vrot.lane.b32.xlu0 %v1253, 64
        %v1299 = vpop.permute.xlu0 %1298
        %1300 = vrot.lane.b32.xlu0 %v1254, 64
        %v1301 = vpop.permute.xlu0 %1300
        %1302 = vrot.lane.b32.xlu0 %v1255, 64
        %v1303 = vpop.permute.xlu0 %1302
        %v1320 = vsub.f32 %v1160, %v1273
        %v1321 = vsub.f32 %v1161, %v1275
        %v1322 = vsub.f32 %v1162, %v1277
        %v1323 = vsub.f32 %v1163, %v1279
        %v1324 = vsub.f32 %v1164, %v1281
        %v1325 = vsub.f32 %v1165, %v1283
        %v1326 = vsub.f32 %v1166, %v1285
        %v1327 = vsub.f32 %v1167, %v1287
        %v1328 = vsub.f32 %v1168, %v1289
        %v1329 = vsub.f32 %v1169, %v1291
        %v1330 = vsub.f32 %v1170, %v1293
        %v1331 = vsub.f32 %v1171, %v1295
        %v1332 = vsub.f32 %v1172, %v1297
        %v1333 = vsub.f32 %v1173, %v1299
        %v1334 = vsub.f32 %v1174, %v1301
        %v1335 = vsub.f32 %v1175, %v1303
        %v1336 = vpack.c.bf16 %v1321, %v1320
        %v1337 = vpack.c.bf16 %v1323, %v1322
        %v1338 = vpack.c.bf16 %v1325, %v1324
        %v1339 = vpack.c.bf16 %v1327, %v1326
        %v1340 = vpack.c.bf16 %v1329, %v1328
        %v1341 = vpack.c.bf16 %v1331, %v1330
        %v1342 = vpack.c.bf16 %v1333, %v1332
        %v1343 = vpack.c.bf16 %v1335, %v1334
        %v1344 = vmul.f32 %v930, %v1032
        %v1345 = vmul.f32 %v934, %v1033
        %v1346 = vmul.f32 %v940, %v1034
        %v1347 = vmul.f32 %v944, %v1035
        %v1348 = vmul.f32 %v950, %v1036
        %v1349 = vmul.f32 %v954, %v1037
        %v1350 = vmul.f32 %v960, %v1038
        %v1351 = vmul.f32 %v964, %v1039
        %v1352 = vmul.f32 %v970, %v1040
        %v1353 = vmul.f32 %v974, %v1041
        %v1354 = vmul.f32 %v980, %v1042
        %v1355 = vmul.f32 %v984, %v1043
        %v1356 = vmul.f32 %v990, %v1044
        %v1357 = vmul.f32 %v994, %v1045
        %v1358 = vmul.f32 %v1000, %v1046
        %v1359 = vmul.f32 %v1004, %v1047
        %1376 = vrot.lane.b32.xlu0 %v1016, 64
        %v1377 = vpop.permute.xlu0 %1376
        %1378 = vrot.lane.b32.xlu0 %v1017, 64
        %v1379 = vpop.permute.xlu0 %1378
        %1380 = vrot.lane.b32.xlu0 %v1018, 64
        %v1381 = vpop.permute.xlu0 %1380
        %1382 = vrot.lane.b32.xlu0 %v1019, 64
        %v1383 = vpop.permute.xlu0 %1382
        %1384 = vrot.lane.b32.xlu0 %v1020, 64
        %v1385 = vpop.permute.xlu0 %1384
        %1386 = vrot.lane.b32.xlu0 %v1021, 64
        %v1387 = vpop.permute.xlu0 %1386
        %1388 = vrot.lane.b32.xlu0 %v1022, 64
        %v1389 = vpop.permute.xlu0 %1388
        %1390 = vrot.lane.b32.xlu0 %v1023, 64
        %v1391 = vpop.permute.xlu0 %1390
        %1392 = vrot.lane.b32.xlu0 %v1024, 64
        %v1393 = vpop.permute.xlu0 %1392
        %1394 = vrot.lane.b32.xlu0 %v1025, 64
        %v1395 = vpop.permute.xlu0 %1394
        %1396 = vrot.lane.b32.xlu0 %v1026, 64
        %v1397 = vpop.permute.xlu0 %1396
        %1398 = vrot.lane.b32.xlu0 %v1027, 64
        %v1399 = vpop.permute.xlu0 %1398
        %1400 = vrot.lane.b32.xlu0 %v1028, 64
        %v1401 = vpop.permute.xlu0 %1400
        %1402 = vrot.lane.b32.xlu0 %v1029, 64
        %v1403 = vpop.permute.xlu0 %1402
        %1404 = vrot.lane.b32.xlu0 %v1030, 64
        %v1405 = vpop.permute.xlu0 %1404
        %1406 = vrot.lane.b32.xlu0 %v1031, 64
        %v1407 = vpop.permute.xlu0 %1406
        %v1424 = vmul.f32 %v930, %v1377
        %v1425 = vmul.f32 %v934, %v1379
        %v1426 = vmul.f32 %v940, %v1381
        %v1427 = vmul.f32 %v944, %v1383
        %v1428 = vmul.f32 %v950, %v1385
        %v1429 = vmul.f32 %v954, %v1387
        %v1430 = vmul.f32 %v960, %v1389
        %v1431 = vmul.f32 %v964, %v1391
        %v1432 = vmul.f32 %v970, %v1393
        %v1433 = vmul.f32 %v974, %v1395
        %v1434 = vmul.f32 %v980, %v1397
        %v1435 = vmul.f32 %v984, %v1399
        %v1436 = vmul.f32 %v990, %v1401
        %v1437 = vmul.f32 %v994, %v1403
        %v1438 = vmul.f32 %v1000, %v1405
        %v1439 = vmul.f32 %v1004, %v1407
        %1456 = vrot.lane.b32.xlu0 %v1424, 64
        %v1457 = vpop.permute.xlu0 %1456
        %1458 = vrot.lane.b32.xlu0 %v1425, 64
        %v1459 = vpop.permute.xlu0 %1458
        %1460 = vrot.lane.b32.xlu0 %v1426, 64
        %v1461 = vpop.permute.xlu0 %1460
        %1462 = vrot.lane.b32.xlu0 %v1427, 64
        %v1463 = vpop.permute.xlu0 %1462
        %1464 = vrot.lane.b32.xlu0 %v1428, 64
        %v1465 = vpop.permute.xlu0 %1464
        %1466 = vrot.lane.b32.xlu0 %v1429, 64
        %v1467 = vpop.permute.xlu0 %1466
        %1468 = vrot.lane.b32.xlu0 %v1430, 64
        %v1469 = vpop.permute.xlu0 %1468
        %1470 = vrot.lane.b32.xlu0 %v1431, 64
        %v1471 = vpop.permute.xlu0 %1470
        %1472 = vrot.lane.b32.xlu0 %v1432, 64
        %v1473 = vpop.permute.xlu0 %1472
        %1474 = vrot.lane.b32.xlu0 %v1433, 64
        %v1475 = vpop.permute.xlu0 %1474
        %1476 = vrot.lane.b32.xlu0 %v1434, 64
        %v1477 = vpop.permute.xlu0 %1476
        %1478 = vrot.lane.b32.xlu0 %v1435, 64
        %v1479 = vpop.permute.xlu0 %1478
        %1480 = vrot.lane.b32.xlu0 %v1436, 64
        %v1481 = vpop.permute.xlu0 %1480
        %1482 = vrot.lane.b32.xlu0 %v1437, 64
        %v1483 = vpop.permute.xlu0 %1482
        %1484 = vrot.lane.b32.xlu0 %v1438, 64
        %v1485 = vpop.permute.xlu0 %1484
        %1486 = vrot.lane.b32.xlu0 %v1439, 64
        %v1487 = vpop.permute.xlu0 %1486
        %v1504 = vadd.f32 %v1344, %v1457
        %v1505 = vadd.f32 %v1345, %v1459
        %v1506 = vadd.f32 %v1346, %v1461
        %v1507 = vadd.f32 %v1347, %v1463
        %v1508 = vadd.f32 %v1348, %v1465
        %v1509 = vadd.f32 %v1349, %v1467
        %v1510 = vadd.f32 %v1350, %v1469
        %v1511 = vadd.f32 %v1351, %v1471
        %v1512 = vadd.f32 %v1352, %v1473
        %v1513 = vadd.f32 %v1353, %v1475
        %v1514 = vadd.f32 %v1354, %v1477
        %v1515 = vadd.f32 %v1355, %v1479
        %v1516 = vadd.f32 %v1356, %v1481
        %v1517 = vadd.f32 %v1357, %v1483
        %v1518 = vadd.f32 %v1358, %v1485
        %v1519 = vadd.f32 %v1359, %v1487
        %v1520 = vpack.c.bf16 %v1505, %v1504
        %v1521 = vpack.c.bf16 %v1507, %v1506
        %v1522 = vpack.c.bf16 %v1509, %v1508
        %v1523 = vpack.c.bf16 %v1511, %v1510
        %v1524 = vpack.c.bf16 %v1513, %v1512
        %v1525 = vpack.c.bf16 %v1515, %v1514
        %v1526 = vpack.c.bf16 %v1517, %v1516
        %v1527 = vpack.c.bf16 %v1519, %v1518
        %v1528 = vlaneseq
        %v1529 = vshrl.u32 %v1528, 7
        %v1530 = vadd.s32 %v1529, 8
        %v1531 = vadd.s32 %v1529, 16
        %v1532 = vadd.s32 %v1529, 24
        %v1533 = vadd.s32 %v1529, 32
        %v1534 = vadd.s32 %v1529, 40
        %v1535 = vadd.s32 %v1529, 48
        %v1536 = vadd.s32 %v1529, 56
        %v1537 = vadd.s32 %v1529, 64
        %v1538 = vadd.s32 %v1529, 72
        %v1539 = vadd.s32 %v1529, 80
        %v1540 = vadd.s32 %v1529, 88
        %v1541 = vadd.s32 %v1529, 96
        %v1542 = vadd.s32 %v1529, 104
        %v1543 = vadd.s32 %v1529, 112
        %v1544 = vadd.s32 %v1529, 120
        %v1545 = vlaneseq
        %v1546 = vand.u32 %v1545, 127
        %vm1547 = vcmp.le.s32.totalorder %v1546, %v1529
        %vm1548 = vcmp.le.s32.totalorder %v1546, %v1530
        %vm1549 = vcmp.le.s32.totalorder %v1546, %v1531
        %vm1550 = vcmp.le.s32.totalorder %v1546, %v1532
        %vm1551 = vcmp.le.s32.totalorder %v1546, %v1533
        %vm1552 = vcmp.le.s32.totalorder %v1546, %v1534
        %vm1553 = vcmp.le.s32.totalorder %v1546, %v1535
        %vm1554 = vcmp.le.s32.totalorder %v1546, %v1536
        %vm1555 = vcmp.le.s32.totalorder %v1546, %v1537
        %vm1556 = vcmp.le.s32.totalorder %v1546, %v1538
        %vm1557 = vcmp.le.s32.totalorder %v1546, %v1539
        %vm1558 = vcmp.le.s32.totalorder %v1546, %v1540
        %vm1559 = vcmp.le.s32.totalorder %v1546, %v1541
        %vm1560 = vcmp.le.s32.totalorder %v1546, %v1542
        %vm1561 = vcmp.le.s32.totalorder %v1546, %v1543
        %vm1562 = vcmp.le.s32.totalorder %v1546, %v1544
        %v1563 = vsel %vm1547, 0.0, -1e+30
        %v1564 = vsel %vm1548, 0.0, -1e+30
        %v1565 = vsel %vm1549, 0.0, -1e+30
        %v1566 = vsel %vm1550, 0.0, -1e+30
        %v1567 = vsel %vm1551, 0.0, -1e+30
        %v1568 = vsel %vm1552, 0.0, -1e+30
        %v1569 = vsel %vm1553, 0.0, -1e+30
        %v1570 = vsel %vm1554, 0.0, -1e+30
        %v1571 = vsel %vm1555, 0.0, -1e+30
        %v1572 = vsel %vm1556, 0.0, -1e+30
        %v1573 = vsel %vm1557, 0.0, -1e+30
        %v1574 = vsel %vm1558, 0.0, -1e+30
        %v1575 = vsel %vm1559, 0.0, -1e+30
        %v1576 = vsel %vm1560, 0.0, -1e+30
        %v1577 = vsel %vm1561, 0.0, -1e+30
        %v1578 = vsel %vm1562, 0.0, -1e+30
        %vm1579 = vcmask 130048
        %v1581 = vsel %vm1579, %v1152, 0
        %v1584 = vsel %vm1579, %v1153, 0
        %v1587 = vsel %vm1579, %v1154, 0
        %v1590 = vsel %vm1579, %v1155, 0
        %v1593 = vsel %vm1579, %v1156, 0
        %v1596 = vsel %vm1579, %v1157, 0
        %v1599 = vsel %vm1579, %v1158, 0
        %v1602 = vsel %vm1579, %v1159, 0
        %v1605 = vsel %vm1579, %v1520, 0
        %v1608 = vsel %vm1579, %v1521, 0
        %v1611 = vsel %vm1579, %v1522, 0
        %v1614 = vsel %vm1579, %v1523, 0
        %v1617 = vsel %vm1579, %v1524, 0
        %v1620 = vsel %vm1579, %v1525, 0
        %v1623 = vsel %vm1579, %v1526, 0
        %v1626 = vsel %vm1579, %v1527, 0
        %1628 = vmatprep.subr.bf16.mxu0 0
        %1629 = vmatpush1.bf16.xpose.msra.mxu0 %v1605
        %1630 = vmatprep.subr.bf16.mxu0 0
        %1631 = vmatpush1.bf16.xpose.msra.mxu0 %v1608
        %1632 = vmatprep.subr.bf16.mxu0 0
        %1633 = vmatpush1.bf16.xpose.msra.mxu0 %v1611
        %1634 = vmatprep.subr.bf16.mxu0 0
        %1635 = vmatpush1.bf16.xpose.msra.mxu0 %v1614
        %1636 = vmatprep.subr.bf16.mxu0 0
        %1637 = vmatpush1.bf16.xpose.msra.mxu0 %v1617
        %1638 = vmatprep.subr.bf16.mxu0 0
        %1639 = vmatpush1.bf16.xpose.msra.mxu0 %v1620
        %1640 = vmatprep.subr.bf16.mxu0 0
        %1641 = vmatpush1.bf16.xpose.msra.mxu0 %v1623
        %1642 = vmatprep.subr.bf16.mxu0 0
        %1643 = vmatpush1.bf16.xpose.msra.mxu0 %v1626
        %1644 = vmatprep.subr.bf16.mxu0 0
        %1645 = vmatpush1.bf16.xpose.msra.mxu0 0
        %1646 = vmatprep.subr.bf16.mxu0 0
        %1647 = vmatpush1.bf16.xpose.msra.mxu0 0
        %1648 = vmatprep.subr.bf16.mxu0 0
        %1649 = vmatpush1.bf16.xpose.msra.mxu0 0
        %1650 = vmatprep.subr.bf16.mxu0 0
        %1651 = vmatpush1.bf16.xpose.msra.mxu0 0
        %1652 = vmatprep.subr.bf16.mxu0 0
        %1653 = vmatpush1.bf16.xpose.msra.mxu0 0
        %1654 = vmatprep.subr.bf16.mxu0 0
        %1655 = vmatpush1.bf16.xpose.msra.mxu0 0
        %1656 = vmatprep.subr.bf16.mxu0 0
        %1657 = vmatpush1.bf16.xpose.msra.mxu0 0
        %1658 = vmatprep.subr.bf16.mxu0 0
        %1659 = vmatpush1.bf16.xpose.msra.mxu0 0
        %1660 = vmatprep.mubr.bf16.mxu0 0
        %1661 = vmatmul.mubr.bf16.gmra.mrb[0].mxu0 %v1581
        %v1662 = vpop.f32.mrb[0].mxu0
        %v1663 = vadd.f32 0.0, %v1662
        %v1664 = vpop.f32.mrb[0].mxu0
        %v1665 = vpop.f32.mrb[0].mxu0
        %v1666 = vadd.f32 0.0, %v1665
        %v1667 = vpop.f32.mrb[0].mxu0
        %1668 = vmatprep.mubr.bf16.mxu0 0
        %1669 = vmatmul.mubr.bf16.gmra.mrb[0].mxu0 %v1584
        %v1670 = vpop.f32.mrb[0].mxu0
        %v1671 = vadd.f32 0.0, %v1670
        %v1672 = vpop.f32.mrb[0].mxu0
        %v1673 = vpop.f32.mrb[0].mxu0
        %v1674 = vadd.f32 0.0, %v1673
        %v1675 = vpop.f32.mrb[0].mxu0
        %1676 = vmatprep.mubr.bf16.mxu0 0
        %1677 = vmatmul.mubr.bf16.gmra.mrb[0].mxu0 %v1587
        %v1678 = vpop.f32.mrb[0].mxu0
        %v1679 = vadd.f32 0.0, %v1678
        %v1680 = vpop.f32.mrb[0].mxu0
        %v1681 = vpop.f32.mrb[0].mxu0
        %v1682 = vadd.f32 0.0, %v1681
        %v1683 = vpop.f32.mrb[0].mxu0
        %1684 = vmatprep.mubr.bf16.mxu0 0
        %1685 = vmatmul.mubr.bf16.gmra.mrb[0].mxu0 %v1590
        %v1686 = vpop.f32.mrb[0].mxu0
        %v1687 = vadd.f32 0.0, %v1686
        %v1688 = vpop.f32.mrb[0].mxu0
        %v1689 = vpop.f32.mrb[0].mxu0
        %v1690 = vadd.f32 0.0, %v1689
        %v1691 = vpop.f32.mrb[0].mxu0
        %1692 = vmatprep.mubr.bf16.mxu0 0
        %1693 = vmatmul.mubr.bf16.gmra.mrb[0].mxu0 %v1593
        %v1694 = vpop.f32.mrb[0].mxu0
        %v1695 = vadd.f32 0.0, %v1694
        %v1696 = vpop.f32.mrb[0].mxu0
        %v1697 = vpop.f32.mrb[0].mxu0
        %v1698 = vadd.f32 0.0, %v1697
        %v1699 = vpop.f32.mrb[0].mxu0
        %1700 = vmatprep.mubr.bf16.mxu0 0
        %1701 = vmatmul.mubr.bf16.gmra.mrb[0].mxu0 %v1596
        %v1702 = vpop.f32.mrb[0].mxu0
        %v1703 = vadd.f32 0.0, %v1702
        %v1704 = vpop.f32.mrb[0].mxu0
        %v1705 = vpop.f32.mrb[0].mxu0
        %v1706 = vadd.f32 0.0, %v1705
        %v1707 = vpop.f32.mrb[0].mxu0
        %1708 = vmatprep.mubr.bf16.mxu0 0
        %1709 = vmatmul.mubr.bf16.gmra.mrb[0].mxu0 %v1599
        %v1710 = vpop.f32.mrb[0].mxu0
        %v1711 = vadd.f32 0.0, %v1710
        %v1712 = vpop.f32.mrb[0].mxu0
        %v1713 = vpop.f32.mrb[0].mxu0
        %v1714 = vadd.f32 0.0, %v1713
        %v1715 = vpop.f32.mrb[0].mxu0
        %1716 = vmatprep.mubr.bf16.mxu0 0
        %1717 = vmatmul.mubr.bf16.gmra.mrb[0].mxu0 %v1602
        %v1718 = vpop.f32.mrb[0].mxu0
        %v1719 = vadd.f32 0.0, %v1718
        %v1720 = vpop.f32.mrb[0].mxu0
        %v1721 = vpop.f32.mrb[0].mxu0
        %v1722 = vadd.f32 0.0, %v1721
        %v1723 = vpop.f32.mrb[0].mxu0
        %1724 = vdwg.mxu0
        %v1726 = vsel %vm1579, %v1096, 0
        %v1729 = vsel %vm1579, %v1097, 0
        %v1732 = vsel %vm1579, %v1098, 0
        %v1735 = vsel %vm1579, %v1099, 0
        %v1738 = vsel %vm1579, %v1100, 0
        %v1741 = vsel %vm1579, %v1101, 0
        %v1744 = vsel %vm1579, %v1102, 0
        %v1747 = vsel %vm1579, %v1103, 0
        %v1750 = vsel %vm1579, %v1336, 0
        %v1753 = vsel %vm1579, %v1337, 0
        %v1756 = vsel %vm1579, %v1338, 0
        %v1759 = vsel %vm1579, %v1339, 0
        %v1762 = vsel %vm1579, %v1340, 0
        %v1765 = vsel %vm1579, %v1341, 0
        %v1768 = vsel %vm1579, %v1342, 0
        %v1771 = vsel %vm1579, %v1343, 0
        %1773 = vmatprep.subr.bf16.mxu0 0
        %1774 = vmatpush1.bf16.xpose.msra.mxu0 %v1750
        %1775 = vmatprep.subr.bf16.mxu0 0
        %1776 = vmatpush1.bf16.xpose.msra.mxu0 %v1753
        %1777 = vmatprep.subr.bf16.mxu0 0
        %1778 = vmatpush1.bf16.xpose.msra.mxu0 %v1756
        %1779 = vmatprep.subr.bf16.mxu0 0
        %1780 = vmatpush1.bf16.xpose.msra.mxu0 %v1759
        %1781 = vmatprep.subr.bf16.mxu0 0
        %1782 = vmatpush1.bf16.xpose.msra.mxu0 %v1762
        %1783 = vmatprep.subr.bf16.mxu0 0
        %1784 = vmatpush1.bf16.xpose.msra.mxu0 %v1765
        %1785 = vmatprep.subr.bf16.mxu0 0
        %1786 = vmatpush1.bf16.xpose.msra.mxu0 %v1768
        %1787 = vmatprep.subr.bf16.mxu0 0
        %1788 = vmatpush1.bf16.xpose.msra.mxu0 %v1771
        %1789 = vmatprep.subr.bf16.mxu0 0
        %1790 = vmatpush1.bf16.xpose.msra.mxu0 0
        %1791 = vmatprep.subr.bf16.mxu0 0
        %1792 = vmatpush1.bf16.xpose.msra.mxu0 0
        %1793 = vmatprep.subr.bf16.mxu0 0
        %1794 = vmatpush1.bf16.xpose.msra.mxu0 0
        %1795 = vmatprep.subr.bf16.mxu0 0
        %1796 = vmatpush1.bf16.xpose.msra.mxu0 0
        %1797 = vmatprep.subr.bf16.mxu0 0
        %1798 = vmatpush1.bf16.xpose.msra.mxu0 0
        %1799 = vmatprep.subr.bf16.mxu0 0
        %1800 = vmatpush1.bf16.xpose.msra.mxu0 0
        %1801 = vmatprep.subr.bf16.mxu0 0
        %1802 = vmatpush1.bf16.xpose.msra.mxu0 0
        %1803 = vmatprep.subr.bf16.mxu0 0
        %1804 = vmatpush1.bf16.xpose.msra.mxu0 0
        %1805 = vmatprep.mubr.bf16.mxu0 0
        %1806 = vmatmul.mubr.bf16.gmra.mrb[0].mxu0 %v1726
        %v1807 = vpop.f32.mrb[0].mxu0
        %v1808 = vadd.f32 %v1663, %v1807
        %v1809 = vpop.f32.mrb[0].mxu0
        %v1810 = vpop.f32.mrb[0].mxu0
        %v1811 = vadd.f32 %v1666, %v1810
        %v1812 = vpop.f32.mrb[0].mxu0
        %1813 = vmatprep.mubr.bf16.mxu0 0
        %1814 = vmatmul.mubr.bf16.gmra.mrb[0].mxu0 %v1729
        %v1815 = vpop.f32.mrb[0].mxu0
        %v1816 = vadd.f32 %v1671, %v1815
        %v1817 = vpop.f32.mrb[0].mxu0
        %v1818 = vpop.f32.mrb[0].mxu0
        %v1819 = vadd.f32 %v1674, %v1818
        %v1820 = vpop.f32.mrb[0].mxu0
        %1821 = vmatprep.mubr.bf16.mxu0 0
        %1822 = vmatmul.mubr.bf16.gmra.mrb[0].mxu0 %v1732
        %v1823 = vpop.f32.mrb[0].mxu0
        %v1824 = vadd.f32 %v1679, %v1823
        %v1825 = vpop.f32.mrb[0].mxu0
        %v1826 = vpop.f32.mrb[0].mxu0
        %v1827 = vadd.f32 %v1682, %v1826
        %v1828 = vpop.f32.mrb[0].mxu0
        %1829 = vmatprep.mubr.bf16.mxu0 0
        %1830 = vmatmul.mubr.bf16.gmra.mrb[0].mxu0 %v1735
        %v1831 = vpop.f32.mrb[0].mxu0
        %v1832 = vadd.f32 %v1687, %v1831
        %v1833 = vpop.f32.mrb[0].mxu0
        %v1834 = vpop.f32.mrb[0].mxu0
        %v1835 = vadd.f32 %v1690, %v1834
        %v1836 = vpop.f32.mrb[0].mxu0
        %1837 = vmatprep.mubr.bf16.mxu0 0
        %1838 = vmatmul.mubr.bf16.gmra.mrb[0].mxu0 %v1738
        %v1839 = vpop.f32.mrb[0].mxu0
        %v1840 = vadd.f32 %v1695, %v1839
        %v1841 = vpop.f32.mrb[0].mxu0
        %v1842 = vpop.f32.mrb[0].mxu0
        %v1843 = vadd.f32 %v1698, %v1842
        %v1844 = vpop.f32.mrb[0].mxu0
        %1845 = vmatprep.mubr.bf16.mxu0 0
        %1846 = vmatmul.mubr.bf16.gmra.mrb[0].mxu0 %v1741
        %v1847 = vpop.f32.mrb[0].mxu0
        %v1848 = vadd.f32 %v1703, %v1847
        %v1849 = vpop.f32.mrb[0].mxu0
        %v1850 = vpop.f32.mrb[0].mxu0
        %v1851 = vadd.f32 %v1706, %v1850
        %v1852 = vpop.f32.mrb[0].mxu0
        %1853 = vmatprep.mubr.bf16.mxu0 0
        %1854 = vmatmul.mubr.bf16.gmra.mrb[0].mxu0 %v1744
        %v1855 = vpop.f32.mrb[0].mxu0
        %v1856 = vadd.f32 %v1711, %v1855
        %v1857 = vpop.f32.mrb[0].mxu0
        %v1858 = vpop.f32.mrb[0].mxu0
        %v1859 = vadd.f32 %v1714, %v1858
        %v1860 = vpop.f32.mrb[0].mxu0
        %1861 = vmatprep.mubr.bf16.mxu0 0
        %1862 = vmatmul.mubr.bf16.gmra.mrb[0].mxu0 %v1747
        %v1863 = vpop.f32.mrb[0].mxu0
        %v1864 = vadd.f32 %v1719, %v1863
        %v1865 = vpop.f32.mrb[0].mxu0
        %v1866 = vpop.f32.mrb[0].mxu0
        %v1867 = vadd.f32 %v1722, %v1866
        %v1868 = vpop.f32.mrb[0].mxu0
        %1869 = vdwg.mxu0
        %v1870 = vadd.f32 %v1808, %v1563
        %v1871 = vadd.f32 %v1811, %v1564
        %v1872 = vadd.f32 %v1816, %v1565
        %v1873 = vadd.f32 %v1819, %v1566
        %v1874 = vadd.f32 %v1824, %v1567
        %v1875 = vadd.f32 %v1827, %v1568
        %v1876 = vadd.f32 %v1832, %v1569
        %v1877 = vadd.f32 %v1835, %v1570
        %v1878 = vadd.f32 %v1840, %v1571
        %v1879 = vadd.f32 %v1843, %v1572
        %v1880 = vadd.f32 %v1848, %v1573
        %v1881 = vadd.f32 %v1851, %v1574
        %v1882 = vadd.f32 %v1856, %v1575
        %v1883 = vadd.f32 %v1859, %v1576
        %v1884 = vadd.f32 %v1864, %v1577
        %v1885 = vadd.f32 %v1867, %v1578
        %1886 = vmax.xlane.f32.xlu0 %v1870
        %v1887 = vpop.xlane.xlu0 %1886
        %1888 = vmax.xlane.f32.xlu0 %v1871
        %v1889 = vpop.xlane.xlu0 %1888
        %1890 = vmax.xlane.f32.xlu0 %v1872
        %v1891 = vpop.xlane.xlu0 %1890
        %1892 = vmax.xlane.f32.xlu0 %v1873
        %v1893 = vpop.xlane.xlu0 %1892
        %1894 = vmax.xlane.f32.xlu0 %v1874
        %v1895 = vpop.xlane.xlu0 %1894
        %1896 = vmax.xlane.f32.xlu0 %v1875
        %v1897 = vpop.xlane.xlu0 %1896
        %1898 = vmax.xlane.f32.xlu0 %v1876
        %v1899 = vpop.xlane.xlu0 %1898
        %1900 = vmax.xlane.f32.xlu0 %v1877
        %v1901 = vpop.xlane.xlu0 %1900
        %1902 = vmax.xlane.f32.xlu0 %v1878
        %v1903 = vpop.xlane.xlu0 %1902
        %1904 = vmax.xlane.f32.xlu0 %v1879
        %v1905 = vpop.xlane.xlu0 %1904
        %1906 = vmax.xlane.f32.xlu0 %v1880
        %v1907 = vpop.xlane.xlu0 %1906
        %1908 = vmax.xlane.f32.xlu0 %v1881
        %v1909 = vpop.xlane.xlu0 %1908
        %1910 = vmax.xlane.f32.xlu0 %v1882
        %v1911 = vpop.xlane.xlu0 %1910
        %1912 = vmax.xlane.f32.xlu0 %v1883
        %v1913 = vpop.xlane.xlu0 %1912
        %1914 = vmax.xlane.f32.xlu0 %v1884
        %v1915 = vpop.xlane.xlu0 %1914
        %1916 = vmax.xlane.f32.xlu0 %v1885
        %v1917 = vpop.xlane.xlu0 %1916
        %v1918 = vsub.f32 %v1870, %v1887
        %v1919 = vsub.f32 %v1871, %v1889
        %v1920 = vsub.f32 %v1872, %v1891
        %v1921 = vsub.f32 %v1873, %v1893
        %v1922 = vsub.f32 %v1874, %v1895
        %v1923 = vsub.f32 %v1875, %v1897
        %v1924 = vsub.f32 %v1876, %v1899
        %v1925 = vsub.f32 %v1877, %v1901
        %v1926 = vsub.f32 %v1878, %v1903
        %v1927 = vsub.f32 %v1879, %v1905
        %v1928 = vsub.f32 %v1880, %v1907
        %v1929 = vsub.f32 %v1881, %v1909
        %v1930 = vsub.f32 %v1882, %v1911
        %v1931 = vsub.f32 %v1883, %v1913
        %v1932 = vsub.f32 %v1884, %v1915
        %v1933 = vsub.f32 %v1885, %v1917
        %v1934 = vmul.f32 %v1918, 1.442695
        %v1935 = vpow.pop %v1934
        %v1936 = vmul.f32 %v1919, 1.442695
        %v1937 = vpow.pop %v1936
        %v1938 = vmul.f32 %v1920, 1.442695
        %v1939 = vpow.pop %v1938
        %v1940 = vmul.f32 %v1921, 1.442695
        %v1941 = vpow.pop %v1940
        %v1942 = vmul.f32 %v1922, 1.442695
        %v1943 = vpow.pop %v1942
        %v1944 = vmul.f32 %v1923, 1.442695
        %v1945 = vpow.pop %v1944
        %v1946 = vmul.f32 %v1924, 1.442695
        %v1947 = vpow.pop %v1946
        %v1948 = vmul.f32 %v1925, 1.442695
        %v1949 = vpow.pop %v1948
        %v1950 = vmul.f32 %v1926, 1.442695
        %v1951 = vpow.pop %v1950
        %v1952 = vmul.f32 %v1927, 1.442695
        %v1953 = vpow.pop %v1952
        %v1954 = vmul.f32 %v1928, 1.442695
        %v1955 = vpow.pop %v1954
        %v1956 = vmul.f32 %v1929, 1.442695
        %v1957 = vpow.pop %v1956
        %v1958 = vmul.f32 %v1930, 1.442695
        %v1959 = vpow.pop %v1958
        %v1960 = vmul.f32 %v1931, 1.442695
        %v1961 = vpow.pop %v1960
        %v1962 = vmul.f32 %v1932, 1.442695
        %v1963 = vpow.pop %v1962
        %v1964 = vmul.f32 %v1933, 1.442695
        %v1965 = vpow.pop %v1964
        %1966 = vadd.xlane.f32.xlu0 %v1935
        %v1967 = vpop.xlane.xlu0 %1966
        %1968 = vadd.xlane.f32.xlu0 %v1937
        %v1969 = vpop.xlane.xlu0 %1968
        %1970 = vadd.xlane.f32.xlu0 %v1939
        %v1971 = vpop.xlane.xlu0 %1970
        %1972 = vadd.xlane.f32.xlu0 %v1941
        %v1973 = vpop.xlane.xlu0 %1972
        %1974 = vadd.xlane.f32.xlu0 %v1943
        %v1975 = vpop.xlane.xlu0 %1974
        %1976 = vadd.xlane.f32.xlu0 %v1945
        %v1977 = vpop.xlane.xlu0 %1976
        %1978 = vadd.xlane.f32.xlu0 %v1947
        %v1979 = vpop.xlane.xlu0 %1978
        %1980 = vadd.xlane.f32.xlu0 %v1949
        %v1981 = vpop.xlane.xlu0 %1980
        %1982 = vadd.xlane.f32.xlu0 %v1951
        %v1983 = vpop.xlane.xlu0 %1982
        %1984 = vadd.xlane.f32.xlu0 %v1953
        %v1985 = vpop.xlane.xlu0 %1984
        %1986 = vadd.xlane.f32.xlu0 %v1955
        %v1987 = vpop.xlane.xlu0 %1986
        %1988 = vadd.xlane.f32.xlu0 %v1957
        %v1989 = vpop.xlane.xlu0 %1988
        %1990 = vadd.xlane.f32.xlu0 %v1959
        %v1991 = vpop.xlane.xlu0 %1990
        %1992 = vadd.xlane.f32.xlu0 %v1961
        %v1993 = vpop.xlane.xlu0 %1992
        %1994 = vadd.xlane.f32.xlu0 %v1963
        %v1995 = vpop.xlane.xlu0 %1994
        %1996 = vadd.xlane.f32.xlu0 %v1965
        %v1997 = vpop.xlane.xlu0 %1996
        %v1998 = vpack.c.bf16 %v1937, %v1935
        %v1999 = vpack.c.bf16 %v1941, %v1939
        %v2000 = vpack.c.bf16 %v1945, %v1943
        %v2001 = vpack.c.bf16 %v1949, %v1947
        %v2002 = vpack.c.bf16 %v1953, %v1951
        %v2003 = vpack.c.bf16 %v1957, %v1955
        %v2004 = vpack.c.bf16 %v1961, %v1959
        %v2005 = vpack.c.bf16 %v1965, %v1963
        %2006 = vmatprep.subr.bf16.mxu0 0
        %2007 = vmatpush1.bf16.msra.mxu0 %v1008
        %2008 = vmatprep.subr.bf16.mxu0 0
        %2009 = vmatpush1.bf16.msra.mxu0 %v1009
        %2010 = vmatprep.subr.bf16.mxu0 0
        %2011 = vmatpush1.bf16.msra.mxu0 %v1010
        %2012 = vmatprep.subr.bf16.mxu0 0
        %2013 = vmatpush1.bf16.msra.mxu0 %v1011
        %2014 = vmatprep.subr.bf16.mxu0 0
        %2015 = vmatpush1.bf16.msra.mxu0 %v1012
        %2016 = vmatprep.subr.bf16.mxu0 0
        %2017 = vmatpush1.bf16.msra.mxu0 %v1013
        %2018 = vmatprep.subr.bf16.mxu0 0
        %2019 = vmatpush1.bf16.msra.mxu0 %v1014
        %2020 = vmatprep.subr.bf16.mxu0 0
        %2021 = vmatpush1.bf16.msra.mxu0 %v1015
        %2022 = vmatprep.subr.bf16.mxu0 0
        %2023 = vmatpush1.bf16.msra.mxu0 0
        %2024 = vmatprep.subr.bf16.mxu0 0
        %2025 = vmatpush1.bf16.msra.mxu0 0
        %2026 = vmatprep.subr.bf16.mxu0 0
        %2027 = vmatpush1.bf16.msra.mxu0 0
        %2028 = vmatprep.subr.bf16.mxu0 0
        %2029 = vmatpush1.bf16.msra.mxu0 0
        %2030 = vmatprep.subr.bf16.mxu0 0
        %2031 = vmatpush1.bf16.msra.mxu0 0
        %2032 = vmatprep.subr.bf16.mxu0 0
        %2033 = vmatpush1.bf16.msra.mxu0 0
        %2034 = vmatprep.subr.bf16.mxu0 0
        %2035 = vmatpush1.bf16.msra.mxu0 0
        %2036 = vmatprep.subr.bf16.mxu0 0
        %2037 = vmatpush1.bf16.msra.mxu0 0
        %2038 = vmatprep.mubr.bf16.mxu0 0
        %2039 = vmatmul.mubr.bf16.gmra.mrb[0].mxu0 %v1998
        %v2040 = vpop.f32.mrb[0].mxu0
        %v2041 = vadd.f32 0.0, %v2040
        %v2042 = vpop.f32.mrb[0].mxu0
        %v2043 = vpop.f32.mrb[0].mxu0
        %v2044 = vadd.f32 0.0, %v2043
        %v2045 = vpop.f32.mrb[0].mxu0
        %2046 = vmatprep.mubr.bf16.mxu0 0
        %2047 = vmatmul.mubr.bf16.gmra.mrb[0].mxu0 %v1999
        %v2048 = vpop.f32.mrb[0].mxu0
        %v2049 = vadd.f32 0.0, %v2048
        %v2050 = vpop.f32.mrb[0].mxu0
        %v2051 = vpop.f32.mrb[0].mxu0
        %v2052 = vadd.f32 0.0, %v2051
        %v2053 = vpop.f32.mrb[0].mxu0
        %2054 = vmatprep.mubr.bf16.mxu0 0
        %2055 = vmatmul.mubr.bf16.gmra.mrb[0].mxu0 %v2000
        %v2056 = vpop.f32.mrb[0].mxu0
        %v2057 = vadd.f32 0.0, %v2056
        %v2058 = vpop.f32.mrb[0].mxu0
        %v2059 = vpop.f32.mrb[0].mxu0
        %v2060 = vadd.f32 0.0, %v2059
        %v2061 = vpop.f32.mrb[0].mxu0
        %2062 = vmatprep.mubr.bf16.mxu0 0
        %2063 = vmatmul.mubr.bf16.gmra.mrb[0].mxu0 %v2001
        %v2064 = vpop.f32.mrb[0].mxu0
        %v2065 = vadd.f32 0.0, %v2064
        %v2066 = vpop.f32.mrb[0].mxu0
        %v2067 = vpop.f32.mrb[0].mxu0
        %v2068 = vadd.f32 0.0, %v2067
        %v2069 = vpop.f32.mrb[0].mxu0
        %2070 = vmatprep.mubr.bf16.mxu0 0
        %2071 = vmatmul.mubr.bf16.gmra.mrb[0].mxu0 %v2002
        %v2072 = vpop.f32.mrb[0].mxu0
        %v2073 = vadd.f32 0.0, %v2072
        %v2074 = vpop.f32.mrb[0].mxu0
        %v2075 = vpop.f32.mrb[0].mxu0
        %v2076 = vadd.f32 0.0, %v2075
        %v2077 = vpop.f32.mrb[0].mxu0
        %2078 = vmatprep.mubr.bf16.mxu0 0
        %2079 = vmatmul.mubr.bf16.gmra.mrb[0].mxu0 %v2003
        %v2080 = vpop.f32.mrb[0].mxu0
        %v2081 = vadd.f32 0.0, %v2080
        %v2082 = vpop.f32.mrb[0].mxu0
        %v2083 = vpop.f32.mrb[0].mxu0
        %v2084 = vadd.f32 0.0, %v2083
        %v2085 = vpop.f32.mrb[0].mxu0
        %2086 = vmatprep.mubr.bf16.mxu0 0
        %2087 = vmatmul.mubr.bf16.gmra.mrb[0].mxu0 %v2004
        %v2088 = vpop.f32.mrb[0].mxu0
        %v2089 = vadd.f32 0.0, %v2088
        %v2090 = vpop.f32.mrb[0].mxu0
        %v2091 = vpop.f32.mrb[0].mxu0
        %v2092 = vadd.f32 0.0, %v2091
        %v2093 = vpop.f32.mrb[0].mxu0
        %2094 = vmatprep.mubr.bf16.mxu0 0
        %2095 = vmatmul.mubr.bf16.gmra.mrb[0].mxu0 %v2005
        %v2096 = vpop.f32.mrb[0].mxu0
        %v2097 = vadd.f32 0.0, %v2096
        %v2098 = vpop.f32.mrb[0].mxu0
        %v2099 = vpop.f32.mrb[0].mxu0
        %v2100 = vadd.f32 0.0, %v2099
        %v2101 = vpop.f32.mrb[0].mxu0
        %2102 = vdwg.mxu0
        %v2103 = vrcp.pop %v1967
        %v2104 = vrcp.pop %v1969
        %v2105 = vrcp.pop %v1971
        %v2106 = vrcp.pop %v1973
        %v2107 = vrcp.pop %v1975
        %v2108 = vrcp.pop %v1977
        %v2109 = vrcp.pop %v1979
        %v2110 = vrcp.pop %v1981
        %v2111 = vrcp.pop %v1983
        %v2112 = vrcp.pop %v1985
        %v2113 = vrcp.pop %v1987
        %v2114 = vrcp.pop %v1989
        %v2115 = vrcp.pop %v1991
        %v2116 = vrcp.pop %v1993
        %v2117 = vrcp.pop %v1995
        %v2118 = vrcp.pop %v1997
        %v2119 = vmul.f32 %v2041, %v2103
        %v2120 = vmul.f32 %v2044, %v2104
        %v2121 = vmul.f32 %v2049, %v2105
        %v2122 = vmul.f32 %v2052, %v2106
        %v2123 = vmul.f32 %v2057, %v2107
        %v2124 = vmul.f32 %v2060, %v2108
        %v2125 = vmul.f32 %v2065, %v2109
        %v2126 = vmul.f32 %v2068, %v2110
        %v2127 = vmul.f32 %v2073, %v2111
        %v2128 = vmul.f32 %v2076, %v2112
        %v2129 = vmul.f32 %v2081, %v2113
        %v2130 = vmul.f32 %v2084, %v2114
        %v2131 = vmul.f32 %v2089, %v2115
        %v2132 = vmul.f32 %v2092, %v2116
        %v2133 = vmul.f32 %v2097, %v2117
        %v2134 = vmul.f32 %v2100, %v2118
        %vm2135 = vcmask 261120
        %2136 = vst.msk [vmem:[#allocation2] sm:$0xff] %vm2135, %v2119
        %2137 = vst.msk [vmem:[#allocation2 + $0x10] sm:$0xff] %vm2135, %v2120
        %2138 = vst.msk [vmem:[#allocation2 + $0x20] sm:$0xff] %vm2135, %v2121
        %2139 = vst.msk [vmem:[#allocation2 + $0x30] sm:$0xff] %vm2135, %v2122
        %2140 = vst.msk [vmem:[#allocation2 + $0x40] sm:$0xff] %vm2135, %v2123
        %2141 = vst.msk [vmem:[#allocation2 + $0x50] sm:$0xff] %vm2135, %v2124
        %2142 = vst.msk [vmem:[#allocation2 + $0x60] sm:$0xff] %vm2135, %v2125
        %2143 = vst.msk [vmem:[#allocation2 + $0x70] sm:$0xff] %vm2135, %v2126
        %2144 = vst.msk [vmem:[#allocation2 + $0x80] sm:$0xff] %vm2135, %v2127
        %2145 = vst.msk [vmem:[#allocation2 + $0x90] sm:$0xff] %vm2135, %v2128
        %2146 = vst.msk [vmem:[#allocation2 + $0xa0] sm:$0xff] %vm2135, %v2129
        %2147 = vst.msk [vmem:[#allocation2 + $0xb0] sm:$0xff] %vm2135, %v2130
        %2148 = vst.msk [vmem:[#allocation2 + $0xc0] sm:$0xff] %vm2135, %v2131
        %2149 = vst.msk [vmem:[#allocation2 + $0xd0] sm:$0xff] %vm2135, %v2132
        %2150 = vst.msk [vmem:[#allocation2 + $0xe0] sm:$0xff] %vm2135, %v2133
        %2151 = vst.msk [vmem:[#allocation2 + $0xf0] sm:$0xff] %vm2135, %v2134
        %2160 = vrot.lane.b32.xlu0 %v1152, 112
        %v2161 = vpop.permute.xlu0 %2160
        %2162 = vrot.lane.b32.xlu0 %v1153, 112
        %v2163 = vpop.permute.xlu0 %2162
        %2164 = vrot.lane.b32.xlu0 %v1154, 112
        %v2165 = vpop.permute.xlu0 %2164
        %2166 = vrot.lane.b32.xlu0 %v1155, 112
        %v2167 = vpop.permute.xlu0 %2166
        %2168 = vrot.lane.b32.xlu0 %v1156, 112
        %v2169 = vpop.permute.xlu0 %2168
        %2170 = vrot.lane.b32.xlu0 %v1157, 112
        %v2171 = vpop.permute.xlu0 %2170
        %2172 = vrot.lane.b32.xlu0 %v1158, 112
        %v2173 = vpop.permute.xlu0 %2172
        %2174 = vrot.lane.b32.xlu0 %v1159, 112
        %v2175 = vpop.permute.xlu0 %2174
        %v2177 = vsel %vm1579, %v2161, 0
        %v2180 = vsel %vm1579, %v2163, 0
        %v2183 = vsel %vm1579, %v2165, 0
        %v2186 = vsel %vm1579, %v2167, 0
        %v2189 = vsel %vm1579, %v2169, 0
        %v2192 = vsel %vm1579, %v2171, 0
        %v2195 = vsel %vm1579, %v2173, 0
        %v2198 = vsel %vm1579, %v2175, 0
        %2200 = vmatprep.subr.bf16.mxu0 0
        %2201 = vmatpush1.bf16.xpose.msra.mxu0 %v1605
        %2202 = vmatprep.subr.bf16.mxu0 0
        %2203 = vmatpush1.bf16.xpose.msra.mxu0 %v1608
        %2204 = vmatprep.subr.bf16.mxu0 0
        %2205 = vmatpush1.bf16.xpose.msra.mxu0 %v1611
        %2206 = vmatprep.subr.bf16.mxu0 0
        %2207 = vmatpush1.bf16.xpose.msra.mxu0 %v1614
        %2208 = vmatprep.subr.bf16.mxu0 0
        %2209 = vmatpush1.bf16.xpose.msra.mxu0 %v1617
        %2210 = vmatprep.subr.bf16.mxu0 0
        %2211 = vmatpush1.bf16.xpose.msra.mxu0 %v1620
        %2212 = vmatprep.subr.bf16.mxu0 0
        %2213 = vmatpush1.bf16.xpose.msra.mxu0 %v1623
        %2214 = vmatprep.subr.bf16.mxu0 0
        %2215 = vmatpush1.bf16.xpose.msra.mxu0 %v1626
        %2216 = vmatprep.subr.bf16.mxu0 0
        %2217 = vmatpush1.bf16.xpose.msra.mxu0 0
        %2218 = vmatprep.subr.bf16.mxu0 0
        %2219 = vmatpush1.bf16.xpose.msra.mxu0 0
        %2220 = vmatprep.subr.bf16.mxu0 0
        %2221 = vmatpush1.bf16.xpose.msra.mxu0 0
        %2222 = vmatprep.subr.bf16.mxu0 0
        %2223 = vmatpush1.bf16.xpose.msra.mxu0 0
        %2224 = vmatprep.subr.bf16.mxu0 0
        %2225 = vmatpush1.bf16.xpose.msra.mxu0 0
        %2226 = vmatprep.subr.bf16.mxu0 0
        %2227 = vmatpush1.bf16.xpose.msra.mxu0 0
        %2228 = vmatprep.subr.bf16.mxu0 0
        %2229 = vmatpush1.bf16.xpose.msra.mxu0 0
        %2230 = vmatprep.subr.bf16.mxu0 0
        %2231 = vmatpush1.bf16.xpose.msra.mxu0 0
        %2232 = vmatprep.mubr.bf16.mxu0 0
        %2233 = vmatmul.mubr.bf16.gmra.mrb[0].mxu0 %v2177
        %v2234 = vpop.f32.mrb[0].mxu0
        %v2235 = vadd.f32 0.0, %v2234
        %v2236 = vpop.f32.mrb[0].mxu0
        %v2237 = vpop.f32.mrb[0].mxu0
        %v2238 = vadd.f32 0.0, %v2237
        %v2239 = vpop.f32.mrb[0].mxu0
        %2240 = vmatprep.mubr.bf16.mxu0 0
        %2241 = vmatmul.mubr.bf16.gmra.mrb[0].mxu0 %v2180
        %v2242 = vpop.f32.mrb[0].mxu0
        %v2243 = vadd.f32 0.0, %v2242
        %v2244 = vpop.f32.mrb[0].mxu0
        %v2245 = vpop.f32.mrb[0].mxu0
        %v2246 = vadd.f32 0.0, %v2245
        %v2247 = vpop.f32.mrb[0].mxu0
        %2248 = vmatprep.mubr.bf16.mxu0 0
        %2249 = vmatmul.mubr.bf16.gmra.mrb[0].mxu0 %v2183
        %v2250 = vpop.f32.mrb[0].mxu0
        %v2251 = vadd.f32 0.0, %v2250
        %v2252 = vpop.f32.mrb[0].mxu0
        %v2253 = vpop.f32.mrb[0].mxu0
        %v2254 = vadd.f32 0.0, %v2253
        %v2255 = vpop.f32.mrb[0].mxu0
        %2256 = vmatprep.mubr.bf16.mxu0 0
        %2257 = vmatmul.mubr.bf16.gmra.mrb[0].mxu0 %v2186
        %v2258 = vpop.f32.mrb[0].mxu0
        %v2259 = vadd.f32 0.0, %v2258
        %v2260 = vpop.f32.mrb[0].mxu0
        %v2261 = vpop.f32.mrb[0].mxu0
        %v2262 = vadd.f32 0.0, %v2261
        %v2263 = vpop.f32.mrb[0].mxu0
        %2264 = vmatprep.mubr.bf16.mxu0 0
        %2265 = vmatmul.mubr.bf16.gmra.mrb[0].mxu0 %v2189
        %v2266 = vpop.f32.mrb[0].mxu0
        %v2267 = vadd.f32 0.0, %v2266
        %v2268 = vpop.f32.mrb[0].mxu0
        %v2269 = vpop.f32.mrb[0].mxu0
        %v2270 = vadd.f32 0.0, %v2269
        %v2271 = vpop.f32.mrb[0].mxu0
        %2272 = vmatprep.mubr.bf16.mxu0 0
        %2273 = vmatmul.mubr.bf16.gmra.mrb[0].mxu0 %v2192
        %v2274 = vpop.f32.mrb[0].mxu0
        %v2275 = vadd.f32 0.0, %v2274
        %v2276 = vpop.f32.mrb[0].mxu0
        %v2277 = vpop.f32.mrb[0].mxu0
        %v2278 = vadd.f32 0.0, %v2277
        %v2279 = vpop.f32.mrb[0].mxu0
        %2280 = vmatprep.mubr.bf16.mxu0 0
        %2281 = vmatmul.mubr.bf16.gmra.mrb[0].mxu0 %v2195
        %v2282 = vpop.f32.mrb[0].mxu0
        %v2283 = vadd.f32 0.0, %v2282
        %v2284 = vpop.f32.mrb[0].mxu0
        %v2285 = vpop.f32.mrb[0].mxu0
        %v2286 = vadd.f32 0.0, %v2285
        %v2287 = vpop.f32.mrb[0].mxu0
        %2288 = vmatprep.mubr.bf16.mxu0 0
        %2289 = vmatmul.mubr.bf16.gmra.mrb[0].mxu0 %v2198
        %v2290 = vpop.f32.mrb[0].mxu0
        %v2291 = vadd.f32 0.0, %v2290
        %v2292 = vpop.f32.mrb[0].mxu0
        %v2293 = vpop.f32.mrb[0].mxu0
        %v2294 = vadd.f32 0.0, %v2293
        %v2295 = vpop.f32.mrb[0].mxu0
        %2296 = vdwg.mxu0
        %2305 = vrot.lane.b32.xlu0 %v1096, 112
        %v2306 = vpop.permute.xlu0 %2305
        %2307 = vrot.lane.b32.xlu0 %v1097, 112
        %v2308 = vpop.permute.xlu0 %2307
        %2309 = vrot.lane.b32.xlu0 %v1098, 112
        %v2310 = vpop.permute.xlu0 %2309
        %2311 = vrot.lane.b32.xlu0 %v1099, 112
        %v2312 = vpop.permute.xlu0 %2311
        %2313 = vrot.lane.b32.xlu0 %v1100, 112
        %v2314 = vpop.permute.xlu0 %2313
        %2315 = vrot.lane.b32.xlu0 %v1101, 112
        %v2316 = vpop.permute.xlu0 %2315
        %2317 = vrot.lane.b32.xlu0 %v1102, 112
        %v2318 = vpop.permute.xlu0 %2317
        %2319 = vrot.lane.b32.xlu0 %v1103, 112
        %v2320 = vpop.permute.xlu0 %2319
        %v2322 = vsel %vm1579, %v2306, 0
        %v2325 = vsel %vm1579, %v2308, 0
        %v2328 = vsel %vm1579, %v2310, 0
        %v2331 = vsel %vm1579, %v2312, 0
        %v2334 = vsel %vm1579, %v2314, 0
        %v2337 = vsel %vm1579, %v2316, 0
        %v2340 = vsel %vm1579, %v2318, 0
        %v2343 = vsel %vm1579, %v2320, 0
        %2345 = vmatprep.subr.bf16.mxu0 0
        %2346 = vmatpush1.bf16.xpose.msra.mxu0 %v1750
        %2347 = vmatprep.subr.bf16.mxu0 0
        %2348 = vmatpush1.bf16.xpose.msra.mxu0 %v1753
        %2349 = vmatprep.subr.bf16.mxu0 0
        %2350 = vmatpush1.bf16.xpose.msra.mxu0 %v1756
        %2351 = vmatprep.subr.bf16.mxu0 0
        %2352 = vmatpush1.bf16.xpose.msra.mxu0 %v1759
        %2353 = vmatprep.subr.bf16.mxu0 0
        %2354 = vmatpush1.bf16.xpose.msra.mxu0 %v1762
        %2355 = vmatprep.subr.bf16.mxu0 0
        %2356 = vmatpush1.bf16.xpose.msra.mxu0 %v1765
        %2357 = vmatprep.subr.bf16.mxu0 0
        %2358 = vmatpush1.bf16.xpose.msra.mxu0 %v1768
        %2359 = vmatprep.subr.bf16.mxu0 0
        %2360 = vmatpush1.bf16.xpose.msra.mxu0 %v1771
        %2361 = vmatprep.subr.bf16.mxu0 0
        %2362 = vmatpush1.bf16.xpose.msra.mxu0 0
        %2363 = vmatprep.subr.bf16.mxu0 0
        %2364 = vmatpush1.bf16.xpose.msra.mxu0 0
        %2365 = vmatprep.subr.bf16.mxu0 0
        %2366 = vmatpush1.bf16.xpose.msra.mxu0 0
        %2367 = vmatprep.subr.bf16.mxu0 0
        %2368 = vmatpush1.bf16.xpose.msra.mxu0 0
        %2369 = vmatprep.subr.bf16.mxu0 0
        %2370 = vmatpush1.bf16.xpose.msra.mxu0 0
        %2371 = vmatprep.subr.bf16.mxu0 0
        %2372 = vmatpush1.bf16.xpose.msra.mxu0 0
        %2373 = vmatprep.subr.bf16.mxu0 0
        %2374 = vmatpush1.bf16.xpose.msra.mxu0 0
        %2375 = vmatprep.subr.bf16.mxu0 0
        %2376 = vmatpush1.bf16.xpose.msra.mxu0 0
        %2377 = vmatprep.mubr.bf16.mxu0 0
        %2378 = vmatmul.mubr.bf16.gmra.mrb[0].mxu0 %v2322
        %v2379 = vpop.f32.mrb[0].mxu0
        %v2380 = vadd.f32 %v2235, %v2379
        %v2381 = vpop.f32.mrb[0].mxu0
        %v2382 = vpop.f32.mrb[0].mxu0
        %v2383 = vadd.f32 %v2238, %v2382
        %v2384 = vpop.f32.mrb[0].mxu0
        %2385 = vmatprep.mubr.bf16.mxu0 0
        %2386 = vmatmul.mubr.bf16.gmra.mrb[0].mxu0 %v2325
        %v2387 = vpop.f32.mrb[0].mxu0
        %v2388 = vadd.f32 %v2243, %v2387
        %v2389 = vpop.f32.mrb[0].mxu0
        %v2390 = vpop.f32.mrb[0].mxu0
        %v2391 = vadd.f32 %v2246, %v2390
        %v2392 = vpop.f32.mrb[0].mxu0
        %2393 = vmatprep.mubr.bf16.mxu0 0
        %2394 = vmatmul.mubr.bf16.gmra.mrb[0].mxu0 %v2328
        %v2395 = vpop.f32.mrb[0].mxu0
        %v2396 = vadd.f32 %v2251, %v2395
        %v2397 = vpop.f32.mrb[0].mxu0
        %v2398 = vpop.f32.mrb[0].mxu0
        %v2399 = vadd.f32 %v2254, %v2398
        %v2400 = vpop.f32.mrb[0].mxu0
        %2401 = vmatprep.mubr.bf16.mxu0 0
        %2402 = vmatmul.mubr.bf16.gmra.mrb[0].mxu0 %v2331
        %v2403 = vpop.f32.mrb[0].mxu0
        %v2404 = vadd.f32 %v2259, %v2403
        %v2405 = vpop.f32.mrb[0].mxu0
        %v2406 = vpop.f32.mrb[0].mxu0
        %v2407 = vadd.f32 %v2262, %v2406
        %v2408 = vpop.f32.mrb[0].mxu0
        %2409 = vmatprep.mubr.bf16.mxu0 0
        %2410 = vmatmul.mubr.bf16.gmra.mrb[0].mxu0 %v2334
        %v2411 = vpop.f32.mrb[0].mxu0
        %v2412 = vadd.f32 %v2267, %v2411
        %v2413 = vpop.f32.mrb[0].mxu0
        %v2414 = vpop.f32.mrb[0].mxu0
        %v2415 = vadd.f32 %v2270, %v2414
        %v2416 = vpop.f32.mrb[0].mxu0
        %2417 = vmatprep.mubr.bf16.mxu0 0
        %2418 = vmatmul.mubr.bf16.gmra.mrb[0].mxu0 %v2337
        %v2419 = vpop.f32.mrb[0].mxu0
        %v2420 = vadd.f32 %v2275, %v2419
        %v2421 = vpop.f32.mrb[0].mxu0
        %v2422 = vpop.f32.mrb[0].mxu0
        %v2423 = vadd.f32 %v2278, %v2422
        %v2424 = vpop.f32.mrb[0].mxu0
        %2425 = vmatprep.mubr.bf16.mxu0 0
        %2426 = vmatmul.mubr.bf16.gmra.mrb[0].mxu0 %v2340
        %v2427 = vpop.f32.mrb[0].mxu0
        %v2428 = vadd.f32 %v2283, %v2427
        %v2429 = vpop.f32.mrb[0].mxu0
        %v2430 = vpop.f32.mrb[0].mxu0
        %v2431 = vadd.f32 %v2286, %v2430
        %v2432 = vpop.f32.mrb[0].mxu0
        %2433 = vmatprep.mubr.bf16.mxu0 0
        %2434 = vmatmul.mubr.bf16.gmra.mrb[0].mxu0 %v2343
        %v2435 = vpop.f32.mrb[0].mxu0
        %v2436 = vadd.f32 %v2291, %v2435
        %v2437 = vpop.f32.mrb[0].mxu0
        %v2438 = vpop.f32.mrb[0].mxu0
        %v2439 = vadd.f32 %v2294, %v2438
        %v2440 = vpop.f32.mrb[0].mxu0
        %2441 = vdwg.mxu0
        %v2442 = vadd.f32 %v2380, %v1563
        %v2443 = vadd.f32 %v2383, %v1564
        %v2444 = vadd.f32 %v2388, %v1565
        %v2445 = vadd.f32 %v2391, %v1566
        %v2446 = vadd.f32 %v2396, %v1567
        %v2447 = vadd.f32 %v2399, %v1568
        %v2448 = vadd.f32 %v2404, %v1569
        %v2449 = vadd.f32 %v2407, %v1570
        %v2450 = vadd.f32 %v2412, %v1571
        %v2451 = vadd.f32 %v2415, %v1572
        %v2452 = vadd.f32 %v2420, %v1573
        %v2453 = vadd.f32 %v2423, %v1574
        %v2454 = vadd.f32 %v2428, %v1575
        %v2455 = vadd.f32 %v2431, %v1576
        %v2456 = vadd.f32 %v2436, %v1577
        %v2457 = vadd.f32 %v2439, %v1578
        %2458 = vmax.xlane.f32.xlu0 %v2442
        %v2459 = vpop.xlane.xlu0 %2458
        %2460 = vmax.xlane.f32.xlu0 %v2443
        %v2461 = vpop.xlane.xlu0 %2460
        %2462 = vmax.xlane.f32.xlu0 %v2444
        %v2463 = vpop.xlane.xlu0 %2462
        %2464 = vmax.xlane.f32.xlu0 %v2445
        %v2465 = vpop.xlane.xlu0 %2464
        %2466 = vmax.xlane.f32.xlu0 %v2446
        %v2467 = vpop.xlane.xlu0 %2466
        %2468 = vmax.xlane.f32.xlu0 %v2447
        %v2469 = vpop.xlane.xlu0 %2468
        %2470 = vmax.xlane.f32.xlu0 %v2448
        %v2471 = vpop.xlane.xlu0 %2470
        %2472 = vmax.xlane.f32.xlu0 %v2449
        %v2473 = vpop.xlane.xlu0 %2472
        %2474 = vmax.xlane.f32.xlu0 %v2450
        %v2475 = vpop.xlane.xlu0 %2474
        %2476 = vmax.xlane.f32.xlu0 %v2451
        %v2477 = vpop.xlane.xlu0 %2476
        %2478 = vmax.xlane.f32.xlu0 %v2452
        %v2479 = vpop.xlane.xlu0 %2478
        %2480 = vmax.xlane.f32.xlu0 %v2453
        %v2481 = vpop.xlane.xlu0 %2480
        %2482 = vmax.xlane.f32.xlu0 %v2454
        %v2483 = vpop.xlane.xlu0 %2482
        %2484 = vmax.xlane.f32.xlu0 %v2455
        %v2485 = vpop.xlane.xlu0 %2484
        %2486 = vmax.xlane.f32.xlu0 %v2456
        %v2487 = vpop.xlane.xlu0 %2486
        %2488 = vmax.xlane.f32.xlu0 %v2457
        %v2489 = vpop.xlane.xlu0 %2488
        %v2490 = vsub.f32 %v2442, %v2459
        %v2491 = vsub.f32 %v2443, %v2461
        %v2492 = vsub.f32 %v2444, %v2463
        %v2493 = vsub.f32 %v2445, %v2465
        %v2494 = vsub.f32 %v2446, %v2467
        %v2495 = vsub.f32 %v2447, %v2469
        %v2496 = vsub.f32 %v2448, %v2471
        %v2497 = vsub.f32 %v2449, %v2473
        %v2498 = vsub.f32 %v2450, %v2475
        %v2499 = vsub.f32 %v2451, %v2477
        %v2500 = vsub.f32 %v2452, %v2479
        %v2501 = vsub.f32 %v2453, %v2481
        %v2502 = vsub.f32 %v2454, %v2483
        %v2503 = vsub.f32 %v2455, %v2485
        %v2504 = vsub.f32 %v2456, %v2487
        %v2505 = vsub.f32 %v2457, %v2489
        %v2506 = vmul.f32 %v2490, 1.442695
        %v2507 = vpow.pop %v2506
        %v2508 = vmul.f32 %v2491, 1.442695
        %v2509 = vpow.pop %v2508
        %v2510 = vmul.f32 %v2492, 1.442695
        %v2511 = vpow.pop %v2510
        %v2512 = vmul.f32 %v2493, 1.442695
        %v2513 = vpow.pop %v2512
        %v2514 = vmul.f32 %v2494, 1.442695
        %v2515 = vpow.pop %v2514
        %v2516 = vmul.f32 %v2495, 1.442695
        %v2517 = vpow.pop %v2516
        %v2518 = vmul.f32 %v2496, 1.442695
        %v2519 = vpow.pop %v2518
        %v2520 = vmul.f32 %v2497, 1.442695
        %v2521 = vpow.pop %v2520
        %v2522 = vmul.f32 %v2498, 1.442695
        %v2523 = vpow.pop %v2522
        %v2524 = vmul.f32 %v2499, 1.442695
        %v2525 = vpow.pop %v2524
        %v2526 = vmul.f32 %v2500, 1.442695
        %v2527 = vpow.pop %v2526
        %v2528 = vmul.f32 %v2501, 1.442695
        %v2529 = vpow.pop %v2528
        %v2530 = vmul.f32 %v2502, 1.442695
        %v2531 = vpow.pop %v2530
        %v2532 = vmul.f32 %v2503, 1.442695
        %v2533 = vpow.pop %v2532
        %v2534 = vmul.f32 %v2504, 1.442695
        %v2535 = vpow.pop %v2534
        %v2536 = vmul.f32 %v2505, 1.442695
        %v2537 = vpow.pop %v2536
        %2538 = vadd.xlane.f32.xlu0 %v2507
        %v2539 = vpop.xlane.xlu0 %2538
        %2540 = vadd.xlane.f32.xlu0 %v2509
        %v2541 = vpop.xlane.xlu0 %2540
        %2542 = vadd.xlane.f32.xlu0 %v2511
        %v2543 = vpop.xlane.xlu0 %2542
        %2544 = vadd.xlane.f32.xlu0 %v2513
        %v2545 = vpop.xlane.xlu0 %2544
        %2546 = vadd.xlane.f32.xlu0 %v2515
        %v2547 = vpop.xlane.xlu0 %2546
        %2548 = vadd.xlane.f32.xlu0 %v2517
        %v2549 = vpop.xlane.xlu0 %2548
        %2550 = vadd.xlane.f32.xlu0 %v2519
        %v2551 = vpop.xlane.xlu0 %2550
        %2552 = vadd.xlane.f32.xlu0 %v2521
        %v2553 = vpop.xlane.xlu0 %2552
        %2554 = vadd.xlane.f32.xlu0 %v2523
        %v2555 = vpop.xlane.xlu0 %2554
        %2556 = vadd.xlane.f32.xlu0 %v2525
        %v2557 = vpop.xlane.xlu0 %2556
        %2558 = vadd.xlane.f32.xlu0 %v2527
        %v2559 = vpop.xlane.xlu0 %2558
        %2560 = vadd.xlane.f32.xlu0 %v2529
        %v2561 = vpop.xlane.xlu0 %2560
        %2562 = vadd.xlane.f32.xlu0 %v2531
        %v2563 = vpop.xlane.xlu0 %2562
        %2564 = vadd.xlane.f32.xlu0 %v2533
        %v2565 = vpop.xlane.xlu0 %2564
        %2566 = vadd.xlane.f32.xlu0 %v2535
        %v2567 = vpop.xlane.xlu0 %2566
        %2568 = vadd.xlane.f32.xlu0 %v2537
        %v2569 = vpop.xlane.xlu0 %2568
        %v2570 = vpack.c.bf16 %v2509, %v2507
        %v2571 = vpack.c.bf16 %v2513, %v2511
        %v2572 = vpack.c.bf16 %v2517, %v2515
        %v2573 = vpack.c.bf16 %v2521, %v2519
        %v2574 = vpack.c.bf16 %v2525, %v2523
        %v2575 = vpack.c.bf16 %v2529, %v2527
        %v2576 = vpack.c.bf16 %v2533, %v2531
        %v2577 = vpack.c.bf16 %v2537, %v2535
        %2578 = vmatprep.subr.bf16.mxu0 0
        %2579 = vmatpush1.bf16.msra.mxu0 %v1008
        %2580 = vmatprep.subr.bf16.mxu0 0
        %2581 = vmatpush1.bf16.msra.mxu0 %v1009
        %2582 = vmatprep.subr.bf16.mxu0 0
        %2583 = vmatpush1.bf16.msra.mxu0 %v1010
        %2584 = vmatprep.subr.bf16.mxu0 0
        %2585 = vmatpush1.bf16.msra.mxu0 %v1011
        %2586 = vmatprep.subr.bf16.mxu0 0
        %2587 = vmatpush1.bf16.msra.mxu0 %v1012
        %2588 = vmatprep.subr.bf16.mxu0 0
        %2589 = vmatpush1.bf16.msra.mxu0 %v1013
        %2590 = vmatprep.subr.bf16.mxu0 0
        %2591 = vmatpush1.bf16.msra.mxu0 %v1014
        %2592 = vmatprep.subr.bf16.mxu0 0
        %2593 = vmatpush1.bf16.msra.mxu0 %v1015
        %2594 = vmatprep.subr.bf16.mxu0 0
        %2595 = vmatpush1.bf16.msra.mxu0 0
        %2596 = vmatprep.subr.bf16.mxu0 0
        %2597 = vmatpush1.bf16.msra.mxu0 0
        %2598 = vmatprep.subr.bf16.mxu0 0
        %2599 = vmatpush1.bf16.msra.mxu0 0
        %2600 = vmatprep.subr.bf16.mxu0 0
        %2601 = vmatpush1.bf16.msra.mxu0 0
        %2602 = vmatprep.subr.bf16.mxu0 0
        %2603 = vmatpush1.bf16.msra.mxu0 0
        %2604 = vmatprep.subr.bf16.mxu0 0
        %2605 = vmatpush1.bf16.msra.mxu0 0
        %2606 = vmatprep.subr.bf16.mxu0 0
        %2607 = vmatpush1.bf16.msra.mxu0 0
        %2608 = vmatprep.subr.bf16.mxu0 0
        %2609 = vmatpush1.bf16.msra.mxu0 0
        %2610 = vmatprep.mubr.bf16.mxu0 0
        %2611 = vmatmul.mubr.bf16.gmra.mrb[0].mxu0 %v2570
        %v2612 = vpop.f32.mrb[0].mxu0
        %v2613 = vadd.f32 0.0, %v2612
        %v2614 = vpop.f32.mrb[0].mxu0
        %v2615 = vpop.f32.mrb[0].mxu0
        %v2616 = vadd.f32 0.0, %v2615
        %v2617 = vpop.f32.mrb[0].mxu0
        %2618 = vmatprep.mubr.bf16.mxu0 0
        %2619 = vmatmul.mubr.bf16.gmra.mrb[0].mxu0 %v2571
        %v2620 = vpop.f32.mrb[0].mxu0
        %v2621 = vadd.f32 0.0, %v2620
        %v2622 = vpop.f32.mrb[0].mxu0
        %v2623 = vpop.f32.mrb[0].mxu0
        %v2624 = vadd.f32 0.0, %v2623
        %v2625 = vpop.f32.mrb[0].mxu0
        %2626 = vmatprep.mubr.bf16.mxu0 0
        %2627 = vmatmul.mubr.bf16.gmra.mrb[0].mxu0 %v2572
        %v2628 = vpop.f32.mrb[0].mxu0
        %v2629 = vadd.f32 0.0, %v2628
        %v2630 = vpop.f32.mrb[0].mxu0
        %v2631 = vpop.f32.mrb[0].mxu0
        %v2632 = vadd.f32 0.0, %v2631
        %v2633 = vpop.f32.mrb[0].mxu0
        %2634 = vmatprep.mubr.bf16.mxu0 0
        %2635 = vmatmul.mubr.bf16.gmra.mrb[0].mxu0 %v2573
        %v2636 = vpop.f32.mrb[0].mxu0
        %v2637 = vadd.f32 0.0, %v2636
        %v2638 = vpop.f32.mrb[0].mxu0
        %v2639 = vpop.f32.mrb[0].mxu0
        %v2640 = vadd.f32 0.0, %v2639
        %v2641 = vpop.f32.mrb[0].mxu0
        %2642 = vmatprep.mubr.bf16.mxu0 0
        %2643 = vmatmul.mubr.bf16.gmra.mrb[0].mxu0 %v2574
        %v2644 = vpop.f32.mrb[0].mxu0
        %v2645 = vadd.f32 0.0, %v2644
        %v2646 = vpop.f32.mrb[0].mxu0
        %v2647 = vpop.f32.mrb[0].mxu0
        %v2648 = vadd.f32 0.0, %v2647
        %v2649 = vpop.f32.mrb[0].mxu0
        %2650 = vmatprep.mubr.bf16.mxu0 0
        %2651 = vmatmul.mubr.bf16.gmra.mrb[0].mxu0 %v2575
        %v2652 = vpop.f32.mrb[0].mxu0
        %v2653 = vadd.f32 0.0, %v2652
        %v2654 = vpop.f32.mrb[0].mxu0
        %v2655 = vpop.f32.mrb[0].mxu0
        %v2656 = vadd.f32 0.0, %v2655
        %v2657 = vpop.f32.mrb[0].mxu0
        %2658 = vmatprep.mubr.bf16.mxu0 0
        %2659 = vmatmul.mubr.bf16.gmra.mrb[0].mxu0 %v2576
        %v2660 = vpop.f32.mrb[0].mxu0
        %v2661 = vadd.f32 0.0, %v2660
        %v2662 = vpop.f32.mrb[0].mxu0
        %v2663 = vpop.f32.mrb[0].mxu0
        %v2664 = vadd.f32 0.0, %v2663
        %v2665 = vpop.f32.mrb[0].mxu0
        %2666 = vmatprep.mubr.bf16.mxu0 0
        %2667 = vmatmul.mubr.bf16.gmra.mrb[0].mxu0 %v2577
        %v2668 = vpop.f32.mrb[0].mxu0
        %v2669 = vadd.f32 0.0, %v2668
        %v2670 = vpop.f32.mrb[0].mxu0
        %v2671 = vpop.f32.mrb[0].mxu0
        %v2672 = vadd.f32 0.0, %v2671
        %v2673 = vpop.f32.mrb[0].mxu0
        %2674 = vdwg.mxu0
        %v2675 = vrcp.pop %v2539
        %v2676 = vrcp.pop %v2541
        %v2677 = vrcp.pop %v2543
        %v2678 = vrcp.pop %v2545
        %v2679 = vrcp.pop %v2547
        %v2680 = vrcp.pop %v2549
        %v2681 = vrcp.pop %v2551
        %v2682 = vrcp.pop %v2553
        %v2683 = vrcp.pop %v2555
        %v2684 = vrcp.pop %v2557
        %v2685 = vrcp.pop %v2559
        %v2686 = vrcp.pop %v2561
        %v2687 = vrcp.pop %v2563
        %v2688 = vrcp.pop %v2565
        %v2689 = vrcp.pop %v2567
        %v2690 = vrcp.pop %v2569
        %v2691 = vmul.f32 %v2613, %v2675
        %v2692 = vmul.f32 %v2616, %v2676
        %v2693 = vmul.f32 %v2621, %v2677
        %v2694 = vmul.f32 %v2624, %v2678
        %v2695 = vmul.f32 %v2629, %v2679
        %v2696 = vmul.f32 %v2632, %v2680
        %v2697 = vmul.f32 %v2637, %v2681
        %v2698 = vmul.f32 %v2640, %v2682
        %v2699 = vmul.f32 %v2645, %v2683
        %v2700 = vmul.f32 %v2648, %v2684
        %v2701 = vmul.f32 %v2653, %v2685
        %v2702 = vmul.f32 %v2656, %v2686
        %v2703 = vmul.f32 %v2661, %v2687
        %v2704 = vmul.f32 %v2664, %v2688
        %v2705 = vmul.f32 %v2669, %v2689
        %v2706 = vmul.f32 %v2672, %v2690
        %2723 = vrot.lane.b32.xlu0 %v2691, 32
        %v2724 = vpop.permute.xlu0 %2723
        %2725 = vrot.lane.b32.xlu0 %v2692, 32
        %v2726 = vpop.permute.xlu0 %2725
        %2727 = vrot.lane.b32.xlu0 %v2693, 32
        %v2728 = vpop.permute.xlu0 %2727
        %2729 = vrot.lane.b32.xlu0 %v2694, 32
        %v2730 = vpop.permute.xlu0 %2729
        %2731 = vrot.lane.b32.xlu0 %v2695, 32
        %v2732 = vpop.permute.xlu0 %2731
        %2733 = vrot.lane.b32.xlu0 %v2696, 32
        %v2734 = vpop.permute.xlu0 %2733
        %2735 = vrot.lane.b32.xlu0 %v2697, 32
        %v2736 = vpop.permute.xlu0 %2735
        %2737 = vrot.lane.b32.xlu0 %v2698, 32
        %v2738 = vpop.permute.xlu0 %2737
        %2739 = vrot.lane.b32.xlu0 %v2699, 32
        %v2740 = vpop.permute.xlu0 %2739
        %2741 = vrot.lane.b32.xlu0 %v2700, 32
        %v2742 = vpop.permute.xlu0 %2741
        %2743 = vrot.lane.b32.xlu0 %v2701, 32
        %v2744 = vpop.permute.xlu0 %2743
        %2745 = vrot.lane.b32.xlu0 %v2702, 32
        %v2746 = vpop.permute.xlu0 %2745
        %2747 = vrot.lane.b32.xlu0 %v2703, 32
        %v2748 = vpop.permute.xlu0 %2747
        %2749 = vrot.lane.b32.xlu0 %v2704, 32
        %v2750 = vpop.permute.xlu0 %2749
        %2751 = vrot.lane.b32.xlu0 %v2705, 32
        %v2752 = vpop.permute.xlu0 %2751
        %2753 = vrot.lane.b32.xlu0 %v2706, 32
        %v2754 = vpop.permute.xlu0 %2753
        %vm2771 = vcmask 523520
        %2772 = vst.msk [vmem:[#allocation2] sm:$0xff] %vm2771, %v2724
        %2773 = vst.msk [vmem:[#allocation2 + $0x10] sm:$0xff] %vm2771, %v2726
        %2774 = vst.msk [vmem:[#allocation2 + $0x20] sm:$0xff] %vm2771, %v2728
        %2775 = vst.msk [vmem:[#allocation2 + $0x30] sm:$0xff] %vm2771, %v2730
        %2776 = vst.msk [vmem:[#allocation2 + $0x40] sm:$0xff] %vm2771, %v2732
        %2777 = vst.msk [vmem:[#allocation2 + $0x50] sm:$0xff] %vm2771, %v2734
        %2778 = vst.msk [vmem:[#allocation2 + $0x60] sm:$0xff] %vm2771, %v2736
        %2779 = vst.msk [vmem:[#allocation2 + $0x70] sm:$0xff] %vm2771, %v2738
        %2780 = vst.msk [vmem:[#allocation2 + $0x80] sm:$0xff] %vm2771, %v2740
        %2781 = vst.msk [vmem:[#allocation2 + $0x90] sm:$0xff] %vm2771, %v2742
        %2782 = vst.msk [vmem:[#allocation2 + $0xa0] sm:$0xff] %vm2771, %v2744
        %2783 = vst.msk [vmem:[#allocation2 + $0xb0] sm:$0xff] %vm2771, %v2746
        %2784 = vst.msk [vmem:[#allocation2 + $0xc0] sm:$0xff] %vm2771, %v2748
        %2785 = vst.msk [vmem:[#allocation2 + $0xd0] sm:$0xff] %vm2771, %v2750
        %2786 = vst.msk [vmem:[#allocation2 + $0xe0] sm:$0xff] %vm2771, %v2752
        %2787 = vst.msk [vmem:[#allocation2 + $0xf0] sm:$0xff] %vm2771, %v2754
        %2788 = vrot.lane.b32.xlu0 %v1152, 96
        %v2789 = vpop.permute.xlu0 %2788
        %2790 = vrot.lane.b32.xlu0 %v1153, 96
        %v2791 = vpop.permute.xlu0 %2790
        %2792 = vrot.lane.b32.xlu0 %v1154, 96
        %v2793 = vpop.permute.xlu0 %2792
        %2794 = vrot.lane.b32.xlu0 %v1155, 96
        %v2795 = vpop.permute.xlu0 %2794
        %2796 = vrot.lane.b32.xlu0 %v1156, 96
        %v2797 = vpop.permute.xlu0 %2796
        %2798 = vrot.lane.b32.xlu0 %v1157, 96
        %v2799 = vpop.permute.xlu0 %2798
        %2800 = vrot.lane.b32.xlu0 %v1158, 96
        %v2801 = vpop.permute.xlu0 %2800
        %2802 = vrot.lane.b32.xlu0 %v1159, 96
        %v2803 = vpop.permute.xlu0 %2802
        %2812 = vrot.lane.b32.xlu0 %v1520, 112
        %v2813 = vpop.permute.xlu0 %2812
        %2814 = vrot.lane.b32.xlu0 %v1521, 112
        %v2815 = vpop.permute.xlu0 %2814
        %2816 = vrot.lane.b32.xlu0 %v1522, 112
        %v2817 = vpop.permute.xlu0 %2816
        %2818 = vrot.lane.b32.xlu0 %v1523, 112
        %v2819 = vpop.permute.xlu0 %2818
        %2820 = vrot.lane.b32.xlu0 %v1524, 112
        %v2821 = vpop.permute.xlu0 %2820
        %2822 = vrot.lane.b32.xlu0 %v1525, 112
        %v2823 = vpop.permute.xlu0 %2822
        %2824 = vrot.lane.b32.xlu0 %v1526, 112
        %v2825 = vpop.permute.xlu0 %2824
        %2826 = vrot.lane.b32.xlu0 %v1527, 112
        %v2827 = vpop.permute.xlu0 %2826
        %v2829 = vsel %vm1579, %v2789, 0
        %v2832 = vsel %vm1579, %v2791, 0
        %v2835 = vsel %vm1579, %v2793, 0
        %v2838 = vsel %vm1579, %v2795, 0
        %v2841 = vsel %vm1579, %v2797, 0
        %v2844 = vsel %vm1579, %v2799, 0
        %v2847 = vsel %vm1579, %v2801, 0
        %v2850 = vsel %vm1579, %v2803, 0
        %v2853 = vsel %vm1579, %v2813, 0
        %v2856 = vsel %vm1579, %v2815, 0
        %v2859 = vsel %vm1579, %v2817, 0
        %v2862 = vsel %vm1579, %v2819, 0
        %v2865 = vsel %vm1579, %v2821, 0
        %v2868 = vsel %vm1579, %v2823, 0
        %v2871 = vsel %vm1579, %v2825, 0
        %v2874 = vsel %vm1579, %v2827, 0
        %2876 = vmatprep.subr.bf16.mxu0 0
        %2877 = vmatpush1.bf16.xpose.msra.mxu0 %v2853
        %2878 = vmatprep.subr.bf16.mxu0 0
        %2879 = vmatpush1.bf16.xpose.msra.mxu0 %v2856
        %2880 = vmatprep.subr.bf16.mxu0 0
        %2881 = vmatpush1.bf16.xpose.msra.mxu0 %v2859
        %2882 = vmatprep.subr.bf16.mxu0 0
        %2883 = vmatpush1.bf16.xpose.msra.mxu0 %v2862
        %2884 = vmatprep.subr.bf16.mxu0 0
        %2885 = vmatpush1.bf16.xpose.msra.mxu0 %v2865
        %2886 = vmatprep.subr.bf16.mxu0 0
        %2887 = vmatpush1.bf16.xpose.msra.mxu0 %v2868
        %2888 = vmatprep.subr.bf16.mxu0 0
        %2889 = vmatpush1.bf16.xpose.msra.mxu0 %v2871
        %2890 = vmatprep.subr.bf16.mxu0 0
        %2891 = vmatpush1.bf16.xpose.msra.mxu0 %v2874
        %2892 = vmatprep.subr.bf16.mxu0 0
        %2893 = vmatpush1.bf16.xpose.msra.mxu0 0
        %2894 = vmatprep.subr.bf16.mxu0 0
        %2895 = vmatpush1.bf16.xpose.msra.mxu0 0
        %2896 = vmatprep.subr.bf16.mxu0 0
        %2897 = vmatpush1.bf16.xpose.msra.mxu0 0
        %2898 = vmatprep.subr.bf16.mxu0 0
        %2899 = vmatpush1.bf16.xpose.msra.mxu0 0
        %2900 = vmatprep.subr.bf16.mxu0 0
        %2901 = vmatpush1.bf16.xpose.msra.mxu0 0
        %2902 = vmatprep.subr.bf16.mxu0 0
        %2903 = vmatpush1.bf16.xpose.msra.mxu0 0
        %2904 = vmatprep.subr.bf16.mxu0 0
        %2905 = vmatpush1.bf16.xpose.msra.mxu0 0
        %2906 = vmatprep.subr.bf16.mxu0 0
        %2907 = vmatpush1.bf16.xpose.msra.mxu0 0
        %2908 = vmatprep.mubr.bf16.mxu0 0
        %2909 = vmatmul.mubr.bf16.gmra.mrb[0].mxu0 %v2829
        %v2910 = vpop.f32.mrb[0].mxu0
        %v2911 = vadd.f32 0.0, %v2910
        %v2912 = vpop.f32.mrb[0].mxu0
        %v2913 = vpop.f32.mrb[0].mxu0
        %v2914 = vadd.f32 0.0, %v2913
        %v2915 = vpop.f32.mrb[0].mxu0
        %2916 = vmatprep.mubr.bf16.mxu0 0
        %2917 = vmatmul.mubr.bf16.gmra.mrb[0].mxu0 %v2832
        %v2918 = vpop.f32.mrb[0].mxu0
        %v2919 = vadd.f32 0.0, %v2918
        %v2920 = vpop.f32.mrb[0].mxu0
        %v2921 = vpop.f32.mrb[0].mxu0
        %v2922 = vadd.f32 0.0, %v2921
        %v2923 = vpop.f32.mrb[0].mxu0
        %2924 = vmatprep.mubr.bf16.mxu0 0
        %2925 = vmatmul.mubr.bf16.gmra.mrb[0].mxu0 %v2835
        %v2926 = vpop.f32.mrb[0].mxu0
        %v2927 = vadd.f32 0.0, %v2926
        %v2928 = vpop.f32.mrb[0].mxu0
        %v2929 = vpop.f32.mrb[0].mxu0
        %v2930 = vadd.f32 0.0, %v2929
        %v2931 = vpop.f32.mrb[0].mxu0
        %2932 = vmatprep.mubr.bf16.mxu0 0
        %2933 = vmatmul.mubr.bf16.gmra.mrb[0].mxu0 %v2838
        %v2934 = vpop.f32.mrb[0].mxu0
        %v2935 = vadd.f32 0.0, %v2934
        %v2936 = vpop.f32.mrb[0].mxu0
        %v2937 = vpop.f32.mrb[0].mxu0
        %v2938 = vadd.f32 0.0, %v2937
        %v2939 = vpop.f32.mrb[0].mxu0
        %2940 = vmatprep.mubr.bf16.mxu0 0
        %2941 = vmatmul.mubr.bf16.gmra.mrb[0].mxu0 %v2841
        %v2942 = vpop.f32.mrb[0].mxu0
        %v2943 = vadd.f32 0.0, %v2942
        %v2944 = vpop.f32.mrb[0].mxu0
        %v2945 = vpop.f32.mrb[0].mxu0
        %v2946 = vadd.f32 0.0, %v2945
        %v2947 = vpop.f32.mrb[0].mxu0
        %2948 = vmatprep.mubr.bf16.mxu0 0
        %2949 = vmatmul.mubr.bf16.gmra.mrb[0].mxu0 %v2844
        %v2950 = vpop.f32.mrb[0].mxu0
        %v2951 = vadd.f32 0.0, %v2950
        %v2952 = vpop.f32.mrb[0].mxu0
        %v2953 = vpop.f32.mrb[0].mxu0
        %v2954 = vadd.f32 0.0, %v2953
        %v2955 = vpop.f32.mrb[0].mxu0
        %2956 = vmatprep.mubr.bf16.mxu0 0
        %2957 = vmatmul.mubr.bf16.gmra.mrb[0].mxu0 %v2847
        %v2958 = vpop.f32.mrb[0].mxu0
        %v2959 = vadd.f32 0.0, %v2958
        %v2960 = vpop.f32.mrb[0].mxu0
        %v2961 = vpop.f32.mrb[0].mxu0
        %v2962 = vadd.f32 0.0, %v2961
        %v2963 = vpop.f32.mrb[0].mxu0
        %2964 = vmatprep.mubr.bf16.mxu0 0
        %2965 = vmatmul.mubr.bf16.gmra.mrb[0].mxu0 %v2850
        %v2966 = vpop.f32.mrb[0].mxu0
        %v2967 = vadd.f32 0.0, %v2966
        %v2968 = vpop.f32.mrb[0].mxu0
        %v2969 = vpop.f32.mrb[0].mxu0
        %v2970 = vadd.f32 0.0, %v2969
        %v2971 = vpop.f32.mrb[0].mxu0
        %2972 = vdwg.mxu0
        %2973 = vrot.lane.b32.xlu0 %v1096, 96
        %v2974 = vpop.permute.xlu0 %2973
        %2975 = vrot.lane.b32.xlu0 %v1097, 96
        %v2976 = vpop.permute.xlu0 %2975
        %2977 = vrot.lane.b32.xlu0 %v1098, 96
        %v2978 = vpop.permute.xlu0 %2977
        %2979 = vrot.lane.b32.xlu0 %v1099, 96
        %v2980 = vpop.permute.xlu0 %2979
        %2981 = vrot.lane.b32.xlu0 %v1100, 96
        %v2982 = vpop.permute.xlu0 %2981
        %2983 = vrot.lane.b32.xlu0 %v1101, 96
        %v2984 = vpop.permute.xlu0 %2983
        %2985 = vrot.lane.b32.xlu0 %v1102, 96
        %v2986 = vpop.permute.xlu0 %2985
        %2987 = vrot.lane.b32.xlu0 %v1103, 96
        %v2988 = vpop.permute.xlu0 %2987
        %2997 = vrot.lane.b32.xlu0 %v1336, 112
        %v2998 = vpop.permute.xlu0 %2997
        %2999 = vrot.lane.b32.xlu0 %v1337, 112
        %v3000 = vpop.permute.xlu0 %2999
        %3001 = vrot.lane.b32.xlu0 %v1338, 112
        %v3002 = vpop.permute.xlu0 %3001
        %3003 = vrot.lane.b32.xlu0 %v1339, 112
        %v3004 = vpop.permute.xlu0 %3003
        %3005 = vrot.lane.b32.xlu0 %v1340, 112
        %v3006 = vpop.permute.xlu0 %3005
        %3007 = vrot.lane.b32.xlu0 %v1341, 112
        %v3008 = vpop.permute.xlu0 %3007
        %3009 = vrot.lane.b32.xlu0 %v1342, 112
        %v3010 = vpop.permute.xlu0 %3009
        %3011 = vrot.lane.b32.xlu0 %v1343, 112
        %v3012 = vpop.permute.xlu0 %3011
        %v3014 = vsel %vm1579, %v2974, 0
        %v3017 = vsel %vm1579, %v2976, 0
        %v3020 = vsel %vm1579, %v2978, 0
        %v3023 = vsel %vm1579, %v2980, 0
        %v3026 = vsel %vm1579, %v2982, 0
        %v3029 = vsel %vm1579, %v2984, 0
        %v3032 = vsel %vm1579, %v2986, 0
        %v3035 = vsel %vm1579, %v2988, 0
        %v3038 = vsel %vm1579, %v2998, 0
        %v3041 = vsel %vm1579, %v3000, 0
        %v3044 = vsel %vm1579, %v3002, 0
        %v3047 = vsel %vm1579, %v3004, 0
        %v3050 = vsel %vm1579, %v3006, 0
        %v3053 = vsel %vm1579, %v3008, 0
        %v3056 = vsel %vm1579, %v3010, 0
        %v3059 = vsel %vm1579, %v3012, 0
        %3061 = vmatprep.subr.bf16.mxu0 0
        %3062 = vmatpush1.bf16.xpose.msra.mxu0 %v3038
        %3063 = vmatprep.subr.bf16.mxu0 0
        %3064 = vmatpush1.bf16.xpose.msra.mxu0 %v3041
        %3065 = vmatprep.subr.bf16.mxu0 0
        %3066 = vmatpush1.bf16.xpose.msra.mxu0 %v3044
        %3067 = vmatprep.subr.bf16.mxu0 0
        %3068 = vmatpush1.bf16.xpose.msra.mxu0 %v3047
        %3069 = vmatprep.subr.bf16.mxu0 0
        %3070 = vmatpush1.bf16.xpose.msra.mxu0 %v3050
        %3071 = vmatprep.subr.bf16.mxu0 0
        %3072 = vmatpush1.bf16.xpose.msra.mxu0 %v3053
        %3073 = vmatprep.subr.bf16.mxu0 0
        %3074 = vmatpush1.bf16.xpose.msra.mxu0 %v3056
        %3075 = vmatprep.subr.bf16.mxu0 0
        %3076 = vmatpush1.bf16.xpose.msra.mxu0 %v3059
        %3077 = vmatprep.subr.bf16.mxu0 0
        %3078 = vmatpush1.bf16.xpose.msra.mxu0 0
        %3079 = vmatprep.subr.bf16.mxu0 0
        %3080 = vmatpush1.bf16.xpose.msra.mxu0 0
        %3081 = vmatprep.subr.bf16.mxu0 0
        %3082 = vmatpush1.bf16.xpose.msra.mxu0 0
        %3083 = vmatprep.subr.bf16.mxu0 0
        %3084 = vmatpush1.bf16.xpose.msra.mxu0 0
        %3085 = vmatprep.subr.bf16.mxu0 0
        %3086 = vmatpush1.bf16.xpose.msra.mxu0 0
        %3087 = vmatprep.subr.bf16.mxu0 0
        %3088 = vmatpush1.bf16.xpose.msra.mxu0 0
        %3089 = vmatprep.subr.bf16.mxu0 0
        %3090 = vmatpush1.bf16.xpose.msra.mxu0 0
        %3091 = vmatprep.subr.bf16.mxu0 0
        %3092 = vmatpush1.bf16.xpose.msra.mxu0 0
        %3093 = vmatprep.mubr.bf16.mxu0 0
        %3094 = vmatmul.mubr.bf16.gmra.mrb[0].mxu0 %v3014
        %v3095 = vpop.f32.mrb[0].mxu0
        %v3096 = vadd.f32 %v2911, %v3095
        %v3097 = vpop.f32.mrb[0].mxu0
        %v3098 = vpop.f32.mrb[0].mxu0
        %v3099 = vadd.f32 %v2914, %v3098
        %v3100 = vpop.f32.mrb[0].mxu0
        %3101 = vmatprep.mubr.bf16.mxu0 0
        %3102 = vmatmul.mubr.bf16.gmra.mrb[0].mxu0 %v3017
        %v3103 = vpop.f32.mrb[0].mxu0
        %v3104 = vadd.f32 %v2919, %v3103
        %v3105 = vpop.f32.mrb[0].mxu0
        %v3106 = vpop.f32.mrb[0].mxu0
        %v3107 = vadd.f32 %v2922, %v3106
        %v3108 = vpop.f32.mrb[0].mxu0
        %3109 = vmatprep.mubr.bf16.mxu0 0
        %3110 = vmatmul.mubr.bf16.gmra.mrb[0].mxu0 %v3020
        %v3111 = vpop.f32.mrb[0].mxu0
        %v3112 = vadd.f32 %v2927, %v3111
        %v3113 = vpop.f32.mrb[0].mxu0
        %v3114 = vpop.f32.mrb[0].mxu0
        %v3115 = vadd.f32 %v2930, %v3114
        %v3116 = vpop.f32.mrb[0].mxu0
        %3117 = vmatprep.mubr.bf16.mxu0 0
        %3118 = vmatmul.mubr.bf16.gmra.mrb[0].mxu0 %v3023
        %v3119 = vpop.f32.mrb[0].mxu0
        %v3120 = vadd.f32 %v2935, %v3119
        %v3121 = vpop.f32.mrb[0].mxu0
        %v3122 = vpop.f32.mrb[0].mxu0
        %v3123 = vadd.f32 %v2938, %v3122
        %v3124 = vpop.f32.mrb[0].mxu0
        %3125 = vmatprep.mubr.bf16.mxu0 0
        %3126 = vmatmul.mubr.bf16.gmra.mrb[0].mxu0 %v3026
        %v3127 = vpop.f32.mrb[0].mxu0
        %v3128 = vadd.f32 %v2943, %v3127
        %v3129 = vpop.f32.mrb[0].mxu0
        %v3130 = vpop.f32.mrb[0].mxu0
        %v3131 = vadd.f32 %v2946, %v3130
        %v3132 = vpop.f32.mrb[0].mxu0
        %3133 = vmatprep.mubr.bf16.mxu0 0
        %3134 = vmatmul.mubr.bf16.gmra.mrb[0].mxu0 %v3029
        %v3135 = vpop.f32.mrb[0].mxu0
        %v3136 = vadd.f32 %v2951, %v3135
        %v3137 = vpop.f32.mrb[0].mxu0
        %v3138 = vpop.f32.mrb[0].mxu0
        %v3139 = vadd.f32 %v2954, %v3138
        %v3140 = vpop.f32.mrb[0].mxu0
        %3141 = vmatprep.mubr.bf16.mxu0 0
        %3142 = vmatmul.mubr.bf16.gmra.mrb[0].mxu0 %v3032
        %v3143 = vpop.f32.mrb[0].mxu0
        %v3144 = vadd.f32 %v2959, %v3143
        %v3145 = vpop.f32.mrb[0].mxu0
        %v3146 = vpop.f32.mrb[0].mxu0
        %v3147 = vadd.f32 %v2962, %v3146
        %v3148 = vpop.f32.mrb[0].mxu0
        %3149 = vmatprep.mubr.bf16.mxu0 0
        %3150 = vmatmul.mubr.bf16.gmra.mrb[0].mxu0 %v3035
        %v3151 = vpop.f32.mrb[0].mxu0
        %v3152 = vadd.f32 %v2967, %v3151
        %v3153 = vpop.f32.mrb[0].mxu0
        %v3154 = vpop.f32.mrb[0].mxu0
        %v3155 = vadd.f32 %v2970, %v3154
        %v3156 = vpop.f32.mrb[0].mxu0
        %3157 = vdwg.mxu0
        %v3158 = vadd.f32 %v3096, %v1563
        %v3159 = vadd.f32 %v3099, %v1564
        %v3160 = vadd.f32 %v3104, %v1565
        %v3161 = vadd.f32 %v3107, %v1566
        %v3162 = vadd.f32 %v3112, %v1567
        %v3163 = vadd.f32 %v3115, %v1568
        %v3164 = vadd.f32 %v3120, %v1569
        %v3165 = vadd.f32 %v3123, %v1570
        %v3166 = vadd.f32 %v3128, %v1571
        %v3167 = vadd.f32 %v3131, %v1572
        %v3168 = vadd.f32 %v3136, %v1573
        %v3169 = vadd.f32 %v3139, %v1574
        %v3170 = vadd.f32 %v3144, %v1575
        %v3171 = vadd.f32 %v3147, %v1576
        %v3172 = vadd.f32 %v3152, %v1577
        %v3173 = vadd.f32 %v3155, %v1578
        %3174 = vmax.xlane.f32.xlu0 %v3158
        %v3175 = vpop.xlane.xlu0 %3174
        %3176 = vmax.xlane.f32.xlu0 %v3159
        %v3177 = vpop.xlane.xlu0 %3176
        %3178 = vmax.xlane.f32.xlu0 %v3160
        %v3179 = vpop.xlane.xlu0 %3178
        %3180 = vmax.xlane.f32.xlu0 %v3161
        %v3181 = vpop.xlane.xlu0 %3180
        %3182 = vmax.xlane.f32.xlu0 %v3162
        %v3183 = vpop.xlane.xlu0 %3182
        %3184 = vmax.xlane.f32.xlu0 %v3163
        %v3185 = vpop.xlane.xlu0 %3184
        %3186 = vmax.xlane.f32.xlu0 %v3164
        %v3187 = vpop.xlane.xlu0 %3186
        %3188 = vmax.xlane.f32.xlu0 %v3165
        %v3189 = vpop.xlane.xlu0 %3188
        %3190 = vmax.xlane.f32.xlu0 %v3166
        %v3191 = vpop.xlane.xlu0 %3190
        %3192 = vmax.xlane.f32.xlu0 %v3167
        %v3193 = vpop.xlane.xlu0 %3192
        %3194 = vmax.xlane.f32.xlu0 %v3168
        %v3195 = vpop.xlane.xlu0 %3194
        %3196 = vmax.xlane.f32.xlu0 %v3169
        %v3197 = vpop.xlane.xlu0 %3196
        %3198 = vmax.xlane.f32.xlu0 %v3170
        %v3199 = vpop.xlane.xlu0 %3198
        %3200 = vmax.xlane.f32.xlu0 %v3171
        %v3201 = vpop.xlane.xlu0 %3200
        %3202 = vmax.xlane.f32.xlu0 %v3172
        %v3203 = vpop.xlane.xlu0 %3202
        %3204 = vmax.xlane.f32.xlu0 %v3173
        %v3205 = vpop.xlane.xlu0 %3204
        %v3206 = vsub.f32 %v3158, %v3175
        %v3207 = vsub.f32 %v3159, %v3177
        %v3208 = vsub.f32 %v3160, %v3179
        %v3209 = vsub.f32 %v3161, %v3181
        %v3210 = vsub.f32 %v3162, %v3183
        %v3211 = vsub.f32 %v3163, %v3185
        %v3212 = vsub.f32 %v3164, %v3187
        %v3213 = vsub.f32 %v3165, %v3189
        %v3214 = vsub.f32 %v3166, %v3191
        %v3215 = vsub.f32 %v3167, %v3193
        %v3216 = vsub.f32 %v3168, %v3195
        %v3217 = vsub.f32 %v3169, %v3197
        %v3218 = vsub.f32 %v3170, %v3199
        %v3219 = vsub.f32 %v3171, %v3201
        %v3220 = vsub.f32 %v3172, %v3203
        %v3221 = vsub.f32 %v3173, %v3205
        %v3222 = vmul.f32 %v3206, 1.442695
        %v3223 = vpow.pop %v3222
        %v3224 = vmul.f32 %v3207, 1.442695
        %v3225 = vpow.pop %v3224
        %v3226 = vmul.f32 %v3208, 1.442695
        %v3227 = vpow.pop %v3226
        %v3228 = vmul.f32 %v3209, 1.442695
        %v3229 = vpow.pop %v3228
        %v3230 = vmul.f32 %v3210, 1.442695
        %v3231 = vpow.pop %v3230
        %v3232 = vmul.f32 %v3211, 1.442695
        %v3233 = vpow.pop %v3232
        %v3234 = vmul.f32 %v3212, 1.442695
        %v3235 = vpow.pop %v3234
        %v3236 = vmul.f32 %v3213, 1.442695
        %v3237 = vpow.pop %v3236
        %v3238 = vmul.f32 %v3214, 1.442695
        %v3239 = vpow.pop %v3238
        %v3240 = vmul.f32 %v3215, 1.442695
        %v3241 = vpow.pop %v3240
        %v3242 = vmul.f32 %v3216, 1.442695
        %v3243 = vpow.pop %v3242
        %v3244 = vmul.f32 %v3217, 1.442695
        %v3245 = vpow.pop %v3244
        %v3246 = vmul.f32 %v3218, 1.442695
        %v3247 = vpow.pop %v3246
        %v3248 = vmul.f32 %v3219, 1.442695
        %v3249 = vpow.pop %v3248
        %v3250 = vmul.f32 %v3220, 1.442695
        %v3251 = vpow.pop %v3250
        %v3252 = vmul.f32 %v3221, 1.442695
        %v3253 = vpow.pop %v3252
        %3254 = vadd.xlane.f32.xlu0 %v3223
        %v3255 = vpop.xlane.xlu0 %3254
        %3256 = vadd.xlane.f32.xlu0 %v3225
        %v3257 = vpop.xlane.xlu0 %3256
        %3258 = vadd.xlane.f32.xlu0 %v3227
        %v3259 = vpop.xlane.xlu0 %3258
        %3260 = vadd.xlane.f32.xlu0 %v3229
        %v3261 = vpop.xlane.xlu0 %3260
        %3262 = vadd.xlane.f32.xlu0 %v3231
        %v3263 = vpop.xlane.xlu0 %3262
        %3264 = vadd.xlane.f32.xlu0 %v3233
        %v3265 = vpop.xlane.xlu0 %3264
        %3266 = vadd.xlane.f32.xlu0 %v3235
        %v3267 = vpop.xlane.xlu0 %3266
        %3268 = vadd.xlane.f32.xlu0 %v3237
        %v3269 = vpop.xlane.xlu0 %3268
        %3270 = vadd.xlane.f32.xlu0 %v3239
        %v3271 = vpop.xlane.xlu0 %3270
        %3272 = vadd.xlane.f32.xlu0 %v3241
        %v3273 = vpop.xlane.xlu0 %3272
        %3274 = vadd.xlane.f32.xlu0 %v3243
        %v3275 = vpop.xlane.xlu0 %3274
        %3276 = vadd.xlane.f32.xlu0 %v3245
        %v3277 = vpop.xlane.xlu0 %3276
        %3278 = vadd.xlane.f32.xlu0 %v3247
        %v3279 = vpop.xlane.xlu0 %3278
        %3280 = vadd.xlane.f32.xlu0 %v3249
        %v3281 = vpop.xlane.xlu0 %3280
        %3282 = vadd.xlane.f32.xlu0 %v3251
        %v3283 = vpop.xlane.xlu0 %3282
        %3284 = vadd.xlane.f32.xlu0 %v3253
        %v3285 = vpop.xlane.xlu0 %3284
        %v3286 = vpack.c.bf16 %v3225, %v3223
        %v3287 = vpack.c.bf16 %v3229, %v3227
        %v3288 = vpack.c.bf16 %v3233, %v3231
        %v3289 = vpack.c.bf16 %v3237, %v3235
        %v3290 = vpack.c.bf16 %v3241, %v3239
        %v3291 = vpack.c.bf16 %v3245, %v3243
        %v3292 = vpack.c.bf16 %v3249, %v3247
        %v3293 = vpack.c.bf16 %v3253, %v3251
        %3302 = vrot.lane.b32.xlu0 %v1008, 96
        %v3303 = vpop.permute.xlu0 %3302
        %3304 = vrot.lane.b32.xlu0 %v1009, 96
        %v3305 = vpop.permute.xlu0 %3304
        %3306 = vrot.lane.b32.xlu0 %v1010, 96
        %v3307 = vpop.permute.xlu0 %3306
        %3308 = vrot.lane.b32.xlu0 %v1011, 96
        %v3309 = vpop.permute.xlu0 %3308
        %3310 = vrot.lane.b32.xlu0 %v1012, 96
        %v3311 = vpop.permute.xlu0 %3310
        %3312 = vrot.lane.b32.xlu0 %v1013, 96
        %v3313 = vpop.permute.xlu0 %3312
        %3314 = vrot.lane.b32.xlu0 %v1014, 96
        %v3315 = vpop.permute.xlu0 %3314
        %3316 = vrot.lane.b32.xlu0 %v1015, 96
        %v3317 = vpop.permute.xlu0 %3316
        %3326 = vmatprep.subr.bf16.mxu0 0
        %3327 = vmatpush1.bf16.msra.mxu0 %v3303
        %3328 = vmatprep.subr.bf16.mxu0 0
        %3329 = vmatpush1.bf16.msra.mxu0 %v3305
        %3330 = vmatprep.subr.bf16.mxu0 0
        %3331 = vmatpush1.bf16.msra.mxu0 %v3307
        %3332 = vmatprep.subr.bf16.mxu0 0
        %3333 = vmatpush1.bf16.msra.mxu0 %v3309
        %3334 = vmatprep.subr.bf16.mxu0 0
        %3335 = vmatpush1.bf16.msra.mxu0 %v3311
        %3336 = vmatprep.subr.bf16.mxu0 0
        %3337 = vmatpush1.bf16.msra.mxu0 %v3313
        %3338 = vmatprep.subr.bf16.mxu0 0
        %3339 = vmatpush1.bf16.msra.mxu0 %v3315
        %3340 = vmatprep.subr.bf16.mxu0 0
        %3341 = vmatpush1.bf16.msra.mxu0 %v3317
        %3342 = vmatprep.subr.bf16.mxu0 0
        %3343 = vmatpush1.bf16.msra.mxu0 0
        %3344 = vmatprep.subr.bf16.mxu0 0
        %3345 = vmatpush1.bf16.msra.mxu0 0
        %3346 = vmatprep.subr.bf16.mxu0 0
        %3347 = vmatpush1.bf16.msra.mxu0 0
        %3348 = vmatprep.subr.bf16.mxu0 0
        %3349 = vmatpush1.bf16.msra.mxu0 0
        %3350 = vmatprep.subr.bf16.mxu0 0
        %3351 = vmatpush1.bf16.msra.mxu0 0
        %3352 = vmatprep.subr.bf16.mxu0 0
        %3353 = vmatpush1.bf16.msra.mxu0 0
        %3354 = vmatprep.subr.bf16.mxu0 0
        %3355 = vmatpush1.bf16.msra.mxu0 0
        %3356 = vmatprep.subr.bf16.mxu0 0
        %3357 = vmatpush1.bf16.msra.mxu0 0
        %3358 = vmatprep.mubr.bf16.mxu0 0
        %3359 = vmatmul.mubr.bf16.gmra.mrb[0].mxu0 %v3286
        %v3360 = vpop.f32.mrb[0].mxu0
        %v3361 = vadd.f32 0.0, %v3360
        %v3362 = vpop.f32.mrb[0].mxu0
        %v3363 = vpop.f32.mrb[0].mxu0
        %v3364 = vadd.f32 0.0, %v3363
        %v3365 = vpop.f32.mrb[0].mxu0
        %3366 = vmatprep.mubr.bf16.mxu0 0
        %3367 = vmatmul.mubr.bf16.gmra.mrb[0].mxu0 %v3287
        %v3368 = vpop.f32.mrb[0].mxu0
        %v3369 = vadd.f32 0.0, %v3368
        %v3370 = vpop.f32.mrb[0].mxu0
        %v3371 = vpop.f32.mrb[0].mxu0
        %v3372 = vadd.f32 0.0, %v3371
        %v3373 = vpop.f32.mrb[0].mxu0
        %3374 = vmatprep.mubr.bf16.mxu0 0
        %3375 = vmatmul.mubr.bf16.gmra.mrb[0].mxu0 %v3288
        %v3376 = vpop.f32.mrb[0].mxu0
        %v3377 = vadd.f32 0.0, %v3376
        %v3378 = vpop.f32.mrb[0].mxu0
        %v3379 = vpop.f32.mrb[0].mxu0
        %v3380 = vadd.f32 0.0, %v3379
        %v3381 = vpop.f32.mrb[0].mxu0
        %3382 = vmatprep.mubr.bf16.mxu0 0
        %3383 = vmatmul.mubr.bf16.gmra.mrb[0].mxu0 %v3289
        %v3384 = vpop.f32.mrb[0].mxu0
        %v3385 = vadd.f32 0.0, %v3384
        %v3386 = vpop.f32.mrb[0].mxu0
        %v3387 = vpop.f32.mrb[0].mxu0
        %v3388 = vadd.f32 0.0, %v3387
        %v3389 = vpop.f32.mrb[0].mxu0
        %3390 = vmatprep.mubr.bf16.mxu0 0
        %3391 = vmatmul.mubr.bf16.gmra.mrb[0].mxu0 %v3290
        %v3392 = vpop.f32.mrb[0].mxu0
        %v3393 = vadd.f32 0.0, %v3392
        %v3394 = vpop.f32.mrb[0].mxu0
        %v3395 = vpop.f32.mrb[0].mxu0
        %v3396 = vadd.f32 0.0, %v3395
        %v3397 = vpop.f32.mrb[0].mxu0
        %3398 = vmatprep.mubr.bf16.mxu0 0
        %3399 = vmatmul.mubr.bf16.gmra.mrb[0].mxu0 %v3291
        %v3400 = vpop.f32.mrb[0].mxu0
        %v3401 = vadd.f32 0.0, %v3400
        %v3402 = vpop.f32.mrb[0].mxu0
        %v3403 = vpop.f32.mrb[0].mxu0
        %v3404 = vadd.f32 0.0, %v3403
        %v3405 = vpop.f32.mrb[0].mxu0
        %3406 = vmatprep.mubr.bf16.mxu0 0
        %3407 = vmatmul.mubr.bf16.gmra.mrb[0].mxu0 %v3292
        %v3408 = vpop.f32.mrb[0].mxu0
        %v3409 = vadd.f32 0.0, %v3408
        %v3410 = vpop.f32.mrb[0].mxu0
        %v3411 = vpop.f32.mrb[0].mxu0
        %v3412 = vadd.f32 0.0, %v3411
        %v3413 = vpop.f32.mrb[0].mxu0
        %3414 = vmatprep.mubr.bf16.mxu0 0
        %3415 = vmatmul.mubr.bf16.gmra.mrb[0].mxu0 %v3293
        %v3416 = vpop.f32.mrb[0].mxu0
        %v3417 = vadd.f32 0.0, %v3416
        %v3418 = vpop.f32.mrb[0].mxu0
        %v3419 = vpop.f32.mrb[0].mxu0
        %v3420 = vadd.f32 0.0, %v3419
        %v3421 = vpop.f32.mrb[0].mxu0
        %3422 = vdwg.mxu0
        %v3423 = vrcp.pop %v3255
        %v3424 = vrcp.pop %v3257
        %v3425 = vrcp.pop %v3259
        %v3426 = vrcp.pop %v3261
        %v3427 = vrcp.pop %v3263
        %v3428 = vrcp.pop %v3265
        %v3429 = vrcp.pop %v3267
        %v3430 = vrcp.pop %v3269
        %v3431 = vrcp.pop %v3271
        %v3432 = vrcp.pop %v3273
        %v3433 = vrcp.pop %v3275
        %v3434 = vrcp.pop %v3277
        %v3435 = vrcp.pop %v3279
        %v3436 = vrcp.pop %v3281
        %v3437 = vrcp.pop %v3283
        %v3438 = vrcp.pop %v3285
        %v3439 = vmul.f32 %v3361, %v3423
        %v3440 = vmul.f32 %v3364, %v3424
        %v3441 = vmul.f32 %v3369, %v3425
        %v3442 = vmul.f32 %v3372, %v3426
        %v3443 = vmul.f32 %v3377, %v3427
        %v3444 = vmul.f32 %v3380, %v3428
        %v3445 = vmul.f32 %v3385, %v3429
        %v3446 = vmul.f32 %v3388, %v3430
        %v3447 = vmul.f32 %v3393, %v3431
        %v3448 = vmul.f32 %v3396, %v3432
        %v3449 = vmul.f32 %v3401, %v3433
        %v3450 = vmul.f32 %v3404, %v3434
        %v3451 = vmul.f32 %v3409, %v3435
        %v3452 = vmul.f32 %v3412, %v3436
        %v3453 = vmul.f32 %v3417, %v3437
        %v3454 = vmul.f32 %v3420, %v3438
        %3471 = vrot.lane.b32.xlu0 %v3439, 64
        %v3472 = vpop.permute.xlu0 %3471
        %3473 = vrot.lane.b32.xlu0 %v3440, 64
        %v3474 = vpop.permute.xlu0 %3473
        %3475 = vrot.lane.b32.xlu0 %v3441, 64
        %v3476 = vpop.permute.xlu0 %3475
        %3477 = vrot.lane.b32.xlu0 %v3442, 64
        %v3478 = vpop.permute.xlu0 %3477
        %3479 = vrot.lane.b32.xlu0 %v3443, 64
        %v3480 = vpop.permute.xlu0 %3479
        %3481 = vrot.lane.b32.xlu0 %v3444, 64
        %v3482 = vpop.permute.xlu0 %3481
        %3483 = vrot.lane.b32.xlu0 %v3445, 64
        %v3484 = vpop.permute.xlu0 %3483
        %3485 = vrot.lane.b32.xlu0 %v3446, 64
        %v3486 = vpop.permute.xlu0 %3485
        %3487 = vrot.lane.b32.xlu0 %v3447, 64
        %v3488 = vpop.permute.xlu0 %3487
        %3489 = vrot.lane.b32.xlu0 %v3448, 64
        %v3490 = vpop.permute.xlu0 %3489
        %3491 = vrot.lane.b32.xlu0 %v3449, 64
        %v3492 = vpop.permute.xlu0 %3491
        %3493 = vrot.lane.b32.xlu0 %v3450, 64
        %v3494 = vpop.permute.xlu0 %3493
        %3495 = vrot.lane.b32.xlu0 %v3451, 64
        %v3496 = vpop.permute.xlu0 %3495
        %3497 = vrot.lane.b32.xlu0 %v3452, 64
        %v3498 = vpop.permute.xlu0 %3497
        %3499 = vrot.lane.b32.xlu0 %v3453, 64
        %v3500 = vpop.permute.xlu0 %3499
        %3501 = vrot.lane.b32.xlu0 %v3454, 64
        %v3502 = vpop.permute.xlu0 %3501
        %vm3519 = vcmask 785920
        %3520 = vst.msk [vmem:[#allocation2] sm:$0xff] %vm3519, %v3472
        %3521 = vst.msk [vmem:[#allocation2 + $0x10] sm:$0xff] %vm3519, %v3474
        %3522 = vst.msk [vmem:[#allocation2 + $0x20] sm:$0xff] %vm3519, %v3476
        %3523 = vst.msk [vmem:[#allocation2 + $0x30] sm:$0xff] %vm3519, %v3478
        %3524 = vst.msk [vmem:[#allocation2 + $0x40] sm:$0xff] %vm3519, %v3480
        %3525 = vst.msk [vmem:[#allocation2 + $0x50] sm:$0xff] %vm3519, %v3482
        %3526 = vst.msk [vmem:[#allocation2 + $0x60] sm:$0xff] %vm3519, %v3484
        %3527 = vst.msk [vmem:[#allocation2 + $0x70] sm:$0xff] %vm3519, %v3486
        %3528 = vst.msk [vmem:[#allocation2 + $0x80] sm:$0xff] %vm3519, %v3488
        %3529 = vst.msk [vmem:[#allocation2 + $0x90] sm:$0xff] %vm3519, %v3490
        %3530 = vst.msk [vmem:[#allocation2 + $0xa0] sm:$0xff] %vm3519, %v3492
        %3531 = vst.msk [vmem:[#allocation2 + $0xb0] sm:$0xff] %vm3519, %v3494
        %3532 = vst.msk [vmem:[#allocation2 + $0xc0] sm:$0xff] %vm3519, %v3496
        %3533 = vst.msk [vmem:[#allocation2 + $0xd0] sm:$0xff] %vm3519, %v3498
        %3534 = vst.msk [vmem:[#allocation2 + $0xe0] sm:$0xff] %vm3519, %v3500
        %3535 = vst.msk [vmem:[#allocation2 + $0xf0] sm:$0xff] %vm3519, %v3502
        %3536 = vrot.lane.b32.xlu0 %v1152, 80
        %v3537 = vpop.permute.xlu0 %3536
        %3538 = vrot.lane.b32.xlu0 %v1153, 80
        %v3539 = vpop.permute.xlu0 %3538
        %3540 = vrot.lane.b32.xlu0 %v1154, 80
        %v3541 = vpop.permute.xlu0 %3540
        %3542 = vrot.lane.b32.xlu0 %v1155, 80
        %v3543 = vpop.permute.xlu0 %3542
        %3544 = vrot.lane.b32.xlu0 %v1156, 80
        %v3545 = vpop.permute.xlu0 %3544
        %3546 = vrot.lane.b32.xlu0 %v1157, 80
        %v3547 = vpop.permute.xlu0 %3546
        %3548 = vrot.lane.b32.xlu0 %v1158, 80
        %v3549 = vpop.permute.xlu0 %3548
        %3550 = vrot.lane.b32.xlu0 %v1159, 80
        %v3551 = vpop.permute.xlu0 %3550
        %v3553 = vsel %vm1579, %v3537, 0
        %v3556 = vsel %vm1579, %v3539, 0
        %v3559 = vsel %vm1579, %v3541, 0
        %v3562 = vsel %vm1579, %v3543, 0
        %v3565 = vsel %vm1579, %v3545, 0
        %v3568 = vsel %vm1579, %v3547, 0
        %v3571 = vsel %vm1579, %v3549, 0
        %v3574 = vsel %vm1579, %v3551, 0
        %3576 = vmatprep.subr.bf16.mxu0 0
        %3577 = vmatpush1.bf16.xpose.msra.mxu0 %v2853
        %3578 = vmatprep.subr.bf16.mxu0 0
        %3579 = vmatpush1.bf16.xpose.msra.mxu0 %v2856
        %3580 = vmatprep.subr.bf16.mxu0 0
        %3581 = vmatpush1.bf16.xpose.msra.mxu0 %v2859
        %3582 = vmatprep.subr.bf16.mxu0 0
        %3583 = vmatpush1.bf16.xpose.msra.mxu0 %v2862
        %3584 = vmatprep.subr.bf16.mxu0 0
        %3585 = vmatpush1.bf16.xpose.msra.mxu0 %v2865
        %3586 = vmatprep.subr.bf16.mxu0 0
        %3587 = vmatpush1.bf16.xpose.msra.mxu0 %v2868
        %3588 = vmatprep.subr.bf16.mxu0 0
        %3589 = vmatpush1.bf16.xpose.msra.mxu0 %v2871
        %3590 = vmatprep.subr.bf16.mxu0 0
        %3591 = vmatpush1.bf16.xpose.msra.mxu0 %v2874
        %3592 = vmatprep.subr.bf16.mxu0 0
        %3593 = vmatpush1.bf16.xpose.msra.mxu0 0
        %3594 = vmatprep.subr.bf16.mxu0 0
        %3595 = vmatpush1.bf16.xpose.msra.mxu0 0
        %3596 = vmatprep.subr.bf16.mxu0 0
        %3597 = vmatpush1.bf16.xpose.msra.mxu0 0
        %3598 = vmatprep.subr.bf16.mxu0 0
        %3599 = vmatpush1.bf16.xpose.msra.mxu0 0
        %3600 = vmatprep.subr.bf16.mxu0 0
        %3601 = vmatpush1.bf16.xpose.msra.mxu0 0
        %3602 = vmatprep.subr.bf16.mxu0 0
        %3603 = vmatpush1.bf16.xpose.msra.mxu0 0
        %3604 = vmatprep.subr.bf16.mxu0 0
        %3605 = vmatpush1.bf16.xpose.msra.mxu0 0
        %3606 = vmatprep.subr.bf16.mxu0 0
        %3607 = vmatpush1.bf16.xpose.msra.mxu0 0
        %3608 = vmatprep.mubr.bf16.mxu0 0
        %3609 = vmatmul.mubr.bf16.gmra.mrb[0].mxu0 %v3553
        %v3610 = vpop.f32.mrb[0].mxu0
        %v3611 = vadd.f32 0.0, %v3610
        %v3612 = vpop.f32.mrb[0].mxu0
        %v3613 = vpop.f32.mrb[0].mxu0
        %v3614 = vadd.f32 0.0, %v3613
        %v3615 = vpop.f32.mrb[0].mxu0
        %3616 = vmatprep.mubr.bf16.mxu0 0
        %3617 = vmatmul.mubr.bf16.gmra.mrb[0].mxu0 %v3556
        %v3618 = vpop.f32.mrb[0].mxu0
        %v3619 = vadd.f32 0.0, %v3618
        %v3620 = vpop.f32.mrb[0].mxu0
        %v3621 = vpop.f32.mrb[0].mxu0
        %v3622 = vadd.f32 0.0, %v3621
        %v3623 = vpop.f32.mrb[0].mxu0
        %3624 = vmatprep.mubr.bf16.mxu0 0
        %3625 = vmatmul.mubr.bf16.gmra.mrb[0].mxu0 %v3559
        %v3626 = vpop.f32.mrb[0].mxu0
        %v3627 = vadd.f32 0.0, %v3626
        %v3628 = vpop.f32.mrb[0].mxu0
        %v3629 = vpop.f32.mrb[0].mxu0
        %v3630 = vadd.f32 0.0, %v3629
        %v3631 = vpop.f32.mrb[0].mxu0
        %3632 = vmatprep.mubr.bf16.mxu0 0
        %3633 = vmatmul.mubr.bf16.gmra.mrb[0].mxu0 %v3562
        %v3634 = vpop.f32.mrb[0].mxu0
        %v3635 = vadd.f32 0.0, %v3634
        %v3636 = vpop.f32.mrb[0].mxu0
        %v3637 = vpop.f32.mrb[0].mxu0
        %v3638 = vadd.f32 0.0, %v3637
        %v3639 = vpop.f32.mrb[0].mxu0
        %3640 = vmatprep.mubr.bf16.mxu0 0
        %3641 = vmatmul.mubr.bf16.gmra.mrb[0].mxu0 %v3565
        %v3642 = vpop.f32.mrb[0].mxu0
        %v3643 = vadd.f32 0.0, %v3642
        %v3644 = vpop.f32.mrb[0].mxu0
        %v3645 = vpop.f32.mrb[0].mxu0
        %v3646 = vadd.f32 0.0, %v3645
        %v3647 = vpop.f32.mrb[0].mxu0
        %3648 = vmatprep.mubr.bf16.mxu0 0
        %3649 = vmatmul.mubr.bf16.gmra.mrb[0].mxu0 %v3568
        %v3650 = vpop.f32.mrb[0].mxu0
        %v3651 = vadd.f32 0.0, %v3650
        %v3652 = vpop.f32.mrb[0].mxu0
        %v3653 = vpop.f32.mrb[0].mxu0
        %v3654 = vadd.f32 0.0, %v3653
        %v3655 = vpop.f32.mrb[0].mxu0
        %3656 = vmatprep.mubr.bf16.mxu0 0
        %3657 = vmatmul.mubr.bf16.gmra.mrb[0].mxu0 %v3571
        %v3658 = vpop.f32.mrb[0].mxu0
        %v3659 = vadd.f32 0.0, %v3658
        %v3660 = vpop.f32.mrb[0].mxu0
        %v3661 = vpop.f32.mrb[0].mxu0
        %v3662 = vadd.f32 0.0, %v3661
        %v3663 = vpop.f32.mrb[0].mxu0
        %3664 = vmatprep.mubr.bf16.mxu0 0
        %3665 = vmatmul.mubr.bf16.gmra.mrb[0].mxu0 %v3574
        %v3666 = vpop.f32.mrb[0].mxu0
        %v3667 = vadd.f32 0.0, %v3666
        %v3668 = vpop.f32.mrb[0].mxu0
        %v3669 = vpop.f32.mrb[0].mxu0
        %v3670 = vadd.f32 0.0, %v3669
        %v3671 = vpop.f32.mrb[0].mxu0
        %3672 = vdwg.mxu0
        %3673 = vrot.lane.b32.xlu0 %v1096, 80
        %v3674 = vpop.permute.xlu0 %3673
        %3675 = vrot.lane.b32.xlu0 %v1097, 80
        %v3676 = vpop.permute.xlu0 %3675
        %3677 = vrot.lane.b32.xlu0 %v1098, 80
        %v3678 = vpop.permute.xlu0 %3677
        %3679 = vrot.lane.b32.xlu0 %v1099, 80
        %v3680 = vpop.permute.xlu0 %3679
        %3681 = vrot.lane.b32.xlu0 %v1100, 80
        %v3682 = vpop.permute.xlu0 %3681
        %3683 = vrot.lane.b32.xlu0 %v1101, 80
        %v3684 = vpop.permute.xlu0 %3683
        %3685 = vrot.lane.b32.xlu0 %v1102, 80
        %v3686 = vpop.permute.xlu0 %3685
        %3687 = vrot.lane.b32.xlu0 %v1103, 80
        %v3688 = vpop.permute.xlu0 %3687
        %v3690 = vsel %vm1579, %v3674, 0
        %v3693 = vsel %vm1579, %v3676, 0
        %v3696 = vsel %vm1579, %v3678, 0
        %v3699 = vsel %vm1579, %v3680, 0
        %v3702 = vsel %vm1579, %v3682, 0
        %v3705 = vsel %vm1579, %v3684, 0
        %v3708 = vsel %vm1579, %v3686, 0
        %v3711 = vsel %vm1579, %v3688, 0
        %3713 = vmatprep.subr.bf16.mxu0 0
        %3714 = vmatpush1.bf16.xpose.msra.mxu0 %v3038
        %3715 = vmatprep.subr.bf16.mxu0 0
        %3716 = vmatpush1.bf16.xpose.msra.mxu0 %v3041
        %3717 = vmatprep.subr.bf16.mxu0 0
        %3718 = vmatpush1.bf16.xpose.msra.mxu0 %v3044
        %3719 = vmatprep.subr.bf16.mxu0 0
        %3720 = vmatpush1.bf16.xpose.msra.mxu0 %v3047
        %3721 = vmatprep.subr.bf16.mxu0 0
        %3722 = vmatpush1.bf16.xpose.msra.mxu0 %v3050
        %3723 = vmatprep.subr.bf16.mxu0 0
        %3724 = vmatpush1.bf16.xpose.msra.mxu0 %v3053
        %3725 = vmatprep.subr.bf16.mxu0 0
        %3726 = vmatpush1.bf16.xpose.msra.mxu0 %v3056
        %3727 = vmatprep.subr.bf16.mxu0 0
        %3728 = vmatpush1.bf16.xpose.msra.mxu0 %v3059
        %3729 = vmatprep.subr.bf16.mxu0 0
        %3730 = vmatpush1.bf16.xpose.msra.mxu0 0
        %3731 = vmatprep.subr.bf16.mxu0 0
        %3732 = vmatpush1.bf16.xpose.msra.mxu0 0
        %3733 = vmatprep.subr.bf16.mxu0 0
        %3734 = vmatpush1.bf16.xpose.msra.mxu0 0
        %3735 = vmatprep.subr.bf16.mxu0 0
        %3736 = vmatpush1.bf16.xpose.msra.mxu0 0
        %3737 = vmatprep.subr.bf16.mxu0 0
        %3738 = vmatpush1.bf16.xpose.msra.mxu0 0
        %3739 = vmatprep.subr.bf16.mxu0 0
        %3740 = vmatpush1.bf16.xpose.msra.mxu0 0
        %3741 = vmatprep.subr.bf16.mxu0 0
        %3742 = vmatpush1.bf16.xpose.msra.mxu0 0
        %3743 = vmatprep.subr.bf16.mxu0 0
        %3744 = vmatpush1.bf16.xpose.msra.mxu0 0
        %3745 = vmatprep.mubr.bf16.mxu0 0
        %3746 = vmatmul.mubr.bf16.gmra.mrb[0].mxu0 %v3690
        %v3747 = vpop.f32.mrb[0].mxu0
        %v3748 = vadd.f32 %v3611, %v3747
        %v3749 = vpop.f32.mrb[0].mxu0
        %v3750 = vpop.f32.mrb[0].mxu0
        %v3751 = vadd.f32 %v3614, %v3750
        %v3752 = vpop.f32.mrb[0].mxu0
        %3753 = vmatprep.mubr.bf16.mxu0 0
        %3754 = vmatmul.mubr.bf16.gmra.mrb[0].mxu0 %v3693
        %v3755 = vpop.f32.mrb[0].mxu0
        %v3756 = vadd.f32 %v3619, %v3755
        %v3757 = vpop.f32.mrb[0].mxu0
        %v3758 = vpop.f32.mrb[0].mxu0
        %v3759 = vadd.f32 %v3622, %v3758
        %v3760 = vpop.f32.mrb[0].mxu0
        %3761 = vmatprep.mubr.bf16.mxu0 0
        %3762 = vmatmul.mubr.bf16.gmra.mrb[0].mxu0 %v3696
        %v3763 = vpop.f32.mrb[0].mxu0
        %v3764 = vadd.f32 %v3627, %v3763
        %v3765 = vpop.f32.mrb[0].mxu0
        %v3766 = vpop.f32.mrb[0].mxu0
        %v3767 = vadd.f32 %v3630, %v3766
        %v3768 = vpop.f32.mrb[0].mxu0
        %3769 = vmatprep.mubr.bf16.mxu0 0
        %3770 = vmatmul.mubr.bf16.gmra.mrb[0].mxu0 %v3699
        %v3771 = vpop.f32.mrb[0].mxu0
        %v3772 = vadd.f32 %v3635, %v3771
        %v3773 = vpop.f32.mrb[0].mxu0
        %v3774 = vpop.f32.mrb[0].mxu0
        %v3775 = vadd.f32 %v3638, %v3774
        %v3776 = vpop.f32.mrb[0].mxu0
        %3777 = vmatprep.mubr.bf16.mxu0 0
        %3778 = vmatmul.mubr.bf16.gmra.mrb[0].mxu0 %v3702
        %v3779 = vpop.f32.mrb[0].mxu0
        %v3780 = vadd.f32 %v3643, %v3779
        %v3781 = vpop.f32.mrb[0].mxu0
        %v3782 = vpop.f32.mrb[0].mxu0
        %v3783 = vadd.f32 %v3646, %v3782
        %v3784 = vpop.f32.mrb[0].mxu0
        %3785 = vmatprep.mubr.bf16.mxu0 0
        %3786 = vmatmul.mubr.bf16.gmra.mrb[0].mxu0 %v3705
        %v3787 = vpop.f32.mrb[0].mxu0
        %v3788 = vadd.f32 %v3651, %v3787
        %v3789 = vpop.f32.mrb[0].mxu0
        %v3790 = vpop.f32.mrb[0].mxu0
        %v3791 = vadd.f32 %v3654, %v3790
        %v3792 = vpop.f32.mrb[0].mxu0
        %3793 = vmatprep.mubr.bf16.mxu0 0
        %3794 = vmatmul.mubr.bf16.gmra.mrb[0].mxu0 %v3708
        %v3795 = vpop.f32.mrb[0].mxu0
        %v3796 = vadd.f32 %v3659, %v3795
        %v3797 = vpop.f32.mrb[0].mxu0
        %v3798 = vpop.f32.mrb[0].mxu0
        %v3799 = vadd.f32 %v3662, %v3798
        %v3800 = vpop.f32.mrb[0].mxu0
        %3801 = vmatprep.mubr.bf16.mxu0 0
        %3802 = vmatmul.mubr.bf16.gmra.mrb[0].mxu0 %v3711
        %v3803 = vpop.f32.mrb[0].mxu0
        %v3804 = vadd.f32 %v3667, %v3803
        %v3805 = vpop.f32.mrb[0].mxu0
        %v3806 = vpop.f32.mrb[0].mxu0
        %v3807 = vadd.f32 %v3670, %v3806
        %v3808 = vpop.f32.mrb[0].mxu0
        %3809 = vdwg.mxu0
        %v3810 = vadd.f32 %v3748, %v1563
        %v3811 = vadd.f32 %v3751, %v1564
        %v3812 = vadd.f32 %v3756, %v1565
        %v3813 = vadd.f32 %v3759, %v1566
        %v3814 = vadd.f32 %v3764, %v1567
        %v3815 = vadd.f32 %v3767, %v1568
        %v3816 = vadd.f32 %v3772, %v1569
        %v3817 = vadd.f32 %v3775, %v1570
        %v3818 = vadd.f32 %v3780, %v1571
        %v3819 = vadd.f32 %v3783, %v1572
        %v3820 = vadd.f32 %v3788, %v1573
        %v3821 = vadd.f32 %v3791, %v1574
        %v3822 = vadd.f32 %v3796, %v1575
        %v3823 = vadd.f32 %v3799, %v1576
        %v3824 = vadd.f32 %v3804, %v1577
        %v3825 = vadd.f32 %v3807, %v1578
        %3826 = vmax.xlane.f32.xlu0 %v3810
        %v3827 = vpop.xlane.xlu0 %3826
        %3828 = vmax.xlane.f32.xlu0 %v3811
        %v3829 = vpop.xlane.xlu0 %3828
        %3830 = vmax.xlane.f32.xlu0 %v3812
        %v3831 = vpop.xlane.xlu0 %3830
        %3832 = vmax.xlane.f32.xlu0 %v3813
        %v3833 = vpop.xlane.xlu0 %3832
        %3834 = vmax.xlane.f32.xlu0 %v3814
        %v3835 = vpop.xlane.xlu0 %3834
        %3836 = vmax.xlane.f32.xlu0 %v3815
        %v3837 = vpop.xlane.xlu0 %3836
        %3838 = vmax.xlane.f32.xlu0 %v3816
        %v3839 = vpop.xlane.xlu0 %3838
        %3840 = vmax.xlane.f32.xlu0 %v3817
        %v3841 = vpop.xlane.xlu0 %3840
        %3842 = vmax.xlane.f32.xlu0 %v3818
        %v3843 = vpop.xlane.xlu0 %3842
        %3844 = vmax.xlane.f32.xlu0 %v3819
        %v3845 = vpop.xlane.xlu0 %3844
        %3846 = vmax.xlane.f32.xlu0 %v3820
        %v3847 = vpop.xlane.xlu0 %3846
        %3848 = vmax.xlane.f32.xlu0 %v3821
        %v3849 = vpop.xlane.xlu0 %3848
        %3850 = vmax.xlane.f32.xlu0 %v3822
        %v3851 = vpop.xlane.xlu0 %3850
        %3852 = vmax.xlane.f32.xlu0 %v3823
        %v3853 = vpop.xlane.xlu0 %3852
        %3854 = vmax.xlane.f32.xlu0 %v3824
        %v3855 = vpop.xlane.xlu0 %3854
        %3856 = vmax.xlane.f32.xlu0 %v3825
        %v3857 = vpop.xlane.xlu0 %3856
        %v3858 = vsub.f32 %v3810, %v3827
        %v3859 = vsub.f32 %v3811, %v3829
        %v3860 = vsub.f32 %v3812, %v3831
        %v3861 = vsub.f32 %v3813, %v3833
        %v3862 = vsub.f32 %v3814, %v3835
        %v3863 = vsub.f32 %v3815, %v3837
        %v3864 = vsub.f32 %v3816, %v3839
        %v3865 = vsub.f32 %v3817, %v3841
        %v3866 = vsub.f32 %v3818, %v3843
        %v3867 = vsub.f32 %v3819, %v3845
        %v3868 = vsub.f32 %v3820, %v3847
        %v3869 = vsub.f32 %v3821, %v3849
        %v3870 = vsub.f32 %v3822, %v3851
        %v3871 = vsub.f32 %v3823, %v3853
        %v3872 = vsub.f32 %v3824, %v3855
        %v3873 = vsub.f32 %v3825, %v3857
        %v3874 = vmul.f32 %v3858, 1.442695
        %v3875 = vpow.pop %v3874
        %v3876 = vmul.f32 %v3859, 1.442695
        %v3877 = vpow.pop %v3876
        %v3878 = vmul.f32 %v3860, 1.442695
        %v3879 = vpow.pop %v3878
        %v3880 = vmul.f32 %v3861, 1.442695
        %v3881 = vpow.pop %v3880
        %v3882 = vmul.f32 %v3862, 1.442695
        %v3883 = vpow.pop %v3882
        %v3884 = vmul.f32 %v3863, 1.442695
        %v3885 = vpow.pop %v3884
        %v3886 = vmul.f32 %v3864, 1.442695
        %v3887 = vpow.pop %v3886
        %v3888 = vmul.f32 %v3865, 1.442695
        %v3889 = vpow.pop %v3888
        %v3890 = vmul.f32 %v3866, 1.442695
        %v3891 = vpow.pop %v3890
        %v3892 = vmul.f32 %v3867, 1.442695
        %v3893 = vpow.pop %v3892
        %v3894 = vmul.f32 %v3868, 1.442695
        %v3895 = vpow.pop %v3894
        %v3896 = vmul.f32 %v3869, 1.442695
        %v3897 = vpow.pop %v3896
        %v3898 = vmul.f32 %v3870, 1.442695
        %v3899 = vpow.pop %v3898
        %v3900 = vmul.f32 %v3871, 1.442695
        %v3901 = vpow.pop %v3900
        %v3902 = vmul.f32 %v3872, 1.442695
        %v3903 = vpow.pop %v3902
        %v3904 = vmul.f32 %v3873, 1.442695
        %v3905 = vpow.pop %v3904
        %3906 = vadd.xlane.f32.xlu0 %v3875
        %v3907 = vpop.xlane.xlu0 %3906
        %3908 = vadd.xlane.f32.xlu0 %v3877
        %v3909 = vpop.xlane.xlu0 %3908
        %3910 = vadd.xlane.f32.xlu0 %v3879
        %v3911 = vpop.xlane.xlu0 %3910
        %3912 = vadd.xlane.f32.xlu0 %v3881
        %v3913 = vpop.xlane.xlu0 %3912
        %3914 = vadd.xlane.f32.xlu0 %v3883
        %v3915 = vpop.xlane.xlu0 %3914
        %3916 = vadd.xlane.f32.xlu0 %v3885
        %v3917 = vpop.xlane.xlu0 %3916
        %3918 = vadd.xlane.f32.xlu0 %v3887
        %v3919 = vpop.xlane.xlu0 %3918
        %3920 = vadd.xlane.f32.xlu0 %v3889
        %v3921 = vpop.xlane.xlu0 %3920
        %3922 = vadd.xlane.f32.xlu0 %v3891
        %v3923 = vpop.xlane.xlu0 %3922
        %3924 = vadd.xlane.f32.xlu0 %v3893
        %v3925 = vpop.xlane.xlu0 %3924
        %3926 = vadd.xlane.f32.xlu0 %v3895
        %v3927 = vpop.xlane.xlu0 %3926
        %3928 = vadd.xlane.f32.xlu0 %v3897
        %v3929 = vpop.xlane.xlu0 %3928
        %3930 = vadd.xlane.f32.xlu0 %v3899
        %v3931 = vpop.xlane.xlu0 %3930
        %3932 = vadd.xlane.f32.xlu0 %v3901
        %v3933 = vpop.xlane.xlu0 %3932
        %3934 = vadd.xlane.f32.xlu0 %v3903
        %v3935 = vpop.xlane.xlu0 %3934
        %3936 = vadd.xlane.f32.xlu0 %v3905
        %v3937 = vpop.xlane.xlu0 %3936
        %v3938 = vpack.c.bf16 %v3877, %v3875
        %v3939 = vpack.c.bf16 %v3881, %v3879
        %v3940 = vpack.c.bf16 %v3885, %v3883
        %v3941 = vpack.c.bf16 %v3889, %v3887
        %v3942 = vpack.c.bf16 %v3893, %v3891
        %v3943 = vpack.c.bf16 %v3897, %v3895
        %v3944 = vpack.c.bf16 %v3901, %v3899
        %v3945 = vpack.c.bf16 %v3905, %v3903
        %3946 = vmatprep.subr.bf16.mxu0 0
        %3947 = vmatpush1.bf16.msra.mxu0 %v3303
        %3948 = vmatprep.subr.bf16.mxu0 0
        %3949 = vmatpush1.bf16.msra.mxu0 %v3305
        %3950 = vmatprep.subr.bf16.mxu0 0
        %3951 = vmatpush1.bf16.msra.mxu0 %v3307
        %3952 = vmatprep.subr.bf16.mxu0 0
        %3953 = vmatpush1.bf16.msra.mxu0 %v3309
        %3954 = vmatprep.subr.bf16.mxu0 0
        %3955 = vmatpush1.bf16.msra.mxu0 %v3311
        %3956 = vmatprep.subr.bf16.mxu0 0
        %3957 = vmatpush1.bf16.msra.mxu0 %v3313
        %3958 = vmatprep.subr.bf16.mxu0 0
        %3959 = vmatpush1.bf16.msra.mxu0 %v3315
        %3960 = vmatprep.subr.bf16.mxu0 0
        %3961 = vmatpush1.bf16.msra.mxu0 %v3317
        %3962 = vmatprep.subr.bf16.mxu0 0
        %3963 = vmatpush1.bf16.msra.mxu0 0
        %3964 = vmatprep.subr.bf16.mxu0 0
        %3965 = vmatpush1.bf16.msra.mxu0 0
        %3966 = vmatprep.subr.bf16.mxu0 0
        %3967 = vmatpush1.bf16.msra.mxu0 0
        %3968 = vmatprep.subr.bf16.mxu0 0
        %3969 = vmatpush1.bf16.msra.mxu0 0
        %3970 = vmatprep.subr.bf16.mxu0 0
        %3971 = vmatpush1.bf16.msra.mxu0 0
        %3972 = vmatprep.subr.bf16.mxu0 0
        %3973 = vmatpush1.bf16.msra.mxu0 0
        %3974 = vmatprep.subr.bf16.mxu0 0
        %3975 = vmatpush1.bf16.msra.mxu0 0
        %3976 = vmatprep.subr.bf16.mxu0 0
        %3977 = vmatpush1.bf16.msra.mxu0 0
        %3978 = vmatprep.mubr.bf16.mxu0 0
        %3979 = vmatmul.mubr.bf16.gmra.mrb[0].mxu0 %v3938
        %v3980 = vpop.f32.mrb[0].mxu0
        %v3981 = vadd.f32 0.0, %v3980
        %v3982 = vpop.f32.mrb[0].mxu0
        %v3983 = vpop.f32.mrb[0].mxu0
        %v3984 = vadd.f32 0.0, %v3983
        %v3985 = vpop.f32.mrb[0].mxu0
        %3986 = vmatprep.mubr.bf16.mxu0 0
        %3987 = vmatmul.mubr.bf16.gmra.mrb[0].mxu0 %v3939
        %v3988 = vpop.f32.mrb[0].mxu0
        %v3989 = vadd.f32 0.0, %v3988
        %v3990 = vpop.f32.mrb[0].mxu0
        %v3991 = vpop.f32.mrb[0].mxu0
        %v3992 = vadd.f32 0.0, %v3991
        %v3993 = vpop.f32.mrb[0].mxu0
        %3994 = vmatprep.mubr.bf16.mxu0 0
        %3995 = vmatmul.mubr.bf16.gmra.mrb[0].mxu0 %v3940
        %v3996 = vpop.f32.mrb[0].mxu0
        %v3997 = vadd.f32 0.0, %v3996
        %v3998 = vpop.f32.mrb[0].mxu0
        %v3999 = vpop.f32.mrb[0].mxu0
        %v4000 = vadd.f32 0.0, %v3999
        %v4001 = vpop.f32.mrb[0].mxu0
        %4002 = vmatprep.mubr.bf16.mxu0 0
        %4003 = vmatmul.mubr.bf16.gmra.mrb[0].mxu0 %v3941
        %v4004 = vpop.f32.mrb[0].mxu0
        %v4005 = vadd.f32 0.0, %v4004
        %v4006 = vpop.f32.mrb[0].mxu0
        %v4007 = vpop.f32.mrb[0].mxu0
        %v4008 = vadd.f32 0.0, %v4007
        %v4009 = vpop.f32.mrb[0].mxu0
        %4010 = vmatprep.mubr.bf16.mxu0 0
        %4011 = vmatmul.mubr.bf16.gmra.mrb[0].mxu0 %v3942
        %v4012 = vpop.f32.mrb[0].mxu0
        %v4013 = vadd.f32 0.0, %v4012
        %v4014 = vpop.f32.mrb[0].mxu0
        %v4015 = vpop.f32.mrb[0].mxu0
        %v4016 = vadd.f32 0.0, %v4015
        %v4017 = vpop.f32.mrb[0].mxu0
        %4018 = vmatprep.mubr.bf16.mxu0 0
        %4019 = vmatmul.mubr.bf16.gmra.mrb[0].mxu0 %v3943
        %v4020 = vpop.f32.mrb[0].mxu0
        %v4021 = vadd.f32 0.0, %v4020
        %v4022 = vpop.f32.mrb[0].mxu0
        %v4023 = vpop.f32.mrb[0].mxu0
        %v4024 = vadd.f32 0.0, %v4023
        %v4025 = vpop.f32.mrb[0].mxu0
        %4026 = vmatprep.mubr.bf16.mxu0 0
        %4027 = vmatmul.mubr.bf16.gmra.mrb[0].mxu0 %v3944
        %v4028 = vpop.f32.mrb[0].mxu0
        %v4029 = vadd.f32 0.0, %v4028
        %v4030 = vpop.f32.mrb[0].mxu0
        %v4031 = vpop.f32.mrb[0].mxu0
        %v4032 = vadd.f32 0.0, %v4031
        %v4033 = vpop.f32.mrb[0].mxu0
        %4034 = vmatprep.mubr.bf16.mxu0 0
        %4035 = vmatmul.mubr.bf16.gmra.mrb[0].mxu0 %v3945
        %v4036 = vpop.f32.mrb[0].mxu0
        %v4037 = vadd.f32 0.0, %v4036
        %v4038 = vpop.f32.mrb[0].mxu0
        %v4039 = vpop.f32.mrb[0].mxu0
        %v4040 = vadd.f32 0.0, %v4039
        %v4041 = vpop.f32.mrb[0].mxu0
        %4042 = vdwg.mxu0
        %v4043 = vrcp.pop %v3907
        %v4044 = vrcp.pop %v3909
        %v4045 = vrcp.pop %v3911
        %v4046 = vrcp.pop %v3913
        %v4047 = vrcp.pop %v3915
        %v4048 = vrcp.pop %v3917
        %v4049 = vrcp.pop %v3919
        %v4050 = vrcp.pop %v3921
        %v4051 = vrcp.pop %v3923
        %v4052 = vrcp.pop %v3925
        %v4053 = vrcp.pop %v3927
        %v4054 = vrcp.pop %v3929
        %v4055 = vrcp.pop %v3931
        %v4056 = vrcp.pop %v3933
        %v4057 = vrcp.pop %v3935
        %v4058 = vrcp.pop %v3937
        %v4059 = vmul.f32 %v3981, %v4043
        %v4060 = vmul.f32 %v3984, %v4044
        %v4061 = vmul.f32 %v3989, %v4045
        %v4062 = vmul.f32 %v3992, %v4046
        %v4063 = vmul.f32 %v3997, %v4047
        %v4064 = vmul.f32 %v4000, %v4048
        %v4065 = vmul.f32 %v4005, %v4049
        %v4066 = vmul.f32 %v4008, %v4050
        %v4067 = vmul.f32 %v4013, %v4051
        %v4068 = vmul.f32 %v4016, %v4052
        %v4069 = vmul.f32 %v4021, %v4053
        %v4070 = vmul.f32 %v4024, %v4054
        %v4071 = vmul.f32 %v4029, %v4055
        %v4072 = vmul.f32 %v4032, %v4056
        %v4073 = vmul.f32 %v4037, %v4057
        %v4074 = vmul.f32 %v4040, %v4058
        %4091 = vrot.lane.b32.xlu0 %v4059, 96
        %v4092 = vpop.permute.xlu0 %4091
        %4093 = vrot.lane.b32.xlu0 %v4060, 96
        %v4094 = vpop.permute.xlu0 %4093
        %4095 = vrot.lane.b32.xlu0 %v4061, 96
        %v4096 = vpop.permute.xlu0 %4095
        %4097 = vrot.lane.b32.xlu0 %v4062, 96
        %v4098 = vpop.permute.xlu0 %4097
        %4099 = vrot.lane.b32.xlu0 %v4063, 96
        %v4100 = vpop.permute.xlu0 %4099
        %4101 = vrot.lane.b32.xlu0 %v4064, 96
        %v4102 = vpop.permute.xlu0 %4101
        %4103 = vrot.lane.b32.xlu0 %v4065, 96
        %v4104 = vpop.permute.xlu0 %4103
        %4105 = vrot.lane.b32.xlu0 %v4066, 96
        %v4106 = vpop.permute.xlu0 %4105
        %4107 = vrot.lane.b32.xlu0 %v4067, 96
        %v4108 = vpop.permute.xlu0 %4107
        %4109 = vrot.lane.b32.xlu0 %v4068, 96
        %v4110 = vpop.permute.xlu0 %4109
        %4111 = vrot.lane.b32.xlu0 %v4069, 96
        %v4112 = vpop.permute.xlu0 %4111
        %4113 = vrot.lane.b32.xlu0 %v4070, 96
        %v4114 = vpop.permute.xlu0 %4113
        %4115 = vrot.lane.b32.xlu0 %v4071, 96
        %v4116 = vpop.permute.xlu0 %4115
        %4117 = vrot.lane.b32.xlu0 %v4072, 96
        %v4118 = vpop.permute.xlu0 %4117
        %4119 = vrot.lane.b32.xlu0 %v4073, 96
        %v4120 = vpop.permute.xlu0 %4119
        %4121 = vrot.lane.b32.xlu0 %v4074, 96
        %v4122 = vpop.permute.xlu0 %4121
        %vm4139 = vcmask 1048320
        %4140 = vst.msk [vmem:[#allocation2] sm:$0xff] %vm4139, %v4092
        %4141 = vst.msk [vmem:[#allocation2 + $0x10] sm:$0xff] %vm4139, %v4094
        %4142 = vst.msk [vmem:[#allocation2 + $0x20] sm:$0xff] %vm4139, %v4096
        %4143 = vst.msk [vmem:[#allocation2 + $0x30] sm:$0xff] %vm4139, %v4098
        %4144 = vst.msk [vmem:[#allocation2 + $0x40] sm:$0xff] %vm4139, %v4100
        %4145 = vst.msk [vmem:[#allocation2 + $0x50] sm:$0xff] %vm4139, %v4102
        %4146 = vst.msk [vmem:[#allocation2 + $0x60] sm:$0xff] %vm4139, %v4104
        %4147 = vst.msk [vmem:[#allocation2 + $0x70] sm:$0xff] %vm4139, %v4106
        %4148 = vst.msk [vmem:[#allocation2 + $0x80] sm:$0xff] %vm4139, %v4108
        %4149 = vst.msk [vmem:[#allocation2 + $0x90] sm:$0xff] %vm4139, %v4110
        %4150 = vst.msk [vmem:[#allocation2 + $0xa0] sm:$0xff] %vm4139, %v4112
        %4151 = vst.msk [vmem:[#allocation2 + $0xb0] sm:$0xff] %vm4139, %v4114
        %4152 = vst.msk [vmem:[#allocation2 + $0xc0] sm:$0xff] %vm4139, %v4116
        %4153 = vst.msk [vmem:[#allocation2 + $0xd0] sm:$0xff] %vm4139, %v4118
        %4154 = vst.msk [vmem:[#allocation2 + $0xe0] sm:$0xff] %vm4139, %v4120
        %4155 = vst.msk [vmem:[#allocation2 + $0xf0] sm:$0xff] %vm4139, %v4122
        %4156 = vrot.lane.b32.xlu0 %v1152, 64
        %v4157 = vpop.permute.xlu0 %4156
        %4158 = vrot.lane.b32.xlu0 %v1153, 64
        %v4159 = vpop.permute.xlu0 %4158
        %4160 = vrot.lane.b32.xlu0 %v1154, 64
        %v4161 = vpop.permute.xlu0 %4160
        %4162 = vrot.lane.b32.xlu0 %v1155, 64
        %v4163 = vpop.permute.xlu0 %4162
        %4164 = vrot.lane.b32.xlu0 %v1156, 64
        %v4165 = vpop.permute.xlu0 %4164
        %4166 = vrot.lane.b32.xlu0 %v1157, 64
        %v4167 = vpop.permute.xlu0 %4166
        %4168 = vrot.lane.b32.xlu0 %v1158, 64
        %v4169 = vpop.permute.xlu0 %4168
        %4170 = vrot.lane.b32.xlu0 %v1159, 64
        %v4171 = vpop.permute.xlu0 %4170
        %4172 = vrot.lane.b32.xlu0 %v1520, 96
        %v4173 = vpop.permute.xlu0 %4172
        %4174 = vrot.lane.b32.xlu0 %v1521, 96
        %v4175 = vpop.permute.xlu0 %4174
        %4176 = vrot.lane.b32.xlu0 %v1522, 96
        %v4177 = vpop.permute.xlu0 %4176
        %4178 = vrot.lane.b32.xlu0 %v1523, 96
        %v4179 = vpop.permute.xlu0 %4178
        %4180 = vrot.lane.b32.xlu0 %v1524, 96
        %v4181 = vpop.permute.xlu0 %4180
        %4182 = vrot.lane.b32.xlu0 %v1525, 96
        %v4183 = vpop.permute.xlu0 %4182
        %4184 = vrot.lane.b32.xlu0 %v1526, 96
        %v4185 = vpop.permute.xlu0 %4184
        %4186 = vrot.lane.b32.xlu0 %v1527, 96
        %v4187 = vpop.permute.xlu0 %4186
        %v4189 = vsel %vm1579, %v4157, 0
        %v4192 = vsel %vm1579, %v4159, 0
        %v4195 = vsel %vm1579, %v4161, 0
        %v4198 = vsel %vm1579, %v4163, 0
        %v4201 = vsel %vm1579, %v4165, 0
        %v4204 = vsel %vm1579, %v4167, 0
        %v4207 = vsel %vm1579, %v4169, 0
        %v4210 = vsel %vm1579, %v4171, 0
        %v4213 = vsel %vm1579, %v4173, 0
        %v4216 = vsel %vm1579, %v4175, 0
        %v4219 = vsel %vm1579, %v4177, 0
        %v4222 = vsel %vm1579, %v4179, 0
        %v4225 = vsel %vm1579, %v4181, 0
        %v4228 = vsel %vm1579, %v4183, 0
        %v4231 = vsel %vm1579, %v4185, 0
        %v4234 = vsel %vm1579, %v4187, 0
        %4236 = vmatprep.subr.bf16.mxu0 0
        %4237 = vmatpush1.bf16.xpose.msra.mxu0 %v4213
        %4238 = vmatprep.subr.bf16.mxu0 0
        %4239 = vmatpush1.bf16.xpose.msra.mxu0 %v4216
        %4240 = vmatprep.subr.bf16.mxu0 0
        %4241 = vmatpush1.bf16.xpose.msra.mxu0 %v4219
        %4242 = vmatprep.subr.bf16.mxu0 0
        %4243 = vmatpush1.bf16.xpose.msra.mxu0 %v4222
        %4244 = vmatprep.subr.bf16.mxu0 0
        %4245 = vmatpush1.bf16.xpose.msra.mxu0 %v4225
        %4246 = vmatprep.subr.bf16.mxu0 0
        %4247 = vmatpush1.bf16.xpose.msra.mxu0 %v4228
        %4248 = vmatprep.subr.bf16.mxu0 0
        %4249 = vmatpush1.bf16.xpose.msra.mxu0 %v4231
        %4250 = vmatprep.subr.bf16.mxu0 0
        %4251 = vmatpush1.bf16.xpose.msra.mxu0 %v4234
        %4252 = vmatprep.subr.bf16.mxu0 0
        %4253 = vmatpush1.bf16.xpose.msra.mxu0 0
        %4254 = vmatprep.subr.bf16.mxu0 0
        %4255 = vmatpush1.bf16.xpose.msra.mxu0 0
        %4256 = vmatprep.subr.bf16.mxu0 0
        %4257 = vmatpush1.bf16.xpose.msra.mxu0 0
        %4258 = vmatprep.subr.bf16.mxu0 0
        %4259 = vmatpush1.bf16.xpose.msra.mxu0 0
        %4260 = vmatprep.subr.bf16.mxu0 0
        %4261 = vmatpush1.bf16.xpose.msra.mxu0 0
        %4262 = vmatprep.subr.bf16.mxu0 0
        %4263 = vmatpush1.bf16.xpose.msra.mxu0 0
        %4264 = vmatprep.subr.bf16.mxu0 0
        %4265 = vmatpush1.bf16.xpose.msra.mxu0 0
        %4266 = vmatprep.subr.bf16.mxu0 0
        %4267 = vmatpush1.bf16.xpose.msra.mxu0 0
        %4268 = vmatprep.mubr.bf16.mxu0 0
        %4269 = vmatmul.mubr.bf16.gmra.mrb[0].mxu0 %v4189
        %v4270 = vpop.f32.mrb[0].mxu0
        %v4271 = vadd.f32 0.0, %v4270
        %v4272 = vpop.f32.mrb[0].mxu0
        %v4273 = vpop.f32.mrb[0].mxu0
        %v4274 = vadd.f32 0.0, %v4273
        %v4275 = vpop.f32.mrb[0].mxu0
        %4276 = vmatprep.mubr.bf16.mxu0 0
        %4277 = vmatmul.mubr.bf16.gmra.mrb[0].mxu0 %v4192
        %v4278 = vpop.f32.mrb[0].mxu0
        %v4279 = vadd.f32 0.0, %v4278
        %v4280 = vpop.f32.mrb[0].mxu0
        %v4281 = vpop.f32.mrb[0].mxu0
        %v4282 = vadd.f32 0.0, %v4281
        %v4283 = vpop.f32.mrb[0].mxu0
        %4284 = vmatprep.mubr.bf16.mxu0 0
        %4285 = vmatmul.mubr.bf16.gmra.mrb[0].mxu0 %v4195
        %v4286 = vpop.f32.mrb[0].mxu0
        %v4287 = vadd.f32 0.0, %v4286
        %v4288 = vpop.f32.mrb[0].mxu0
        %v4289 = vpop.f32.mrb[0].mxu0
        %v4290 = vadd.f32 0.0, %v4289
        %v4291 = vpop.f32.mrb[0].mxu0
        %4292 = vmatprep.mubr.bf16.mxu0 0
        %4293 = vmatmul.mubr.bf16.gmra.mrb[0].mxu0 %v4198
        %v4294 = vpop.f32.mrb[0].mxu0
        %v4295 = vadd.f32 0.0, %v4294
        %v4296 = vpop.f32.mrb[0].mxu0
        %v4297 = vpop.f32.mrb[0].mxu0
        %v4298 = vadd.f32 0.0, %v4297
        %v4299 = vpop.f32.mrb[0].mxu0
        %4300 = vmatprep.mubr.bf16.mxu0 0
        %4301 = vmatmul.mubr.bf16.gmra.mrb[0].mxu0 %v4201
        %v4302 = vpop.f32.mrb[0].mxu0
        %v4303 = vadd.f32 0.0, %v4302
        %v4304 = vpop.f32.mrb[0].mxu0
        %v4305 = vpop.f32.mrb[0].mxu0
        %v4306 = vadd.f32 0.0, %v4305
        %v4307 = vpop.f32.mrb[0].mxu0
        %4308 = vmatprep.mubr.bf16.mxu0 0
        %4309 = vmatmul.mubr.bf16.gmra.mrb[0].mxu0 %v4204
        %v4310 = vpop.f32.mrb[0].mxu0
        %v4311 = vadd.f32 0.0, %v4310
        %v4312 = vpop.f32.mrb[0].mxu0
        %v4313 = vpop.f32.mrb[0].mxu0
        %v4314 = vadd.f32 0.0, %v4313
        %v4315 = vpop.f32.mrb[0].mxu0
        %4316 = vmatprep.mubr.bf16.mxu0 0
        %4317 = vmatmul.mubr.bf16.gmra.mrb[0].mxu0 %v4207
        %v4318 = vpop.f32.mrb[0].mxu0
        %v4319 = vadd.f32 0.0, %v4318
        %v4320 = vpop.f32.mrb[0].mxu0
        %v4321 = vpop.f32.mrb[0].mxu0
        %v4322 = vadd.f32 0.0, %v4321
        %v4323 = vpop.f32.mrb[0].mxu0
        %4324 = vmatprep.mubr.bf16.mxu0 0
        %4325 = vmatmul.mubr.bf16.gmra.mrb[0].mxu0 %v4210
        %v4326 = vpop.f32.mrb[0].mxu0
        %v4327 = vadd.f32 0.0, %v4326
        %v4328 = vpop.f32.mrb[0].mxu0
        %v4329 = vpop.f32.mrb[0].mxu0
        %v4330 = vadd.f32 0.0, %v4329
        %v4331 = vpop.f32.mrb[0].mxu0
        %4332 = vdwg.mxu0
        %4333 = vrot.lane.b32.xlu0 %v1096, 64
        %v4334 = vpop.permute.xlu0 %4333
        %4335 = vrot.lane.b32.xlu0 %v1097, 64
        %v4336 = vpop.permute.xlu0 %4335
        %4337 = vrot.lane.b32.xlu0 %v1098, 64
        %v4338 = vpop.permute.xlu0 %4337
        %4339 = vrot.lane.b32.xlu0 %v1099, 64
        %v4340 = vpop.permute.xlu0 %4339
        %4341 = vrot.lane.b32.xlu0 %v1100, 64
        %v4342 = vpop.permute.xlu0 %4341
        %4343 = vrot.lane.b32.xlu0 %v1101, 64
        %v4344 = vpop.permute.xlu0 %4343
        %4345 = vrot.lane.b32.xlu0 %v1102, 64
        %v4346 = vpop.permute.xlu0 %4345
        %4347 = vrot.lane.b32.xlu0 %v1103, 64
        %v4348 = vpop.permute.xlu0 %4347
        %4349 = vrot.lane.b32.xlu0 %v1336, 96
        %v4350 = vpop.permute.xlu0 %4349
        %4351 = vrot.lane.b32.xlu0 %v1337, 96
        %v4352 = vpop.permute.xlu0 %4351
        %4353 = vrot.lane.b32.xlu0 %v1338, 96
        %v4354 = vpop.permute.xlu0 %4353
        %4355 = vrot.lane.b32.xlu0 %v1339, 96
        %v4356 = vpop.permute.xlu0 %4355
        %4357 = vrot.lane.b32.xlu0 %v1340, 96
        %v4358 = vpop.permute.xlu0 %4357
        %4359 = vrot.lane.b32.xlu0 %v1341, 96
        %v4360 = vpop.permute.xlu0 %4359
        %4361 = vrot.lane.b32.xlu0 %v1342, 96
        %v4362 = vpop.permute.xlu0 %4361
        %4363 = vrot.lane.b32.xlu0 %v1343, 96
        %v4364 = vpop.permute.xlu0 %4363
        %v4366 = vsel %vm1579, %v4334, 0
        %v4369 = vsel %vm1579, %v4336, 0
        %v4372 = vsel %vm1579, %v4338, 0
        %v4375 = vsel %vm1579, %v4340, 0
        %v4378 = vsel %vm1579, %v4342, 0
        %v4381 = vsel %vm1579, %v4344, 0
        %v4384 = vsel %vm1579, %v4346, 0
        %v4387 = vsel %vm1579, %v4348, 0
        %v4390 = vsel %vm1579, %v4350, 0
        %v4393 = vsel %vm1579, %v4352, 0
        %v4396 = vsel %vm1579, %v4354, 0
        %v4399 = vsel %vm1579, %v4356, 0
        %v4402 = vsel %vm1579, %v4358, 0
        %v4405 = vsel %vm1579, %v4360, 0
        %v4408 = vsel %vm1579, %v4362, 0
        %v4411 = vsel %vm1579, %v4364, 0
        %4413 = vmatprep.subr.bf16.mxu0 0
        %4414 = vmatpush1.bf16.xpose.msra.mxu0 %v4390
        %4415 = vmatprep.subr.bf16.mxu0 0
        %4416 = vmatpush1.bf16.xpose.msra.mxu0 %v4393
        %4417 = vmatprep.subr.bf16.mxu0 0
        %4418 = vmatpush1.bf16.xpose.msra.mxu0 %v4396
        %4419 = vmatprep.subr.bf16.mxu0 0
        %4420 = vmatpush1.bf16.xpose.msra.mxu0 %v4399
        %4421 = vmatprep.subr.bf16.mxu0 0
        %4422 = vmatpush1.bf16.xpose.msra.mxu0 %v4402
        %4423 = vmatprep.subr.bf16.mxu0 0
        %4424 = vmatpush1.bf16.xpose.msra.mxu0 %v4405
        %4425 = vmatprep.subr.bf16.mxu0 0
        %4426 = vmatpush1.bf16.xpose.msra.mxu0 %v4408
        %4427 = vmatprep.subr.bf16.mxu0 0
        %4428 = vmatpush1.bf16.xpose.msra.mxu0 %v4411
        %4429 = vmatprep.subr.bf16.mxu0 0
        %4430 = vmatpush1.bf16.xpose.msra.mxu0 0
        %4431 = vmatprep.subr.bf16.mxu0 0
        %4432 = vmatpush1.bf16.xpose.msra.mxu0 0
        %4433 = vmatprep.subr.bf16.mxu0 0
        %4434 = vmatpush1.bf16.xpose.msra.mxu0 0
        %4435 = vmatprep.subr.bf16.mxu0 0
        %4436 = vmatpush1.bf16.xpose.msra.mxu0 0
        %4437 = vmatprep.subr.bf16.mxu0 0
        %4438 = vmatpush1.bf16.xpose.msra.mxu0 0
        %4439 = vmatprep.subr.bf16.mxu0 0
        %4440 = vmatpush1.bf16.xpose.msra.mxu0 0
        %4441 = vmatprep.subr.bf16.mxu0 0
        %4442 = vmatpush1.bf16.xpose.msra.mxu0 0
        %4443 = vmatprep.subr.bf16.mxu0 0
        %4444 = vmatpush1.bf16.xpose.msra.mxu0 0
        %4445 = vmatprep.mubr.bf16.mxu0 0
        %4446 = vmatmul.mubr.bf16.gmra.mrb[0].mxu0 %v4366
        %v4447 = vpop.f32.mrb[0].mxu0
        %v4448 = vadd.f32 %v4271, %v4447
        %v4449 = vpop.f32.mrb[0].mxu0
        %v4450 = vpop.f32.mrb[0].mxu0
        %v4451 = vadd.f32 %v4274, %v4450
        %v4452 = vpop.f32.mrb[0].mxu0
        %4453 = vmatprep.mubr.bf16.mxu0 0
        %4454 = vmatmul.mubr.bf16.gmra.mrb[0].mxu0 %v4369
        %v4455 = vpop.f32.mrb[0].mxu0
        %v4456 = vadd.f32 %v4279, %v4455
        %v4457 = vpop.f32.mrb[0].mxu0
        %v4458 = vpop.f32.mrb[0].mxu0
        %v4459 = vadd.f32 %v4282, %v4458
        %v4460 = vpop.f32.mrb[0].mxu0
        %4461 = vmatprep.mubr.bf16.mxu0 0
        %4462 = vmatmul.mubr.bf16.gmra.mrb[0].mxu0 %v4372
        %v4463 = vpop.f32.mrb[0].mxu0
        %v4464 = vadd.f32 %v4287, %v4463
        %v4465 = vpop.f32.mrb[0].mxu0
        %v4466 = vpop.f32.mrb[0].mxu0
        %v4467 = vadd.f32 %v4290, %v4466
        %v4468 = vpop.f32.mrb[0].mxu0
        %4469 = vmatprep.mubr.bf16.mxu0 0
        %4470 = vmatmul.mubr.bf16.gmra.mrb[0].mxu0 %v4375
        %v4471 = vpop.f32.mrb[0].mxu0
        %v4472 = vadd.f32 %v4295, %v4471
        %v4473 = vpop.f32.mrb[0].mxu0
        %v4474 = vpop.f32.mrb[0].mxu0
        %v4475 = vadd.f32 %v4298, %v4474
        %v4476 = vpop.f32.mrb[0].mxu0
        %4477 = vmatprep.mubr.bf16.mxu0 0
        %4478 = vmatmul.mubr.bf16.gmra.mrb[0].mxu0 %v4378
        %v4479 = vpop.f32.mrb[0].mxu0
        %v4480 = vadd.f32 %v4303, %v4479
        %v4481 = vpop.f32.mrb[0].mxu0
        %v4482 = vpop.f32.mrb[0].mxu0
        %v4483 = vadd.f32 %v4306, %v4482
        %v4484 = vpop.f32.mrb[0].mxu0
        %4485 = vmatprep.mubr.bf16.mxu0 0
        %4486 = vmatmul.mubr.bf16.gmra.mrb[0].mxu0 %v4381
        %v4487 = vpop.f32.mrb[0].mxu0
        %v4488 = vadd.f32 %v4311, %v4487
        %v4489 = vpop.f32.mrb[0].mxu0
        %v4490 = vpop.f32.mrb[0].mxu0
        %v4491 = vadd.f32 %v4314, %v4490
        %v4492 = vpop.f32.mrb[0].mxu0
        %4493 = vmatprep.mubr.bf16.mxu0 0
        %4494 = vmatmul.mubr.bf16.gmra.mrb[0].mxu0 %v4384
        %v4495 = vpop.f32.mrb[0].mxu0
        %v4496 = vadd.f32 %v4319, %v4495
        %v4497 = vpop.f32.mrb[0].mxu0
        %v4498 = vpop.f32.mrb[0].mxu0
        %v4499 = vadd.f32 %v4322, %v4498
        %v4500 = vpop.f32.mrb[0].mxu0
        %4501 = vmatprep.mubr.bf16.mxu0 0
        %4502 = vmatmul.mubr.bf16.gmra.mrb[0].mxu0 %v4387
        %v4503 = vpop.f32.mrb[0].mxu0
        %v4504 = vadd.f32 %v4327, %v4503
        %v4505 = vpop.f32.mrb[0].mxu0
        %v4506 = vpop.f32.mrb[0].mxu0
        %v4507 = vadd.f32 %v4330, %v4506
        %v4508 = vpop.f32.mrb[0].mxu0
        %4509 = vdwg.mxu0
        %v4510 = vadd.f32 %v4448, %v1563
        %v4511 = vadd.f32 %v4451, %v1564
        %v4512 = vadd.f32 %v4456, %v1565
        %v4513 = vadd.f32 %v4459, %v1566
        %v4514 = vadd.f32 %v4464, %v1567
        %v4515 = vadd.f32 %v4467, %v1568
        %v4516 = vadd.f32 %v4472, %v1569
        %v4517 = vadd.f32 %v4475, %v1570
        %v4518 = vadd.f32 %v4480, %v1571
        %v4519 = vadd.f32 %v4483, %v1572
        %v4520 = vadd.f32 %v4488, %v1573
        %v4521 = vadd.f32 %v4491, %v1574
        %v4522 = vadd.f32 %v4496, %v1575
        %v4523 = vadd.f32 %v4499, %v1576
        %v4524 = vadd.f32 %v4504, %v1577
        %v4525 = vadd.f32 %v4507, %v1578
        %4526 = vmax.xlane.f32.xlu0 %v4510
        %v4527 = vpop.xlane.xlu0 %4526
        %4528 = vmax.xlane.f32.xlu0 %v4511
        %v4529 = vpop.xlane.xlu0 %4528
        %4530 = vmax.xlane.f32.xlu0 %v4512
        %v4531 = vpop.xlane.xlu0 %4530
        %4532 = vmax.xlane.f32.xlu0 %v4513
        %v4533 = vpop.xlane.xlu0 %4532
        %4534 = vmax.xlane.f32.xlu0 %v4514
        %v4535 = vpop.xlane.xlu0 %4534
        %4536 = vmax.xlane.f32.xlu0 %v4515
        %v4537 = vpop.xlane.xlu0 %4536
        %4538 = vmax.xlane.f32.xlu0 %v4516
        %v4539 = vpop.xlane.xlu0 %4538
        %4540 = vmax.xlane.f32.xlu0 %v4517
        %v4541 = vpop.xlane.xlu0 %4540
        %4542 = vmax.xlane.f32.xlu0 %v4518
        %v4543 = vpop.xlane.xlu0 %4542
        %4544 = vmax.xlane.f32.xlu0 %v4519
        %v4545 = vpop.xlane.xlu0 %4544
        %4546 = vmax.xlane.f32.xlu0 %v4520
        %v4547 = vpop.xlane.xlu0 %4546
        %4548 = vmax.xlane.f32.xlu0 %v4521
        %v4549 = vpop.xlane.xlu0 %4548
        %4550 = vmax.xlane.f32.xlu0 %v4522
        %v4551 = vpop.xlane.xlu0 %4550
        %4552 = vmax.xlane.f32.xlu0 %v4523
        %v4553 = vpop.xlane.xlu0 %4552
        %4554 = vmax.xlane.f32.xlu0 %v4524
        %v4555 = vpop.xlane.xlu0 %4554
        %4556 = vmax.xlane.f32.xlu0 %v4525
        %v4557 = vpop.xlane.xlu0 %4556
        %v4558 = vsub.f32 %v4510, %v4527
        %v4559 = vsub.f32 %v4511, %v4529
        %v4560 = vsub.f32 %v4512, %v4531
        %v4561 = vsub.f32 %v4513, %v4533
        %v4562 = vsub.f32 %v4514, %v4535
        %v4563 = vsub.f32 %v4515, %v4537
        %v4564 = vsub.f32 %v4516, %v4539
        %v4565 = vsub.f32 %v4517, %v4541
        %v4566 = vsub.f32 %v4518, %v4543
        %v4567 = vsub.f32 %v4519, %v4545
        %v4568 = vsub.f32 %v4520, %v4547
        %v4569 = vsub.f32 %v4521, %v4549
        %v4570 = vsub.f32 %v4522, %v4551
        %v4571 = vsub.f32 %v4523, %v4553
        %v4572 = vsub.f32 %v4524, %v4555
        %v4573 = vsub.f32 %v4525, %v4557
        %v4574 = vmul.f32 %v4558, 1.442695
        %v4575 = vpow.pop %v4574
        %v4576 = vmul.f32 %v4559, 1.442695
        %v4577 = vpow.pop %v4576
        %v4578 = vmul.f32 %v4560, 1.442695
        %v4579 = vpow.pop %v4578
        %v4580 = vmul.f32 %v4561, 1.442695
        %v4581 = vpow.pop %v4580
        %v4582 = vmul.f32 %v4562, 1.442695
        %v4583 = vpow.pop %v4582
        %v4584 = vmul.f32 %v4563, 1.442695
        %v4585 = vpow.pop %v4584
        %v4586 = vmul.f32 %v4564, 1.442695
        %v4587 = vpow.pop %v4586
        %v4588 = vmul.f32 %v4565, 1.442695
        %v4589 = vpow.pop %v4588
        %v4590 = vmul.f32 %v4566, 1.442695
        %v4591 = vpow.pop %v4590
        %v4592 = vmul.f32 %v4567, 1.442695
        %v4593 = vpow.pop %v4592
        %v4594 = vmul.f32 %v4568, 1.442695
        %v4595 = vpow.pop %v4594
        %v4596 = vmul.f32 %v4569, 1.442695
        %v4597 = vpow.pop %v4596
        %v4598 = vmul.f32 %v4570, 1.442695
        %v4599 = vpow.pop %v4598
        %v4600 = vmul.f32 %v4571, 1.442695
        %v4601 = vpow.pop %v4600
        %v4602 = vmul.f32 %v4572, 1.442695
        %v4603 = vpow.pop %v4602
        %v4604 = vmul.f32 %v4573, 1.442695
        %v4605 = vpow.pop %v4604
        %4606 = vadd.xlane.f32.xlu0 %v4575
        %v4607 = vpop.xlane.xlu0 %4606
        %4608 = vadd.xlane.f32.xlu0 %v4577
        %v4609 = vpop.xlane.xlu0 %4608
        %4610 = vadd.xlane.f32.xlu0 %v4579
        %v4611 = vpop.xlane.xlu0 %4610
        %4612 = vadd.xlane.f32.xlu0 %v4581
        %v4613 = vpop.xlane.xlu0 %4612
        %4614 = vadd.xlane.f32.xlu0 %v4583
        %v4615 = vpop.xlane.xlu0 %4614
        %4616 = vadd.xlane.f32.xlu0 %v4585
        %v4617 = vpop.xlane.xlu0 %4616
        %4618 = vadd.xlane.f32.xlu0 %v4587
        %v4619 = vpop.xlane.xlu0 %4618
        %4620 = vadd.xlane.f32.xlu0 %v4589
        %v4621 = vpop.xlane.xlu0 %4620
        %4622 = vadd.xlane.f32.xlu0 %v4591
        %v4623 = vpop.xlane.xlu0 %4622
        %4624 = vadd.xlane.f32.xlu0 %v4593
        %v4625 = vpop.xlane.xlu0 %4624
        %4626 = vadd.xlane.f32.xlu0 %v4595
        %v4627 = vpop.xlane.xlu0 %4626
        %4628 = vadd.xlane.f32.xlu0 %v4597
        %v4629 = vpop.xlane.xlu0 %4628
        %4630 = vadd.xlane.f32.xlu0 %v4599
        %v4631 = vpop.xlane.xlu0 %4630
        %4632 = vadd.xlane.f32.xlu0 %v4601
        %v4633 = vpop.xlane.xlu0 %4632
        %4634 = vadd.xlane.f32.xlu0 %v4603
        %v4635 = vpop.xlane.xlu0 %4634
        %4636 = vadd.xlane.f32.xlu0 %v4605
        %v4637 = vpop.xlane.xlu0 %4636
        %v4638 = vpack.c.bf16 %v4577, %v4575
        %v4639 = vpack.c.bf16 %v4581, %v4579
        %v4640 = vpack.c.bf16 %v4585, %v4583
        %v4641 = vpack.c.bf16 %v4589, %v4587
        %v4642 = vpack.c.bf16 %v4593, %v4591
        %v4643 = vpack.c.bf16 %v4597, %v4595
        %v4644 = vpack.c.bf16 %v4601, %v4599
        %v4645 = vpack.c.bf16 %v4605, %v4603
        %4646 = vrot.lane.b32.xlu0 %v1008, 64
        %v4647 = vpop.permute.xlu0 %4646
        %4648 = vrot.lane.b32.xlu0 %v1009, 64
        %v4649 = vpop.permute.xlu0 %4648
        %4650 = vrot.lane.b32.xlu0 %v1010, 64
        %v4651 = vpop.permute.xlu0 %4650
        %4652 = vrot.lane.b32.xlu0 %v1011, 64
        %v4653 = vpop.permute.xlu0 %4652
        %4654 = vrot.lane.b32.xlu0 %v1012, 64
        %v4655 = vpop.permute.xlu0 %4654
        %4656 = vrot.lane.b32.xlu0 %v1013, 64
        %v4657 = vpop.permute.xlu0 %4656
        %4658 = vrot.lane.b32.xlu0 %v1014, 64
        %v4659 = vpop.permute.xlu0 %4658
        %4660 = vrot.lane.b32.xlu0 %v1015, 64
        %v4661 = vpop.permute.xlu0 %4660
        %4670 = vmatprep.subr.bf16.mxu0 0
        %4671 = vmatpush1.bf16.msra.mxu0 %v4647
        %4672 = vmatprep.subr.bf16.mxu0 0
        %4673 = vmatpush1.bf16.msra.mxu0 %v4649
        %4674 = vmatprep.subr.bf16.mxu0 0
        %4675 = vmatpush1.bf16.msra.mxu0 %v4651
        %4676 = vmatprep.subr.bf16.mxu0 0
        %4677 = vmatpush1.bf16.msra.mxu0 %v4653
        %4678 = vmatprep.subr.bf16.mxu0 0
        %4679 = vmatpush1.bf16.msra.mxu0 %v4655
        %4680 = vmatprep.subr.bf16.mxu0 0
        %4681 = vmatpush1.bf16.msra.mxu0 %v4657
        %4682 = vmatprep.subr.bf16.mxu0 0
        %4683 = vmatpush1.bf16.msra.mxu0 %v4659
        %4684 = vmatprep.subr.bf16.mxu0 0
        %4685 = vmatpush1.bf16.msra.mxu0 %v4661
        %4686 = vmatprep.subr.bf16.mxu0 0
        %4687 = vmatpush1.bf16.msra.mxu0 0
        %4688 = vmatprep.subr.bf16.mxu0 0
        %4689 = vmatpush1.bf16.msra.mxu0 0
        %4690 = vmatprep.subr.bf16.mxu0 0
        %4691 = vmatpush1.bf16.msra.mxu0 0
        %4692 = vmatprep.subr.bf16.mxu0 0
        %4693 = vmatpush1.bf16.msra.mxu0 0
        %4694 = vmatprep.subr.bf16.mxu0 0
        %4695 = vmatpush1.bf16.msra.mxu0 0
        %4696 = vmatprep.subr.bf16.mxu0 0
        %4697 = vmatpush1.bf16.msra.mxu0 0
        %4698 = vmatprep.subr.bf16.mxu0 0
        %4699 = vmatpush1.bf16.msra.mxu0 0
        %4700 = vmatprep.subr.bf16.mxu0 0
        %4701 = vmatpush1.bf16.msra.mxu0 0
        %4702 = vmatprep.mubr.bf16.mxu0 0
        %4703 = vmatmul.mubr.bf16.gmra.mrb[0].mxu0 %v4638
        %v4704 = vpop.f32.mrb[0].mxu0
        %v4705 = vadd.f32 0.0, %v4704
        %v4706 = vpop.f32.mrb[0].mxu0
        %v4707 = vpop.f32.mrb[0].mxu0
        %v4708 = vadd.f32 0.0, %v4707
        %v4709 = vpop.f32.mrb[0].mxu0
        %4710 = vmatprep.mubr.bf16.mxu0 0
        %4711 = vmatmul.mubr.bf16.gmra.mrb[0].mxu0 %v4639
        %v4712 = vpop.f32.mrb[0].mxu0
        %v4713 = vadd.f32 0.0, %v4712
        %v4714 = vpop.f32.mrb[0].mxu0
        %v4715 = vpop.f32.mrb[0].mxu0
        %v4716 = vadd.f32 0.0, %v4715
        %v4717 = vpop.f32.mrb[0].mxu0
        %4718 = vmatprep.mubr.bf16.mxu0 0
        %4719 = vmatmul.mubr.bf16.gmra.mrb[0].mxu0 %v4640
        %v4720 = vpop.f32.mrb[0].mxu0
        %v4721 = vadd.f32 0.0, %v4720
        %v4722 = vpop.f32.mrb[0].mxu0
        %v4723 = vpop.f32.mrb[0].mxu0
        %v4724 = vadd.f32 0.0, %v4723
        %v4725 = vpop.f32.mrb[0].mxu0
        %4726 = vmatprep.mubr.bf16.mxu0 0
        %4727 = vmatmul.mubr.bf16.gmra.mrb[0].mxu0 %v4641
        %v4728 = vpop.f32.mrb[0].mxu0
        %v4729 = vadd.f32 0.0, %v4728
        %v4730 = vpop.f32.mrb[0].mxu0
        %v4731 = vpop.f32.mrb[0].mxu0
        %v4732 = vadd.f32 0.0, %v4731
        %v4733 = vpop.f32.mrb[0].mxu0
        %4734 = vmatprep.mubr.bf16.mxu0 0
        %4735 = vmatmul.mubr.bf16.gmra.mrb[0].mxu0 %v4642
        %v4736 = vpop.f32.mrb[0].mxu0
        %v4737 = vadd.f32 0.0, %v4736
        %v4738 = vpop.f32.mrb[0].mxu0
        %v4739 = vpop.f32.mrb[0].mxu0
        %v4740 = vadd.f32 0.0, %v4739
        %v4741 = vpop.f32.mrb[0].mxu0
        %4742 = vmatprep.mubr.bf16.mxu0 0
        %4743 = vmatmul.mubr.bf16.gmra.mrb[0].mxu0 %v4643
        %v4744 = vpop.f32.mrb[0].mxu0
        %v4745 = vadd.f32 0.0, %v4744
        %v4746 = vpop.f32.mrb[0].mxu0
        %v4747 = vpop.f32.mrb[0].mxu0
        %v4748 = vadd.f32 0.0, %v4747
        %v4749 = vpop.f32.mrb[0].mxu0
        %4750 = vmatprep.mubr.bf16.mxu0 0
        %4751 = vmatmul.mubr.bf16.gmra.mrb[0].mxu0 %v4644
        %v4752 = vpop.f32.mrb[0].mxu0
        %v4753 = vadd.f32 0.0, %v4752
        %v4754 = vpop.f32.mrb[0].mxu0
        %v4755 = vpop.f32.mrb[0].mxu0
        %v4756 = vadd.f32 0.0, %v4755
        %v4757 = vpop.f32.mrb[0].mxu0
        %4758 = vmatprep.mubr.bf16.mxu0 0
        %4759 = vmatmul.mubr.bf16.gmra.mrb[0].mxu0 %v4645
        %v4760 = vpop.f32.mrb[0].mxu0
        %v4761 = vadd.f32 0.0, %v4760
        %v4762 = vpop.f32.mrb[0].mxu0
        %v4763 = vpop.f32.mrb[0].mxu0
        %v4764 = vadd.f32 0.0, %v4763
        %v4765 = vpop.f32.mrb[0].mxu0
        %4766 = vdwg.mxu0
        %v4767 = vrcp.pop %v4607
        %v4768 = vrcp.pop %v4609
        %v4769 = vrcp.pop %v4611
        %v4770 = vrcp.pop %v4613
        %v4771 = vrcp.pop %v4615
        %v4772 = vrcp.pop %v4617
        %v4773 = vrcp.pop %v4619
        %v4774 = vrcp.pop %v4621
        %v4775 = vrcp.pop %v4623
        %v4776 = vrcp.pop %v4625
        %v4777 = vrcp.pop %v4627
        %v4778 = vrcp.pop %v4629
        %v4779 = vrcp.pop %v4631
        %v4780 = vrcp.pop %v4633
        %v4781 = vrcp.pop %v4635
        %v4782 = vrcp.pop %v4637
        %v4783 = vmul.f32 %v4705, %v4767
        %v4784 = vmul.f32 %v4708, %v4768
        %v4785 = vmul.f32 %v4713, %v4769
        %v4786 = vmul.f32 %v4716, %v4770
        %v4787 = vmul.f32 %v4721, %v4771
        %v4788 = vmul.f32 %v4724, %v4772
        %v4789 = vmul.f32 %v4729, %v4773
        %v4790 = vmul.f32 %v4732, %v4774
        %v4791 = vmul.f32 %v4737, %v4775
        %v4792 = vmul.f32 %v4740, %v4776
        %v4793 = vmul.f32 %v4745, %v4777
        %v4794 = vmul.f32 %v4748, %v4778
        %v4795 = vmul.f32 %v4753, %v4779
        %v4796 = vmul.f32 %v4756, %v4780
        %v4797 = vmul.f32 %v4761, %v4781
        %v4798 = vmul.f32 %v4764, %v4782
        %4799 = vst.msk [vmem:[#allocation2 + $0x8] sm:$0xff] %vm2135, %v4783
        %4800 = vst.msk [vmem:[#allocation2 + $0x18] sm:$0xff] %vm2135, %v4784
        %4801 = vst.msk [vmem:[#allocation2 + $0x28] sm:$0xff] %vm2135, %v4785
        %4802 = vst.msk [vmem:[#allocation2 + $0x38] sm:$0xff] %vm2135, %v4786
        %4803 = vst.msk [vmem:[#allocation2 + $0x48] sm:$0xff] %vm2135, %v4787
        %4804 = vst.msk [vmem:[#allocation2 + $0x58] sm:$0xff] %vm2135, %v4788
        %4805 = vst.msk [vmem:[#allocation2 + $0x68] sm:$0xff] %vm2135, %v4789
        %4806 = vst.msk [vmem:[#allocation2 + $0x78] sm:$0xff] %vm2135, %v4790
        %4807 = vst.msk [vmem:[#allocation2 + $0x88] sm:$0xff] %vm2135, %v4791
        %4808 = vst.msk [vmem:[#allocation2 + $0x98] sm:$0xff] %vm2135, %v4792
        %4809 = vst.msk [vmem:[#allocation2 + $0xa8] sm:$0xff] %vm2135, %v4793
        %4810 = vst.msk [vmem:[#allocation2 + $0xb8] sm:$0xff] %vm2135, %v4794
        %4811 = vst.msk [vmem:[#allocation2 + $0xc8] sm:$0xff] %vm2135, %v4795
        %4812 = vst.msk [vmem:[#allocation2 + $0xd8] sm:$0xff] %vm2135, %v4796
        %4813 = vst.msk [vmem:[#allocation2 + $0xe8] sm:$0xff] %vm2135, %v4797
        %4814 = vst.msk [vmem:[#allocation2 + $0xf8] sm:$0xff] %vm2135, %v4798
        %4815 = vrot.lane.b32.xlu0 %v1152, 48
        %v4816 = vpop.permute.xlu0 %4815
        %4817 = vrot.lane.b32.xlu0 %v1153, 48
        %v4818 = vpop.permute.xlu0 %4817
        %4819 = vrot.lane.b32.xlu0 %v1154, 48
        %v4820 = vpop.permute.xlu0 %4819
        %4821 = vrot.lane.b32.xlu0 %v1155, 48
        %v4822 = vpop.permute.xlu0 %4821
        %4823 = vrot.lane.b32.xlu0 %v1156, 48
        %v4824 = vpop.permute.xlu0 %4823
        %4825 = vrot.lane.b32.xlu0 %v1157, 48
        %v4826 = vpop.permute.xlu0 %4825
        %4827 = vrot.lane.b32.xlu0 %v1158, 48
        %v4828 = vpop.permute.xlu0 %4827
        %4829 = vrot.lane.b32.xlu0 %v1159, 48
        %v4830 = vpop.permute.xlu0 %4829
        %v4832 = vsel %vm1579, %v4816, 0
        %v4835 = vsel %vm1579, %v4818, 0
        %v4838 = vsel %vm1579, %v4820, 0
        %v4841 = vsel %vm1579, %v4822, 0
        %v4844 = vsel %vm1579, %v4824, 0
        %v4847 = vsel %vm1579, %v4826, 0
        %v4850 = vsel %vm1579, %v4828, 0
        %v4853 = vsel %vm1579, %v4830, 0
        %4855 = vmatprep.subr.bf16.mxu0 0
        %4856 = vmatpush1.bf16.xpose.msra.mxu0 %v4213
        %4857 = vmatprep.subr.bf16.mxu0 0
        %4858 = vmatpush1.bf16.xpose.msra.mxu0 %v4216
        %4859 = vmatprep.subr.bf16.mxu0 0
        %4860 = vmatpush1.bf16.xpose.msra.mxu0 %v4219
        %4861 = vmatprep.subr.bf16.mxu0 0
        %4862 = vmatpush1.bf16.xpose.msra.mxu0 %v4222
        %4863 = vmatprep.subr.bf16.mxu0 0
        %4864 = vmatpush1.bf16.xpose.msra.mxu0 %v4225
        %4865 = vmatprep.subr.bf16.mxu0 0
        %4866 = vmatpush1.bf16.xpose.msra.mxu0 %v4228
        %4867 = vmatprep.subr.bf16.mxu0 0
        %4868 = vmatpush1.bf16.xpose.msra.mxu0 %v4231
        %4869 = vmatprep.subr.bf16.mxu0 0
        %4870 = vmatpush1.bf16.xpose.msra.mxu0 %v4234
        %4871 = vmatprep.subr.bf16.mxu0 0
        %4872 = vmatpush1.bf16.xpose.msra.mxu0 0
        %4873 = vmatprep.subr.bf16.mxu0 0
        %4874 = vmatpush1.bf16.xpose.msra.mxu0 0
        %4875 = vmatprep.subr.bf16.mxu0 0
        %4876 = vmatpush1.bf16.xpose.msra.mxu0 0
        %4877 = vmatprep.subr.bf16.mxu0 0
        %4878 = vmatpush1.bf16.xpose.msra.mxu0 0
        %4879 = vmatprep.subr.bf16.mxu0 0
        %4880 = vmatpush1.bf16.xpose.msra.mxu0 0
        %4881 = vmatprep.subr.bf16.mxu0 0
        %4882 = vmatpush1.bf16.xpose.msra.mxu0 0
        %4883 = vmatprep.subr.bf16.mxu0 0
        %4884 = vmatpush1.bf16.xpose.msra.mxu0 0
        %4885 = vmatprep.subr.bf16.mxu0 0
        %4886 = vmatpush1.bf16.xpose.msra.mxu0 0
        %4887 = vmatprep.mubr.bf16.mxu0 0
        %4888 = vmatmul.mubr.bf16.gmra.mrb[0].mxu0 %v4832
        %v4889 = vpop.f32.mrb[0].mxu0
        %v4890 = vadd.f32 0.0, %v4889
        %v4891 = vpop.f32.mrb[0].mxu0
        %v4892 = vpop.f32.mrb[0].mxu0
        %v4893 = vadd.f32 0.0, %v4892
        %v4894 = vpop.f32.mrb[0].mxu0
        %4895 = vmatprep.mubr.bf16.mxu0 0
        %4896 = vmatmul.mubr.bf16.gmra.mrb[0].mxu0 %v4835
        %v4897 = vpop.f32.mrb[0].mxu0
        %v4898 = vadd.f32 0.0, %v4897
        %v4899 = vpop.f32.mrb[0].mxu0
        %v4900 = vpop.f32.mrb[0].mxu0
        %v4901 = vadd.f32 0.0, %v4900
        %v4902 = vpop.f32.mrb[0].mxu0
        %4903 = vmatprep.mubr.bf16.mxu0 0
        %4904 = vmatmul.mubr.bf16.gmra.mrb[0].mxu0 %v4838
        %v4905 = vpop.f32.mrb[0].mxu0
        %v4906 = vadd.f32 0.0, %v4905
        %v4907 = vpop.f32.mrb[0].mxu0
        %v4908 = vpop.f32.mrb[0].mxu0
        %v4909 = vadd.f32 0.0, %v4908
        %v4910 = vpop.f32.mrb[0].mxu0
        %4911 = vmatprep.mubr.bf16.mxu0 0
        %4912 = vmatmul.mubr.bf16.gmra.mrb[0].mxu0 %v4841
        %v4913 = vpop.f32.mrb[0].mxu0
        %v4914 = vadd.f32 0.0, %v4913
        %v4915 = vpop.f32.mrb[0].mxu0
        %v4916 = vpop.f32.mrb[0].mxu0
        %v4917 = vadd.f32 0.0, %v4916
        %v4918 = vpop.f32.mrb[0].mxu0
        %4919 = vmatprep.mubr.bf16.mxu0 0
        %4920 = vmatmul.mubr.bf16.gmra.mrb[0].mxu0 %v4844
        %v4921 = vpop.f32.mrb[0].mxu0
        %v4922 = vadd.f32 0.0, %v4921
        %v4923 = vpop.f32.mrb[0].mxu0
        %v4924 = vpop.f32.mrb[0].mxu0
        %v4925 = vadd.f32 0.0, %v4924
        %v4926 = vpop.f32.mrb[0].mxu0
        %4927 = vmatprep.mubr.bf16.mxu0 0
        %4928 = vmatmul.mubr.bf16.gmra.mrb[0].mxu0 %v4847
        %v4929 = vpop.f32.mrb[0].mxu0
        %v4930 = vadd.f32 0.0, %v4929
        %v4931 = vpop.f32.mrb[0].mxu0
        %v4932 = vpop.f32.mrb[0].mxu0
        %v4933 = vadd.f32 0.0, %v4932
        %v4934 = vpop.f32.mrb[0].mxu0
        %4935 = vmatprep.mubr.bf16.mxu0 0
        %4936 = vmatmul.mubr.bf16.gmra.mrb[0].mxu0 %v4850
        %v4937 = vpop.f32.mrb[0].mxu0
        %v4938 = vadd.f32 0.0, %v4937
        %v4939 = vpop.f32.mrb[0].mxu0
        %v4940 = vpop.f32.mrb[0].mxu0
        %v4941 = vadd.f32 0.0, %v4940
        %v4942 = vpop.f32.mrb[0].mxu0
        %4943 = vmatprep.mubr.bf16.mxu0 0
        %4944 = vmatmul.mubr.bf16.gmra.mrb[0].mxu0 %v4853
        %v4945 = vpop.f32.mrb[0].mxu0
        %v4946 = vadd.f32 0.0, %v4945
        %v4947 = vpop.f32.mrb[0].mxu0
        %v4948 = vpop.f32.mrb[0].mxu0
        %v4949 = vadd.f32 0.0, %v4948
        %v4950 = vpop.f32.mrb[0].mxu0
        %4951 = vdwg.mxu0
        %4952 = vrot.lane.b32.xlu0 %v1096, 48
        %v4953 = vpop.permute.xlu0 %4952
        %4954 = vrot.lane.b32.xlu0 %v1097, 48
        %v4955 = vpop.permute.xlu0 %4954
        %4956 = vrot.lane.b32.xlu0 %v1098, 48
        %v4957 = vpop.permute.xlu0 %4956
        %4958 = vrot.lane.b32.xlu0 %v1099, 48
        %v4959 = vpop.permute.xlu0 %4958
        %4960 = vrot.lane.b32.xlu0 %v1100, 48
        %v4961 = vpop.permute.xlu0 %4960
        %4962 = vrot.lane.b32.xlu0 %v1101, 48
        %v4963 = vpop.permute.xlu0 %4962
        %4964 = vrot.lane.b32.xlu0 %v1102, 48
        %v4965 = vpop.permute.xlu0 %4964
        %4966 = vrot.lane.b32.xlu0 %v1103, 48
        %v4967 = vpop.permute.xlu0 %4966
        %v4969 = vsel %vm1579, %v4953, 0
        %v4972 = vsel %vm1579, %v4955, 0
        %v4975 = vsel %vm1579, %v4957, 0
        %v4978 = vsel %vm1579, %v4959, 0
        %v4981 = vsel %vm1579, %v4961, 0
        %v4984 = vsel %vm1579, %v4963, 0
        %v4987 = vsel %vm1579, %v4965, 0
        %v4990 = vsel %vm1579, %v4967, 0
        %4992 = vmatprep.subr.bf16.mxu0 0
        %4993 = vmatpush1.bf16.xpose.msra.mxu0 %v4390
        %4994 = vmatprep.subr.bf16.mxu0 0
        %4995 = vmatpush1.bf16.xpose.msra.mxu0 %v4393
        %4996 = vmatprep.subr.bf16.mxu0 0
        %4997 = vmatpush1.bf16.xpose.msra.mxu0 %v4396
        %4998 = vmatprep.subr.bf16.mxu0 0
        %4999 = vmatpush1.bf16.xpose.msra.mxu0 %v4399
        %5000 = vmatprep.subr.bf16.mxu0 0
        %5001 = vmatpush1.bf16.xpose.msra.mxu0 %v4402
        %5002 = vmatprep.subr.bf16.mxu0 0
        %5003 = vmatpush1.bf16.xpose.msra.mxu0 %v4405
        %5004 = vmatprep.subr.bf16.mxu0 0
        %5005 = vmatpush1.bf16.xpose.msra.mxu0 %v4408
        %5006 = vmatprep.subr.bf16.mxu0 0
        %5007 = vmatpush1.bf16.xpose.msra.mxu0 %v4411
        %5008 = vmatprep.subr.bf16.mxu0 0
        %5009 = vmatpush1.bf16.xpose.msra.mxu0 0
        %5010 = vmatprep.subr.bf16.mxu0 0
        %5011 = vmatpush1.bf16.xpose.msra.mxu0 0
        %5012 = vmatprep.subr.bf16.mxu0 0
        %5013 = vmatpush1.bf16.xpose.msra.mxu0 0
        %5014 = vmatprep.subr.bf16.mxu0 0
        %5015 = vmatpush1.bf16.xpose.msra.mxu0 0
        %5016 = vmatprep.subr.bf16.mxu0 0
        %5017 = vmatpush1.bf16.xpose.msra.mxu0 0
        %5018 = vmatprep.subr.bf16.mxu0 0
        %5019 = vmatpush1.bf16.xpose.msra.mxu0 0
        %5020 = vmatprep.subr.bf16.mxu0 0
        %5021 = vmatpush1.bf16.xpose.msra.mxu0 0
        %5022 = vmatprep.subr.bf16.mxu0 0
        %5023 = vmatpush1.bf16.xpose.msra.mxu0 0
        %5024 = vmatprep.mubr.bf16.mxu0 0
        %5025 = vmatmul.mubr.bf16.gmra.mrb[0].mxu0 %v4969
        %v5026 = vpop.f32.mrb[0].mxu0
        %v5027 = vadd.f32 %v4890, %v5026
        %v5028 = vpop.f32.mrb[0].mxu0
        %v5029 = vpop.f32.mrb[0].mxu0
        %v5030 = vadd.f32 %v4893, %v5029
        %v5031 = vpop.f32.mrb[0].mxu0
        %5032 = vmatprep.mubr.bf16.mxu0 0
        %5033 = vmatmul.mubr.bf16.gmra.mrb[0].mxu0 %v4972
        %v5034 = vpop.f32.mrb[0].mxu0
        %v5035 = vadd.f32 %v4898, %v5034
        %v5036 = vpop.f32.mrb[0].mxu0
        %v5037 = vpop.f32.mrb[0].mxu0
        %v5038 = vadd.f32 %v4901, %v5037
        %v5039 = vpop.f32.mrb[0].mxu0
        %5040 = vmatprep.mubr.bf16.mxu0 0
        %5041 = vmatmul.mubr.bf16.gmra.mrb[0].mxu0 %v4975
        %v5042 = vpop.f32.mrb[0].mxu0
        %v5043 = vadd.f32 %v4906, %v5042
        %v5044 = vpop.f32.mrb[0].mxu0
        %v5045 = vpop.f32.mrb[0].mxu0
        %v5046 = vadd.f32 %v4909, %v5045
        %v5047 = vpop.f32.mrb[0].mxu0
        %5048 = vmatprep.mubr.bf16.mxu0 0
        %5049 = vmatmul.mubr.bf16.gmra.mrb[0].mxu0 %v4978
        %v5050 = vpop.f32.mrb[0].mxu0
        %v5051 = vadd.f32 %v4914, %v5050
        %v5052 = vpop.f32.mrb[0].mxu0
        %v5053 = vpop.f32.mrb[0].mxu0
        %v5054 = vadd.f32 %v4917, %v5053
        %v5055 = vpop.f32.mrb[0].mxu0
        %5056 = vmatprep.mubr.bf16.mxu0 0
        %5057 = vmatmul.mubr.bf16.gmra.mrb[0].mxu0 %v4981
        %v5058 = vpop.f32.mrb[0].mxu0
        %v5059 = vadd.f32 %v4922, %v5058
        %v5060 = vpop.f32.mrb[0].mxu0
        %v5061 = vpop.f32.mrb[0].mxu0
        %v5062 = vadd.f32 %v4925, %v5061
        %v5063 = vpop.f32.mrb[0].mxu0
        %5064 = vmatprep.mubr.bf16.mxu0 0
        %5065 = vmatmul.mubr.bf16.gmra.mrb[0].mxu0 %v4984
        %v5066 = vpop.f32.mrb[0].mxu0
        %v5067 = vadd.f32 %v4930, %v5066
        %v5068 = vpop.f32.mrb[0].mxu0
        %v5069 = vpop.f32.mrb[0].mxu0
        %v5070 = vadd.f32 %v4933, %v5069
        %v5071 = vpop.f32.mrb[0].mxu0
        %5072 = vmatprep.mubr.bf16.mxu0 0
        %5073 = vmatmul.mubr.bf16.gmra.mrb[0].mxu0 %v4987
        %v5074 = vpop.f32.mrb[0].mxu0
        %v5075 = vadd.f32 %v4938, %v5074
        %v5076 = vpop.f32.mrb[0].mxu0
        %v5077 = vpop.f32.mrb[0].mxu0
        %v5078 = vadd.f32 %v4941, %v5077
        %v5079 = vpop.f32.mrb[0].mxu0
        %5080 = vmatprep.mubr.bf16.mxu0 0
        %5081 = vmatmul.mubr.bf16.gmra.mrb[0].mxu0 %v4990
        %v5082 = vpop.f32.mrb[0].mxu0
        %v5083 = vadd.f32 %v4946, %v5082
        %v5084 = vpop.f32.mrb[0].mxu0
        %v5085 = vpop.f32.mrb[0].mxu0
        %v5086 = vadd.f32 %v4949, %v5085
        %v5087 = vpop.f32.mrb[0].mxu0
        %5088 = vdwg.mxu0
        %v5089 = vadd.f32 %v5027, %v1563
        %v5090 = vadd.f32 %v5030, %v1564
        %v5091 = vadd.f32 %v5035, %v1565
        %v5092 = vadd.f32 %v5038, %v1566
        %v5093 = vadd.f32 %v5043, %v1567
        %v5094 = vadd.f32 %v5046, %v1568
        %v5095 = vadd.f32 %v5051, %v1569
        %v5096 = vadd.f32 %v5054, %v1570
        %v5097 = vadd.f32 %v5059, %v1571
        %v5098 = vadd.f32 %v5062, %v1572
        %v5099 = vadd.f32 %v5067, %v1573
        %v5100 = vadd.f32 %v5070, %v1574
        %v5101 = vadd.f32 %v5075, %v1575
        %v5102 = vadd.f32 %v5078, %v1576
        %v5103 = vadd.f32 %v5083, %v1577
        %v5104 = vadd.f32 %v5086, %v1578
        %5105 = vmax.xlane.f32.xlu0 %v5089
        %v5106 = vpop.xlane.xlu0 %5105
        %5107 = vmax.xlane.f32.xlu0 %v5090
        %v5108 = vpop.xlane.xlu0 %5107
        %5109 = vmax.xlane.f32.xlu0 %v5091
        %v5110 = vpop.xlane.xlu0 %5109
        %5111 = vmax.xlane.f32.xlu0 %v5092
        %v5112 = vpop.xlane.xlu0 %5111
        %5113 = vmax.xlane.f32.xlu0 %v5093
        %v5114 = vpop.xlane.xlu0 %5113
        %5115 = vmax.xlane.f32.xlu0 %v5094
        %v5116 = vpop.xlane.xlu0 %5115
        %5117 = vmax.xlane.f32.xlu0 %v5095
        %v5118 = vpop.xlane.xlu0 %5117
        %5119 = vmax.xlane.f32.xlu0 %v5096
        %v5120 = vpop.xlane.xlu0 %5119
        %5121 = vmax.xlane.f32.xlu0 %v5097
        %v5122 = vpop.xlane.xlu0 %5121
        %5123 = vmax.xlane.f32.xlu0 %v5098
        %v5124 = vpop.xlane.xlu0 %5123
        %5125 = vmax.xlane.f32.xlu0 %v5099
        %v5126 = vpop.xlane.xlu0 %5125
        %5127 = vmax.xlane.f32.xlu0 %v5100
        %v5128 = vpop.xlane.xlu0 %5127
        %5129 = vmax.xlane.f32.xlu0 %v5101
        %v5130 = vpop.xlane.xlu0 %5129
        %5131 = vmax.xlane.f32.xlu0 %v5102
        %v5132 = vpop.xlane.xlu0 %5131
        %5133 = vmax.xlane.f32.xlu0 %v5103
        %v5134 = vpop.xlane.xlu0 %5133
        %5135 = vmax.xlane.f32.xlu0 %v5104
        %v5136 = vpop.xlane.xlu0 %5135
        %v5137 = vsub.f32 %v5089, %v5106
        %v5138 = vsub.f32 %v5090, %v5108
        %v5139 = vsub.f32 %v5091, %v5110
        %v5140 = vsub.f32 %v5092, %v5112
        %v5141 = vsub.f32 %v5093, %v5114
        %v5142 = vsub.f32 %v5094, %v5116
        %v5143 = vsub.f32 %v5095, %v5118
        %v5144 = vsub.f32 %v5096, %v5120
        %v5145 = vsub.f32 %v5097, %v5122
        %v5146 = vsub.f32 %v5098, %v5124
        %v5147 = vsub.f32 %v5099, %v5126
        %v5148 = vsub.f32 %v5100, %v5128
        %v5149 = vsub.f32 %v5101, %v5130
        %v5150 = vsub.f32 %v5102, %v5132
        %v5151 = vsub.f32 %v5103, %v5134
        %v5152 = vsub.f32 %v5104, %v5136
        %v5153 = vmul.f32 %v5137, 1.442695
        %v5154 = vpow.pop %v5153
        %v5155 = vmul.f32 %v5138, 1.442695
        %v5156 = vpow.pop %v5155
        %v5157 = vmul.f32 %v5139, 1.442695
        %v5158 = vpow.pop %v5157
        %v5159 = vmul.f32 %v5140, 1.442695
        %v5160 = vpow.pop %v5159
        %v5161 = vmul.f32 %v5141, 1.442695
        %v5162 = vpow.pop %v5161
        %v5163 = vmul.f32 %v5142, 1.442695
        %v5164 = vpow.pop %v5163
        %v5165 = vmul.f32 %v5143, 1.442695
        %v5166 = vpow.pop %v5165
        %v5167 = vmul.f32 %v5144, 1.442695
        %v5168 = vpow.pop %v5167
        %v5169 = vmul.f32 %v5145, 1.442695
        %v5170 = vpow.pop %v5169
        %v5171 = vmul.f32 %v5146, 1.442695
        %v5172 = vpow.pop %v5171
        %v5173 = vmul.f32 %v5147, 1.442695
        %v5174 = vpow.pop %v5173
        %v5175 = vmul.f32 %v5148, 1.442695
        %v5176 = vpow.pop %v5175
        %v5177 = vmul.f32 %v5149, 1.442695
        %v5178 = vpow.pop %v5177
        %v5179 = vmul.f32 %v5150, 1.442695
        %v5180 = vpow.pop %v5179
        %v5181 = vmul.f32 %v5151, 1.442695
        %v5182 = vpow.pop %v5181
        %v5183 = vmul.f32 %v5152, 1.442695
        %v5184 = vpow.pop %v5183
        %5185 = vadd.xlane.f32.xlu0 %v5154
        %v5186 = vpop.xlane.xlu0 %5185
        %5187 = vadd.xlane.f32.xlu0 %v5156
        %v5188 = vpop.xlane.xlu0 %5187
        %5189 = vadd.xlane.f32.xlu0 %v5158
        %v5190 = vpop.xlane.xlu0 %5189
        %5191 = vadd.xlane.f32.xlu0 %v5160
        %v5192 = vpop.xlane.xlu0 %5191
        %5193 = vadd.xlane.f32.xlu0 %v5162
        %v5194 = vpop.xlane.xlu0 %5193
        %5195 = vadd.xlane.f32.xlu0 %v5164
        %v5196 = vpop.xlane.xlu0 %5195
        %5197 = vadd.xlane.f32.xlu0 %v5166
        %v5198 = vpop.xlane.xlu0 %5197
        %5199 = vadd.xlane.f32.xlu0 %v5168
        %v5200 = vpop.xlane.xlu0 %5199
        %5201 = vadd.xlane.f32.xlu0 %v5170
        %v5202 = vpop.xlane.xlu0 %5201
        %5203 = vadd.xlane.f32.xlu0 %v5172
        %v5204 = vpop.xlane.xlu0 %5203
        %5205 = vadd.xlane.f32.xlu0 %v5174
        %v5206 = vpop.xlane.xlu0 %5205
        %5207 = vadd.xlane.f32.xlu0 %v5176
        %v5208 = vpop.xlane.xlu0 %5207
        %5209 = vadd.xlane.f32.xlu0 %v5178
        %v5210 = vpop.xlane.xlu0 %5209
        %5211 = vadd.xlane.f32.xlu0 %v5180
        %v5212 = vpop.xlane.xlu0 %5211
        %5213 = vadd.xlane.f32.xlu0 %v5182
        %v5214 = vpop.xlane.xlu0 %5213
        %5215 = vadd.xlane.f32.xlu0 %v5184
        %v5216 = vpop.xlane.xlu0 %5215
        %v5217 = vpack.c.bf16 %v5156, %v5154
        %v5218 = vpack.c.bf16 %v5160, %v5158
        %v5219 = vpack.c.bf16 %v5164, %v5162
        %v5220 = vpack.c.bf16 %v5168, %v5166
        %v5221 = vpack.c.bf16 %v5172, %v5170
        %v5222 = vpack.c.bf16 %v5176, %v5174
        %v5223 = vpack.c.bf16 %v5180, %v5178
        %v5224 = vpack.c.bf16 %v5184, %v5182
        %5225 = vmatprep.subr.bf16.mxu0 0
        %5226 = vmatpush1.bf16.msra.mxu0 %v4647
        %5227 = vmatprep.subr.bf16.mxu0 0
        %5228 = vmatpush1.bf16.msra.mxu0 %v4649
        %5229 = vmatprep.subr.bf16.mxu0 0
        %5230 = vmatpush1.bf16.msra.mxu0 %v4651
        %5231 = vmatprep.subr.bf16.mxu0 0
        %5232 = vmatpush1.bf16.msra.mxu0 %v4653
        %5233 = vmatprep.subr.bf16.mxu0 0
        %5234 = vmatpush1.bf16.msra.mxu0 %v4655
        %5235 = vmatprep.subr.bf16.mxu0 0
        %5236 = vmatpush1.bf16.msra.mxu0 %v4657
        %5237 = vmatprep.subr.bf16.mxu0 0
        %5238 = vmatpush1.bf16.msra.mxu0 %v4659
        %5239 = vmatprep.subr.bf16.mxu0 0
        %5240 = vmatpush1.bf16.msra.mxu0 %v4661
        %5241 = vmatprep.subr.bf16.mxu0 0
        %5242 = vmatpush1.bf16.msra.mxu0 0
        %5243 = vmatprep.subr.bf16.mxu0 0
        %5244 = vmatpush1.bf16.msra.mxu0 0
        %5245 = vmatprep.subr.bf16.mxu0 0
        %5246 = vmatpush1.bf16.msra.mxu0 0
        %5247 = vmatprep.subr.bf16.mxu0 0
        %5248 = vmatpush1.bf16.msra.mxu0 0
        %5249 = vmatprep.subr.bf16.mxu0 0
        %5250 = vmatpush1.bf16.msra.mxu0 0
        %5251 = vmatprep.subr.bf16.mxu0 0
        %5252 = vmatpush1.bf16.msra.mxu0 0
        %5253 = vmatprep.subr.bf16.mxu0 0
        %5254 = vmatpush1.bf16.msra.mxu0 0
        %5255 = vmatprep.subr.bf16.mxu0 0
        %5256 = vmatpush1.bf16.msra.mxu0 0
        %5257 = vmatprep.mubr.bf16.mxu0 0
        %5258 = vmatmul.mubr.bf16.gmra.mrb[0].mxu0 %v5217
        %v5259 = vpop.f32.mrb[0].mxu0
        %v5260 = vadd.f32 0.0, %v5259
        %v5261 = vpop.f32.mrb[0].mxu0
        %v5262 = vpop.f32.mrb[0].mxu0
        %v5263 = vadd.f32 0.0, %v5262
        %v5264 = vpop.f32.mrb[0].mxu0
        %5265 = vmatprep.mubr.bf16.mxu0 0
        %5266 = vmatmul.mubr.bf16.gmra.mrb[0].mxu0 %v5218
        %v5267 = vpop.f32.mrb[0].mxu0
        %v5268 = vadd.f32 0.0, %v5267
        %v5269 = vpop.f32.mrb[0].mxu0
        %v5270 = vpop.f32.mrb[0].mxu0
        %v5271 = vadd.f32 0.0, %v5270
        %v5272 = vpop.f32.mrb[0].mxu0
        %5273 = vmatprep.mubr.bf16.mxu0 0
        %5274 = vmatmul.mubr.bf16.gmra.mrb[0].mxu0 %v5219
        %v5275 = vpop.f32.mrb[0].mxu0
        %v5276 = vadd.f32 0.0, %v5275
        %v5277 = vpop.f32.mrb[0].mxu0
        %v5278 = vpop.f32.mrb[0].mxu0
        %v5279 = vadd.f32 0.0, %v5278
        %v5280 = vpop.f32.mrb[0].mxu0
        %5281 = vmatprep.mubr.bf16.mxu0 0
        %5282 = vmatmul.mubr.bf16.gmra.mrb[0].mxu0 %v5220
        %v5283 = vpop.f32.mrb[0].mxu0
        %v5284 = vadd.f32 0.0, %v5283
        %v5285 = vpop.f32.mrb[0].mxu0
        %v5286 = vpop.f32.mrb[0].mxu0
        %v5287 = vadd.f32 0.0, %v5286
        %v5288 = vpop.f32.mrb[0].mxu0
        %5289 = vmatprep.mubr.bf16.mxu0 0
        %5290 = vmatmul.mubr.bf16.gmra.mrb[0].mxu0 %v5221
        %v5291 = vpop.f32.mrb[0].mxu0
        %v5292 = vadd.f32 0.0, %v5291
        %v5293 = vpop.f32.mrb[0].mxu0
        %v5294 = vpop.f32.mrb[0].mxu0
        %v5295 = vadd.f32 0.0, %v5294
        %v5296 = vpop.f32.mrb[0].mxu0
        %5297 = vmatprep.mubr.bf16.mxu0 0
        %5298 = vmatmul.mubr.bf16.gmra.mrb[0].mxu0 %v5222
        %v5299 = vpop.f32.mrb[0].mxu0
        %v5300 = vadd.f32 0.0, %v5299
        %v5301 = vpop.f32.mrb[0].mxu0
        %v5302 = vpop.f32.mrb[0].mxu0
        %v5303 = vadd.f32 0.0, %v5302
        %v5304 = vpop.f32.mrb[0].mxu0
        %5305 = vmatprep.mubr.bf16.mxu0 0
        %5306 = vmatmul.mubr.bf16.gmra.mrb[0].mxu0 %v5223
        %v5307 = vpop.f32.mrb[0].mxu0
        %v5308 = vadd.f32 0.0, %v5307
        %v5309 = vpop.f32.mrb[0].mxu0
        %v5310 = vpop.f32.mrb[0].mxu0
        %v5311 = vadd.f32 0.0, %v5310
        %v5312 = vpop.f32.mrb[0].mxu0
        %5313 = vmatprep.mubr.bf16.mxu0 0
        %5314 = vmatmul.mubr.bf16.gmra.mrb[0].mxu0 %v5224
        %v5315 = vpop.f32.mrb[0].mxu0
        %v5316 = vadd.f32 0.0, %v5315
        %v5317 = vpop.f32.mrb[0].mxu0
        %v5318 = vpop.f32.mrb[0].mxu0
        %v5319 = vadd.f32 0.0, %v5318
        %v5320 = vpop.f32.mrb[0].mxu0
        %5321 = vdwg.mxu0
        %v5322 = vrcp.pop %v5186
        %v5323 = vrcp.pop %v5188
        %v5324 = vrcp.pop %v5190
        %v5325 = vrcp.pop %v5192
        %v5326 = vrcp.pop %v5194
        %v5327 = vrcp.pop %v5196
        %v5328 = vrcp.pop %v5198
        %v5329 = vrcp.pop %v5200
        %v5330 = vrcp.pop %v5202
        %v5331 = vrcp.pop %v5204
        %v5332 = vrcp.pop %v5206
        %v5333 = vrcp.pop %v5208
        %v5334 = vrcp.pop %v5210
        %v5335 = vrcp.pop %v5212
        %v5336 = vrcp.pop %v5214
        %v5337 = vrcp.pop %v5216
        %v5338 = vmul.f32 %v5260, %v5322
        %v5339 = vmul.f32 %v5263, %v5323
        %v5340 = vmul.f32 %v5268, %v5324
        %v5341 = vmul.f32 %v5271, %v5325
        %v5342 = vmul.f32 %v5276, %v5326
        %v5343 = vmul.f32 %v5279, %v5327
        %v5344 = vmul.f32 %v5284, %v5328
        %v5345 = vmul.f32 %v5287, %v5329
        %v5346 = vmul.f32 %v5292, %v5330
        %v5347 = vmul.f32 %v5295, %v5331
        %v5348 = vmul.f32 %v5300, %v5332
        %v5349 = vmul.f32 %v5303, %v5333
        %v5350 = vmul.f32 %v5308, %v5334
        %v5351 = vmul.f32 %v5311, %v5335
        %v5352 = vmul.f32 %v5316, %v5336
        %v5353 = vmul.f32 %v5319, %v5337
        %5370 = vrot.lane.b32.xlu0 %v5338, 32
        %v5371 = vpop.permute.xlu0 %5370
        %5372 = vrot.lane.b32.xlu0 %v5339, 32
        %v5373 = vpop.permute.xlu0 %5372
        %5374 = vrot.lane.b32.xlu0 %v5340, 32
        %v5375 = vpop.permute.xlu0 %5374
        %5376 = vrot.lane.b32.xlu0 %v5341, 32
        %v5377 = vpop.permute.xlu0 %5376
        %5378 = vrot.lane.b32.xlu0 %v5342, 32
        %v5379 = vpop.permute.xlu0 %5378
        %5380 = vrot.lane.b32.xlu0 %v5343, 32
        %v5381 = vpop.permute.xlu0 %5380
        %5382 = vrot.lane.b32.xlu0 %v5344, 32
        %v5383 = vpop.permute.xlu0 %5382
        %5384 = vrot.lane.b32.xlu0 %v5345, 32
        %v5385 = vpop.permute.xlu0 %5384
        %5386 = vrot.lane.b32.xlu0 %v5346, 32
        %v5387 = vpop.permute.xlu0 %5386
        %5388 = vrot.lane.b32.xlu0 %v5347, 32
        %v5389 = vpop.permute.xlu0 %5388
        %5390 = vrot.lane.b32.xlu0 %v5348, 32
        %v5391 = vpop.permute.xlu0 %5390
        %5392 = vrot.lane.b32.xlu0 %v5349, 32
        %v5393 = vpop.permute.xlu0 %5392
        %5394 = vrot.lane.b32.xlu0 %v5350, 32
        %v5395 = vpop.permute.xlu0 %5394
        %5396 = vrot.lane.b32.xlu0 %v5351, 32
        %v5397 = vpop.permute.xlu0 %5396
        %5398 = vrot.lane.b32.xlu0 %v5352, 32
        %v5399 = vpop.permute.xlu0 %5398
        %5400 = vrot.lane.b32.xlu0 %v5353, 32
        %v5401 = vpop.permute.xlu0 %5400
        %5418 = vst.msk [vmem:[#allocation2 + $0x8] sm:$0xff] %vm2771, %v5371
        %5419 = vst.msk [vmem:[#allocation2 + $0x18] sm:$0xff] %vm2771, %v5373
        %5420 = vst.msk [vmem:[#allocation2 + $0x28] sm:$0xff] %vm2771, %v5375
        %5421 = vst.msk [vmem:[#allocation2 + $0x38] sm:$0xff] %vm2771, %v5377
        %5422 = vst.msk [vmem:[#allocation2 + $0x48] sm:$0xff] %vm2771, %v5379
        %5423 = vst.msk [vmem:[#allocation2 + $0x58] sm:$0xff] %vm2771, %v5381
        %5424 = vst.msk [vmem:[#allocation2 + $0x68] sm:$0xff] %vm2771, %v5383
        %5425 = vst.msk [vmem:[#allocation2 + $0x78] sm:$0xff] %vm2771, %v5385
        %5426 = vst.msk [vmem:[#allocation2 + $0x88] sm:$0xff] %vm2771, %v5387
        %5427 = vst.msk [vmem:[#allocation2 + $0x98] sm:$0xff] %vm2771, %v5389
        %5428 = vst.msk [vmem:[#allocation2 + $0xa8] sm:$0xff] %vm2771, %v5391
        %5429 = vst.msk [vmem:[#allocation2 + $0xb8] sm:$0xff] %vm2771, %v5393
        %5430 = vst.msk [vmem:[#allocation2 + $0xc8] sm:$0xff] %vm2771, %v5395
        %5431 = vst.msk [vmem:[#allocation2 + $0xd8] sm:$0xff] %vm2771, %v5397
        %5432 = vst.msk [vmem:[#allocation2 + $0xe8] sm:$0xff] %vm2771, %v5399
        %5433 = vst.msk [vmem:[#allocation2 + $0xf8] sm:$0xff] %vm2771, %v5401
        %5434 = vrot.lane.b32.xlu0 %v1152, 32
        %v5435 = vpop.permute.xlu0 %5434
        %5436 = vrot.lane.b32.xlu0 %v1153, 32
        %v5437 = vpop.permute.xlu0 %5436
        %5438 = vrot.lane.b32.xlu0 %v1154, 32
        %v5439 = vpop.permute.xlu0 %5438
        %5440 = vrot.lane.b32.xlu0 %v1155, 32
        %v5441 = vpop.permute.xlu0 %5440
        %5442 = vrot.lane.b32.xlu0 %v1156, 32
        %v5443 = vpop.permute.xlu0 %5442
        %5444 = vrot.lane.b32.xlu0 %v1157, 32
        %v5445 = vpop.permute.xlu0 %5444
        %5446 = vrot.lane.b32.xlu0 %v1158, 32
        %v5447 = vpop.permute.xlu0 %5446
        %5448 = vrot.lane.b32.xlu0 %v1159, 32
        %v5449 = vpop.permute.xlu0 %5448
        %5450 = vrot.lane.b32.xlu0 %v1520, 80
        %v5451 = vpop.permute.xlu0 %5450
        %5452 = vrot.lane.b32.xlu0 %v1521, 80
        %v5453 = vpop.permute.xlu0 %5452
        %5454 = vrot.lane.b32.xlu0 %v1522, 80
        %v5455 = vpop.permute.xlu0 %5454
        %5456 = vrot.lane.b32.xlu0 %v1523, 80
        %v5457 = vpop.permute.xlu0 %5456
        %5458 = vrot.lane.b32.xlu0 %v1524, 80
        %v5459 = vpop.permute.xlu0 %5458
        %5460 = vrot.lane.b32.xlu0 %v1525, 80
        %v5461 = vpop.permute.xlu0 %5460
        %5462 = vrot.lane.b32.xlu0 %v1526, 80
        %v5463 = vpop.permute.xlu0 %5462
        %5464 = vrot.lane.b32.xlu0 %v1527, 80
        %v5465 = vpop.permute.xlu0 %5464
        %v5467 = vsel %vm1579, %v5435, 0
        %v5470 = vsel %vm1579, %v5437, 0
        %v5473 = vsel %vm1579, %v5439, 0
        %v5476 = vsel %vm1579, %v5441, 0
        %v5479 = vsel %vm1579, %v5443, 0
        %v5482 = vsel %vm1579, %v5445, 0
        %v5485 = vsel %vm1579, %v5447, 0
        %v5488 = vsel %vm1579, %v5449, 0
        %v5491 = vsel %vm1579, %v5451, 0
        %v5494 = vsel %vm1579, %v5453, 0
        %v5497 = vsel %vm1579, %v5455, 0
        %v5500 = vsel %vm1579, %v5457, 0
        %v5503 = vsel %vm1579, %v5459, 0
        %v5506 = vsel %vm1579, %v5461, 0
        %v5509 = vsel %vm1579, %v5463, 0
        %v5512 = vsel %vm1579, %v5465, 0
        %5514 = vmatprep.subr.bf16.mxu0 0
        %5515 = vmatpush1.bf16.xpose.msra.mxu0 %v5491
        %5516 = vmatprep.subr.bf16.mxu0 0
        %5517 = vmatpush1.bf16.xpose.msra.mxu0 %v5494
        %5518 = vmatprep.subr.bf16.mxu0 0
        %5519 = vmatpush1.bf16.xpose.msra.mxu0 %v5497
        %5520 = vmatprep.subr.bf16.mxu0 0
        %5521 = vmatpush1.bf16.xpose.msra.mxu0 %v5500
        %5522 = vmatprep.subr.bf16.mxu0 0
        %5523 = vmatpush1.bf16.xpose.msra.mxu0 %v5503
        %5524 = vmatprep.subr.bf16.mxu0 0
        %5525 = vmatpush1.bf16.xpose.msra.mxu0 %v5506
        %5526 = vmatprep.subr.bf16.mxu0 0
        %5527 = vmatpush1.bf16.xpose.msra.mxu0 %v5509
        %5528 = vmatprep.subr.bf16.mxu0 0
        %5529 = vmatpush1.bf16.xpose.msra.mxu0 %v5512
        %5530 = vmatprep.subr.bf16.mxu0 0
        %5531 = vmatpush1.bf16.xpose.msra.mxu0 0
        %5532 = vmatprep.subr.bf16.mxu0 0
        %5533 = vmatpush1.bf16.xpose.msra.mxu0 0
        %5534 = vmatprep.subr.bf16.mxu0 0
        %5535 = vmatpush1.bf16.xpose.msra.mxu0 0
        %5536 = vmatprep.subr.bf16.mxu0 0
        %5537 = vmatpush1.bf16.xpose.msra.mxu0 0
        %5538 = vmatprep.subr.bf16.mxu0 0
        %5539 = vmatpush1.bf16.xpose.msra.mxu0 0
        %5540 = vmatprep.subr.bf16.mxu0 0
        %5541 = vmatpush1.bf16.xpose.msra.mxu0 0
        %5542 = vmatprep.subr.bf16.mxu0 0
        %5543 = vmatpush1.bf16.xpose.msra.mxu0 0
        %5544 = vmatprep.subr.bf16.mxu0 0
        %5545 = vmatpush1.bf16.xpose.msra.mxu0 0
        %5546 = vmatprep.mubr.bf16.mxu0 0
        %5547 = vmatmul.mubr.bf16.gmra.mrb[0].mxu0 %v5467
        %v5548 = vpop.f32.mrb[0].mxu0
        %v5549 = vadd.f32 0.0, %v5548
        %v5550 = vpop.f32.mrb[0].mxu0
        %v5551 = vpop.f32.mrb[0].mxu0
        %v5552 = vadd.f32 0.0, %v5551
        %v5553 = vpop.f32.mrb[0].mxu0
        %5554 = vmatprep.mubr.bf16.mxu0 0
        %5555 = vmatmul.mubr.bf16.gmra.mrb[0].mxu0 %v5470
        %v5556 = vpop.f32.mrb[0].mxu0
        %v5557 = vadd.f32 0.0, %v5556
        %v5558 = vpop.f32.mrb[0].mxu0
        %v5559 = vpop.f32.mrb[0].mxu0
        %v5560 = vadd.f32 0.0, %v5559
        %v5561 = vpop.f32.mrb[0].mxu0
        %5562 = vmatprep.mubr.bf16.mxu0 0
        %5563 = vmatmul.mubr.bf16.gmra.mrb[0].mxu0 %v5473
        %v5564 = vpop.f32.mrb[0].mxu0
        %v5565 = vadd.f32 0.0, %v5564
        %v5566 = vpop.f32.mrb[0].mxu0
        %v5567 = vpop.f32.mrb[0].mxu0
        %v5568 = vadd.f32 0.0, %v5567
        %v5569 = vpop.f32.mrb[0].mxu0
        %5570 = vmatprep.mubr.bf16.mxu0 0
        %5571 = vmatmul.mubr.bf16.gmra.mrb[0].mxu0 %v5476
        %v5572 = vpop.f32.mrb[0].mxu0
        %v5573 = vadd.f32 0.0, %v5572
        %v5574 = vpop.f32.mrb[0].mxu0
        %v5575 = vpop.f32.mrb[0].mxu0
        %v5576 = vadd.f32 0.0, %v5575
        %v5577 = vpop.f32.mrb[0].mxu0
        %5578 = vmatprep.mubr.bf16.mxu0 0
        %5579 = vmatmul.mubr.bf16.gmra.mrb[0].mxu0 %v5479
        %v5580 = vpop.f32.mrb[0].mxu0
        %v5581 = vadd.f32 0.0, %v5580
        %v5582 = vpop.f32.mrb[0].mxu0
        %v5583 = vpop.f32.mrb[0].mxu0
        %v5584 = vadd.f32 0.0, %v5583
        %v5585 = vpop.f32.mrb[0].mxu0
        %5586 = vmatprep.mubr.bf16.mxu0 0
        %5587 = vmatmul.mubr.bf16.gmra.mrb[0].mxu0 %v5482
        %v5588 = vpop.f32.mrb[0].mxu0
        %v5589 = vadd.f32 0.0, %v5588
        %v5590 = vpop.f32.mrb[0].mxu0
        %v5591 = vpop.f32.mrb[0].mxu0
        %v5592 = vadd.f32 0.0, %v5591
        %v5593 = vpop.f32.mrb[0].mxu0
        %5594 = vmatprep.mubr.bf16.mxu0 0
        %5595 = vmatmul.mubr.bf16.gmra.mrb[0].mxu0 %v5485
        %v5596 = vpop.f32.mrb[0].mxu0
        %v5597 = vadd.f32 0.0, %v5596
        %v5598 = vpop.f32.mrb[0].mxu0
        %v5599 = vpop.f32.mrb[0].mxu0
        %v5600 = vadd.f32 0.0, %v5599
        %v5601 = vpop.f32.mrb[0].mxu0
        %5602 = vmatprep.mubr.bf16.mxu0 0
        %5603 = vmatmul.mubr.bf16.gmra.mrb[0].mxu0 %v5488
        %v5604 = vpop.f32.mrb[0].mxu0
        %v5605 = vadd.f32 0.0, %v5604
        %v5606 = vpop.f32.mrb[0].mxu0
        %v5607 = vpop.f32.mrb[0].mxu0
        %v5608 = vadd.f32 0.0, %v5607
        %v5609 = vpop.f32.mrb[0].mxu0
        %5610 = vdwg.mxu0
        %5611 = vrot.lane.b32.xlu0 %v1096, 32
        %v5612 = vpop.permute.xlu0 %5611
        %5613 = vrot.lane.b32.xlu0 %v1097, 32
        %v5614 = vpop.permute.xlu0 %5613
        %5615 = vrot.lane.b32.xlu0 %v1098, 32
        %v5616 = vpop.permute.xlu0 %5615
        %5617 = vrot.lane.b32.xlu0 %v1099, 32
        %v5618 = vpop.permute.xlu0 %5617
        %5619 = vrot.lane.b32.xlu0 %v1100, 32
        %v5620 = vpop.permute.xlu0 %5619
        %5621 = vrot.lane.b32.xlu0 %v1101, 32
        %v5622 = vpop.permute.xlu0 %5621
        %5623 = vrot.lane.b32.xlu0 %v1102, 32
        %v5624 = vpop.permute.xlu0 %5623
        %5625 = vrot.lane.b32.xlu0 %v1103, 32
        %v5626 = vpop.permute.xlu0 %5625
        %5627 = vrot.lane.b32.xlu0 %v1336, 80
        %v5628 = vpop.permute.xlu0 %5627
        %5629 = vrot.lane.b32.xlu0 %v1337, 80
        %v5630 = vpop.permute.xlu0 %5629
        %5631 = vrot.lane.b32.xlu0 %v1338, 80
        %v5632 = vpop.permute.xlu0 %5631
        %5633 = vrot.lane.b32.xlu0 %v1339, 80
        %v5634 = vpop.permute.xlu0 %5633
        %5635 = vrot.lane.b32.xlu0 %v1340, 80
        %v5636 = vpop.permute.xlu0 %5635
        %5637 = vrot.lane.b32.xlu0 %v1341, 80
        %v5638 = vpop.permute.xlu0 %5637
        %5639 = vrot.lane.b32.xlu0 %v1342, 80
        %v5640 = vpop.permute.xlu0 %5639
        %5641 = vrot.lane.b32.xlu0 %v1343, 80
        %v5642 = vpop.permute.xlu0 %5641
        %v5644 = vsel %vm1579, %v5612, 0
        %v5647 = vsel %vm1579, %v5614, 0
        %v5650 = vsel %vm1579, %v5616, 0
        %v5653 = vsel %vm1579, %v5618, 0
        %v5656 = vsel %vm1579, %v5620, 0
        %v5659 = vsel %vm1579, %v5622, 0
        %v5662 = vsel %vm1579, %v5624, 0
        %v5665 = vsel %vm1579, %v5626, 0
        %v5668 = vsel %vm1579, %v5628, 0
        %v5671 = vsel %vm1579, %v5630, 0
        %v5674 = vsel %vm1579, %v5632, 0
        %v5677 = vsel %vm1579, %v5634, 0
        %v5680 = vsel %vm1579, %v5636, 0
        %v5683 = vsel %vm1579, %v5638, 0
        %v5686 = vsel %vm1579, %v5640, 0
        %v5689 = vsel %vm1579, %v5642, 0
        %5691 = vmatprep.subr.bf16.mxu0 0
        %5692 = vmatpush1.bf16.xpose.msra.mxu0 %v5668
        %5693 = vmatprep.subr.bf16.mxu0 0
        %5694 = vmatpush1.bf16.xpose.msra.mxu0 %v5671
        %5695 = vmatprep.subr.bf16.mxu0 0
        %5696 = vmatpush1.bf16.xpose.msra.mxu0 %v5674
        %5697 = vmatprep.subr.bf16.mxu0 0
        %5698 = vmatpush1.bf16.xpose.msra.mxu0 %v5677
        %5699 = vmatprep.subr.bf16.mxu0 0
        %5700 = vmatpush1.bf16.xpose.msra.mxu0 %v5680
        %5701 = vmatprep.subr.bf16.mxu0 0
        %5702 = vmatpush1.bf16.xpose.msra.mxu0 %v5683
        %5703 = vmatprep.subr.bf16.mxu0 0
        %5704 = vmatpush1.bf16.xpose.msra.mxu0 %v5686
        %5705 = vmatprep.subr.bf16.mxu0 0
        %5706 = vmatpush1.bf16.xpose.msra.mxu0 %v5689
        %5707 = vmatprep.subr.bf16.mxu0 0
        %5708 = vmatpush1.bf16.xpose.msra.mxu0 0
        %5709 = vmatprep.subr.bf16.mxu0 0
        %5710 = vmatpush1.bf16.xpose.msra.mxu0 0
        %5711 = vmatprep.subr.bf16.mxu0 0
        %5712 = vmatpush1.bf16.xpose.msra.mxu0 0
        %5713 = vmatprep.subr.bf16.mxu0 0
        %5714 = vmatpush1.bf16.xpose.msra.mxu0 0
        %5715 = vmatprep.subr.bf16.mxu0 0
        %5716 = vmatpush1.bf16.xpose.msra.mxu0 0
        %5717 = vmatprep.subr.bf16.mxu0 0
        %5718 = vmatpush1.bf16.xpose.msra.mxu0 0
        %5719 = vmatprep.subr.bf16.mxu0 0
        %5720 = vmatpush1.bf16.xpose.msra.mxu0 0
        %5721 = vmatprep.subr.bf16.mxu0 0
        %5722 = vmatpush1.bf16.xpose.msra.mxu0 0
        %5723 = vmatprep.mubr.bf16.mxu0 0
        %5724 = vmatmul.mubr.bf16.gmra.mrb[0].mxu0 %v5644
        %v5725 = vpop.f32.mrb[0].mxu0
        %v5726 = vadd.f32 %v5549, %v5725
        %v5727 = vpop.f32.mrb[0].mxu0
        %v5728 = vpop.f32.mrb[0].mxu0
        %v5729 = vadd.f32 %v5552, %v5728
        %v5730 = vpop.f32.mrb[0].mxu0
        %5731 = vmatprep.mubr.bf16.mxu0 0
        %5732 = vmatmul.mubr.bf16.gmra.mrb[0].mxu0 %v5647
        %v5733 = vpop.f32.mrb[0].mxu0
        %v5734 = vadd.f32 %v5557, %v5733
        %v5735 = vpop.f32.mrb[0].mxu0
        %v5736 = vpop.f32.mrb[0].mxu0
        %v5737 = vadd.f32 %v5560, %v5736
        %v5738 = vpop.f32.mrb[0].mxu0
        %5739 = vmatprep.mubr.bf16.mxu0 0
        %5740 = vmatmul.mubr.bf16.gmra.mrb[0].mxu0 %v5650
        %v5741 = vpop.f32.mrb[0].mxu0
        %v5742 = vadd.f32 %v5565, %v5741
        %v5743 = vpop.f32.mrb[0].mxu0
        %v5744 = vpop.f32.mrb[0].mxu0
        %v5745 = vadd.f32 %v5568, %v5744
        %v5746 = vpop.f32.mrb[0].mxu0
        %5747 = vmatprep.mubr.bf16.mxu0 0
        %5748 = vmatmul.mubr.bf16.gmra.mrb[0].mxu0 %v5653
        %v5749 = vpop.f32.mrb[0].mxu0
        %v5750 = vadd.f32 %v5573, %v5749
        %v5751 = vpop.f32.mrb[0].mxu0
        %v5752 = vpop.f32.mrb[0].mxu0
        %v5753 = vadd.f32 %v5576, %v5752
        %v5754 = vpop.f32.mrb[0].mxu0
        %5755 = vmatprep.mubr.bf16.mxu0 0
        %5756 = vmatmul.mubr.bf16.gmra.mrb[0].mxu0 %v5656
        %v5757 = vpop.f32.mrb[0].mxu0
        %v5758 = vadd.f32 %v5581, %v5757
        %v5759 = vpop.f32.mrb[0].mxu0
        %v5760 = vpop.f32.mrb[0].mxu0
        %v5761 = vadd.f32 %v5584, %v5760
        %v5762 = vpop.f32.mrb[0].mxu0
        %5763 = vmatprep.mubr.bf16.mxu0 0
        %5764 = vmatmul.mubr.bf16.gmra.mrb[0].mxu0 %v5659
        %v5765 = vpop.f32.mrb[0].mxu0
        %v5766 = vadd.f32 %v5589, %v5765
        %v5767 = vpop.f32.mrb[0].mxu0
        %v5768 = vpop.f32.mrb[0].mxu0
        %v5769 = vadd.f32 %v5592, %v5768
        %v5770 = vpop.f32.mrb[0].mxu0
        %5771 = vmatprep.mubr.bf16.mxu0 0
        %5772 = vmatmul.mubr.bf16.gmra.mrb[0].mxu0 %v5662
        %v5773 = vpop.f32.mrb[0].mxu0
        %v5774 = vadd.f32 %v5597, %v5773
        %v5775 = vpop.f32.mrb[0].mxu0
        %v5776 = vpop.f32.mrb[0].mxu0
        %v5777 = vadd.f32 %v5600, %v5776
        %v5778 = vpop.f32.mrb[0].mxu0
        %5779 = vmatprep.mubr.bf16.mxu0 0
        %5780 = vmatmul.mubr.bf16.gmra.mrb[0].mxu0 %v5665
        %v5781 = vpop.f32.mrb[0].mxu0
        %v5782 = vadd.f32 %v5605, %v5781
        %v5783 = vpop.f32.mrb[0].mxu0
        %v5784 = vpop.f32.mrb[0].mxu0
        %v5785 = vadd.f32 %v5608, %v5784
        %v5786 = vpop.f32.mrb[0].mxu0
        %5787 = vdwg.mxu0
        %v5788 = vadd.f32 %v5726, %v1563
        %v5789 = vadd.f32 %v5729, %v1564
        %v5790 = vadd.f32 %v5734, %v1565
        %v5791 = vadd.f32 %v5737, %v1566
        %v5792 = vadd.f32 %v5742, %v1567
        %v5793 = vadd.f32 %v5745, %v1568
        %v5794 = vadd.f32 %v5750, %v1569
        %v5795 = vadd.f32 %v5753, %v1570
        %v5796 = vadd.f32 %v5758, %v1571
        %v5797 = vadd.f32 %v5761, %v1572
        %v5798 = vadd.f32 %v5766, %v1573
        %v5799 = vadd.f32 %v5769, %v1574
        %v5800 = vadd.f32 %v5774, %v1575
        %v5801 = vadd.f32 %v5777, %v1576
        %v5802 = vadd.f32 %v5782, %v1577
        %v5803 = vadd.f32 %v5785, %v1578
        %5804 = vmax.xlane.f32.xlu0 %v5788
        %v5805 = vpop.xlane.xlu0 %5804
        %5806 = vmax.xlane.f32.xlu0 %v5789
        %v5807 = vpop.xlane.xlu0 %5806
        %5808 = vmax.xlane.f32.xlu0 %v5790
        %v5809 = vpop.xlane.xlu0 %5808
        %5810 = vmax.xlane.f32.xlu0 %v5791
        %v5811 = vpop.xlane.xlu0 %5810
        %5812 = vmax.xlane.f32.xlu0 %v5792
        %v5813 = vpop.xlane.xlu0 %5812
        %5814 = vmax.xlane.f32.xlu0 %v5793
        %v5815 = vpop.xlane.xlu0 %5814
        %5816 = vmax.xlane.f32.xlu0 %v5794
        %v5817 = vpop.xlane.xlu0 %5816
        %5818 = vmax.xlane.f32.xlu0 %v5795
        %v5819 = vpop.xlane.xlu0 %5818
        %5820 = vmax.xlane.f32.xlu0 %v5796
        %v5821 = vpop.xlane.xlu0 %5820
        %5822 = vmax.xlane.f32.xlu0 %v5797
        %v5823 = vpop.xlane.xlu0 %5822
        %5824 = vmax.xlane.f32.xlu0 %v5798
        %v5825 = vpop.xlane.xlu0 %5824
        %5826 = vmax.xlane.f32.xlu0 %v5799
        %v5827 = vpop.xlane.xlu0 %5826
        %5828 = vmax.xlane.f32.xlu0 %v5800
        %v5829 = vpop.xlane.xlu0 %5828
        %5830 = vmax.xlane.f32.xlu0 %v5801
        %v5831 = vpop.xlane.xlu0 %5830
        %5832 = vmax.xlane.f32.xlu0 %v5802
        %v5833 = vpop.xlane.xlu0 %5832
        %5834 = vmax.xlane.f32.xlu0 %v5803
        %v5835 = vpop.xlane.xlu0 %5834
        %v5836 = vsub.f32 %v5788, %v5805
        %v5837 = vsub.f32 %v5789, %v5807
        %v5838 = vsub.f32 %v5790, %v5809
        %v5839 = vsub.f32 %v5791, %v5811
        %v5840 = vsub.f32 %v5792, %v5813
        %v5841 = vsub.f32 %v5793, %v5815
        %v5842 = vsub.f32 %v5794, %v5817
        %v5843 = vsub.f32 %v5795, %v5819
        %v5844 = vsub.f32 %v5796, %v5821
        %v5845 = vsub.f32 %v5797, %v5823
        %v5846 = vsub.f32 %v5798, %v5825
        %v5847 = vsub.f32 %v5799, %v5827
        %v5848 = vsub.f32 %v5800, %v5829
        %v5849 = vsub.f32 %v5801, %v5831
        %v5850 = vsub.f32 %v5802, %v5833
        %v5851 = vsub.f32 %v5803, %v5835
        %v5852 = vmul.f32 %v5836, 1.442695
        %v5853 = vpow.pop %v5852
        %v5854 = vmul.f32 %v5837, 1.442695
        %v5855 = vpow.pop %v5854
        %v5856 = vmul.f32 %v5838, 1.442695
        %v5857 = vpow.pop %v5856
        %v5858 = vmul.f32 %v5839, 1.442695
        %v5859 = vpow.pop %v5858
        %v5860 = vmul.f32 %v5840, 1.442695
        %v5861 = vpow.pop %v5860
        %v5862 = vmul.f32 %v5841, 1.442695
        %v5863 = vpow.pop %v5862
        %v5864 = vmul.f32 %v5842, 1.442695
        %v5865 = vpow.pop %v5864
        %v5866 = vmul.f32 %v5843, 1.442695
        %v5867 = vpow.pop %v5866
        %v5868 = vmul.f32 %v5844, 1.442695
        %v5869 = vpow.pop %v5868
        %v5870 = vmul.f32 %v5845, 1.442695
        %v5871 = vpow.pop %v5870
        %v5872 = vmul.f32 %v5846, 1.442695
        %v5873 = vpow.pop %v5872
        %v5874 = vmul.f32 %v5847, 1.442695
        %v5875 = vpow.pop %v5874
        %v5876 = vmul.f32 %v5848, 1.442695
        %v5877 = vpow.pop %v5876
        %v5878 = vmul.f32 %v5849, 1.442695
        %v5879 = vpow.pop %v5878
        %v5880 = vmul.f32 %v5850, 1.442695
        %v5881 = vpow.pop %v5880
        %v5882 = vmul.f32 %v5851, 1.442695
        %v5883 = vpow.pop %v5882
        %5884 = vadd.xlane.f32.xlu0 %v5853
        %v5885 = vpop.xlane.xlu0 %5884
        %5886 = vadd.xlane.f32.xlu0 %v5855
        %v5887 = vpop.xlane.xlu0 %5886
        %5888 = vadd.xlane.f32.xlu0 %v5857
        %v5889 = vpop.xlane.xlu0 %5888
        %5890 = vadd.xlane.f32.xlu0 %v5859
        %v5891 = vpop.xlane.xlu0 %5890
        %5892 = vadd.xlane.f32.xlu0 %v5861
        %v5893 = vpop.xlane.xlu0 %5892
        %5894 = vadd.xlane.f32.xlu0 %v5863
        %v5895 = vpop.xlane.xlu0 %5894
        %5896 = vadd.xlane.f32.xlu0 %v5865
        %v5897 = vpop.xlane.xlu0 %5896
        %5898 = vadd.xlane.f32.xlu0 %v5867
        %v5899 = vpop.xlane.xlu0 %5898
        %5900 = vadd.xlane.f32.xlu0 %v5869
        %v5901 = vpop.xlane.xlu0 %5900
        %5902 = vadd.xlane.f32.xlu0 %v5871
        %v5903 = vpop.xlane.xlu0 %5902
        %5904 = vadd.xlane.f32.xlu0 %v5873
        %v5905 = vpop.xlane.xlu0 %5904
        %5906 = vadd.xlane.f32.xlu0 %v5875
        %v5907 = vpop.xlane.xlu0 %5906
        %5908 = vadd.xlane.f32.xlu0 %v5877
        %v5909 = vpop.xlane.xlu0 %5908
        %5910 = vadd.xlane.f32.xlu0 %v5879
        %v5911 = vpop.xlane.xlu0 %5910
        %5912 = vadd.xlane.f32.xlu0 %v5881
        %v5913 = vpop.xlane.xlu0 %5912
        %5914 = vadd.xlane.f32.xlu0 %v5883
        %v5915 = vpop.xlane.xlu0 %5914
        %v5916 = vpack.c.bf16 %v5855, %v5853
        %v5917 = vpack.c.bf16 %v5859, %v5857
        %v5918 = vpack.c.bf16 %v5863, %v5861
        %v5919 = vpack.c.bf16 %v5867, %v5865
        %v5920 = vpack.c.bf16 %v5871, %v5869
        %v5921 = vpack.c.bf16 %v5875, %v5873
        %v5922 = vpack.c.bf16 %v5879, %v5877
        %v5923 = vpack.c.bf16 %v5883, %v5881
        %5924 = vrot.lane.b32.xlu0 %v1008, 32
        %v5925 = vpop.permute.xlu0 %5924
        %5926 = vrot.lane.b32.xlu0 %v1009, 32
        %v5927 = vpop.permute.xlu0 %5926
        %5928 = vrot.lane.b32.xlu0 %v1010, 32
        %v5929 = vpop.permute.xlu0 %5928
        %5930 = vrot.lane.b32.xlu0 %v1011, 32
        %v5931 = vpop.permute.xlu0 %5930
        %5932 = vrot.lane.b32.xlu0 %v1012, 32
        %v5933 = vpop.permute.xlu0 %5932
        %5934 = vrot.lane.b32.xlu0 %v1013, 32
        %v5935 = vpop.permute.xlu0 %5934
        %5936 = vrot.lane.b32.xlu0 %v1014, 32
        %v5937 = vpop.permute.xlu0 %5936
        %5938 = vrot.lane.b32.xlu0 %v1015, 32
        %v5939 = vpop.permute.xlu0 %5938
        %5948 = vmatprep.subr.bf16.mxu0 0
        %5949 = vmatpush1.bf16.msra.mxu0 %v5925
        %5950 = vmatprep.subr.bf16.mxu0 0
        %5951 = vmatpush1.bf16.msra.mxu0 %v5927
        %5952 = vmatprep.subr.bf16.mxu0 0
        %5953 = vmatpush1.bf16.msra.mxu0 %v5929
        %5954 = vmatprep.subr.bf16.mxu0 0
        %5955 = vmatpush1.bf16.msra.mxu0 %v5931
        %5956 = vmatprep.subr.bf16.mxu0 0
        %5957 = vmatpush1.bf16.msra.mxu0 %v5933
        %5958 = vmatprep.subr.bf16.mxu0 0
        %5959 = vmatpush1.bf16.msra.mxu0 %v5935
        %5960 = vmatprep.subr.bf16.mxu0 0
        %5961 = vmatpush1.bf16.msra.mxu0 %v5937
        %5962 = vmatprep.subr.bf16.mxu0 0
        %5963 = vmatpush1.bf16.msra.mxu0 %v5939
        %5964 = vmatprep.subr.bf16.mxu0 0
        %5965 = vmatpush1.bf16.msra.mxu0 0
        %5966 = vmatprep.subr.bf16.mxu0 0
        %5967 = vmatpush1.bf16.msra.mxu0 0
        %5968 = vmatprep.subr.bf16.mxu0 0
        %5969 = vmatpush1.bf16.msra.mxu0 0
        %5970 = vmatprep.subr.bf16.mxu0 0
        %5971 = vmatpush1.bf16.msra.mxu0 0
        %5972 = vmatprep.subr.bf16.mxu0 0
        %5973 = vmatpush1.bf16.msra.mxu0 0
        %5974 = vmatprep.subr.bf16.mxu0 0
        %5975 = vmatpush1.bf16.msra.mxu0 0
        %5976 = vmatprep.subr.bf16.mxu0 0
        %5977 = vmatpush1.bf16.msra.mxu0 0
        %5978 = vmatprep.subr.bf16.mxu0 0
        %5979 = vmatpush1.bf16.msra.mxu0 0
        %5980 = vmatprep.mubr.bf16.mxu0 0
        %5981 = vmatmul.mubr.bf16.gmra.mrb[0].mxu0 %v5916
        %v5982 = vpop.f32.mrb[0].mxu0
        %v5983 = vadd.f32 0.0, %v5982
        %v5984 = vpop.f32.mrb[0].mxu0
        %v5985 = vpop.f32.mrb[0].mxu0
        %v5986 = vadd.f32 0.0, %v5985
        %v5987 = vpop.f32.mrb[0].mxu0
        %5988 = vmatprep.mubr.bf16.mxu0 0
        %5989 = vmatmul.mubr.bf16.gmra.mrb[0].mxu0 %v5917
        %v5990 = vpop.f32.mrb[0].mxu0
        %v5991 = vadd.f32 0.0, %v5990
        %v5992 = vpop.f32.mrb[0].mxu0
        %v5993 = vpop.f32.mrb[0].mxu0
        %v5994 = vadd.f32 0.0, %v5993
        %v5995 = vpop.f32.mrb[0].mxu0
        %5996 = vmatprep.mubr.bf16.mxu0 0
        %5997 = vmatmul.mubr.bf16.gmra.mrb[0].mxu0 %v5918
        %v5998 = vpop.f32.mrb[0].mxu0
        %v5999 = vadd.f32 0.0, %v5998
        %v6000 = vpop.f32.mrb[0].mxu0
        %v6001 = vpop.f32.mrb[0].mxu0
        %v6002 = vadd.f32 0.0, %v6001
        %v6003 = vpop.f32.mrb[0].mxu0
        %6004 = vmatprep.mubr.bf16.mxu0 0
        %6005 = vmatmul.mubr.bf16.gmra.mrb[0].mxu0 %v5919
        %v6006 = vpop.f32.mrb[0].mxu0
        %v6007 = vadd.f32 0.0, %v6006
        %v6008 = vpop.f32.mrb[0].mxu0
        %v6009 = vpop.f32.mrb[0].mxu0
        %v6010 = vadd.f32 0.0, %v6009
        %v6011 = vpop.f32.mrb[0].mxu0
        %6012 = vmatprep.mubr.bf16.mxu0 0
        %6013 = vmatmul.mubr.bf16.gmra.mrb[0].mxu0 %v5920
        %v6014 = vpop.f32.mrb[0].mxu0
        %v6015 = vadd.f32 0.0, %v6014
        %v6016 = vpop.f32.mrb[0].mxu0
        %v6017 = vpop.f32.mrb[0].mxu0
        %v6018 = vadd.f32 0.0, %v6017
        %v6019 = vpop.f32.mrb[0].mxu0
        %6020 = vmatprep.mubr.bf16.mxu0 0
        %6021 = vmatmul.mubr.bf16.gmra.mrb[0].mxu0 %v5921
        %v6022 = vpop.f32.mrb[0].mxu0
        %v6023 = vadd.f32 0.0, %v6022
        %v6024 = vpop.f32.mrb[0].mxu0
        %v6025 = vpop.f32.mrb[0].mxu0
        %v6026 = vadd.f32 0.0, %v6025
        %v6027 = vpop.f32.mrb[0].mxu0
        %6028 = vmatprep.mubr.bf16.mxu0 0
        %6029 = vmatmul.mubr.bf16.gmra.mrb[0].mxu0 %v5922
        %v6030 = vpop.f32.mrb[0].mxu0
        %v6031 = vadd.f32 0.0, %v6030
        %v6032 = vpop.f32.mrb[0].mxu0
        %v6033 = vpop.f32.mrb[0].mxu0
        %v6034 = vadd.f32 0.0, %v6033
        %v6035 = vpop.f32.mrb[0].mxu0
        %6036 = vmatprep.mubr.bf16.mxu0 0
        %6037 = vmatmul.mubr.bf16.gmra.mrb[0].mxu0 %v5923
        %v6038 = vpop.f32.mrb[0].mxu0
        %v6039 = vadd.f32 0.0, %v6038
        %v6040 = vpop.f32.mrb[0].mxu0
        %v6041 = vpop.f32.mrb[0].mxu0
        %v6042 = vadd.f32 0.0, %v6041
        %v6043 = vpop.f32.mrb[0].mxu0
        %6044 = vdwg.mxu0
        %v6045 = vrcp.pop %v5885
        %v6046 = vrcp.pop %v5887
        %v6047 = vrcp.pop %v5889
        %v6048 = vrcp.pop %v5891
        %v6049 = vrcp.pop %v5893
        %v6050 = vrcp.pop %v5895
        %v6051 = vrcp.pop %v5897
        %v6052 = vrcp.pop %v5899
        %v6053 = vrcp.pop %v5901
        %v6054 = vrcp.pop %v5903
        %v6055 = vrcp.pop %v5905
        %v6056 = vrcp.pop %v5907
        %v6057 = vrcp.pop %v5909
        %v6058 = vrcp.pop %v5911
        %v6059 = vrcp.pop %v5913
        %v6060 = vrcp.pop %v5915
        %v6061 = vmul.f32 %v5983, %v6045
        %v6062 = vmul.f32 %v5986, %v6046
        %v6063 = vmul.f32 %v5991, %v6047
        %v6064 = vmul.f32 %v5994, %v6048
        %v6065 = vmul.f32 %v5999, %v6049
        %v6066 = vmul.f32 %v6002, %v6050
        %v6067 = vmul.f32 %v6007, %v6051
        %v6068 = vmul.f32 %v6010, %v6052
        %v6069 = vmul.f32 %v6015, %v6053
        %v6070 = vmul.f32 %v6018, %v6054
        %v6071 = vmul.f32 %v6023, %v6055
        %v6072 = vmul.f32 %v6026, %v6056
        %v6073 = vmul.f32 %v6031, %v6057
        %v6074 = vmul.f32 %v6034, %v6058
        %v6075 = vmul.f32 %v6039, %v6059
        %v6076 = vmul.f32 %v6042, %v6060
        %6093 = vrot.lane.b32.xlu0 %v6061, 64
        %v6094 = vpop.permute.xlu0 %6093
        %6095 = vrot.lane.b32.xlu0 %v6062, 64
        %v6096 = vpop.permute.xlu0 %6095
        %6097 = vrot.lane.b32.xlu0 %v6063, 64
        %v6098 = vpop.permute.xlu0 %6097
        %6099 = vrot.lane.b32.xlu0 %v6064, 64
        %v6100 = vpop.permute.xlu0 %6099
        %6101 = vrot.lane.b32.xlu0 %v6065, 64
        %v6102 = vpop.permute.xlu0 %6101
        %6103 = vrot.lane.b32.xlu0 %v6066, 64
        %v6104 = vpop.permute.xlu0 %6103
        %6105 = vrot.lane.b32.xlu0 %v6067, 64
        %v6106 = vpop.permute.xlu0 %6105
        %6107 = vrot.lane.b32.xlu0 %v6068, 64
        %v6108 = vpop.permute.xlu0 %6107
        %6109 = vrot.lane.b32.xlu0 %v6069, 64
        %v6110 = vpop.permute.xlu0 %6109
        %6111 = vrot.lane.b32.xlu0 %v6070, 64
        %v6112 = vpop.permute.xlu0 %6111
        %6113 = vrot.lane.b32.xlu0 %v6071, 64
        %v6114 = vpop.permute.xlu0 %6113
        %6115 = vrot.lane.b32.xlu0 %v6072, 64
        %v6116 = vpop.permute.xlu0 %6115
        %6117 = vrot.lane.b32.xlu0 %v6073, 64
        %v6118 = vpop.permute.xlu0 %6117
        %6119 = vrot.lane.b32.xlu0 %v6074, 64
        %v6120 = vpop.permute.xlu0 %6119
        %6121 = vrot.lane.b32.xlu0 %v6075, 64
        %v6122 = vpop.permute.xlu0 %6121
        %6123 = vrot.lane.b32.xlu0 %v6076, 64
        %v6124 = vpop.permute.xlu0 %6123
        %6141 = vst.msk [vmem:[#allocation2 + $0x8] sm:$0xff] %vm3519, %v6094
        %6142 = vst.msk [vmem:[#allocation2 + $0x18] sm:$0xff] %vm3519, %v6096
        %6143 = vst.msk [vmem:[#allocation2 + $0x28] sm:$0xff] %vm3519, %v6098
        %6144 = vst.msk [vmem:[#allocation2 + $0x38] sm:$0xff] %vm3519, %v6100
        %6145 = vst.msk [vmem:[#allocation2 + $0x48] sm:$0xff] %vm3519, %v6102
        %6146 = vst.msk [vmem:[#allocation2 + $0x58] sm:$0xff] %vm3519, %v6104
        %6147 = vst.msk [vmem:[#allocation2 + $0x68] sm:$0xff] %vm3519, %v6106
        %6148 = vst.msk [vmem:[#allocation2 + $0x78] sm:$0xff] %vm3519, %v6108
        %6149 = vst.msk [vmem:[#allocation2 + $0x88] sm:$0xff] %vm3519, %v6110
        %6150 = vst.msk [vmem:[#allocation2 + $0x98] sm:$0xff] %vm3519, %v6112
        %6151 = vst.msk [vmem:[#allocation2 + $0xa8] sm:$0xff] %vm3519, %v6114
        %6152 = vst.msk [vmem:[#allocation2 + $0xb8] sm:$0xff] %vm3519, %v6116
        %6153 = vst.msk [vmem:[#allocation2 + $0xc8] sm:$0xff] %vm3519, %v6118
        %6154 = vst.msk [vmem:[#allocation2 + $0xd8] sm:$0xff] %vm3519, %v6120
        %6155 = vst.msk [vmem:[#allocation2 + $0xe8] sm:$0xff] %vm3519, %v6122
        %6156 = vst.msk [vmem:[#allocation2 + $0xf8] sm:$0xff] %vm3519, %v6124
        %6157 = vrot.lane.b32.xlu0 %v1152, 16
        %v6158 = vpop.permute.xlu0 %6157
        %6159 = vrot.lane.b32.xlu0 %v1153, 16
        %v6160 = vpop.permute.xlu0 %6159
        %6161 = vrot.lane.b32.xlu0 %v1154, 16
        %v6162 = vpop.permute.xlu0 %6161
        %6163 = vrot.lane.b32.xlu0 %v1155, 16
        %v6164 = vpop.permute.xlu0 %6163
        %6165 = vrot.lane.b32.xlu0 %v1156, 16
        %v6166 = vpop.permute.xlu0 %6165
        %6167 = vrot.lane.b32.xlu0 %v1157, 16
        %v6168 = vpop.permute.xlu0 %6167
        %6169 = vrot.lane.b32.xlu0 %v1158, 16
        %v6170 = vpop.permute.xlu0 %6169
        %6171 = vrot.lane.b32.xlu0 %v1159, 16
        %v6172 = vpop.permute.xlu0 %6171
        %v6174 = vsel %vm1579, %v6158, 0
        %v6177 = vsel %vm1579, %v6160, 0
        %v6180 = vsel %vm1579, %v6162, 0
        %v6183 = vsel %vm1579, %v6164, 0
        %v6186 = vsel %vm1579, %v6166, 0
        %v6189 = vsel %vm1579, %v6168, 0
        %v6192 = vsel %vm1579, %v6170, 0
        %v6195 = vsel %vm1579, %v6172, 0
        %6197 = vmatprep.subr.bf16.mxu0 0
        %6198 = vmatpush1.bf16.xpose.msra.mxu0 %v5491
        %6199 = vmatprep.subr.bf16.mxu0 0
        %6200 = vmatpush1.bf16.xpose.msra.mxu0 %v5494
        %6201 = vmatprep.subr.bf16.mxu0 0
        %6202 = vmatpush1.bf16.xpose.msra.mxu0 %v5497
        %6203 = vmatprep.subr.bf16.mxu0 0
        %6204 = vmatpush1.bf16.xpose.msra.mxu0 %v5500
        %6205 = vmatprep.subr.bf16.mxu0 0
        %6206 = vmatpush1.bf16.xpose.msra.mxu0 %v5503
        %6207 = vmatprep.subr.bf16.mxu0 0
        %6208 = vmatpush1.bf16.xpose.msra.mxu0 %v5506
        %6209 = vmatprep.subr.bf16.mxu0 0
        %6210 = vmatpush1.bf16.xpose.msra.mxu0 %v5509
        %6211 = vmatprep.subr.bf16.mxu0 0
        %6212 = vmatpush1.bf16.xpose.msra.mxu0 %v5512
        %6213 = vmatprep.subr.bf16.mxu0 0
        %6214 = vmatpush1.bf16.xpose.msra.mxu0 0
        %6215 = vmatprep.subr.bf16.mxu0 0
        %6216 = vmatpush1.bf16.xpose.msra.mxu0 0
        %6217 = vmatprep.subr.bf16.mxu0 0
        %6218 = vmatpush1.bf16.xpose.msra.mxu0 0
        %6219 = vmatprep.subr.bf16.mxu0 0
        %6220 = vmatpush1.bf16.xpose.msra.mxu0 0
        %6221 = vmatprep.subr.bf16.mxu0 0
        %6222 = vmatpush1.bf16.xpose.msra.mxu0 0
        %6223 = vmatprep.subr.bf16.mxu0 0
        %6224 = vmatpush1.bf16.xpose.msra.mxu0 0
        %6225 = vmatprep.subr.bf16.mxu0 0
        %6226 = vmatpush1.bf16.xpose.msra.mxu0 0
        %6227 = vmatprep.subr.bf16.mxu0 0
        %6228 = vmatpush1.bf16.xpose.msra.mxu0 0
        %6229 = vmatprep.mubr.bf16.mxu0 0
        %6230 = vmatmul.mubr.bf16.gmra.mrb[0].mxu0 %v6174
        %v6231 = vpop.f32.mrb[0].mxu0
        %v6232 = vadd.f32 0.0, %v6231
        %v6233 = vpop.f32.mrb[0].mxu0
        %v6234 = vpop.f32.mrb[0].mxu0
        %v6235 = vadd.f32 0.0, %v6234
        %v6236 = vpop.f32.mrb[0].mxu0
        %6237 = vmatprep.mubr.bf16.mxu0 0
        %6238 = vmatmul.mubr.bf16.gmra.mrb[0].mxu0 %v6177
        %v6239 = vpop.f32.mrb[0].mxu0
        %v6240 = vadd.f32 0.0, %v6239
        %v6241 = vpop.f32.mrb[0].mxu0
        %v6242 = vpop.f32.mrb[0].mxu0
        %v6243 = vadd.f32 0.0, %v6242
        %v6244 = vpop.f32.mrb[0].mxu0
        %6245 = vmatprep.mubr.bf16.mxu0 0
        %6246 = vmatmul.mubr.bf16.gmra.mrb[0].mxu0 %v6180
        %v6247 = vpop.f32.mrb[0].mxu0
        %v6248 = vadd.f32 0.0, %v6247
        %v6249 = vpop.f32.mrb[0].mxu0
        %v6250 = vpop.f32.mrb[0].mxu0
        %v6251 = vadd.f32 0.0, %v6250
        %v6252 = vpop.f32.mrb[0].mxu0
        %6253 = vmatprep.mubr.bf16.mxu0 0
        %6254 = vmatmul.mubr.bf16.gmra.mrb[0].mxu0 %v6183
        %v6255 = vpop.f32.mrb[0].mxu0
        %v6256 = vadd.f32 0.0, %v6255
        %v6257 = vpop.f32.mrb[0].mxu0
        %v6258 = vpop.f32.mrb[0].mxu0
        %v6259 = vadd.f32 0.0, %v6258
        %v6260 = vpop.f32.mrb[0].mxu0
        %6261 = vmatprep.mubr.bf16.mxu0 0
        %6262 = vmatmul.mubr.bf16.gmra.mrb[0].mxu0 %v6186
        %v6263 = vpop.f32.mrb[0].mxu0
        %v6264 = vadd.f32 0.0, %v6263
        %v6265 = vpop.f32.mrb[0].mxu0
        %v6266 = vpop.f32.mrb[0].mxu0
        %v6267 = vadd.f32 0.0, %v6266
        %v6268 = vpop.f32.mrb[0].mxu0
        %6269 = vmatprep.mubr.bf16.mxu0 0
        %6270 = vmatmul.mubr.bf16.gmra.mrb[0].mxu0 %v6189
        %v6271 = vpop.f32.mrb[0].mxu0
        %v6272 = vadd.f32 0.0, %v6271
        %v6273 = vpop.f32.mrb[0].mxu0
        %v6274 = vpop.f32.mrb[0].mxu0
        %v6275 = vadd.f32 0.0, %v6274
        %v6276 = vpop.f32.mrb[0].mxu0
        %6277 = vmatprep.mubr.bf16.mxu0 0
        %6278 = vmatmul.mubr.bf16.gmra.mrb[0].mxu0 %v6192
        %v6279 = vpop.f32.mrb[0].mxu0
        %v6280 = vadd.f32 0.0, %v6279
        %v6281 = vpop.f32.mrb[0].mxu0
        %v6282 = vpop.f32.mrb[0].mxu0
        %v6283 = vadd.f32 0.0, %v6282
        %v6284 = vpop.f32.mrb[0].mxu0
        %6285 = vmatprep.mubr.bf16.mxu0 0
        %6286 = vmatmul.mubr.bf16.gmra.mrb[0].mxu0 %v6195
        %v6287 = vpop.f32.mrb[0].mxu0
        %v6288 = vadd.f32 0.0, %v6287
        %v6289 = vpop.f32.mrb[0].mxu0
        %v6290 = vpop.f32.mrb[0].mxu0
        %v6291 = vadd.f32 0.0, %v6290
        %v6292 = vpop.f32.mrb[0].mxu0
        %6293 = vdwg.mxu0
        %6294 = vrot.lane.b32.xlu0 %v1096, 16
        %v6295 = vpop.permute.xlu0 %6294
        %6296 = vrot.lane.b32.xlu0 %v1097, 16
        %v6297 = vpop.permute.xlu0 %6296
        %6298 = vrot.lane.b32.xlu0 %v1098, 16
        %v6299 = vpop.permute.xlu0 %6298
        %6300 = vrot.lane.b32.xlu0 %v1099, 16
        %v6301 = vpop.permute.xlu0 %6300
        %6302 = vrot.lane.b32.xlu0 %v1100, 16
        %v6303 = vpop.permute.xlu0 %6302
        %6304 = vrot.lane.b32.xlu0 %v1101, 16
        %v6305 = vpop.permute.xlu0 %6304
        %6306 = vrot.lane.b32.xlu0 %v1102, 16
        %v6307 = vpop.permute.xlu0 %6306
        %6308 = vrot.lane.b32.xlu0 %v1103, 16
        %v6309 = vpop.permute.xlu0 %6308
        %v6311 = vsel %vm1579, %v6295, 0
        %v6314 = vsel %vm1579, %v6297, 0
        %v6317 = vsel %vm1579, %v6299, 0
        %v6320 = vsel %vm1579, %v6301, 0
        %v6323 = vsel %vm1579, %v6303, 0
        %v6326 = vsel %vm1579, %v6305, 0
        %v6329 = vsel %vm1579, %v6307, 0
        %v6332 = vsel %vm1579, %v6309, 0
        %6334 = vmatprep.subr.bf16.mxu0 0
        %6335 = vmatpush1.bf16.xpose.msra.mxu0 %v5668
        %6336 = vmatprep.subr.bf16.mxu0 0
        %6337 = vmatpush1.bf16.xpose.msra.mxu0 %v5671
        %6338 = vmatprep.subr.bf16.mxu0 0
        %6339 = vmatpush1.bf16.xpose.msra.mxu0 %v5674
        %6340 = vmatprep.subr.bf16.mxu0 0
        %6341 = vmatpush1.bf16.xpose.msra.mxu0 %v5677
        %6342 = vmatprep.subr.bf16.mxu0 0
        %6343 = vmatpush1.bf16.xpose.msra.mxu0 %v5680
        %6344 = vmatprep.subr.bf16.mxu0 0
        %6345 = vmatpush1.bf16.xpose.msra.mxu0 %v5683
        %6346 = vmatprep.subr.bf16.mxu0 0
        %6347 = vmatpush1.bf16.xpose.msra.mxu0 %v5686
        %6348 = vmatprep.subr.bf16.mxu0 0
        %6349 = vmatpush1.bf16.xpose.msra.mxu0 %v5689
        %6350 = vmatprep.subr.bf16.mxu0 0
        %6351 = vmatpush1.bf16.xpose.msra.mxu0 0
        %6352 = vmatprep.subr.bf16.mxu0 0
        %6353 = vmatpush1.bf16.xpose.msra.mxu0 0
        %6354 = vmatprep.subr.bf16.mxu0 0
        %6355 = vmatpush1.bf16.xpose.msra.mxu0 0
        %6356 = vmatprep.subr.bf16.mxu0 0
        %6357 = vmatpush1.bf16.xpose.msra.mxu0 0
        %6358 = vmatprep.subr.bf16.mxu0 0
        %6359 = vmatpush1.bf16.xpose.msra.mxu0 0
        %6360 = vmatprep.subr.bf16.mxu0 0
        %6361 = vmatpush1.bf16.xpose.msra.mxu0 0
        %6362 = vmatprep.subr.bf16.mxu0 0
        %6363 = vmatpush1.bf16.xpose.msra.mxu0 0
        %6364 = vmatprep.subr.bf16.mxu0 0
        %6365 = vmatpush1.bf16.xpose.msra.mxu0 0
        %6366 = vmatprep.mubr.bf16.mxu0 0
        %6367 = vmatmul.mubr.bf16.gmra.mrb[0].mxu0 %v6311
        %v6368 = vpop.f32.mrb[0].mxu0
        %v6369 = vadd.f32 %v6232, %v6368
        %v6370 = vpop.f32.mrb[0].mxu0
        %v6371 = vpop.f32.mrb[0].mxu0
        %v6372 = vadd.f32 %v6235, %v6371
        %v6373 = vpop.f32.mrb[0].mxu0
        %6374 = vmatprep.mubr.bf16.mxu0 0
        %6375 = vmatmul.mubr.bf16.gmra.mrb[0].mxu0 %v6314
        %v6376 = vpop.f32.mrb[0].mxu0
        %v6377 = vadd.f32 %v6240, %v6376
        %v6378 = vpop.f32.mrb[0].mxu0
        %v6379 = vpop.f32.mrb[0].mxu0
        %v6380 = vadd.f32 %v6243, %v6379
        %v6381 = vpop.f32.mrb[0].mxu0
        %6382 = vmatprep.mubr.bf16.mxu0 0
        %6383 = vmatmul.mubr.bf16.gmra.mrb[0].mxu0 %v6317
        %v6384 = vpop.f32.mrb[0].mxu0
        %v6385 = vadd.f32 %v6248, %v6384
        %v6386 = vpop.f32.mrb[0].mxu0
        %v6387 = vpop.f32.mrb[0].mxu0
        %v6388 = vadd.f32 %v6251, %v6387
        %v6389 = vpop.f32.mrb[0].mxu0
        %6390 = vmatprep.mubr.bf16.mxu0 0
        %6391 = vmatmul.mubr.bf16.gmra.mrb[0].mxu0 %v6320
        %v6392 = vpop.f32.mrb[0].mxu0
        %v6393 = vadd.f32 %v6256, %v6392
        %v6394 = vpop.f32.mrb[0].mxu0
        %v6395 = vpop.f32.mrb[0].mxu0
        %v6396 = vadd.f32 %v6259, %v6395
        %v6397 = vpop.f32.mrb[0].mxu0
        %6398 = vmatprep.mubr.bf16.mxu0 0
        %6399 = vmatmul.mubr.bf16.gmra.mrb[0].mxu0 %v6323
        %v6400 = vpop.f32.mrb[0].mxu0
        %v6401 = vadd.f32 %v6264, %v6400
        %v6402 = vpop.f32.mrb[0].mxu0
        %v6403 = vpop.f32.mrb[0].mxu0
        %v6404 = vadd.f32 %v6267, %v6403
        %v6405 = vpop.f32.mrb[0].mxu0
        %6406 = vmatprep.mubr.bf16.mxu0 0
        %6407 = vmatmul.mubr.bf16.gmra.mrb[0].mxu0 %v6326
        %v6408 = vpop.f32.mrb[0].mxu0
        %v6409 = vadd.f32 %v6272, %v6408
        %v6410 = vpop.f32.mrb[0].mxu0
        %v6411 = vpop.f32.mrb[0].mxu0
        %v6412 = vadd.f32 %v6275, %v6411
        %v6413 = vpop.f32.mrb[0].mxu0
        %6414 = vmatprep.mubr.bf16.mxu0 0
        %6415 = vmatmul.mubr.bf16.gmra.mrb[0].mxu0 %v6329
        %v6416 = vpop.f32.mrb[0].mxu0
        %v6417 = vadd.f32 %v6280, %v6416
        %v6418 = vpop.f32.mrb[0].mxu0
        %v6419 = vpop.f32.mrb[0].mxu0
        %v6420 = vadd.f32 %v6283, %v6419
        %v6421 = vpop.f32.mrb[0].mxu0
        %6422 = vmatprep.mubr.bf16.mxu0 0
        %6423 = vmatmul.mubr.bf16.gmra.mrb[0].mxu0 %v6332
        %v6424 = vpop.f32.mrb[0].mxu0
        %v6425 = vadd.f32 %v6288, %v6424
        %v6426 = vpop.f32.mrb[0].mxu0
        %v6427 = vpop.f32.mrb[0].mxu0
        %v6428 = vadd.f32 %v6291, %v6427
        %v6429 = vpop.f32.mrb[0].mxu0
        %6430 = vdwg.mxu0
        %v6431 = vadd.f32 %v6369, %v1563
        %v6432 = vadd.f32 %v6372, %v1564
        %v6433 = vadd.f32 %v6377, %v1565
        %v6434 = vadd.f32 %v6380, %v1566
        %v6435 = vadd.f32 %v6385, %v1567
        %v6436 = vadd.f32 %v6388, %v1568
        %v6437 = vadd.f32 %v6393, %v1569
        %v6438 = vadd.f32 %v6396, %v1570
        %v6439 = vadd.f32 %v6401, %v1571
        %v6440 = vadd.f32 %v6404, %v1572
        %v6441 = vadd.f32 %v6409, %v1573
        %v6442 = vadd.f32 %v6412, %v1574
        %v6443 = vadd.f32 %v6417, %v1575
        %v6444 = vadd.f32 %v6420, %v1576
        %v6445 = vadd.f32 %v6425, %v1577
        %v6446 = vadd.f32 %v6428, %v1578
        %6447 = vmax.xlane.f32.xlu0 %v6431
        %v6448 = vpop.xlane.xlu0 %6447
        %6449 = vmax.xlane.f32.xlu0 %v6432
        %v6450 = vpop.xlane.xlu0 %6449
        %6451 = vmax.xlane.f32.xlu0 %v6433
        %v6452 = vpop.xlane.xlu0 %6451
        %6453 = vmax.xlane.f32.xlu0 %v6434
        %v6454 = vpop.xlane.xlu0 %6453
        %6455 = vmax.xlane.f32.xlu0 %v6435
        %v6456 = vpop.xlane.xlu0 %6455
        %6457 = vmax.xlane.f32.xlu0 %v6436
        %v6458 = vpop.xlane.xlu0 %6457
        %6459 = vmax.xlane.f32.xlu0 %v6437
        %v6460 = vpop.xlane.xlu0 %6459
        %6461 = vmax.xlane.f32.xlu0 %v6438
        %v6462 = vpop.xlane.xlu0 %6461
        %6463 = vmax.xlane.f32.xlu0 %v6439
        %v6464 = vpop.xlane.xlu0 %6463
        %6465 = vmax.xlane.f32.xlu0 %v6440
        %v6466 = vpop.xlane.xlu0 %6465
        %6467 = vmax.xlane.f32.xlu0 %v6441
        %v6468 = vpop.xlane.xlu0 %6467
        %6469 = vmax.xlane.f32.xlu0 %v6442
        %v6470 = vpop.xlane.xlu0 %6469
        %6471 = vmax.xlane.f32.xlu0 %v6443
        %v6472 = vpop.xlane.xlu0 %6471
        %6473 = vmax.xlane.f32.xlu0 %v6444
        %v6474 = vpop.xlane.xlu0 %6473
        %6475 = vmax.xlane.f32.xlu0 %v6445
        %v6476 = vpop.xlane.xlu0 %6475
        %6477 = vmax.xlane.f32.xlu0 %v6446
        %v6478 = vpop.xlane.xlu0 %6477
        %v6479 = vsub.f32 %v6431, %v6448
        %v6480 = vsub.f32 %v6432, %v6450
        %v6481 = vsub.f32 %v6433, %v6452
        %v6482 = vsub.f32 %v6434, %v6454
        %v6483 = vsub.f32 %v6435, %v6456
        %v6484 = vsub.f32 %v6436, %v6458
        %v6485 = vsub.f32 %v6437, %v6460
        %v6486 = vsub.f32 %v6438, %v6462
        %v6487 = vsub.f32 %v6439, %v6464
        %v6488 = vsub.f32 %v6440, %v6466
        %v6489 = vsub.f32 %v6441, %v6468
        %v6490 = vsub.f32 %v6442, %v6470
        %v6491 = vsub.f32 %v6443, %v6472
        %v6492 = vsub.f32 %v6444, %v6474
        %v6493 = vsub.f32 %v6445, %v6476
        %v6494 = vsub.f32 %v6446, %v6478
        %v6495 = vmul.f32 %v6479, 1.442695
        %v6496 = vpow.pop %v6495
        %v6497 = vmul.f32 %v6480, 1.442695
        %v6498 = vpow.pop %v6497
        %v6499 = vmul.f32 %v6481, 1.442695
        %v6500 = vpow.pop %v6499
        %v6501 = vmul.f32 %v6482, 1.442695
        %v6502 = vpow.pop %v6501
        %v6503 = vmul.f32 %v6483, 1.442695
        %v6504 = vpow.pop %v6503
        %v6505 = vmul.f32 %v6484, 1.442695
        %v6506 = vpow.pop %v6505
        %v6507 = vmul.f32 %v6485, 1.442695
        %v6508 = vpow.pop %v6507
        %v6509 = vmul.f32 %v6486, 1.442695
        %v6510 = vpow.pop %v6509
        %v6511 = vmul.f32 %v6487, 1.442695
        %v6512 = vpow.pop %v6511
        %v6513 = vmul.f32 %v6488, 1.442695
        %v6514 = vpow.pop %v6513
        %v6515 = vmul.f32 %v6489, 1.442695
        %v6516 = vpow.pop %v6515
        %v6517 = vmul.f32 %v6490, 1.442695
        %v6518 = vpow.pop %v6517
        %v6519 = vmul.f32 %v6491, 1.442695
        %v6520 = vpow.pop %v6519
        %v6521 = vmul.f32 %v6492, 1.442695
        %v6522 = vpow.pop %v6521
        %v6523 = vmul.f32 %v6493, 1.442695
        %v6524 = vpow.pop %v6523
        %v6525 = vmul.f32 %v6494, 1.442695
        %v6526 = vpow.pop %v6525
        %6527 = vadd.xlane.f32.xlu0 %v6496
        %v6528 = vpop.xlane.xlu0 %6527
        %6529 = vadd.xlane.f32.xlu0 %v6498
        %v6530 = vpop.xlane.xlu0 %6529
        %6531 = vadd.xlane.f32.xlu0 %v6500
        %v6532 = vpop.xlane.xlu0 %6531
        %6533 = vadd.xlane.f32.xlu0 %v6502
        %v6534 = vpop.xlane.xlu0 %6533
        %6535 = vadd.xlane.f32.xlu0 %v6504
        %v6536 = vpop.xlane.xlu0 %6535
        %6537 = vadd.xlane.f32.xlu0 %v6506
        %v6538 = vpop.xlane.xlu0 %6537
        %6539 = vadd.xlane.f32.xlu0 %v6508
        %v6540 = vpop.xlane.xlu0 %6539
        %6541 = vadd.xlane.f32.xlu0 %v6510
        %v6542 = vpop.xlane.xlu0 %6541
        %6543 = vadd.xlane.f32.xlu0 %v6512
        %v6544 = vpop.xlane.xlu0 %6543
        %6545 = vadd.xlane.f32.xlu0 %v6514
        %v6546 = vpop.xlane.xlu0 %6545
        %6547 = vadd.xlane.f32.xlu0 %v6516
        %v6548 = vpop.xlane.xlu0 %6547
        %6549 = vadd.xlane.f32.xlu0 %v6518
        %v6550 = vpop.xlane.xlu0 %6549
        %6551 = vadd.xlane.f32.xlu0 %v6520
        %v6552 = vpop.xlane.xlu0 %6551
        %6553 = vadd.xlane.f32.xlu0 %v6522
        %v6554 = vpop.xlane.xlu0 %6553
        %6555 = vadd.xlane.f32.xlu0 %v6524
        %v6556 = vpop.xlane.xlu0 %6555
        %6557 = vadd.xlane.f32.xlu0 %v6526
        %v6558 = vpop.xlane.xlu0 %6557
        %v6559 = vpack.c.bf16 %v6498, %v6496
        %v6560 = vpack.c.bf16 %v6502, %v6500
        %v6561 = vpack.c.bf16 %v6506, %v6504
        %v6562 = vpack.c.bf16 %v6510, %v6508
        %v6563 = vpack.c.bf16 %v6514, %v6512
        %v6564 = vpack.c.bf16 %v6518, %v6516
        %v6565 = vpack.c.bf16 %v6522, %v6520
        %v6566 = vpack.c.bf16 %v6526, %v6524
        %6567 = vmatprep.subr.bf16.mxu0 0
        %6568 = vmatpush1.bf16.msra.mxu0 %v5925
        %6569 = vmatprep.subr.bf16.mxu0 0
        %6570 = vmatpush1.bf16.msra.mxu0 %v5927
        %6571 = vmatprep.subr.bf16.mxu0 0
        %6572 = vmatpush1.bf16.msra.mxu0 %v5929
        %6573 = vmatprep.subr.bf16.mxu0 0
        %6574 = vmatpush1.bf16.msra.mxu0 %v5931
        %6575 = vmatprep.subr.bf16.mxu0 0
        %6576 = vmatpush1.bf16.msra.mxu0 %v5933
        %6577 = vmatprep.subr.bf16.mxu0 0
        %6578 = vmatpush1.bf16.msra.mxu0 %v5935
        %6579 = vmatprep.subr.bf16.mxu0 0
        %6580 = vmatpush1.bf16.msra.mxu0 %v5937
        %6581 = vmatprep.subr.bf16.mxu0 0
        %6582 = vmatpush1.bf16.msra.mxu0 %v5939
        %6583 = vmatprep.subr.bf16.mxu0 0
        %6584 = vmatpush1.bf16.msra.mxu0 0
        %6585 = vmatprep.subr.bf16.mxu0 0
        %6586 = vmatpush1.bf16.msra.mxu0 0
        %6587 = vmatprep.subr.bf16.mxu0 0
        %6588 = vmatpush1.bf16.msra.mxu0 0
        %6589 = vmatprep.subr.bf16.mxu0 0
        %6590 = vmatpush1.bf16.msra.mxu0 0
        %6591 = vmatprep.subr.bf16.mxu0 0
        %6592 = vmatpush1.bf16.msra.mxu0 0
        %6593 = vmatprep.subr.bf16.mxu0 0
        %6594 = vmatpush1.bf16.msra.mxu0 0
        %6595 = vmatprep.subr.bf16.mxu0 0
        %6596 = vmatpush1.bf16.msra.mxu0 0
        %6597 = vmatprep.subr.bf16.mxu0 0
        %6598 = vmatpush1.bf16.msra.mxu0 0
        %6599 = vmatprep.mubr.bf16.mxu0 0
        %6600 = vmatmul.mubr.bf16.gmra.mrb[0].mxu0 %v6559
        %v6601 = vpop.f32.mrb[0].mxu0
        %v6602 = vadd.f32 0.0, %v6601
        %v6603 = vpop.f32.mrb[0].mxu0
        %v6604 = vpop.f32.mrb[0].mxu0
        %v6605 = vadd.f32 0.0, %v6604
        %v6606 = vpop.f32.mrb[0].mxu0
        %6607 = vmatprep.mubr.bf16.mxu0 0
        %6608 = vmatmul.mubr.bf16.gmra.mrb[0].mxu0 %v6560
        %v6609 = vpop.f32.mrb[0].mxu0
        %v6610 = vadd.f32 0.0, %v6609
        %v6611 = vpop.f32.mrb[0].mxu0
        %v6612 = vpop.f32.mrb[0].mxu0
        %v6613 = vadd.f32 0.0, %v6612
        %v6614 = vpop.f32.mrb[0].mxu0
        %6615 = vmatprep.mubr.bf16.mxu0 0
        %6616 = vmatmul.mubr.bf16.gmra.mrb[0].mxu0 %v6561
        %v6617 = vpop.f32.mrb[0].mxu0
        %v6618 = vadd.f32 0.0, %v6617
        %v6619 = vpop.f32.mrb[0].mxu0
        %v6620 = vpop.f32.mrb[0].mxu0
        %v6621 = vadd.f32 0.0, %v6620
        %v6622 = vpop.f32.mrb[0].mxu0
        %6623 = vmatprep.mubr.bf16.mxu0 0
        %6624 = vmatmul.mubr.bf16.gmra.mrb[0].mxu0 %v6562
        %v6625 = vpop.f32.mrb[0].mxu0
        %v6626 = vadd.f32 0.0, %v6625
        %v6627 = vpop.f32.mrb[0].mxu0
        %v6628 = vpop.f32.mrb[0].mxu0
        %v6629 = vadd.f32 0.0, %v6628
        %v6630 = vpop.f32.mrb[0].mxu0
        %6631 = vmatprep.mubr.bf16.mxu0 0
        %6632 = vmatmul.mubr.bf16.gmra.mrb[0].mxu0 %v6563
        %v6633 = vpop.f32.mrb[0].mxu0
        %v6634 = vadd.f32 0.0, %v6633
        %v6635 = vpop.f32.mrb[0].mxu0
        %v6636 = vpop.f32.mrb[0].mxu0
        %v6637 = vadd.f32 0.0, %v6636
        %v6638 = vpop.f32.mrb[0].mxu0
        %6639 = vmatprep.mubr.bf16.mxu0 0
        %6640 = vmatmul.mubr.bf16.gmra.mrb[0].mxu0 %v6564
        %v6641 = vpop.f32.mrb[0].mxu0
        %v6642 = vadd.f32 0.0, %v6641
        %v6643 = vpop.f32.mrb[0].mxu0
        %v6644 = vpop.f32.mrb[0].mxu0
        %v6645 = vadd.f32 0.0, %v6644
        %v6646 = vpop.f32.mrb[0].mxu0
        %6647 = vmatprep.mubr.bf16.mxu0 0
        %6648 = vmatmul.mubr.bf16.gmra.mrb[0].mxu0 %v6565
        %v6649 = vpop.f32.mrb[0].mxu0
        %v6650 = vadd.f32 0.0, %v6649
        %v6651 = vpop.f32.mrb[0].mxu0
        %v6652 = vpop.f32.mrb[0].mxu0
        %v6653 = vadd.f32 0.0, %v6652
        %v6654 = vpop.f32.mrb[0].mxu0
        %6655 = vmatprep.mubr.bf16.mxu0 0
        %6656 = vmatmul.mubr.bf16.gmra.mrb[0].mxu0 %v6566
        %v6657 = vpop.f32.mrb[0].mxu0
        %v6658 = vadd.f32 0.0, %v6657
        %v6659 = vpop.f32.mrb[0].mxu0
        %v6660 = vpop.f32.mrb[0].mxu0
        %v6661 = vadd.f32 0.0, %v6660
        %v6662 = vpop.f32.mrb[0].mxu0
        %6663 = vdwg.mxu0
        %v6664 = vrcp.pop %v6528
        %v6665 = vrcp.pop %v6530
        %v6666 = vrcp.pop %v6532
        %v6667 = vrcp.pop %v6534
        %v6668 = vrcp.pop %v6536
        %v6669 = vrcp.pop %v6538
        %v6670 = vrcp.pop %v6540
        %v6671 = vrcp.pop %v6542
        %v6672 = vrcp.pop %v6544
        %v6673 = vrcp.pop %v6546
        %v6674 = vrcp.pop %v6548
        %v6675 = vrcp.pop %v6550
        %v6676 = vrcp.pop %v6552
        %v6677 = vrcp.pop %v6554
        %v6678 = vrcp.pop %v6556
        %v6679 = vrcp.pop %v6558
        %v6680 = vmul.f32 %v6602, %v6664
        %v6681 = vmul.f32 %v6605, %v6665
        %v6682 = vmul.f32 %v6610, %v6666
        %v6683 = vmul.f32 %v6613, %v6667
        %v6684 = vmul.f32 %v6618, %v6668
        %v6685 = vmul.f32 %v6621, %v6669
        %v6686 = vmul.f32 %v6626, %v6670
        %v6687 = vmul.f32 %v6629, %v6671
        %v6688 = vmul.f32 %v6634, %v6672
        %v6689 = vmul.f32 %v6637, %v6673
        %v6690 = vmul.f32 %v6642, %v6674
        %v6691 = vmul.f32 %v6645, %v6675
        %v6692 = vmul.f32 %v6650, %v6676
        %v6693 = vmul.f32 %v6653, %v6677
        %v6694 = vmul.f32 %v6658, %v6678
        %v6695 = vmul.f32 %v6661, %v6679
        %6712 = vrot.lane.b32.xlu0 %v6680, 96
        %v6713 = vpop.permute.xlu0 %6712
        %6714 = vrot.lane.b32.xlu0 %v6681, 96
        %v6715 = vpop.permute.xlu0 %6714
        %6716 = vrot.lane.b32.xlu0 %v6682, 96
        %v6717 = vpop.permute.xlu0 %6716
        %6718 = vrot.lane.b32.xlu0 %v6683, 96
        %v6719 = vpop.permute.xlu0 %6718
        %6720 = vrot.lane.b32.xlu0 %v6684, 96
        %v6721 = vpop.permute.xlu0 %6720
        %6722 = vrot.lane.b32.xlu0 %v6685, 96
        %v6723 = vpop.permute.xlu0 %6722
        %6724 = vrot.lane.b32.xlu0 %v6686, 96
        %v6725 = vpop.permute.xlu0 %6724
        %6726 = vrot.lane.b32.xlu0 %v6687, 96
        %v6727 = vpop.permute.xlu0 %6726
        %6728 = vrot.lane.b32.xlu0 %v6688, 96
        %v6729 = vpop.permute.xlu0 %6728
        %6730 = vrot.lane.b32.xlu0 %v6689, 96
        %v6731 = vpop.permute.xlu0 %6730
        %6732 = vrot.lane.b32.xlu0 %v6690, 96
        %v6733 = vpop.permute.xlu0 %6732
        %6734 = vrot.lane.b32.xlu0 %v6691, 96
        %v6735 = vpop.permute.xlu0 %6734
        %6736 = vrot.lane.b32.xlu0 %v6692, 96
        %v6737 = vpop.permute.xlu0 %6736
        %6738 = vrot.lane.b32.xlu0 %v6693, 96
        %v6739 = vpop.permute.xlu0 %6738
        %6740 = vrot.lane.b32.xlu0 %v6694, 96
        %v6741 = vpop.permute.xlu0 %6740
        %6742 = vrot.lane.b32.xlu0 %v6695, 96
        %v6743 = vpop.permute.xlu0 %6742
        %6760 = vst.msk [vmem:[#allocation2 + $0x8] sm:$0xff] %vm4139, %v6713
        %6761 = vst.msk [vmem:[#allocation2 + $0x18] sm:$0xff] %vm4139, %v6715
        %6762 = vst.msk [vmem:[#allocation2 + $0x28] sm:$0xff] %vm4139, %v6717
        %6763 = vst.msk [vmem:[#allocation2 + $0x38] sm:$0xff] %vm4139, %v6719
        %6764 = vst.msk [vmem:[#allocation2 + $0x48] sm:$0xff] %vm4139, %v6721
        %6765 = vst.msk [vmem:[#allocation2 + $0x58] sm:$0xff] %vm4139, %v6723
        %6766 = vst.msk [vmem:[#allocation2 + $0x68] sm:$0xff] %vm4139, %v6725
        %6767 = vst.msk [vmem:[#allocation2 + $0x78] sm:$0xff] %vm4139, %v6727
        %6768 = vst.msk [vmem:[#allocation2 + $0x88] sm:$0xff] %vm4139, %v6729
        %6769 = vst.msk [vmem:[#allocation2 + $0x98] sm:$0xff] %vm4139, %v6731
        %6770 = vst.msk [vmem:[#allocation2 + $0xa8] sm:$0xff] %vm4139, %v6733
        %6771 = vst.msk [vmem:[#allocation2 + $0xb8] sm:$0xff] %vm4139, %v6735
        %6772 = vst.msk [vmem:[#allocation2 + $0xc8] sm:$0xff] %vm4139, %v6737
        %6773 = vst.msk [vmem:[#allocation2 + $0xd8] sm:$0xff] %vm4139, %v6739
        %6774 = vst.msk [vmem:[#allocation2 + $0xe8] sm:$0xff] %vm4139, %v6741
        %6775 = vst.msk [vmem:[#allocation2 + $0xf8] sm:$0xff] %vm4139, %v6743
        %v6776 = vld [vmem:[#allocation2] sm:$0xff]
        %v6777 = vld [vmem:[#allocation2 + $0x8] sm:$0xff]
        %v6778 = vld [vmem:[#allocation2 + $0x10] sm:$0xff]
        %v6779 = vld [vmem:[#allocation2 + $0x18] sm:$0xff]
        %v6780 = vld [vmem:[#allocation2 + $0x20] sm:$0xff]
        %v6781 = vld [vmem:[#allocation2 + $0x28] sm:$0xff]
        %v6782 = vld [vmem:[#allocation2 + $0x30] sm:$0xff]
        %v6783 = vld [vmem:[#allocation2 + $0x38] sm:$0xff]
        %v6784 = vld [vmem:[#allocation2 + $0x40] sm:$0xff]
        %v6785 = vld [vmem:[#allocation2 + $0x48] sm:$0xff]
        %v6786 = vld [vmem:[#allocation2 + $0x50] sm:$0xff]
        %v6787 = vld [vmem:[#allocation2 + $0x58] sm:$0xff]
        %v6788 = vld [vmem:[#allocation2 + $0x60] sm:$0xff]
        %v6789 = vld [vmem:[#allocation2 + $0x68] sm:$0xff]
        %v6790 = vld [vmem:[#allocation2 + $0x70] sm:$0xff]
        %v6791 = vld [vmem:[#allocation2 + $0x78] sm:$0xff]
        %v6792 = vld [vmem:[#allocation2 + $0x80] sm:$0xff]
        %v6793 = vld [vmem:[#allocation2 + $0x88] sm:$0xff]
        %v6794 = vld [vmem:[#allocation2 + $0x90] sm:$0xff]
        %v6795 = vld [vmem:[#allocation2 + $0x98] sm:$0xff]
        %v6796 = vld [vmem:[#allocation2 + $0xa0] sm:$0xff]
        %v6797 = vld [vmem:[#allocation2 + $0xa8] sm:$0xff]
        %v6798 = vld [vmem:[#allocation2 + $0xb0] sm:$0xff]
        %v6799 = vld [vmem:[#allocation2 + $0xb8] sm:$0xff]
        %v6800 = vld [vmem:[#allocation2 + $0xc0] sm:$0xff]
        %v6801 = vld [vmem:[#allocation2 + $0xc8] sm:$0xff]
        %v6802 = vld [vmem:[#allocation2 + $0xd0] sm:$0xff]
        %v6803 = vld [vmem:[#allocation2 + $0xd8] sm:$0xff]
        %v6804 = vld [vmem:[#allocation2 + $0xe0] sm:$0xff]
        %v6805 = vld [vmem:[#allocation2 + $0xe8] sm:$0xff]
        %v6806 = vld [vmem:[#allocation2 + $0xf0] sm:$0xff]
        %v6807 = vld [vmem:[#allocation2 + $0xf8] sm:$0xff]
        %v6808 = vpack.c.bf16 %v6778, %v6776
        %v6809 = vpack.c.bf16 %v6779, %v6777
        %v6810 = vpack.c.bf16 %v6782, %v6780
        %v6811 = vpack.c.bf16 %v6783, %v6781
        %v6812 = vpack.c.bf16 %v6786, %v6784
        %v6813 = vpack.c.bf16 %v6787, %v6785
        %v6814 = vpack.c.bf16 %v6790, %v6788
        %v6815 = vpack.c.bf16 %v6791, %v6789
        %v6816 = vpack.c.bf16 %v6794, %v6792
        %v6817 = vpack.c.bf16 %v6795, %v6793
        %v6818 = vpack.c.bf16 %v6798, %v6796
        %v6819 = vpack.c.bf16 %v6799, %v6797
        %v6820 = vpack.c.bf16 %v6802, %v6800
        %v6821 = vpack.c.bf16 %v6803, %v6801
        %v6822 = vpack.c.bf16 %v6806, %v6804
        %v6823 = vpack.c.bf16 %v6807, %v6805
        %v6824 = vld [vmem:[#allocation8] sm:$0xff]
        %v6825 = vld [vmem:[#allocation8 + $0x8] sm:$0xff]
        %v6826 = vld [vmem:[#allocation8 + $0x10] sm:$0xff]
        %v6827 = vld [vmem:[#allocation8 + $0x18] sm:$0xff]
        %v6828 = vld [vmem:[#allocation8 + $0x20] sm:$0xff]
        %v6829 = vld [vmem:[#allocation8 + $0x28] sm:$0xff]
        %v6830 = vld [vmem:[#allocation8 + $0x30] sm:$0xff]
        %v6831 = vld [vmem:[#allocation8 + $0x38] sm:$0xff]
        %v6832 = vld [vmem:[#allocation8 + $0x40] sm:$0xff]
        %v6833 = vld [vmem:[#allocation8 + $0x48] sm:$0xff]
        %v6834 = vld [vmem:[#allocation8 + $0x50] sm:$0xff]
        %v6835 = vld [vmem:[#allocation8 + $0x58] sm:$0xff]
        %v6836 = vld [vmem:[#allocation8 + $0x60] sm:$0xff]
        %v6837 = vld [vmem:[#allocation8 + $0x68] sm:$0xff]
        %v6838 = vld [vmem:[#allocation8 + $0x70] sm:$0xff]
        %v6839 = vld [vmem:[#allocation8 + $0x78] sm:$0xff]
        %v6840 = vld [vmem:[#allocation8 + $0x80] sm:$0xff]
        %v6841 = vld [vmem:[#allocation8 + $0x88] sm:$0xff]
        %v6842 = vld [vmem:[#allocation8 + $0x90] sm:$0xff]
        %v6843 = vld [vmem:[#allocation8 + $0x98] sm:$0xff]
        %v6844 = vld [vmem:[#allocation8 + $0xa0] sm:$0xff]
        %v6845 = vld [vmem:[#allocation8 + $0xa8] sm:$0xff]
        %v6846 = vld [vmem:[#allocation8 + $0xb0] sm:$0xff]
        %v6847 = vld [vmem:[#allocation8 + $0xb8] sm:$0xff]
        %v6848 = vld [vmem:[#allocation8 + $0xc0] sm:$0xff]
        %v6849 = vld [vmem:[#allocation8 + $0xc8] sm:$0xff]
        %v6850 = vld [vmem:[#allocation8 + $0xd0] sm:$0xff]
        %v6851 = vld [vmem:[#allocation8 + $0xd8] sm:$0xff]
        %v6852 = vld [vmem:[#allocation8 + $0xe0] sm:$0xff]
        %v6853 = vld [vmem:[#allocation8 + $0xe8] sm:$0xff]
        %v6854 = vld [vmem:[#allocation8 + $0xf0] sm:$0xff]
        %v6855 = vld [vmem:[#allocation8 + $0xf8] sm:$0xff]
        %v6888 = vunpack.c.l.b16 %v6824
        %v6889 = vunpack.c.h.b16 %v6824
        %v6890 = vunpack.c.l.b16 %v6825
        %v6891 = vunpack.c.h.b16 %v6825
        %v6892 = vunpack.c.l.b16 %v6826
        %v6893 = vunpack.c.h.b16 %v6826
        %v6894 = vunpack.c.l.b16 %v6827
        %v6895 = vunpack.c.h.b16 %v6827
        %v6896 = vunpack.c.l.b16 %v6828
        %v6897 = vunpack.c.h.b16 %v6828
        %v6898 = vunpack.c.l.b16 %v6829
        %v6899 = vunpack.c.h.b16 %v6829
        %v6900 = vunpack.c.l.b16 %v6830
        %v6901 = vunpack.c.h.b16 %v6830
        %v6902 = vunpack.c.l.b16 %v6831
        %v6903 = vunpack.c.h.b16 %v6831
        %v6904 = vunpack.c.l.b16 %v6832
        %v6905 = vunpack.c.h.b16 %v6832
        %v6906 = vunpack.c.l.b16 %v6833
        %v6907 = vunpack.c.h.b16 %v6833
        %v6908 = vunpack.c.l.b16 %v6834
        %v6909 = vunpack.c.h.b16 %v6834
        %v6910 = vunpack.c.l.b16 %v6835
        %v6911 = vunpack.c.h.b16 %v6835
        %v6912 = vunpack.c.l.b16 %v6836
        %v6913 = vunpack.c.h.b16 %v6836
        %v6914 = vunpack.c.l.b16 %v6837
        %v6915 = vunpack.c.h.b16 %v6837
        %v6916 = vunpack.c.l.b16 %v6838
        %v6917 = vunpack.c.h.b16 %v6838
        %v6918 = vunpack.c.l.b16 %v6839
        %v6919 = vunpack.c.h.b16 %v6839
        %v6920 = vunpack.c.l.b16 %v6840
        %v6921 = vunpack.c.h.b16 %v6840
        %v6922 = vunpack.c.l.b16 %v6841
        %v6923 = vunpack.c.h.b16 %v6841
        %v6924 = vunpack.c.l.b16 %v6842
        %v6925 = vunpack.c.h.b16 %v6842
        %v6926 = vunpack.c.l.b16 %v6843
        %v6927 = vunpack.c.h.b16 %v6843
        %v6928 = vunpack.c.l.b16 %v6844
        %v6929 = vunpack.c.h.b16 %v6844
        %v6930 = vunpack.c.l.b16 %v6845
        %v6931 = vunpack.c.h.b16 %v6845
        %v6932 = vunpack.c.l.b16 %v6846
        %v6933 = vunpack.c.h.b16 %v6846
        %v6934 = vunpack.c.l.b16 %v6847
        %v6935 = vunpack.c.h.b16 %v6847
        %v6936 = vunpack.c.l.b16 %v6848
        %v6937 = vunpack.c.h.b16 %v6848
        %v6938 = vunpack.c.l.b16 %v6849
        %v6939 = vunpack.c.h.b16 %v6849
        %v6940 = vunpack.c.l.b16 %v6850
        %v6941 = vunpack.c.h.b16 %v6850
        %v6942 = vunpack.c.l.b16 %v6851
        %v6943 = vunpack.c.h.b16 %v6851
        %v6944 = vunpack.c.l.b16 %v6852
        %v6945 = vunpack.c.h.b16 %v6852
        %v6946 = vunpack.c.l.b16 %v6853
        %v6947 = vunpack.c.h.b16 %v6853
        %v6948 = vunpack.c.l.b16 %v6854
        %v6949 = vunpack.c.h.b16 %v6854
        %v6950 = vunpack.c.l.b16 %v6855
        %v6951 = vunpack.c.h.b16 %v6855
        %v6952 = vpack.c.b16 %v6890, %v6888
        %v6953 = vpack.c.b16 %v6891, %v6889
        %v6954 = vpack.c.b16 %v6894, %v6892
        %v6955 = vpack.c.b16 %v6895, %v6893
        %v6956 = vpack.c.b16 %v6898, %v6896
        %v6957 = vpack.c.b16 %v6899, %v6897
        %v6958 = vpack.c.b16 %v6902, %v6900
        %v6959 = vpack.c.b16 %v6903, %v6901
        %v6960 = vpack.c.b16 %v6906, %v6904
        %v6961 = vpack.c.b16 %v6907, %v6905
        %v6962 = vpack.c.b16 %v6910, %v6908
        %v6963 = vpack.c.b16 %v6911, %v6909
        %v6964 = vpack.c.b16 %v6914, %v6912
        %v6965 = vpack.c.b16 %v6915, %v6913
        %v6966 = vpack.c.b16 %v6918, %v6916
        %v6967 = vpack.c.b16 %v6919, %v6917
        %v6968 = vpack.c.b16 %v6922, %v6920
        %v6969 = vpack.c.b16 %v6923, %v6921
        %v6970 = vpack.c.b16 %v6926, %v6924
        %v6971 = vpack.c.b16 %v6927, %v6925
        %v6972 = vpack.c.b16 %v6930, %v6928
        %v6973 = vpack.c.b16 %v6931, %v6929
        %v6974 = vpack.c.b16 %v6934, %v6932
        %v6975 = vpack.c.b16 %v6935, %v6933
        %v6976 = vpack.c.b16 %v6938, %v6936
        %v6977 = vpack.c.b16 %v6939, %v6937
        %v6978 = vpack.c.b16 %v6942, %v6940
        %v6979 = vpack.c.b16 %v6943, %v6941
        %v6980 = vpack.c.b16 %v6946, %v6944
        %v6981 = vpack.c.b16 %v6947, %v6945
        %v6982 = vpack.c.b16 %v6950, %v6948
        %v6983 = vpack.c.b16 %v6951, %v6949
        %7016 = vmatprep.subr.bf16.mxu0 %v6953
        %7017 = vmatpush1.bf16.msra.mxu0 %v6952
        %7018 = vmatprep.subr.bf16.mxu0 %v6955
        %7019 = vmatpush1.bf16.msra.mxu0 %v6954
        %7020 = vmatprep.subr.bf16.mxu0 %v6957
        %7021 = vmatpush1.bf16.msra.mxu0 %v6956
        %7022 = vmatprep.subr.bf16.mxu0 %v6959
        %7023 = vmatpush1.bf16.msra.mxu0 %v6958
        %7024 = vmatprep.subr.bf16.mxu0 %v6961
        %7025 = vmatpush1.bf16.msra.mxu0 %v6960
        %7026 = vmatprep.subr.bf16.mxu0 %v6963
        %7027 = vmatpush1.bf16.msra.mxu0 %v6962
        %7028 = vmatprep.subr.bf16.mxu0 %v6965
        %7029 = vmatpush1.bf16.msra.mxu0 %v6964
        %7030 = vmatprep.subr.bf16.mxu0 %v6967
        %7031 = vmatpush1.bf16.msra.mxu0 %v6966
        %7032 = vmatprep.subr.bf16.mxu0 %v6969
        %7033 = vmatpush1.bf16.msra.mxu0 %v6968
        %7034 = vmatprep.subr.bf16.mxu0 %v6971
        %7035 = vmatpush1.bf16.msra.mxu0 %v6970
        %7036 = vmatprep.subr.bf16.mxu0 %v6973
        %7037 = vmatpush1.bf16.msra.mxu0 %v6972
        %7038 = vmatprep.subr.bf16.mxu0 %v6975
        %7039 = vmatpush1.bf16.msra.mxu0 %v6974
        %7040 = vmatprep.subr.bf16.mxu0 %v6977
        %7041 = vmatpush1.bf16.msra.mxu0 %v6976
        %7042 = vmatprep.subr.bf16.mxu0 %v6979
        %7043 = vmatpush1.bf16.msra.mxu0 %v6978
        %7044 = vmatprep.subr.bf16.mxu0 %v6981
        %7045 = vmatpush1.bf16.msra.mxu0 %v6980
        %7046 = vmatprep.subr.bf16.mxu0 %v6983
        %7047 = vmatpush1.bf16.msra.mxu0 %v6982
        %7048 = vmatprep.mubr.bf16.mxu0 %v6809
        %7049 = vmatmul.mubr.bf16.gmra.mrb[0].mxu0 %v6808
        %v7050 = vpop.f32.mrb[0].mxu0
        %v7051 = vadd.f32 0.0, %v7050
        %v7052 = vpop.f32.mrb[0].mxu0
        %v7053 = vadd.f32 0.0, %v7052
        %v7054 = vpop.f32.mrb[0].mxu0
        %v7055 = vadd.f32 0.0, %v7054
        %v7056 = vpop.f32.mrb[0].mxu0
        %v7057 = vadd.f32 0.0, %v7056
        %7058 = vmatprep.mubr.bf16.mxu0 %v6811
        %7059 = vmatmul.mubr.bf16.gmra.mrb[0].mxu0 %v6810
        %v7060 = vpop.f32.mrb[0].mxu0
        %v7061 = vadd.f32 0.0, %v7060
        %v7062 = vpop.f32.mrb[0].mxu0
        %v7063 = vadd.f32 0.0, %v7062
        %v7064 = vpop.f32.mrb[0].mxu0
        %v7065 = vadd.f32 0.0, %v7064
        %v7066 = vpop.f32.mrb[0].mxu0
        %v7067 = vadd.f32 0.0, %v7066
        %7068 = vmatprep.mubr.bf16.mxu0 %v6813
        %7069 = vmatmul.mubr.bf16.gmra.mrb[0].mxu0 %v6812
        %v7070 = vpop.f32.mrb[0].mxu0
        %v7071 = vadd.f32 0.0, %v7070
        %v7072 = vpop.f32.mrb[0].mxu0
        %v7073 = vadd.f32 0.0, %v7072
        %v7074 = vpop.f32.mrb[0].mxu0
        %v7075 = vadd.f32 0.0, %v7074
        %v7076 = vpop.f32.mrb[0].mxu0
        %v7077 = vadd.f32 0.0, %v7076
        %7078 = vmatprep.mubr.bf16.mxu0 %v6815
        %7079 = vmatmul.mubr.bf16.gmra.mrb[0].mxu0 %v6814
        %v7080 = vpop.f32.mrb[0].mxu0
        %v7081 = vadd.f32 0.0, %v7080
        %v7082 = vpop.f32.mrb[0].mxu0
        %v7083 = vadd.f32 0.0, %v7082
        %v7084 = vpop.f32.mrb[0].mxu0
        %v7085 = vadd.f32 0.0, %v7084
        %v7086 = vpop.f32.mrb[0].mxu0
        %v7087 = vadd.f32 0.0, %v7086
        %7088 = vmatprep.mubr.bf16.mxu0 %v6817
        %7089 = vmatmul.mubr.bf16.gmra.mrb[0].mxu0 %v6816
        %v7090 = vpop.f32.mrb[0].mxu0
        %v7091 = vadd.f32 0.0, %v7090
        %v7092 = vpop.f32.mrb[0].mxu0
        %v7093 = vadd.f32 0.0, %v7092
        %v7094 = vpop.f32.mrb[0].mxu0
        %v7095 = vadd.f32 0.0, %v7094
        %v7096 = vpop.f32.mrb[0].mxu0
        %v7097 = vadd.f32 0.0, %v7096
        %7098 = vmatprep.mubr.bf16.mxu0 %v6819
        %7099 = vmatmul.mubr.bf16.gmra.mrb[0].mxu0 %v6818
        %v7100 = vpop.f32.mrb[0].mxu0
        %v7101 = vadd.f32 0.0, %v7100
        %v7102 = vpop.f32.mrb[0].mxu0
        %v7103 = vadd.f32 0.0, %v7102
        %v7104 = vpop.f32.mrb[0].mxu0
        %v7105 = vadd.f32 0.0, %v7104
        %v7106 = vpop.f32.mrb[0].mxu0
        %v7107 = vadd.f32 0.0, %v7106
        %7108 = vmatprep.mubr.bf16.mxu0 %v6821
        %7109 = vmatmul.mubr.bf16.gmra.mrb[0].mxu0 %v6820
        %v7110 = vpop.f32.mrb[0].mxu0
        %v7111 = vadd.f32 0.0, %v7110
        %v7112 = vpop.f32.mrb[0].mxu0
        %v7113 = vadd.f32 0.0, %v7112
        %v7114 = vpop.f32.mrb[0].mxu0
        %v7115 = vadd.f32 0.0, %v7114
        %v7116 = vpop.f32.mrb[0].mxu0
        %v7117 = vadd.f32 0.0, %v7116
        %7118 = vmatprep.mubr.bf16.mxu0 %v6823
        %7119 = vmatmul.mubr.bf16.gmra.mrb[0].mxu0 %v6822
        %v7120 = vpop.f32.mrb[0].mxu0
        %v7121 = vadd.f32 0.0, %v7120
        %v7122 = vpop.f32.mrb[0].mxu0
        %v7123 = vadd.f32 0.0, %v7122
        %v7124 = vpop.f32.mrb[0].mxu0
        %v7125 = vadd.f32 0.0, %v7124
        %v7126 = vpop.f32.mrb[0].mxu0
        %v7127 = vadd.f32 0.0, %v7126
        %7128 = vdwg.mxu0
        %7129 = vst [vmem:[%s300] sm:$0xff] %v7051
        %7130 = vst [vmem:[%s300 + $0x8] sm:$0xff] %v7053
        %7131 = vst [vmem:[%s300 + $0x10] sm:$0xff] %v7055
        %7132 = vst [vmem:[%s300 + $0x18] sm:$0xff] %v7057
        %7133 = vst [vmem:[%s300 + $0x20] sm:$0xff] %v7061
        %7134 = vst [vmem:[%s300 + $0x28] sm:$0xff] %v7063
        %7135 = vst [vmem:[%s300 + $0x30] sm:$0xff] %v7065
        %7136 = vst [vmem:[%s300 + $0x38] sm:$0xff] %v7067
        %7137 = vst [vmem:[%s300 + $0x40] sm:$0xff] %v7071
        %7138 = vst [vmem:[%s300 + $0x48] sm:$0xff] %v7073
        %7139 = vst [vmem:[%s300 + $0x50] sm:$0xff] %v7075
        %7140 = vst [vmem:[%s300 + $0x58] sm:$0xff] %v7077
        %7141 = vst [vmem:[%s300 + $0x60] sm:$0xff] %v7081
        %7142 = vst [vmem:[%s300 + $0x68] sm:$0xff] %v7083
        %7143 = vst [vmem:[%s300 + $0x70] sm:$0xff] %v7085
        %7144 = vst [vmem:[%s300 + $0x78] sm:$0xff] %v7087
        %7145 = vst [vmem:[%s300 + $0x80] sm:$0xff] %v7091
        %7146 = vst [vmem:[%s300 + $0x88] sm:$0xff] %v7093
        %7147 = vst [vmem:[%s300 + $0x90] sm:$0xff] %v7095
        %7148 = vst [vmem:[%s300 + $0x98] sm:$0xff] %v7097
        %7149 = vst [vmem:[%s300 + $0xa0] sm:$0xff] %v7101
        %7150 = vst [vmem:[%s300 + $0xa8] sm:$0xff] %v7103
        %7151 = vst [vmem:[%s300 + $0xb0] sm:$0xff] %v7105
        %7152 = vst [vmem:[%s300 + $0xb8] sm:$0xff] %v7107
        %7153 = vst [vmem:[%s300 + $0xc0] sm:$0xff] %v7111
        %7154 = vst [vmem:[%s300 + $0xc8] sm:$0xff] %v7113
        %7155 = vst [vmem:[%s300 + $0xd0] sm:$0xff] %v7115
        %7156 = vst [vmem:[%s300 + $0xd8] sm:$0xff] %v7117
        %7157 = vst [vmem:[%s300 + $0xe0] sm:$0xff] %v7121
        %7158 = vst [vmem:[%s300 + $0xe8] sm:$0xff] %v7123
        %7159 = vst [vmem:[%s300 + $0xf0] sm:$0xff] %v7125
        %7160 = vst [vmem:[%s300 + $0xf8] sm:$0xff] %v7127
        %s7161 = sand.u32 %s142, 1
        %s7162 = scalar_lea.sflag [#allocation5], %s7161
        %s7163 = sand.u32 %s142, 1
        %s7164 = smul.addr %s7163, 256
        %s7165 = scalar_lea.vmem [#allocation12], %s7164
        // Predicated region
        $region61: #{tpu_custom_call.1} parent=39 // pred_check
          %p7166 = pneg %p152
        $region62: #{tpu_custom_call.1} parent=39 // pred_check_branch
          %7168 = sbr.rel (%p7166) target = $region64
        $region63: #{tpu_custom_call.1} parent=39 // pred_region
          %s7170 = ssub.s32 4096, 4096
          %7171 = vsyncadd %s7162, %s7170
          %s7172 = smul.addr %s24, 32
          %s7173 = smul.addr %s7172, 128
          %s7174 = scalar_lea.hbm %s5, %s7173
          %s7175 = sshll.u32 %s7165, 4
          %s7176 = int_to_ptr.vmem [resolvable:$true] %s7175
          %7181 = dma.vmem_to_hbm [thread:$0]  %s7176, 4096, %s7174, %s7162, 256, 256, 16
        $region64: #{tpu_custom_call.1} parent=39 // pred_fallthru
          _
      $region40: #{tpu_custom_call.1} parent=5 // pred_fallthru
        _
      %p7182 = scmp.le.s32.totalorder 2, %s19
      // Predicated region
      $region65: #{tpu_custom_call.1} parent=5 // pred_check
        %p7183 = pneg %p7182
      $region66: #{tpu_custom_call.1} parent=5 // pred_check_branch
        %7185 = sbr.rel (%p7183) target = $region68
      $region67: #{tpu_custom_call.1} parent=5 // pred_region
        %s7186 = ssub.s32 %s19, 2
        // Predicated region
        $region69: #{tpu_custom_call.1} parent=67 // pred_check
          %p7187 = pneg %p158
        $region70: #{tpu_custom_call.1} parent=67 // pred_check_branch
          %7189 = sbr.rel (%p7187) target = $region72
        $region71: #{tpu_custom_call.1} parent=67 // pred_region
          %s7190 = sand.u32 %s143, 1
          %s7191 = scalar_lea.sflag [#allocation5], %s7190
          %s7192 = sand.u32 %s143, 1
          %s7193 = smul.addr %s7192, 256
          %s7194 = scalar_lea.vmem [#allocation12], %s7193
          %7195 = dma.done %s7191, 4096
        $region72: #{tpu_custom_call.1} parent=67 // pred_fallthru
          _
      $region68: #{tpu_custom_call.1} parent=5 // pred_fallthru
        _
    $region6: #{tpu_custom_call.1} parent=1 // loop_footer
      %s23 = sadd.s32 1, %s19
    $region7: #{tpu_custom_call.1} parent=1 // loop_footer_branch
      %18 = sbr.rel target = $region3
    $region8: #{tpu_custom_call.1} parent=1 // loop_exit
      _
    %7196 = vsyncpa [#allocation4], 1
    %s7197 = scalar_lea.sflag [#allocation4], 1
    %7198 = vsyncpa %s7197, 1
    %7199 = vsyncpa [#allocation7], 1
    %7200 = vsyncpa [#allocation10], 1
    %7201 = vsyncpa [#allocation5], 1
    %s7202 = scalar_lea.sflag [#allocation5], 1
    %7203 = vsyncpa %s7202, 1

</llo_original>
